<compile_context>
chip_gen: v7x
topology: tpu7x:2x2x1
jax: 0.10.0
libtpu: 0.0.40
codegen_flags: <defaults>
</compile_context>

<pallas_src>
import math
import numpy as np
import jax
import jax.numpy as jnp
from jax import lax
from jax.experimental import pallas as pl
from jax.experimental.pallas import tpu as pltpu

EMBED = 300          # self.embedding_size
OUT_SIZE = 2         # self.out_size
STRIDE = 2           # self.stride
LANE = 128
MAX_BATCH_TILE = 512


def _out_len(n, k, stride=STRIDE):
    # length after VALID conv / pool with window k, stride 2, dilation 1
    return (n - (k - 1) - 1) // stride + 1


def _round_up(n, m):
    return ((n + m - 1) // m) * m


# ----------------------------------------------------------------------------------
# Host-side folding of conv / pool / fc parameters into lane-aligned matmul operands
# (channel-packed layout: column index for (o, l) is o*Lc + l, then padded to 128).
# ----------------------------------------------------------------------------------
def build_folded_params(params, seq_len, kernel_sizes):
    C, E, O = seq_len, EMBED, OUT_SIZE
    total = sum(_out_len(_out_len(E, k), k) for k in kernel_sizes)
    fc_w = np.asarray(params["fc_w"], np.float32).reshape(O, total)  # flat idx = o*total + p
    fc_b = float(np.asarray(params["fc_b"], np.float32).reshape(()))

    folded = []
    off = 0
    for (W, bvec), k in zip(params["convs"], kernel_sizes):
        W = np.asarray(W, np.float32)        # (O, C, k)
        bvec = np.asarray(bvec, np.float32)  # (O,)
        Lc = _out_len(E, k)
        Lp = _out_len(Lc, k)
        Wc = _round_up(O * Lc, LANE)         # packed: 384 instead of 512
        Wp = _round_up(O * Lp, LANE)

        # Folded conv: conv[b, o, l] = sum_{c,j} W[o,c,j] * x[b, c, 2l+j]
        #   => (B, C*E) @ Wf with Wf[c*E + 2l + j, o*Lc + l] = W[o, c, j]
        Wf = np.zeros((C * E, Wc), np.float32)
        l = np.arange(Lc)
        for o in range(O):
            cols = o * Lc + l
            for c in range(C):
                for j in range(k):
                    Wf[c * E + 2 * l + j, cols] = W[o, c, j]

        # Conv bias row, zero in padded columns (keeps relu(pad)=0 invariant).
        brow = np.zeros((1, Wc), np.float32)
        for o in range(O):
            brow[0, o * Lc:o * Lc + Lc] = bvec[o]

        # Pooling gathers (one-hot, exact in bf16): P[j, o*Lc + 2p + j, o*Lp + p] = 1.
        P = np.zeros((k, Wc, Wp), np.float32)
        p = np.arange(Lp)
        for j in range(k):
            for o in range(O):
                P[j, o * Lc + 2 * p + j, o * Lp + p] = 1.0

        # fc fold: union flat index == o*total + (off + p); weights replicated across
        # 128 lanes so the fc output block is lane-dense; pad rows stay zero.
        F = np.zeros((Wp, LANE), np.float32)
        for o in range(O):
            F[o * Lp:o * Lp + Lp, :] = fc_w[o, off:off + Lp][:, None]

        folded.append(dict(
            k=k,
            Wf=jnp.asarray(Wf, jnp.bfloat16),
            brow=jnp.asarray(brow, jnp.float32),
            P=jnp.asarray(P, jnp.bfloat16),
            F=jnp.asarray(F, jnp.bfloat16),
        ))
        off += Lp

    fcb = jnp.full((1, LANE), fc_b, jnp.float32)
    return folded, fcb


# ----------------------------------------------------------------------------------
# Kernel
# ----------------------------------------------------------------------------------
def _make_kernel(kernel_sizes, B_tile):
    nk = len(kernel_sizes)

    def kernel(*refs):
        x_ref = refs[0]                         # (B_tile, C*E)  bf16
        per_ks = refs[1:1 + 4 * nk]             # [Wf, brow, P, F] per kernel size
        fcb_ref = refs[1 + 4 * nk]              # (1, 128) f32
        out_ref = refs[2 + 4 * nk]              # (B_tile, 128) bf16

        x = x_ref[...]                          # bf16
        z = None
        for idx, k in enumerate(kernel_sizes):
            wf_ref, brow_ref, p_ref, f_ref = per_ks[4 * idx:4 * idx + 4]

            # Conv1d(in=C, out=O, kernel=k, stride=2): one wide bf16 MXU dot.
            conv = jnp.dot(x, wf_ref[...], preferred_element_type=jnp.float32)
            r = jnp.maximum(conv + brow_ref[...], 0.0)          # bias + ReLU, (B, Wc)
            r16 = r.astype(jnp.bfloat16)

            # MaxPool1d(kernel=k, stride=2): bf16 one-hot gather dots + running max.
            pooled = jnp.dot(r16, p_ref[0], preferred_element_type=jnp.float32)
            for j in range(1, k):
                pooled = jnp.maximum(
                    pooled, jnp.dot(r16, p_ref[j], preferred_element_type=jnp.float32))

            # fc contribution: lane-replicated bf16 weights -> lane-dense (B, 128) partial.
            contrib = jnp.dot(pooled.astype(jnp.bfloat16), f_ref[...],
                              preferred_element_type=jnp.float32)
            z = contrib if z is None else z + contrib

        # TODO(synk): nn.Dropout(0.25) is identity in eval mode; training-mode RNG masking omitted.
        out_ref[...] = jax.nn.sigmoid(z + fcb_ref[...]).astype(out_ref.dtype)

    return kernel


# ----------------------------------------------------------------------------------
# Parameters (same shapes as the nn.Module) and forward wrappers
# ----------------------------------------------------------------------------------
def init_params(key, seq_len, num_words, kernel_sizes):
    keys = jax.random.split(key, 3 + 2 * len(kernel_sizes))
    emb = jax.random.normal(keys[0], (num_words + 1, EMBED), jnp.float32)
    emb = emb.at[0].set(0.0)                                   # padding_idx=0
    convs = []
    for i, k in enumerate(kernel_sizes):
        bound = 1.0 / math.sqrt(seq_len * k)
        W = jax.random.uniform(keys[1 + 2 * i], (OUT_SIZE, seq_len, k),
                               jnp.float32, -bound, bound)
        bvec = jax.random.uniform(keys[2 + 2 * i], (OUT_SIZE,),
                                  jnp.float32, -bound, bound)
        convs.append((W, bvec))
    total = sum(_out_len(_out_len(EMBED, k), k) for k in kernel_sizes)
    fc_in = total * OUT_SIZE                                   # == in_features_fc()
    fb = 1.0 / math.sqrt(fc_in)
    fc_w = jax.random.uniform(keys[-2], (1, fc_in), jnp.float32, -fb, fb)
    fc_b = jax.random.uniform(keys[-1], (1,), jnp.float32, -fb, fb)
    return dict(embedding=emb, convs=convs, fc_w=fc_w, fc_b=fc_b, total=total)


def make_forward_fn(params, seq_len, kernel_sizes):
    """Folds conv/pool/fc params once on the host and returns a jitted forward(tokens)."""
    kernel_sizes = tuple(kernel_sizes)
    folded, fcb = build_folded_params(params, seq_len, kernel_sizes)
    emb = params["embedding"]
    CE = seq_len * EMBED

    def _forward(tokens):
        B = tokens.shape[0]
        # Embedding lookup stays as plain-JAX glue (table gather); all hot-path compute
        # is in-kernel.  Flatten (B, C, E) -> (B, C*E) row-major so flat idx == c*E + pos.
        x = emb[tokens].reshape(B, CE).astype(jnp.bfloat16)

        # Batch tiling: grid over batch -> DMA/compute pipelining + megacore on v7x.
        if B <= MAX_BATCH_TILE:
            B_tile, B_pad = B, B             # block == full dim (allowed even if B % 8 != 0)
        else:
            B_tile = MAX_BATCH_TILE
            B_pad = _round_up(B, B_tile)
            x = jnp.pad(x, ((0, B_pad - B), (0, 0)))
        num_tiles = B_pad // B_tile

        inputs = [x]
        in_specs = [pl.BlockSpec((B_tile, CE), lambda i: (i, 0))]
        for f in folded:
            inputs += [f["Wf"], f["brow"], f["P"], f["F"]]
            in_specs += [
                pl.BlockSpec(f["Wf"].shape, lambda i: (0, 0)),
                pl.BlockSpec(f["brow"].shape, lambda i: (0, 0)),
                pl.BlockSpec(f["P"].shape, lambda i: (0, 0, 0)),
                pl.BlockSpec(f["F"].shape, lambda i: (0, 0)),
            ]
        inputs.append(fcb)
        in_specs.append(pl.BlockSpec((1, LANE), lambda i: (0, 0)))

        out = pl.pallas_call(
            _make_kernel(kernel_sizes, B_tile),
            out_shape=jax.ShapeDtypeStruct((B_pad, LANE), jnp.bfloat16),
            grid=(num_tiles,),
            in_specs=in_specs,
            out_specs=pl.BlockSpec((B_tile, LANE), lambda i: (i, 0)),
            compiler_params=pltpu.CompilerParams(
                dimension_semantics=("parallel",),
                vmem_limit_bytes=32 * 1024 * 1024,
            ),
        )(*inputs)
        # All 128 output lanes carry the same value; take lane 0 and the valid rows.
        return out[:B, 0].astype(jnp.float32).reshape(B)       # torch .squeeze()

    return jax.jit(_forward)


def reference_forward(tokens, params, kernel_sizes):
    """Pure-JAX (f32) reference of the PyTorch forward (eval mode)."""
    x = params["embedding"][tokens]                            # (B, C, E)
    outs = []
    for (W, b), k in zip(params["convs"], kernel_sizes):
        conv = lax.conv_general_dilated(
            x, W, window_strides=(STRIDE,), padding="VALID",
            dimension_numbers=("NCH", "OIH", "NCH"))
        conv = conv + b[None, :, None]
        r = jax.nn.relu(conv)
        pooled = lax.reduce_window(r, -jnp.inf, lax.max,
                                   (1, 1, k), (1, 1, STRIDE), "VALID")
        outs.append(pooled)
    union = jnp.concatenate(outs, axis=2)
    flat = union.reshape(union.shape[0], -1)
    z = flat @ params["fc_w"].T + params["fc_b"]
    return jax.nn.sigmoid(z).squeeze()


if __name__ == "__main__":
    seq_len = 8
    num_words = 50
    kernel_sizes = [3, 4]
    batch = 2

    key = jax.random.PRNGKey(0)
    pkey, tkey = jax.random.split(key)
    params = init_params(pkey, seq_len, num_words, kernel_sizes)
    tokens = jax.random.randint(tkey, (batch, seq_len), 0, num_words + 1, dtype=jnp.int32)

    forward = make_forward_fn(params, seq_len, kernel_sizes)   # folds/uploads consts once
    out = jax.block_until_ready(forward(tokens))

    ref = jax.block_until_ready(reference_forward(tokens, params, kernel_sizes))
    assert out.shape == (batch,), out.shape
    assert bool(jnp.all(jnp.isfinite(out)))
    assert bool(jnp.allclose(out, ref, atol=1e-2, rtol=1e-2)), (out, ref)

    print("KERNEL_OK")
</pallas_src>

<mosaic_0001>
module attributes {stable_mosaic.version = 11 : i64} {
  func.func @kernel(%arg0: i32, %arg1: memref<2x2400xbf16, #tpu.memory_space<vmem>>, %arg2: memref<2400x384xbf16, #tpu.memory_space<vmem>>, %arg3: memref<1x384xf32, #tpu.memory_space<vmem>>, %arg4: memref<3x384x256xbf16, #tpu.memory_space<vmem>>, %arg5: memref<256x128xbf16, #tpu.memory_space<vmem>>, %arg6: memref<2400x384xbf16, #tpu.memory_space<vmem>>, %arg7: memref<1x384xf32, #tpu.memory_space<vmem>>, %arg8: memref<4x384x256xbf16, #tpu.memory_space<vmem>>, %arg9: memref<256x128xbf16, #tpu.memory_space<vmem>>, %arg10: memref<1x128xf32, #tpu.memory_space<vmem>>, %arg11: memref<2x128xbf16, #tpu.memory_space<vmem>>) attributes {dimension_semantics = [#tpu.dimension_semantics<parallel>], iteration_bounds = array<i64: 1>, scalar_prefetch = 0 : i64, scratch_operands = 0 : i64, tpu.core_type = #tpu.core_type<tc>, window_params = [{transform_indices = @transform_0, window_bounds = array<i64: 2, 2400>}, {pipeline_mode = #tpu.pipeline_mode<synchronous>, transform_indices = @transform_1, window_bounds = array<i64: 2400, 384>}, {pipeline_mode = #tpu.pipeline_mode<synchronous>, transform_indices = @transform_2, window_bounds = array<i64: 1, 384>}, {pipeline_mode = #tpu.pipeline_mode<synchronous>, transform_indices = @transform_3, window_bounds = array<i64: 3, 384, 256>}, {pipeline_mode = #tpu.pipeline_mode<synchronous>, transform_indices = @transform_4, window_bounds = array<i64: 256, 128>}, {pipeline_mode = #tpu.pipeline_mode<synchronous>, transform_indices = @transform_5, window_bounds = array<i64: 2400, 384>}, {pipeline_mode = #tpu.pipeline_mode<synchronous>, transform_indices = @transform_6, window_bounds = array<i64: 1, 384>}, {pipeline_mode = #tpu.pipeline_mode<synchronous>, transform_indices = @transform_7, window_bounds = array<i64: 4, 384, 256>}, {pipeline_mode = #tpu.pipeline_mode<synchronous>, transform_indices = @transform_8, window_bounds = array<i64: 256, 128>}, {pipeline_mode = #tpu.pipeline_mode<synchronous>, transform_indices = @transform_9, window_bounds = array<i64: 1, 128>}, {transform_indices = @transform_10, window_bounds = array<i64: 2, 128>}]} {
    %c0 = arith.constant 0 : index
    %c0_0 = arith.constant 0 : index
    %0 = vector.load %arg1[%c0, %c0_0] : memref<2x2400xbf16, #tpu.memory_space<vmem>>, vector<2x2400xbf16>
    %c0_1 = arith.constant 0 : index
    %c0_2 = arith.constant 0 : index
    %1 = vector.load %arg2[%c0_1, %c0_2] : memref<2400x384xbf16, #tpu.memory_space<vmem>>, vector<2400x384xbf16>
    %cst = arith.constant dense<0.000000e+00> : vector<2x384xf32>
    %2 = tpu.matmul %0, %1, %cst {dimension_numbers = #tpu.dot_dimension_numbers<[1], [0], [0], [1], [0, 0, 1, 1], [], []>} : vector<2x2400xbf16>, vector<2400x384xbf16>, vector<2x384xf32> -> vector<2x384xf32>
    %c0_3 = arith.constant 0 : index
    %c0_4 = arith.constant 0 : index
    %3 = vector.load %arg3[%c0_3, %c0_4] : memref<1x384xf32, #tpu.memory_space<vmem>>, vector<1x384xf32>
    %4 = vector.broadcast %3 : vector<1x384xf32> to vector<2x384xf32>
    %5 = arith.addf %2, %4 : vector<2x384xf32>
    %cst_5 = arith.constant 0.000000e+00 : f32
    %6 = vector.broadcast %cst_5 : f32 to vector<2x384xf32>
    %7 = arith.maximumf %5, %6 : vector<2x384xf32>
    %8 = arith.truncf %7 : vector<2x384xf32> to vector<2x384xbf16>
    %c0_6 = arith.constant 0 : index
    %c0_7 = arith.constant 0 : index
    %c0_8 = arith.constant 0 : index
    %9 = vector.load %arg4[%c0_6, %c0_7, %c0_8] : memref<3x384x256xbf16, #tpu.memory_space<vmem>>, vector<1x384x256xbf16>
    %10 = vector.shape_cast %9 : vector<1x384x256xbf16> to vector<384x256xbf16>
    %cst_9 = arith.constant dense<0.000000e+00> : vector<2x256xf32>
    %11 = tpu.matmul %8, %10, %cst_9 {dimension_numbers = #tpu.dot_dimension_numbers<[1], [0], [0], [1], [0, 0, 1, 1], [], []>} : vector<2x384xbf16>, vector<384x256xbf16>, vector<2x256xf32> -> vector<2x256xf32>
    %c1 = arith.constant 1 : index
    %c0_10 = arith.constant 0 : index
    %c0_11 = arith.constant 0 : index
    %12 = vector.load %arg4[%c1, %c0_10, %c0_11] : memref<3x384x256xbf16, #tpu.memory_space<vmem>>, vector<1x384x256xbf16>
    %13 = vector.shape_cast %12 : vector<1x384x256xbf16> to vector<384x256xbf16>
    %cst_12 = arith.constant dense<0.000000e+00> : vector<2x256xf32>
    %14 = tpu.matmul %8, %13, %cst_12 {dimension_numbers = #tpu.dot_dimension_numbers<[1], [0], [0], [1], [0, 0, 1, 1], [], []>} : vector<2x384xbf16>, vector<384x256xbf16>, vector<2x256xf32> -> vector<2x256xf32>
    %15 = arith.maximumf %11, %14 : vector<2x256xf32>
    %c2 = arith.constant 2 : index
    %c0_13 = arith.constant 0 : index
    %c0_14 = arith.constant 0 : index
    %16 = vector.load %arg4[%c2, %c0_13, %c0_14] : memref<3x384x256xbf16, #tpu.memory_space<vmem>>, vector<1x384x256xbf16>
    %17 = vector.shape_cast %16 : vector<1x384x256xbf16> to vector<384x256xbf16>
    %cst_15 = arith.constant dense<0.000000e+00> : vector<2x256xf32>
    %18 = tpu.matmul %8, %17, %cst_15 {dimension_numbers = #tpu.dot_dimension_numbers<[1], [0], [0], [1], [0, 0, 1, 1], [], []>} : vector<2x384xbf16>, vector<384x256xbf16>, vector<2x256xf32> -> vector<2x256xf32>
    %19 = arith.maximumf %15, %18 : vector<2x256xf32>
    %20 = arith.truncf %19 : vector<2x256xf32> to vector<2x256xbf16>
    %c0_16 = arith.constant 0 : index
    %c0_17 = arith.constant 0 : index
    %21 = vector.load %arg5[%c0_16, %c0_17] : memref<256x128xbf16, #tpu.memory_space<vmem>>, vector<256x128xbf16>
    %cst_18 = arith.constant dense<0.000000e+00> : vector<2x128xf32>
    %22 = tpu.matmul %20, %21, %cst_18 {dimension_numbers = #tpu.dot_dimension_numbers<[1], [0], [0], [1], [0, 0, 1, 1], [], []>} : vector<2x256xbf16>, vector<256x128xbf16>, vector<2x128xf32> -> vector<2x128xf32>
    %c0_19 = arith.constant 0 : index
    %c0_20 = arith.constant 0 : index
    %23 = vector.load %arg6[%c0_19, %c0_20] : memref<2400x384xbf16, #tpu.memory_space<vmem>>, vector<2400x384xbf16>
    %cst_21 = arith.constant dense<0.000000e+00> : vector<2x384xf32>
    %24 = tpu.matmul %0, %23, %cst_21 {dimension_numbers = #tpu.dot_dimension_numbers<[1], [0], [0], [1], [0, 0, 1, 1], [], []>} : vector<2x2400xbf16>, vector<2400x384xbf16>, vector<2x384xf32> -> vector<2x384xf32>
    %c0_22 = arith.constant 0 : index
    %c0_23 = arith.constant 0 : index
    %25 = vector.load %arg7[%c0_22, %c0_23] : memref<1x384xf32, #tpu.memory_space<vmem>>, vector<1x384xf32>
    %26 = vector.broadcast %25 : vector<1x384xf32> to vector<2x384xf32>
    %27 = arith.addf %24, %26 : vector<2x384xf32>
    %cst_24 = arith.constant 0.000000e+00 : f32
    %28 = vector.broadcast %cst_24 : f32 to vector<2x384xf32>
    %29 = arith.maximumf %27, %28 : vector<2x384xf32>
    %30 = arith.truncf %29 : vector<2x384xf32> to vector<2x384xbf16>
    %c0_25 = arith.constant 0 : index
    %c0_26 = arith.constant 0 : index
    %c0_27 = arith.constant 0 : index
    %31 = vector.load %arg8[%c0_25, %c0_26, %c0_27] : memref<4x384x256xbf16, #tpu.memory_space<vmem>>, vector<1x384x256xbf16>
    %32 = vector.shape_cast %31 : vector<1x384x256xbf16> to vector<384x256xbf16>
    %cst_28 = arith.constant dense<0.000000e+00> : vector<2x256xf32>
    %33 = tpu.matmul %30, %32, %cst_28 {dimension_numbers = #tpu.dot_dimension_numbers<[1], [0], [0], [1], [0, 0, 1, 1], [], []>} : vector<2x384xbf16>, vector<384x256xbf16>, vector<2x256xf32> -> vector<2x256xf32>
    %c1_29 = arith.constant 1 : index
    %c0_30 = arith.constant 0 : index
    %c0_31 = arith.constant 0 : index
    %34 = vector.load %arg8[%c1_29, %c0_30, %c0_31] : memref<4x384x256xbf16, #tpu.memory_space<vmem>>, vector<1x384x256xbf16>
    %35 = vector.shape_cast %34 : vector<1x384x256xbf16> to vector<384x256xbf16>
    %cst_32 = arith.constant dense<0.000000e+00> : vector<2x256xf32>
    %36 = tpu.matmul %30, %35, %cst_32 {dimension_numbers = #tpu.dot_dimension_numbers<[1], [0], [0], [1], [0, 0, 1, 1], [], []>} : vector<2x384xbf16>, vector<384x256xbf16>, vector<2x256xf32> -> vector<2x256xf32>
    %37 = arith.maximumf %33, %36 : vector<2x256xf32>
    %c2_33 = arith.constant 2 : index
    %c0_34 = arith.constant 0 : index
    %c0_35 = arith.constant 0 : index
    %38 = vector.load %arg8[%c2_33, %c0_34, %c0_35] : memref<4x384x256xbf16, #tpu.memory_space<vmem>>, vector<1x384x256xbf16>
    %39 = vector.shape_cast %38 : vector<1x384x256xbf16> to vector<384x256xbf16>
    %cst_36 = arith.constant dense<0.000000e+00> : vector<2x256xf32>
    %40 = tpu.matmul %30, %39, %cst_36 {dimension_numbers = #tpu.dot_dimension_numbers<[1], [0], [0], [1], [0, 0, 1, 1], [], []>} : vector<2x384xbf16>, vector<384x256xbf16>, vector<2x256xf32> -> vector<2x256xf32>
    %41 = arith.maximumf %37, %40 : vector<2x256xf32>
    %c3 = arith.constant 3 : index
    %c0_37 = arith.constant 0 : index
    %c0_38 = arith.constant 0 : index
    %42 = vector.load %arg8[%c3, %c0_37, %c0_38] : memref<4x384x256xbf16, #tpu.memory_space<vmem>>, vector<1x384x256xbf16>
    %43 = vector.shape_cast %42 : vector<1x384x256xbf16> to vector<384x256xbf16>
    %cst_39 = arith.constant dense<0.000000e+00> : vector<2x256xf32>
    %44 = tpu.matmul %30, %43, %cst_39 {dimension_numbers = #tpu.dot_dimension_numbers<[1], [0], [0], [1], [0, 0, 1, 1], [], []>} : vector<2x384xbf16>, vector<384x256xbf16>, vector<2x256xf32> -> vector<2x256xf32>
    %45 = arith.maximumf %41, %44 : vector<2x256xf32>
    %46 = arith.truncf %45 : vector<2x256xf32> to vector<2x256xbf16>
    %c0_40 = arith.constant 0 : index
    %c0_41 = arith.constant 0 : index
    %47 = vector.load %arg9[%c0_40, %c0_41] : memref<256x128xbf16, #tpu.memory_space<vmem>>, vector<256x128xbf16>
    %cst_42 = arith.constant dense<0.000000e+00> : vector<2x128xf32>
    %48 = tpu.matmul %46, %47, %cst_42 {dimension_numbers = #tpu.dot_dimension_numbers<[1], [0], [0], [1], [0, 0, 1, 1], [], []>} : vector<2x256xbf16>, vector<256x128xbf16>, vector<2x128xf32> -> vector<2x128xf32>
    %49 = arith.addf %22, %48 : vector<2x128xf32>
    %c0_43 = arith.constant 0 : index
    %c0_44 = arith.constant 0 : index
    %50 = vector.load %arg10[%c0_43, %c0_44] : memref<1x128xf32, #tpu.memory_space<vmem>>, vector<1x128xf32>
    %51 = vector.broadcast %50 : vector<1x128xf32> to vector<2x128xf32>
    %52 = arith.addf %49, %51 : vector<2x128xf32>
    %53 = arith.negf %52 : vector<2x128xf32>
    %54 = math.exp %53 : vector<2x128xf32>
    %cst_45 = arith.constant 1.000000e+00 : f32
    %55 = vector.broadcast %cst_45 : f32 to vector<2x128xf32>
    %56 = arith.addf %55, %54 : vector<2x128xf32>
    %57 = arith.divf %55, %56 : vector<2x128xf32>
    %58 = arith.truncf %57 : vector<2x128xf32> to vector<2x128xbf16>
    %c0_46 = arith.constant 0 : index
    %c0_47 = arith.constant 0 : index
    %59 = vector.load %arg11[%c0_46, %c0_47] : memref<2x128xbf16, #tpu.memory_space<vmem>>, vector<2x128xbf16>
    tpu.vector_store %arg11[%c0_46, %c0_47], %58 {strides = array<i32>} : memref<2x128xbf16, #tpu.memory_space<vmem>>, vector<2x128xbf16>,
    return
  }
  func.func @transform_0(%arg0: i32) -> (i32, i32) {
    %c0_i32 = arith.constant 0 : i32
    %c0_i32_0 = arith.constant 0 : i32
    return %arg0, %c0_i32 : i32, i32
  }
  func.func @transform_1(%arg0: i32) -> (i32, i32) {
    %c0_i32 = arith.constant 0 : i32
    %c0_i32_0 = arith.constant 0 : i32
    %c0_i32_1 = arith.constant 0 : i32
    return %c0_i32, %c0_i32_0 : i32, i32
  }
  func.func @transform_2(%arg0: i32) -> (i32, i32) {
    %c0_i32 = arith.constant 0 : i32
    %c0_i32_0 = arith.constant 0 : i32
    %c0_i32_1 = arith.constant 0 : i32
    return %c0_i32, %c0_i32_0 : i32, i32
  }
  func.func @transform_3(%arg0: i32) -> (i32, i32, i32) {
    %c0_i32 = arith.constant 0 : i32
    %c0_i32_0 = arith.constant 0 : i32
    %c0_i32_1 = arith.constant 0 : i32
    %c0_i32_2 = arith.constant 0 : i32
    return %c0_i32, %c0_i32_0, %c0_i32_1 : i32, i32, i32
  }
  func.func @transform_4(%arg0: i32) -> (i32, i32) {
    %c0_i32 = arith.constant 0 : i32
    %c0_i32_0 = arith.constant 0 : i32
    %c0_i32_1 = arith.constant 0 : i32
    return %c0_i32, %c0_i32_0 : i32, i32
  }
  func.func @transform_5(%arg0: i32) -> (i32, i32) {
    %c0_i32 = arith.constant 0 : i32
    %c0_i32_0 = arith.constant 0 : i32
    %c0_i32_1 = arith.constant 0 : i32
    return %c0_i32, %c0_i32_0 : i32, i32
  }
  func.func @transform_6(%arg0: i32) -> (i32, i32) {
    %c0_i32 = arith.constant 0 : i32
    %c0_i32_0 = arith.constant 0 : i32
    %c0_i32_1 = arith.constant 0 : i32
    return %c0_i32, %c0_i32_0 : i32, i32
  }
  func.func @transform_7(%arg0: i32) -> (i32, i32, i32) {
    %c0_i32 = arith.constant 0 : i32
    %c0_i32_0 = arith.constant 0 : i32
    %c0_i32_1 = arith.constant 0 : i32
    %c0_i32_2 = arith.constant 0 : i32
    return %c0_i32, %c0_i32_0, %c0_i32_1 : i32, i32, i32
  }
  func.func @transform_8(%arg0: i32) -> (i32, i32) {
    %c0_i32 = arith.constant 0 : i32
    %c0_i32_0 = arith.constant 0 : i32
    %c0_i32_1 = arith.constant 0 : i32
    return %c0_i32, %c0_i32_0 : i32, i32
  }
  func.func @transform_9(%arg0: i32) -> (i32, i32) {
    %c0_i32 = arith.constant 0 : i32
    %c0_i32_0 = arith.constant 0 : i32
    %c0_i32_1 = arith.constant 0 : i32
    return %c0_i32, %c0_i32_0 : i32, i32
  }
  func.func @transform_10(%arg0: i32) -> (i32, i32) {
    %c0_i32 = arith.constant 0 : i32
    %c0_i32_0 = arith.constant 0 : i32
    return %arg0, %c0_i32 : i32, i32
  }
}

</mosaic_0001>

<llo_original>
// kernel: _forward.1
$region0: #{_forward.1}
  #allocation0 [shape = 'u32[]', space=smem, size = 0x4, offset = 0x4, fixed_abs, tag = 'smem constant byte address 0x4 - core index']
  #allocation1 [shape = 'u32[144,128]{1,0:T(1,128)}', space=vmem, size = 0x12000, scoped, tag = 'internal scratch']
  %s0 = inlined_call_operand.vmem [shape: bf16[2,2400], index: 0, kind: input, shape index: {}]
  %s1 = inlined_call_operand.vmem [shape: bf16[2400,384], index: 1, kind: input, shape index: {}]
  %s2 = inlined_call_operand.vmem [shape: f32[1,384], index: 2, kind: input, shape index: {}]
  %s3 = inlined_call_operand.vmem [shape: bf16[3,384,256], index: 3, kind: input, shape index: {}]
  %s4 = inlined_call_operand.vmem [shape: bf16[256,128], index: 4, kind: input, shape index: {}]
  %s5 = inlined_call_operand.vmem [shape: bf16[2400,384], index: 5, kind: input, shape index: {}]
  %s6 = inlined_call_operand.vmem [shape: f32[1,384], index: 6, kind: input, shape index: {}]
  %s7 = inlined_call_operand.vmem [shape: bf16[4,384,256], index: 7, kind: input, shape index: {}]
  %s8 = inlined_call_operand.vmem [shape: bf16[256,128], index: 8, kind: input, shape index: {}]
  %s9 = inlined_call_operand.vmem [shape: f32[1,128], index: 9, kind: input, shape index: {}]
  %s10 = inlined_call_operand.vmem [shape: bf16[2,128], index: 10, kind: output, shape index: {}]
  %s11 = sld [smem:[#allocation0]]
  $region50: #{_forward.1} parent=0
    _
  %s13 = ssub.s32 1, %s11
  %s14 = scalar_select 0, %s13, %s11
  // Predicated region
  $region2: #{_forward.1} parent=0 // pred_check
    _
  $region3: #{_forward.1} parent=0 // pred_check_branch
    %16 = sbr.rel (0) target = $region5
  $region4: #{_forward.1} parent=0 // pred_region
    _
  $region5: #{_forward.1} parent=0 // pred_fallthru
    _
  // Predicated region
  $region6: #{_forward.1} parent=0 // pred_check
    _
  $region7: #{_forward.1} parent=0 // pred_check_branch
    %18 = sbr.rel (0) target = $region9
  $region8: #{_forward.1} parent=0 // pred_region
    _
  $region9: #{_forward.1} parent=0 // pred_fallthru
    _
  // Predicated region
  $region10: #{_forward.1} parent=0 // pred_check
    _
  $region11: #{_forward.1} parent=0 // pred_check_branch
    %20 = sbr.rel (0) target = $region13
  $region12: #{_forward.1} parent=0 // pred_region
    _
  $region13: #{_forward.1} parent=0 // pred_fallthru
    _
  // Predicated region
  $region14: #{_forward.1} parent=0 // pred_check
    _
  $region15: #{_forward.1} parent=0 // pred_check_branch
    %22 = sbr.rel (0) target = $region17
  $region16: #{_forward.1} parent=0 // pred_region
    _
  $region17: #{_forward.1} parent=0 // pred_fallthru
    _
  // Predicated region
  $region18: #{_forward.1} parent=0 // pred_check
    _
  $region19: #{_forward.1} parent=0 // pred_check_branch
    %24 = sbr.rel (0) target = $region21
  $region20: #{_forward.1} parent=0 // pred_region
    _
  $region21: #{_forward.1} parent=0 // pred_fallthru
    _
  // Predicated region
  $region22: #{_forward.1} parent=0 // pred_check
    _
  $region23: #{_forward.1} parent=0 // pred_check_branch
    %26 = sbr.rel (0) target = $region25
  $region24: #{_forward.1} parent=0 // pred_region
    _
  $region25: #{_forward.1} parent=0 // pred_fallthru
    _
  // Predicated region
  $region26: #{_forward.1} parent=0 // pred_check
    _
  $region27: #{_forward.1} parent=0 // pred_check_branch
    %28 = sbr.rel (0) target = $region29
  $region28: #{_forward.1} parent=0 // pred_region
    _
  $region29: #{_forward.1} parent=0 // pred_fallthru
    _
  // Predicated region
  $region30: #{_forward.1} parent=0 // pred_check
    _
  $region31: #{_forward.1} parent=0 // pred_check_branch
    %30 = sbr.rel (0) target = $region33
  $region32: #{_forward.1} parent=0 // pred_region
    _
  $region33: #{_forward.1} parent=0 // pred_fallthru
    _
  // Predicated region
  $region34: #{_forward.1} parent=0 // pred_check
    _
  $region35: #{_forward.1} parent=0 // pred_check_branch
    %32 = sbr.rel (0) target = $region37
  $region36: #{_forward.1} parent=0 // pred_region
    _
  $region37: #{_forward.1} parent=0 // pred_fallthru
    _
  // Predicated region
  $region38: #{_forward.1} parent=0 // pred_check
    _
  $region39: #{_forward.1} parent=0 // pred_check_branch
    %34 = sbr.rel (0) target = $region41
  $region40: #{_forward.1} parent=0 // pred_region
    _
  $region41: #{_forward.1} parent=0 // pred_fallthru
    _
  %v36 = vld [vmem:[%s0] sm:$0xff]
  %v37 = vld [vmem:[%s0 + $0x8] sm:$0xff]
  %v38 = vld [vmem:[%s0 + $0x10] sm:$0x7]
  %v39 = vld [vmem:[%s1] sm:$0xff]
  %v40 = vld [vmem:[%s1 + $0x8] sm:$0xf]
  %v41 = vld [vmem:[%s1 + $0xc] sm:$0xff]
  %v42 = vld [vmem:[%s1 + $0x14] sm:$0xf]
  %v43 = vld [vmem:[%s1 + $0x18] sm:$0xff]
  %v44 = vld [vmem:[%s1 + $0x20] sm:$0xf]
  %v45 = vld [vmem:[%s1 + $0x24] sm:$0xff]
  %v46 = vld [vmem:[%s1 + $0x2c] sm:$0xf]
  %v47 = vld [vmem:[%s1 + $0x30] sm:$0xff]
  %v48 = vld [vmem:[%s1 + $0x38] sm:$0xf]
  %v49 = vld [vmem:[%s1 + $0x3c] sm:$0xff]
  %v50 = vld [vmem:[%s1 + $0x44] sm:$0xf]
  %v51 = vld [vmem:[%s1 + $0x48] sm:$0xff]
  %v52 = vld [vmem:[%s1 + $0x50] sm:$0xf]
  %v53 = vld [vmem:[%s1 + $0x54] sm:$0xff]
  %v54 = vld [vmem:[%s1 + $0x5c] sm:$0xf]
  %v55 = vld [vmem:[%s1 + $0x60] sm:$0xff]
  %v56 = vld [vmem:[%s1 + $0x68] sm:$0xf]
  %v57 = vld [vmem:[%s1 + $0x6c] sm:$0xff]
  %v58 = vld [vmem:[%s1 + $0x74] sm:$0xf]
  %v59 = vld [vmem:[%s1 + $0x78] sm:$0xff]
  %v60 = vld [vmem:[%s1 + $0x80] sm:$0xf]
  %v61 = vld [vmem:[%s1 + $0x84] sm:$0xff]
  %v62 = vld [vmem:[%s1 + $0x8c] sm:$0xf]
  %v63 = vld [vmem:[%s1 + $0x90] sm:$0xff]
  %v64 = vld [vmem:[%s1 + $0x98] sm:$0xf]
  %v65 = vld [vmem:[%s1 + $0x9c] sm:$0xff]
  %v66 = vld [vmem:[%s1 + $0xa4] sm:$0xf]
  %v67 = vld [vmem:[%s1 + $0xa8] sm:$0xff]
  %v68 = vld [vmem:[%s1 + $0xb0] sm:$0xf]
  %v69 = vld [vmem:[%s1 + $0xb4] sm:$0xff]
  %v70 = vld [vmem:[%s1 + $0xbc] sm:$0xf]
  %v71 = vld [vmem:[%s1 + $0xc0] sm:$0xff]
  %v72 = vld [vmem:[%s1 + $0xc8] sm:$0xf]
  %v73 = vld [vmem:[%s1 + $0xcc] sm:$0xff]
  %v74 = vld [vmem:[%s1 + $0xd4] sm:$0xf]
  %v75 = vld [vmem:[%s1 + $0xd8] sm:$0xff]
  %v76 = vld [vmem:[%s1 + $0xe0] sm:$0xf]
  %v77 = vld [vmem:[%s1 + $0xe4] sm:$0xff]
  %v78 = vld [vmem:[%s1 + $0xec] sm:$0xf]
  %v79 = vld [vmem:[%s1 + $0xf0] sm:$0xff]
  %v80 = vld [vmem:[%s1 + $0xf8] sm:$0xf]
  %v81 = vld [vmem:[%s1 + $0xfc] sm:$0xff]
  %v82 = vld [vmem:[%s1 + $0x104] sm:$0xf]
  %v83 = vld [vmem:[%s1 + $0x108] sm:$0xff]
  %v84 = vld [vmem:[%s1 + $0x110] sm:$0xf]
  %v85 = vld [vmem:[%s1 + $0x114] sm:$0xff]
  %v86 = vld [vmem:[%s1 + $0x11c] sm:$0xf]
  %v87 = vld [vmem:[%s1 + $0x120] sm:$0xff]
  %v88 = vld [vmem:[%s1 + $0x128] sm:$0xf]
  %v89 = vld [vmem:[%s1 + $0x12c] sm:$0xff]
  %v90 = vld [vmem:[%s1 + $0x134] sm:$0xf]
  %v91 = vld [vmem:[%s1 + $0x138] sm:$0xff]
  %v92 = vld [vmem:[%s1 + $0x140] sm:$0xf]
  %v93 = vld [vmem:[%s1 + $0x144] sm:$0xff]
  %v94 = vld [vmem:[%s1 + $0x14c] sm:$0xf]
  %v95 = vld [vmem:[%s1 + $0x150] sm:$0xff]
  %v96 = vld [vmem:[%s1 + $0x158] sm:$0xf]
  %v97 = vld [vmem:[%s1 + $0x15c] sm:$0xff]
  %v98 = vld [vmem:[%s1 + $0x164] sm:$0xf]
  %v99 = vld [vmem:[%s1 + $0x168] sm:$0xff]
  %v100 = vld [vmem:[%s1 + $0x170] sm:$0xf]
  %v101 = vld [vmem:[%s1 + $0x174] sm:$0xff]
  %v102 = vld [vmem:[%s1 + $0x17c] sm:$0xf]
  %v103 = vld [vmem:[%s1 + $0x180] sm:$0xff]
  %v104 = vld [vmem:[%s1 + $0x188] sm:$0xf]
  %v105 = vld [vmem:[%s1 + $0x18c] sm:$0xff]
  %v106 = vld [vmem:[%s1 + $0x194] sm:$0xf]
  %v107 = vld [vmem:[%s1 + $0x198] sm:$0xff]
  %v108 = vld [vmem:[%s1 + $0x1a0] sm:$0xf]
  %v109 = vld [vmem:[%s1 + $0x1a4] sm:$0xff]
  %v110 = vld [vmem:[%s1 + $0x1ac] sm:$0xf]
  %v111 = vld [vmem:[%s1 + $0x1b0] sm:$0xff]
  %v112 = vld [vmem:[%s1 + $0x1b8] sm:$0xf]
  %v113 = vld [vmem:[%s1 + $0x1bc] sm:$0xff]
  %v114 = vld [vmem:[%s1 + $0x1c4] sm:$0xf]
  %v115 = vld [vmem:[%s1 + $0x1c8] sm:$0xff]
  %v116 = vld [vmem:[%s1 + $0x1d0] sm:$0xf]
  %v117 = vld [vmem:[%s1 + $0x1d4] sm:$0xff]
  %v118 = vld [vmem:[%s1 + $0x1dc] sm:$0xf]
  %v119 = vld [vmem:[%s1 + $0x1e0] sm:$0xff]
  %v120 = vld [vmem:[%s1 + $0x1e8] sm:$0xf]
  %v121 = vld [vmem:[%s1 + $0x1ec] sm:$0xff]
  %v122 = vld [vmem:[%s1 + $0x1f4] sm:$0xf]
  %v123 = vld [vmem:[%s1 + $0x1f8] sm:$0xff]
  %v124 = vld [vmem:[%s1 + $0x200] sm:$0xf]
  %v125 = vld [vmem:[%s1 + $0x204] sm:$0xff]
  %v126 = vld [vmem:[%s1 + $0x20c] sm:$0xf]
  %v127 = vld [vmem:[%s1 + $0x210] sm:$0xff]
  %v128 = vld [vmem:[%s1 + $0x218] sm:$0xf]
  %v129 = vld [vmem:[%s1 + $0x21c] sm:$0xff]
  %v130 = vld [vmem:[%s1 + $0x224] sm:$0xf]
  %v131 = vld [vmem:[%s1 + $0x228] sm:$0xff]
  %v132 = vld [vmem:[%s1 + $0x230] sm:$0xf]
  %v133 = vld [vmem:[%s1 + $0x234] sm:$0xff]
  %v134 = vld [vmem:[%s1 + $0x23c] sm:$0xf]
  %v135 = vld [vmem:[%s1 + $0x240] sm:$0xff]
  %v136 = vld [vmem:[%s1 + $0x248] sm:$0xf]
  %v137 = vld [vmem:[%s1 + $0x24c] sm:$0xff]
  %v138 = vld [vmem:[%s1 + $0x254] sm:$0xf]
  %v139 = vld [vmem:[%s1 + $0x258] sm:$0xff]
  %v140 = vld [vmem:[%s1 + $0x260] sm:$0xf]
  %v141 = vld [vmem:[%s1 + $0x264] sm:$0xff]
  %v142 = vld [vmem:[%s1 + $0x26c] sm:$0xf]
  %v143 = vld [vmem:[%s1 + $0x270] sm:$0xff]
  %v144 = vld [vmem:[%s1 + $0x278] sm:$0xf]
  %v145 = vld [vmem:[%s1 + $0x27c] sm:$0xff]
  %v146 = vld [vmem:[%s1 + $0x284] sm:$0xf]
  %v147 = vld [vmem:[%s1 + $0x288] sm:$0xff]
  %v148 = vld [vmem:[%s1 + $0x290] sm:$0xf]
  %v149 = vld [vmem:[%s1 + $0x294] sm:$0xff]
  %v150 = vld [vmem:[%s1 + $0x29c] sm:$0xf]
  %v151 = vld [vmem:[%s1 + $0x2a0] sm:$0xff]
  %v152 = vld [vmem:[%s1 + $0x2a8] sm:$0xf]
  %v153 = vld [vmem:[%s1 + $0x2ac] sm:$0xff]
  %v154 = vld [vmem:[%s1 + $0x2b4] sm:$0xf]
  %v155 = vld [vmem:[%s1 + $0x2b8] sm:$0xff]
  %v156 = vld [vmem:[%s1 + $0x2c0] sm:$0xf]
  %v157 = vld [vmem:[%s1 + $0x2c4] sm:$0xff]
  %v158 = vld [vmem:[%s1 + $0x2cc] sm:$0xf]
  %v159 = vld [vmem:[%s1 + $0x2d0] sm:$0xff]
  %v160 = vld [vmem:[%s1 + $0x2d8] sm:$0xf]
  %v161 = vld [vmem:[%s1 + $0x2dc] sm:$0xff]
  %v162 = vld [vmem:[%s1 + $0x2e4] sm:$0xf]
  %v163 = vld [vmem:[%s1 + $0x2e8] sm:$0xff]
  %v164 = vld [vmem:[%s1 + $0x2f0] sm:$0xf]
  %v165 = vld [vmem:[%s1 + $0x2f4] sm:$0xff]
  %v166 = vld [vmem:[%s1 + $0x2fc] sm:$0xf]
  %v167 = vld [vmem:[%s1 + $0x300] sm:$0xff]
  %v168 = vld [vmem:[%s1 + $0x308] sm:$0xf]
  %v169 = vld [vmem:[%s1 + $0x30c] sm:$0xff]
  %v170 = vld [vmem:[%s1 + $0x314] sm:$0xf]
  %v171 = vld [vmem:[%s1 + $0x318] sm:$0xff]
  %v172 = vld [vmem:[%s1 + $0x320] sm:$0xf]
  %v173 = vld [vmem:[%s1 + $0x324] sm:$0xff]
  %v174 = vld [vmem:[%s1 + $0x32c] sm:$0xf]
  %v175 = vld [vmem:[%s1 + $0x330] sm:$0xff]
  %v176 = vld [vmem:[%s1 + $0x338] sm:$0xf]
  %v177 = vld [vmem:[%s1 + $0x33c] sm:$0xff]
  %v178 = vld [vmem:[%s1 + $0x344] sm:$0xf]
  %v179 = vld [vmem:[%s1 + $0x348] sm:$0xff]
  %v180 = vld [vmem:[%s1 + $0x350] sm:$0xf]
  %v181 = vld [vmem:[%s1 + $0x354] sm:$0xff]
  %v182 = vld [vmem:[%s1 + $0x35c] sm:$0xf]
  %v183 = vld [vmem:[%s1 + $0x360] sm:$0xff]
  %v184 = vld [vmem:[%s1 + $0x368] sm:$0xf]
  %v185 = vld [vmem:[%s1 + $0x36c] sm:$0xff]
  %v186 = vld [vmem:[%s1 + $0x374] sm:$0xf]
  %v187 = vld [vmem:[%s1 + $0x378] sm:$0xff]
  %v188 = vld [vmem:[%s1 + $0x380] sm:$0xf]
  %v189 = vld [vmem:[%s1 + $0x384] sm:$0xff]
  %v190 = vld [vmem:[%s1 + $0x38c] sm:$0xf]
  %v191 = vld [vmem:[%s1 + $0x390] sm:$0xff]
  %v192 = vld [vmem:[%s1 + $0x398] sm:$0xf]
  %v193 = vld [vmem:[%s1 + $0x39c] sm:$0xff]
  %v194 = vld [vmem:[%s1 + $0x3a4] sm:$0xf]
  %v195 = vld [vmem:[%s1 + $0x3a8] sm:$0xff]
  %v196 = vld [vmem:[%s1 + $0x3b0] sm:$0xf]
  %v197 = vld [vmem:[%s1 + $0x3b4] sm:$0xff]
  %v198 = vld [vmem:[%s1 + $0x3bc] sm:$0xf]
  %v199 = vld [vmem:[%s1 + $0x3c0] sm:$0xff]
  %v200 = vld [vmem:[%s1 + $0x3c8] sm:$0xf]
  %v201 = vld [vmem:[%s1 + $0x3cc] sm:$0xff]
  %v202 = vld [vmem:[%s1 + $0x3d4] sm:$0xf]
  %v203 = vld [vmem:[%s1 + $0x3d8] sm:$0xff]
  %v204 = vld [vmem:[%s1 + $0x3e0] sm:$0xf]
  %v205 = vld [vmem:[%s1 + $0x3e4] sm:$0xff]
  %v206 = vld [vmem:[%s1 + $0x3ec] sm:$0xf]
  %v207 = vld [vmem:[%s1 + $0x3f0] sm:$0xff]
  %v208 = vld [vmem:[%s1 + $0x3f8] sm:$0xf]
  %v209 = vld [vmem:[%s1 + $0x3fc] sm:$0xff]
  %v210 = vld [vmem:[%s1 + $0x404] sm:$0xf]
  %v211 = vld [vmem:[%s1 + $0x408] sm:$0xff]
  %v212 = vld [vmem:[%s1 + $0x410] sm:$0xf]
  %v213 = vld [vmem:[%s1 + $0x414] sm:$0xff]
  %v214 = vld [vmem:[%s1 + $0x41c] sm:$0xf]
  %v215 = vld [vmem:[%s1 + $0x420] sm:$0xff]
  %v216 = vld [vmem:[%s1 + $0x428] sm:$0xf]
  %v217 = vld [vmem:[%s1 + $0x42c] sm:$0xff]
  %v218 = vld [vmem:[%s1 + $0x434] sm:$0xf]
  %v219 = vld [vmem:[%s1 + $0x438] sm:$0xff]
  %v220 = vld [vmem:[%s1 + $0x440] sm:$0xf]
  %v221 = vld [vmem:[%s1 + $0x444] sm:$0xff]
  %v222 = vld [vmem:[%s1 + $0x44c] sm:$0xf]
  %v223 = vld [vmem:[%s1 + $0x450] sm:$0xff]
  %v224 = vld [vmem:[%s1 + $0x458] sm:$0xf]
  %v225 = vld [vmem:[%s1 + $0x45c] sm:$0xff]
  %v226 = vld [vmem:[%s1 + $0x464] sm:$0xf]
  %v227 = vld [vmem:[%s1 + $0x468] sm:$0xff]
  %v228 = vld [vmem:[%s1 + $0x470] sm:$0xf]
  %v229 = vld [vmem:[%s1 + $0x474] sm:$0xff]
  %v230 = vld [vmem:[%s1 + $0x47c] sm:$0xf]
  %v231 = vld [vmem:[%s1 + $0x480] sm:$0xff]
  %v232 = vld [vmem:[%s1 + $0x488] sm:$0xf]
  %v233 = vld [vmem:[%s1 + $0x48c] sm:$0xff]
  %v234 = vld [vmem:[%s1 + $0x494] sm:$0xf]
  %v235 = vld [vmem:[%s1 + $0x498] sm:$0xff]
  %v236 = vld [vmem:[%s1 + $0x4a0] sm:$0xf]
  %v237 = vld [vmem:[%s1 + $0x4a4] sm:$0xff]
  %v238 = vld [vmem:[%s1 + $0x4ac] sm:$0xf]
  %v239 = vld [vmem:[%s1 + $0x4b0] sm:$0xff]
  %v240 = vld [vmem:[%s1 + $0x4b8] sm:$0xf]
  %v241 = vld [vmem:[%s1 + $0x4bc] sm:$0xff]
  %v242 = vld [vmem:[%s1 + $0x4c4] sm:$0xf]
  %v243 = vld [vmem:[%s1 + $0x4c8] sm:$0xff]
  %v244 = vld [vmem:[%s1 + $0x4d0] sm:$0xf]
  %v245 = vld [vmem:[%s1 + $0x4d4] sm:$0xff]
  %v246 = vld [vmem:[%s1 + $0x4dc] sm:$0xf]
  %v247 = vld [vmem:[%s1 + $0x4e0] sm:$0xff]
  %v248 = vld [vmem:[%s1 + $0x4e8] sm:$0xf]
  %v249 = vld [vmem:[%s1 + $0x4ec] sm:$0xff]
  %v250 = vld [vmem:[%s1 + $0x4f4] sm:$0xf]
  %v251 = vld [vmem:[%s1 + $0x4f8] sm:$0xff]
  %v252 = vld [vmem:[%s1 + $0x500] sm:$0xf]
  %v253 = vld [vmem:[%s1 + $0x504] sm:$0xff]
  %v254 = vld [vmem:[%s1 + $0x50c] sm:$0xf]
  %v255 = vld [vmem:[%s1 + $0x510] sm:$0xff]
  %v256 = vld [vmem:[%s1 + $0x518] sm:$0xf]
  %v257 = vld [vmem:[%s1 + $0x51c] sm:$0xff]
  %v258 = vld [vmem:[%s1 + $0x524] sm:$0xf]
  %v259 = vld [vmem:[%s1 + $0x528] sm:$0xff]
  %v260 = vld [vmem:[%s1 + $0x530] sm:$0xf]
  %v261 = vld [vmem:[%s1 + $0x534] sm:$0xff]
  %v262 = vld [vmem:[%s1 + $0x53c] sm:$0xf]
  %v263 = vld [vmem:[%s1 + $0x540] sm:$0xff]
  %v264 = vld [vmem:[%s1 + $0x548] sm:$0xf]
  %v265 = vld [vmem:[%s1 + $0x54c] sm:$0xff]
  %v266 = vld [vmem:[%s1 + $0x554] sm:$0xf]
  %v267 = vld [vmem:[%s1 + $0x558] sm:$0xff]
  %v268 = vld [vmem:[%s1 + $0x560] sm:$0xf]
  %v269 = vld [vmem:[%s1 + $0x564] sm:$0xff]
  %v270 = vld [vmem:[%s1 + $0x56c] sm:$0xf]
  %v271 = vld [vmem:[%s1 + $0x570] sm:$0xff]
  %v272 = vld [vmem:[%s1 + $0x578] sm:$0xf]
  %v273 = vld [vmem:[%s1 + $0x57c] sm:$0xff]
  %v274 = vld [vmem:[%s1 + $0x584] sm:$0xf]
  %v275 = vld [vmem:[%s1 + $0x588] sm:$0xff]
  %v276 = vld [vmem:[%s1 + $0x590] sm:$0xf]
  %v277 = vld [vmem:[%s1 + $0x594] sm:$0xff]
  %v278 = vld [vmem:[%s1 + $0x59c] sm:$0xf]
  %v279 = vld [vmem:[%s1 + $0x5a0] sm:$0xff]
  %v280 = vld [vmem:[%s1 + $0x5a8] sm:$0xf]
  %v281 = vld [vmem:[%s1 + $0x5ac] sm:$0xff]
  %v282 = vld [vmem:[%s1 + $0x5b4] sm:$0xf]
  %v283 = vld [vmem:[%s1 + $0x5b8] sm:$0xff]
  %v284 = vld [vmem:[%s1 + $0x5c0] sm:$0xf]
  %v285 = vld [vmem:[%s1 + $0x5c4] sm:$0xff]
  %v286 = vld [vmem:[%s1 + $0x5cc] sm:$0xf]
  %v287 = vld [vmem:[%s1 + $0x5d0] sm:$0xff]
  %v288 = vld [vmem:[%s1 + $0x5d8] sm:$0xf]
  %v289 = vld [vmem:[%s1 + $0x5dc] sm:$0xff]
  %v290 = vld [vmem:[%s1 + $0x5e4] sm:$0xf]
  %v291 = vld [vmem:[%s1 + $0x5e8] sm:$0xff]
  %v292 = vld [vmem:[%s1 + $0x5f0] sm:$0xf]
  %v293 = vld [vmem:[%s1 + $0x5f4] sm:$0xff]
  %v294 = vld [vmem:[%s1 + $0x5fc] sm:$0xf]
  %v295 = vld [vmem:[%s1 + $0x600] sm:$0xff]
  %v296 = vld [vmem:[%s1 + $0x608] sm:$0xf]
  %v297 = vld [vmem:[%s1 + $0x60c] sm:$0xff]
  %v298 = vld [vmem:[%s1 + $0x614] sm:$0xf]
  %v299 = vld [vmem:[%s1 + $0x618] sm:$0xff]
  %v300 = vld [vmem:[%s1 + $0x620] sm:$0xf]
  %v301 = vld [vmem:[%s1 + $0x624] sm:$0xff]
  %v302 = vld [vmem:[%s1 + $0x62c] sm:$0xf]
  %v303 = vld [vmem:[%s1 + $0x630] sm:$0xff]
  %v304 = vld [vmem:[%s1 + $0x638] sm:$0xf]
  %v305 = vld [vmem:[%s1 + $0x63c] sm:$0xff]
  %v306 = vld [vmem:[%s1 + $0x644] sm:$0xf]
  %v307 = vld [vmem:[%s1 + $0x648] sm:$0xff]
  %v308 = vld [vmem:[%s1 + $0x650] sm:$0xf]
  %v309 = vld [vmem:[%s1 + $0x654] sm:$0xff]
  %v310 = vld [vmem:[%s1 + $0x65c] sm:$0xf]
  %v311 = vld [vmem:[%s1 + $0x660] sm:$0xff]
  %v312 = vld [vmem:[%s1 + $0x668] sm:$0xf]
  %v313 = vld [vmem:[%s1 + $0x66c] sm:$0xff]
  %v314 = vld [vmem:[%s1 + $0x674] sm:$0xf]
  %v315 = vld [vmem:[%s1 + $0x678] sm:$0xff]
  %v316 = vld [vmem:[%s1 + $0x680] sm:$0xf]
  %v317 = vld [vmem:[%s1 + $0x684] sm:$0xff]
  %v318 = vld [vmem:[%s1 + $0x68c] sm:$0xf]
  %v319 = vld [vmem:[%s1 + $0x690] sm:$0xff]
  %v320 = vld [vmem:[%s1 + $0x698] sm:$0xf]
  %v321 = vld [vmem:[%s1 + $0x69c] sm:$0xff]
  %v322 = vld [vmem:[%s1 + $0x6a4] sm:$0xf]
  %v323 = vld [vmem:[%s1 + $0x6a8] sm:$0xff]
  %v324 = vld [vmem:[%s1 + $0x6b0] sm:$0xf]
  %v325 = vld [vmem:[%s1 + $0x6b4] sm:$0xff]
  %v326 = vld [vmem:[%s1 + $0x6bc] sm:$0xf]
  %v327 = vld [vmem:[%s1 + $0x6c0] sm:$0xff]
  %v328 = vld [vmem:[%s1 + $0x6c8] sm:$0xf]
  %v329 = vld [vmem:[%s1 + $0x6cc] sm:$0xff]
  %v330 = vld [vmem:[%s1 + $0x6d4] sm:$0xf]
  %v331 = vld [vmem:[%s1 + $0x6d8] sm:$0xff]
  %v332 = vld [vmem:[%s1 + $0x6e0] sm:$0xf]
  %v333 = vld [vmem:[%s1 + $0x6e4] sm:$0xff]
  %v334 = vld [vmem:[%s1 + $0x6ec] sm:$0xf]
  %v335 = vld [vmem:[%s1 + $0x6f0] sm:$0xff]
  %v336 = vld [vmem:[%s1 + $0x6f8] sm:$0xf]
  %v337 = vld [vmem:[%s1 + $0x6fc] sm:$0xff]
  %v338 = vld [vmem:[%s1 + $0x704] sm:$0xf]
  %v339 = vld [vmem:[%s1 + $0x708] sm:$0xff]
  %v340 = vld [vmem:[%s1 + $0x710] sm:$0xf]
  %v341 = vld [vmem:[%s1 + $0x714] sm:$0xff]
  %v342 = vld [vmem:[%s1 + $0x71c] sm:$0xf]
  %v343 = vld [vmem:[%s1 + $0x720] sm:$0xff]
  %v344 = vld [vmem:[%s1 + $0x728] sm:$0xf]
  %v345 = vld [vmem:[%s1 + $0x72c] sm:$0xff]
  %v346 = vld [vmem:[%s1 + $0x734] sm:$0xf]
  %v347 = vld [vmem:[%s1 + $0x738] sm:$0xff]
  %v348 = vld [vmem:[%s1 + $0x740] sm:$0xf]
  %v349 = vld [vmem:[%s1 + $0x744] sm:$0xff]
  %v350 = vld [vmem:[%s1 + $0x74c] sm:$0xf]
  %v351 = vld [vmem:[%s1 + $0x750] sm:$0xff]
  %v352 = vld [vmem:[%s1 + $0x758] sm:$0xf]
  %v353 = vld [vmem:[%s1 + $0x75c] sm:$0xff]
  %v354 = vld [vmem:[%s1 + $0x764] sm:$0xf]
  %v355 = vld [vmem:[%s1 + $0x768] sm:$0xff]
  %v356 = vld [vmem:[%s1 + $0x770] sm:$0xf]
  %v357 = vld [vmem:[%s1 + $0x774] sm:$0xff]
  %v358 = vld [vmem:[%s1 + $0x77c] sm:$0xf]
  %v359 = vld [vmem:[%s1 + $0x780] sm:$0xff]
  %v360 = vld [vmem:[%s1 + $0x788] sm:$0xf]
  %v361 = vld [vmem:[%s1 + $0x78c] sm:$0xff]
  %v362 = vld [vmem:[%s1 + $0x794] sm:$0xf]
  %v363 = vld [vmem:[%s1 + $0x798] sm:$0xff]
  %v364 = vld [vmem:[%s1 + $0x7a0] sm:$0xf]
  %v365 = vld [vmem:[%s1 + $0x7a4] sm:$0xff]
  %v366 = vld [vmem:[%s1 + $0x7ac] sm:$0xf]
  %v367 = vld [vmem:[%s1 + $0x7b0] sm:$0xff]
  %v368 = vld [vmem:[%s1 + $0x7b8] sm:$0xf]
  %v369 = vld [vmem:[%s1 + $0x7bc] sm:$0xff]
  %v370 = vld [vmem:[%s1 + $0x7c4] sm:$0xf]
  %v371 = vld [vmem:[%s1 + $0x7c8] sm:$0xff]
  %v372 = vld [vmem:[%s1 + $0x7d0] sm:$0xf]
  %v373 = vld [vmem:[%s1 + $0x7d4] sm:$0xff]
  %v374 = vld [vmem:[%s1 + $0x7dc] sm:$0xf]
  %v375 = vld [vmem:[%s1 + $0x7e0] sm:$0xff]
  %v376 = vld [vmem:[%s1 + $0x7e8] sm:$0xf]
  %v377 = vld [vmem:[%s1 + $0x7ec] sm:$0xff]
  %v378 = vld [vmem:[%s1 + $0x7f4] sm:$0xf]
  %v379 = vld [vmem:[%s1 + $0x7f8] sm:$0xff]
  %v380 = vld [vmem:[%s1 + $0x800] sm:$0xf]
  %v381 = vld [vmem:[%s1 + $0x804] sm:$0xff]
  %v382 = vld [vmem:[%s1 + $0x80c] sm:$0xf]
  %v383 = vld [vmem:[%s1 + $0x810] sm:$0xff]
  %v384 = vld [vmem:[%s1 + $0x818] sm:$0xf]
  %v385 = vld [vmem:[%s1 + $0x81c] sm:$0xff]
  %v386 = vld [vmem:[%s1 + $0x824] sm:$0xf]
  %v387 = vld [vmem:[%s1 + $0x828] sm:$0xff]
  %v388 = vld [vmem:[%s1 + $0x830] sm:$0xf]
  %v389 = vld [vmem:[%s1 + $0x834] sm:$0xff]
  %v390 = vld [vmem:[%s1 + $0x83c] sm:$0xf]
  %v391 = vld [vmem:[%s1 + $0x840] sm:$0xff]
  %v392 = vld [vmem:[%s1 + $0x848] sm:$0xf]
  %v393 = vld [vmem:[%s1 + $0x84c] sm:$0xff]
  %v394 = vld [vmem:[%s1 + $0x854] sm:$0xf]
  %v395 = vld [vmem:[%s1 + $0x858] sm:$0xff]
  %v396 = vld [vmem:[%s1 + $0x860] sm:$0xf]
  %v397 = vld [vmem:[%s1 + $0x864] sm:$0xff]
  %v398 = vld [vmem:[%s1 + $0x86c] sm:$0xf]
  %v399 = vld [vmem:[%s1 + $0x870] sm:$0xff]
  %v400 = vld [vmem:[%s1 + $0x878] sm:$0xf]
  %v401 = vld [vmem:[%s1 + $0x87c] sm:$0xff]
  %v402 = vld [vmem:[%s1 + $0x884] sm:$0xf]
  %v403 = vld [vmem:[%s1 + $0x888] sm:$0xff]
  %v404 = vld [vmem:[%s1 + $0x890] sm:$0xf]
  %v405 = vld [vmem:[%s1 + $0x894] sm:$0xff]
  %v406 = vld [vmem:[%s1 + $0x89c] sm:$0xf]
  %v407 = vld [vmem:[%s1 + $0x8a0] sm:$0xff]
  %v408 = vld [vmem:[%s1 + $0x8a8] sm:$0xf]
  %v409 = vld [vmem:[%s1 + $0x8ac] sm:$0xff]
  %v410 = vld [vmem:[%s1 + $0x8b4] sm:$0xf]
  %v411 = vld [vmem:[%s1 + $0x8b8] sm:$0xff]
  %v412 = vld [vmem:[%s1 + $0x8c0] sm:$0xf]
  %v413 = vld [vmem:[%s1 + $0x8c4] sm:$0xff]
  %v414 = vld [vmem:[%s1 + $0x8cc] sm:$0xf]
  %v415 = vld [vmem:[%s1 + $0x8d0] sm:$0xff]
  %v416 = vld [vmem:[%s1 + $0x8d8] sm:$0xf]
  %v417 = vld [vmem:[%s1 + $0x8dc] sm:$0xff]
  %v418 = vld [vmem:[%s1 + $0x8e4] sm:$0xf]
  %v419 = vld [vmem:[%s1 + $0x8e8] sm:$0xff]
  %v420 = vld [vmem:[%s1 + $0x8f0] sm:$0xf]
  %v421 = vld [vmem:[%s1 + $0x8f4] sm:$0xff]
  %v422 = vld [vmem:[%s1 + $0x8fc] sm:$0xf]
  %v423 = vld [vmem:[%s1 + $0x900] sm:$0xff]
  %v424 = vld [vmem:[%s1 + $0x908] sm:$0xf]
  %v425 = vld [vmem:[%s1 + $0x90c] sm:$0xff]
  %v426 = vld [vmem:[%s1 + $0x914] sm:$0xf]
  %v427 = vld [vmem:[%s1 + $0x918] sm:$0xff]
  %v428 = vld [vmem:[%s1 + $0x920] sm:$0xf]
  %v429 = vld [vmem:[%s1 + $0x924] sm:$0xff]
  %v430 = vld [vmem:[%s1 + $0x92c] sm:$0xf]
  %v431 = vld [vmem:[%s1 + $0x930] sm:$0xff]
  %v432 = vld [vmem:[%s1 + $0x938] sm:$0xf]
  %v433 = vld [vmem:[%s1 + $0x93c] sm:$0xff]
  %v434 = vld [vmem:[%s1 + $0x944] sm:$0xf]
  %v435 = vld [vmem:[%s1 + $0x948] sm:$0xff]
  %v436 = vld [vmem:[%s1 + $0x950] sm:$0xf]
  %v437 = vld [vmem:[%s1 + $0x954] sm:$0xff]
  %v438 = vld [vmem:[%s1 + $0x95c] sm:$0xf]
  %v439 = vld [vmem:[%s1 + $0x960] sm:$0xff]
  %v440 = vld [vmem:[%s1 + $0x968] sm:$0xf]
  %v441 = vld [vmem:[%s1 + $0x96c] sm:$0xff]
  %v442 = vld [vmem:[%s1 + $0x974] sm:$0xf]
  %v443 = vld [vmem:[%s1 + $0x978] sm:$0xff]
  %v444 = vld [vmem:[%s1 + $0x980] sm:$0xf]
  %v445 = vld [vmem:[%s1 + $0x984] sm:$0xff]
  %v446 = vld [vmem:[%s1 + $0x98c] sm:$0xf]
  %v447 = vld [vmem:[%s1 + $0x990] sm:$0xff]
  %v448 = vld [vmem:[%s1 + $0x998] sm:$0xf]
  %v449 = vld [vmem:[%s1 + $0x99c] sm:$0xff]
  %v450 = vld [vmem:[%s1 + $0x9a4] sm:$0xf]
  %v451 = vld [vmem:[%s1 + $0x9a8] sm:$0xff]
  %v452 = vld [vmem:[%s1 + $0x9b0] sm:$0xf]
  %v453 = vld [vmem:[%s1 + $0x9b4] sm:$0xff]
  %v454 = vld [vmem:[%s1 + $0x9bc] sm:$0xf]
  %v455 = vld [vmem:[%s1 + $0x9c0] sm:$0xff]
  %v456 = vld [vmem:[%s1 + $0x9c8] sm:$0xf]
  %v457 = vld [vmem:[%s1 + $0x9cc] sm:$0xff]
  %v458 = vld [vmem:[%s1 + $0x9d4] sm:$0xf]
  %v459 = vld [vmem:[%s1 + $0x9d8] sm:$0xff]
  %v460 = vld [vmem:[%s1 + $0x9e0] sm:$0xf]
  %v461 = vld [vmem:[%s1 + $0x9e4] sm:$0xff]
  %v462 = vld [vmem:[%s1 + $0x9ec] sm:$0xf]
  %v463 = vld [vmem:[%s1 + $0x9f0] sm:$0xff]
  %v464 = vld [vmem:[%s1 + $0x9f8] sm:$0xf]
  %v465 = vld [vmem:[%s1 + $0x9fc] sm:$0xff]
  %v466 = vld [vmem:[%s1 + $0xa04] sm:$0xf]
  %v467 = vld [vmem:[%s1 + $0xa08] sm:$0xff]
  %v468 = vld [vmem:[%s1 + $0xa10] sm:$0xf]
  %v469 = vld [vmem:[%s1 + $0xa14] sm:$0xff]
  %v470 = vld [vmem:[%s1 + $0xa1c] sm:$0xf]
  %v471 = vld [vmem:[%s1 + $0xa20] sm:$0xff]
  %v472 = vld [vmem:[%s1 + $0xa28] sm:$0xf]
  %v473 = vld [vmem:[%s1 + $0xa2c] sm:$0xff]
  %v474 = vld [vmem:[%s1 + $0xa34] sm:$0xf]
  %v475 = vld [vmem:[%s1 + $0xa38] sm:$0xff]
  %v476 = vld [vmem:[%s1 + $0xa40] sm:$0xf]
  %v477 = vld [vmem:[%s1 + $0xa44] sm:$0xff]
  %v478 = vld [vmem:[%s1 + $0xa4c] sm:$0xf]
  %v479 = vld [vmem:[%s1 + $0xa50] sm:$0xff]
  %v480 = vld [vmem:[%s1 + $0xa58] sm:$0xf]
  %v481 = vld [vmem:[%s1 + $0xa5c] sm:$0xff]
  %v482 = vld [vmem:[%s1 + $0xa64] sm:$0xf]
  %v483 = vld [vmem:[%s1 + $0xa68] sm:$0xff]
  %v484 = vld [vmem:[%s1 + $0xa70] sm:$0xf]
  %v485 = vld [vmem:[%s1 + $0xa74] sm:$0xff]
  %v486 = vld [vmem:[%s1 + $0xa7c] sm:$0xf]
  %v487 = vld [vmem:[%s1 + $0xa80] sm:$0xff]
  %v488 = vld [vmem:[%s1 + $0xa88] sm:$0xf]
  %v489 = vld [vmem:[%s1 + $0xa8c] sm:$0xff]
  %v490 = vld [vmem:[%s1 + $0xa94] sm:$0xf]
  %v491 = vld [vmem:[%s1 + $0xa98] sm:$0xff]
  %v492 = vld [vmem:[%s1 + $0xaa0] sm:$0xf]
  %v493 = vld [vmem:[%s1 + $0xaa4] sm:$0xff]
  %v494 = vld [vmem:[%s1 + $0xaac] sm:$0xf]
  %v495 = vld [vmem:[%s1 + $0xab0] sm:$0xff]
  %v496 = vld [vmem:[%s1 + $0xab8] sm:$0xf]
  %v497 = vld [vmem:[%s1 + $0xabc] sm:$0xff]
  %v498 = vld [vmem:[%s1 + $0xac4] sm:$0xf]
  %v499 = vld [vmem:[%s1 + $0xac8] sm:$0xff]
  %v500 = vld [vmem:[%s1 + $0xad0] sm:$0xf]
  %v501 = vld [vmem:[%s1 + $0xad4] sm:$0xff]
  %v502 = vld [vmem:[%s1 + $0xadc] sm:$0xf]
  %v503 = vld [vmem:[%s1 + $0xae0] sm:$0xff]
  %v504 = vld [vmem:[%s1 + $0xae8] sm:$0xf]
  %v505 = vld [vmem:[%s1 + $0xaec] sm:$0xff]
  %v506 = vld [vmem:[%s1 + $0xaf4] sm:$0xf]
  %v507 = vld [vmem:[%s1 + $0xaf8] sm:$0xff]
  %v508 = vld [vmem:[%s1 + $0xb00] sm:$0xf]
  %v509 = vld [vmem:[%s1 + $0xb04] sm:$0xff]
  %v510 = vld [vmem:[%s1 + $0xb0c] sm:$0xf]
  %v511 = vld [vmem:[%s1 + $0xb10] sm:$0xff]
  %v512 = vld [vmem:[%s1 + $0xb18] sm:$0xf]
  %v513 = vld [vmem:[%s1 + $0xb1c] sm:$0xff]
  %v514 = vld [vmem:[%s1 + $0xb24] sm:$0xf]
  %v515 = vld [vmem:[%s1 + $0xb28] sm:$0xff]
  %v516 = vld [vmem:[%s1 + $0xb30] sm:$0xf]
  %v517 = vld [vmem:[%s1 + $0xb34] sm:$0xff]
  %v518 = vld [vmem:[%s1 + $0xb3c] sm:$0xf]
  %v519 = vld [vmem:[%s1 + $0xb40] sm:$0xff]
  %v520 = vld [vmem:[%s1 + $0xb48] sm:$0xf]
  %v521 = vld [vmem:[%s1 + $0xb4c] sm:$0xff]
  %v522 = vld [vmem:[%s1 + $0xb54] sm:$0xf]
  %v523 = vld [vmem:[%s1 + $0xb58] sm:$0xff]
  %v524 = vld [vmem:[%s1 + $0xb60] sm:$0xf]
  %v525 = vld [vmem:[%s1 + $0xb64] sm:$0xff]
  %v526 = vld [vmem:[%s1 + $0xb6c] sm:$0xf]
  %v527 = vld [vmem:[%s1 + $0xb70] sm:$0xff]
  %v528 = vld [vmem:[%s1 + $0xb78] sm:$0xf]
  %v529 = vld [vmem:[%s1 + $0xb7c] sm:$0xff]
  %v530 = vld [vmem:[%s1 + $0xb84] sm:$0xf]
  %v531 = vld [vmem:[%s1 + $0xb88] sm:$0xff]
  %v532 = vld [vmem:[%s1 + $0xb90] sm:$0xf]
  %v533 = vld [vmem:[%s1 + $0xb94] sm:$0xff]
  %v534 = vld [vmem:[%s1 + $0xb9c] sm:$0xf]
  %v535 = vld [vmem:[%s1 + $0xba0] sm:$0xff]
  %v536 = vld [vmem:[%s1 + $0xba8] sm:$0xf]
  %v537 = vld [vmem:[%s1 + $0xbac] sm:$0xff]
  %v538 = vld [vmem:[%s1 + $0xbb4] sm:$0xf]
  %v539 = vld [vmem:[%s1 + $0xbb8] sm:$0xff]
  %v540 = vld [vmem:[%s1 + $0xbc0] sm:$0xf]
  %v541 = vld [vmem:[%s1 + $0xbc4] sm:$0xff]
  %v542 = vld [vmem:[%s1 + $0xbcc] sm:$0xf]
  %v543 = vld [vmem:[%s1 + $0xbd0] sm:$0xff]
  %v544 = vld [vmem:[%s1 + $0xbd8] sm:$0xf]
  %v545 = vld [vmem:[%s1 + $0xbdc] sm:$0xff]
  %v546 = vld [vmem:[%s1 + $0xbe4] sm:$0xf]
  %v547 = vld [vmem:[%s1 + $0xbe8] sm:$0xff]
  %v548 = vld [vmem:[%s1 + $0xbf0] sm:$0xf]
  %v549 = vld [vmem:[%s1 + $0xbf4] sm:$0xff]
  %v550 = vld [vmem:[%s1 + $0xbfc] sm:$0xf]
  %v551 = vld [vmem:[%s1 + $0xc00] sm:$0xff]
  %v552 = vld [vmem:[%s1 + $0xc08] sm:$0xf]
  %v553 = vld [vmem:[%s1 + $0xc0c] sm:$0xff]
  %v554 = vld [vmem:[%s1 + $0xc14] sm:$0xf]
  %v555 = vld [vmem:[%s1 + $0xc18] sm:$0xff]
  %v556 = vld [vmem:[%s1 + $0xc20] sm:$0xf]
  %v557 = vld [vmem:[%s1 + $0xc24] sm:$0xff]
  %v558 = vld [vmem:[%s1 + $0xc2c] sm:$0xf]
  %v559 = vld [vmem:[%s1 + $0xc30] sm:$0xff]
  %v560 = vld [vmem:[%s1 + $0xc38] sm:$0xf]
  %v561 = vld [vmem:[%s1 + $0xc3c] sm:$0xff]
  %v562 = vld [vmem:[%s1 + $0xc44] sm:$0xf]
  %v563 = vld [vmem:[%s1 + $0xc48] sm:$0xff]
  %v564 = vld [vmem:[%s1 + $0xc50] sm:$0xf]
  %v565 = vld [vmem:[%s1 + $0xc54] sm:$0xff]
  %v566 = vld [vmem:[%s1 + $0xc5c] sm:$0xf]
  %v567 = vld [vmem:[%s1 + $0xc60] sm:$0xff]
  %v568 = vld [vmem:[%s1 + $0xc68] sm:$0xf]
  %v569 = vld [vmem:[%s1 + $0xc6c] sm:$0xff]
  %v570 = vld [vmem:[%s1 + $0xc74] sm:$0xf]
  %v571 = vld [vmem:[%s1 + $0xc78] sm:$0xff]
  %v572 = vld [vmem:[%s1 + $0xc80] sm:$0xf]
  %v573 = vld [vmem:[%s1 + $0xc84] sm:$0xff]
  %v574 = vld [vmem:[%s1 + $0xc8c] sm:$0xf]
  %v575 = vld [vmem:[%s1 + $0xc90] sm:$0xff]
  %v576 = vld [vmem:[%s1 + $0xc98] sm:$0xf]
  %v577 = vld [vmem:[%s1 + $0xc9c] sm:$0xff]
  %v578 = vld [vmem:[%s1 + $0xca4] sm:$0xf]
  %v579 = vld [vmem:[%s1 + $0xca8] sm:$0xff]
  %v580 = vld [vmem:[%s1 + $0xcb0] sm:$0xf]
  %v581 = vld [vmem:[%s1 + $0xcb4] sm:$0xff]
  %v582 = vld [vmem:[%s1 + $0xcbc] sm:$0xf]
  %v583 = vld [vmem:[%s1 + $0xcc0] sm:$0xff]
  %v584 = vld [vmem:[%s1 + $0xcc8] sm:$0xf]
  %v585 = vld [vmem:[%s1 + $0xccc] sm:$0xff]
  %v586 = vld [vmem:[%s1 + $0xcd4] sm:$0xf]
  %v587 = vld [vmem:[%s1 + $0xcd8] sm:$0xff]
  %v588 = vld [vmem:[%s1 + $0xce0] sm:$0xf]
  %v589 = vld [vmem:[%s1 + $0xce4] sm:$0xff]
  %v590 = vld [vmem:[%s1 + $0xcec] sm:$0xf]
  %v591 = vld [vmem:[%s1 + $0xcf0] sm:$0xff]
  %v592 = vld [vmem:[%s1 + $0xcf8] sm:$0xf]
  %v593 = vld [vmem:[%s1 + $0xcfc] sm:$0xff]
  %v594 = vld [vmem:[%s1 + $0xd04] sm:$0xf]
  %v595 = vld [vmem:[%s1 + $0xd08] sm:$0xff]
  %v596 = vld [vmem:[%s1 + $0xd10] sm:$0xf]
  %v597 = vld [vmem:[%s1 + $0xd14] sm:$0xff]
  %v598 = vld [vmem:[%s1 + $0xd1c] sm:$0xf]
  %v599 = vld [vmem:[%s1 + $0xd20] sm:$0xff]
  %v600 = vld [vmem:[%s1 + $0xd28] sm:$0xf]
  %v601 = vld [vmem:[%s1 + $0xd2c] sm:$0xff]
  %v602 = vld [vmem:[%s1 + $0xd34] sm:$0xf]
  %v603 = vld [vmem:[%s1 + $0xd38] sm:$0xff]
  %v604 = vld [vmem:[%s1 + $0xd40] sm:$0xf]
  %v605 = vld [vmem:[%s1 + $0xd44] sm:$0xff]
  %v606 = vld [vmem:[%s1 + $0xd4c] sm:$0xf]
  %v607 = vld [vmem:[%s1 + $0xd50] sm:$0xff]
  %v608 = vld [vmem:[%s1 + $0xd58] sm:$0xf]
  %v609 = vld [vmem:[%s1 + $0xd5c] sm:$0xff]
  %v610 = vld [vmem:[%s1 + $0xd64] sm:$0xf]
  %v611 = vld [vmem:[%s1 + $0xd68] sm:$0xff]
  %v612 = vld [vmem:[%s1 + $0xd70] sm:$0xf]
  %v613 = vld [vmem:[%s1 + $0xd74] sm:$0xff]
  %v614 = vld [vmem:[%s1 + $0xd7c] sm:$0xf]
  %v615 = vld [vmem:[%s1 + $0xd80] sm:$0xff]
  %v616 = vld [vmem:[%s1 + $0xd88] sm:$0xf]
  %v617 = vld [vmem:[%s1 + $0xd8c] sm:$0xff]
  %v618 = vld [vmem:[%s1 + $0xd94] sm:$0xf]
  %v619 = vld [vmem:[%s1 + $0xd98] sm:$0xff]
  %v620 = vld [vmem:[%s1 + $0xda0] sm:$0xf]
  %v621 = vld [vmem:[%s1 + $0xda4] sm:$0xff]
  %v622 = vld [vmem:[%s1 + $0xdac] sm:$0xf]
  %v623 = vld [vmem:[%s1 + $0xdb0] sm:$0xff]
  %v624 = vld [vmem:[%s1 + $0xdb8] sm:$0xf]
  %v625 = vld [vmem:[%s1 + $0xdbc] sm:$0xff]
  %v626 = vld [vmem:[%s1 + $0xdc4] sm:$0xf]
  %v627 = vld [vmem:[%s1 + $0xdc8] sm:$0xff]
  %v628 = vld [vmem:[%s1 + $0xdd0] sm:$0xf]
  %v629 = vld [vmem:[%s1 + $0xdd4] sm:$0xff]
  %v630 = vld [vmem:[%s1 + $0xddc] sm:$0xf]
  %v631 = vld [vmem:[%s1 + $0xde0] sm:$0xff]
  %v632 = vld [vmem:[%s1 + $0xde8] sm:$0xf]
  %v633 = vld [vmem:[%s1 + $0xdec] sm:$0xff]
  %v634 = vld [vmem:[%s1 + $0xdf4] sm:$0xf]
  %v635 = vld [vmem:[%s1 + $0xdf8] sm:$0xff]
  %v636 = vld [vmem:[%s1 + $0xe00] sm:$0xf]
  %v637 = vld [vmem:[%s1 + $0xe04] sm:$0xff]
  %v638 = vld [vmem:[%s1 + $0xe0c] sm:$0xf]
  %v639 = vld [vmem:[%s2] sm:$0x7]
  %v641 = vlaneseq
  %v642 = vshrl.u32 %v641, 7
  %v643 = vsub.s32 0, %v642
  %v644 = vrot.slane %v639, %v643
  %v645 = vlaneseq
  %v646 = vshrl.u32 %v645, 7
  %v647 = vsub.s32 1, %v646
  %v648 = vrot.slane %v639, %v647
  %v649 = vlaneseq
  %v650 = vshrl.u32 %v649, 7
  %v651 = vsub.s32 2, %v650
  %v652 = vrot.slane %v639, %v651
  %v659 = vcombine.high %v36, %v36
  %v661 = vunpack.c.l.s4 1966171168
  %v662 = vunpack.c.0.s8 %v661
  %v663 = vlaneseq
  %v664 = vshrl.u32 %v663, 7
  %v665 = vsub.s32 %v662, %v664
  %v666 = vrot.slane %v36, %v665
  %v668 = vunpack.c.l.s4 1966171168
  %v669 = vunpack.c.0.s8 %v668
  %v670 = vlaneseq
  %v671 = vshrl.u32 %v670, 7
  %v672 = vsub.s32 %v669, %v671
  %v673 = vrot.slane %v659, %v672
  %v674 = vcombine.high %v666, %v666
  %v675 = vcombine.high %v673, %v673
  %v677 = vunpack.c.l.s4 1966171168
  %v678 = vunpack.c.0.s8 %v677
  %v679 = vlaneseq
  %v680 = vshrl.u32 %v679, 7
  %v681 = vsub.s32 %v678, %v680
  %v682 = vrot.slane %v666, %v681
  %v684 = vunpack.c.l.s4 1966171168
  %v685 = vunpack.c.0.s8 %v684
  %v686 = vlaneseq
  %v687 = vshrl.u32 %v686, 7
  %v688 = vsub.s32 %v685, %v687
  %v689 = vrot.slane %v673, %v688
  %v691 = vunpack.c.l.s4 1966171168
  %v692 = vunpack.c.0.s8 %v691
  %v693 = vlaneseq
  %v694 = vshrl.u32 %v693, 7
  %v695 = vsub.s32 %v692, %v694
  %v696 = vrot.slane %v674, %v695
  %v698 = vunpack.c.l.s4 1966171168
  %v699 = vunpack.c.0.s8 %v698
  %v700 = vlaneseq
  %v701 = vshrl.u32 %v700, 7
  %v702 = vsub.s32 %v699, %v701
  %v703 = vrot.slane %v675, %v702
  %v704 = vcombine.high %v682, %v682
  %v705 = vcombine.high %v689, %v689
  %v706 = vcombine.high %v696, %v696
  %v707 = vcombine.high %v703, %v703
  %v708 = vcombine.high %v37, %v37
  %v710 = vunpack.c.l.s4 1966171168
  %v711 = vunpack.c.0.s8 %v710
  %v712 = vlaneseq
  %v713 = vshrl.u32 %v712, 7
  %v714 = vsub.s32 %v711, %v713
  %v715 = vrot.slane %v37, %v714
  %v717 = vunpack.c.l.s4 1966171168
  %v718 = vunpack.c.0.s8 %v717
  %v719 = vlaneseq
  %v720 = vshrl.u32 %v719, 7
  %v721 = vsub.s32 %v718, %v720
  %v722 = vrot.slane %v708, %v721
  %v723 = vcombine.high %v715, %v715
  %v724 = vcombine.high %v722, %v722
  %v726 = vunpack.c.l.s4 1966171168
  %v727 = vunpack.c.0.s8 %v726
  %v728 = vlaneseq
  %v729 = vshrl.u32 %v728, 7
  %v730 = vsub.s32 %v727, %v729
  %v731 = vrot.slane %v715, %v730
  %v733 = vunpack.c.l.s4 1966171168
  %v734 = vunpack.c.0.s8 %v733
  %v735 = vlaneseq
  %v736 = vshrl.u32 %v735, 7
  %v737 = vsub.s32 %v734, %v736
  %v738 = vrot.slane %v722, %v737
  %v740 = vunpack.c.l.s4 1966171168
  %v741 = vunpack.c.0.s8 %v740
  %v742 = vlaneseq
  %v743 = vshrl.u32 %v742, 7
  %v744 = vsub.s32 %v741, %v743
  %v745 = vrot.slane %v723, %v744
  %v747 = vunpack.c.l.s4 1966171168
  %v748 = vunpack.c.0.s8 %v747
  %v749 = vlaneseq
  %v750 = vshrl.u32 %v749, 7
  %v751 = vsub.s32 %v748, %v750
  %v752 = vrot.slane %v724, %v751
  %v753 = vcombine.high %v731, %v731
  %v754 = vcombine.high %v738, %v738
  %v755 = vcombine.high %v745, %v745
  %v756 = vcombine.high %v752, %v752
  %v758 = vunpack.c.l.s4 1966171168
  %v759 = vunpack.c.0.s8 %v758
  %v760 = vlaneseq
  %v761 = vshrl.u32 %v760, 7
  %v762 = vsub.s32 %v759, %v761
  %v763 = vrot.slane %v38, %v762
  %v764 = vcombine.high %v763, %v763
  %v766 = vunpack.c.l.s4 1966171168
  %v767 = vunpack.c.0.s8 %v766
  %v768 = vlaneseq
  %v769 = vshrl.u32 %v768, 7
  %v770 = vsub.s32 %v767, %v769
  %v771 = vrot.slane %v763, %v770
  %v773 = vunpack.c.l.s4 1966171168
  %v774 = vunpack.c.0.s8 %v773
  %v775 = vlaneseq
  %v776 = vshrl.u32 %v775, 7
  %v777 = vsub.s32 %v774, %v776
  %v778 = vrot.slane %v764, %v777
  %v779 = vcombine.high %v771, %v771
  %v1398 = vunpack.c.l.b16 %v39
  %v1399 = vunpack.c.h.b16 %v39
  %v1400 = vunpack.c.l.b16 %v40
  %v1401 = vunpack.c.l.b16 %v41
  %v1402 = vunpack.c.h.b16 %v41
  %v1403 = vunpack.c.l.b16 %v42
  %v1404 = vunpack.c.l.b16 %v43
  %v1405 = vunpack.c.h.b16 %v43
  %v1406 = vunpack.c.l.b16 %v44
  %v1407 = vunpack.c.l.b16 %v45
  %v1408 = vunpack.c.h.b16 %v45
  %v1409 = vunpack.c.l.b16 %v46
  %v1410 = vunpack.c.l.b16 %v47
  %v1411 = vunpack.c.h.b16 %v47
  %v1412 = vunpack.c.l.b16 %v48
  %v1413 = vunpack.c.l.b16 %v49
  %v1414 = vunpack.c.h.b16 %v49
  %v1415 = vunpack.c.l.b16 %v50
  %v1416 = vunpack.c.l.b16 %v51
  %v1417 = vunpack.c.h.b16 %v51
  %v1418 = vunpack.c.l.b16 %v52
  %v1419 = vunpack.c.l.b16 %v53
  %v1420 = vunpack.c.h.b16 %v53
  %v1421 = vunpack.c.l.b16 %v54
  %v1422 = vunpack.c.l.b16 %v55
  %v1423 = vunpack.c.h.b16 %v55
  %v1424 = vunpack.c.l.b16 %v56
  %v1425 = vunpack.c.l.b16 %v57
  %v1426 = vunpack.c.h.b16 %v57
  %v1427 = vunpack.c.l.b16 %v58
  %v1428 = vunpack.c.l.b16 %v59
  %v1429 = vunpack.c.h.b16 %v59
  %v1430 = vunpack.c.l.b16 %v60
  %v1431 = vunpack.c.l.b16 %v61
  %v1432 = vunpack.c.h.b16 %v61
  %v1433 = vunpack.c.l.b16 %v62
  %v1434 = vunpack.c.l.b16 %v63
  %v1435 = vunpack.c.h.b16 %v63
  %v1436 = vunpack.c.l.b16 %v64
  %v1437 = vunpack.c.l.b16 %v65
  %v1438 = vunpack.c.h.b16 %v65
  %v1439 = vunpack.c.l.b16 %v66
  %v1440 = vunpack.c.l.b16 %v67
  %v1441 = vunpack.c.h.b16 %v67
  %v1442 = vunpack.c.l.b16 %v68
  %v1443 = vunpack.c.l.b16 %v69
  %v1444 = vunpack.c.h.b16 %v69
  %v1445 = vunpack.c.l.b16 %v70
  %v1446 = vunpack.c.l.b16 %v71
  %v1447 = vunpack.c.h.b16 %v71
  %v1448 = vunpack.c.l.b16 %v72
  %v1449 = vunpack.c.l.b16 %v73
  %v1450 = vunpack.c.h.b16 %v73
  %v1451 = vunpack.c.l.b16 %v74
  %v1452 = vunpack.c.l.b16 %v75
  %v1453 = vunpack.c.h.b16 %v75
  %v1454 = vunpack.c.l.b16 %v76
  %v1455 = vunpack.c.l.b16 %v77
  %v1456 = vunpack.c.h.b16 %v77
  %v1457 = vunpack.c.l.b16 %v78
  %v1458 = vunpack.c.l.b16 %v79
  %v1459 = vunpack.c.h.b16 %v79
  %v1460 = vunpack.c.l.b16 %v80
  %v1461 = vunpack.c.l.b16 %v81
  %v1462 = vunpack.c.h.b16 %v81
  %v1463 = vunpack.c.l.b16 %v82
  %v1464 = vunpack.c.l.b16 %v83
  %v1465 = vunpack.c.h.b16 %v83
  %v1466 = vunpack.c.l.b16 %v84
  %v1467 = vunpack.c.l.b16 %v85
  %v1468 = vunpack.c.h.b16 %v85
  %v1469 = vunpack.c.l.b16 %v86
  %v1470 = vunpack.c.l.b16 %v87
  %v1471 = vunpack.c.h.b16 %v87
  %v1472 = vunpack.c.l.b16 %v88
  %v1473 = vunpack.c.l.b16 %v89
  %v1474 = vunpack.c.h.b16 %v89
  %v1475 = vunpack.c.l.b16 %v90
  %v1476 = vunpack.c.l.b16 %v91
  %v1477 = vunpack.c.h.b16 %v91
  %v1478 = vunpack.c.l.b16 %v92
  %v1479 = vunpack.c.l.b16 %v93
  %v1480 = vunpack.c.h.b16 %v93
  %v1481 = vunpack.c.l.b16 %v94
  %v1482 = vunpack.c.l.b16 %v95
  %v1483 = vunpack.c.h.b16 %v95
  %v1484 = vunpack.c.l.b16 %v96
  %v1485 = vunpack.c.l.b16 %v97
  %v1486 = vunpack.c.h.b16 %v97
  %v1487 = vunpack.c.l.b16 %v98
  %v1488 = vunpack.c.l.b16 %v99
  %v1489 = vunpack.c.h.b16 %v99
  %v1490 = vunpack.c.l.b16 %v100
  %v1491 = vunpack.c.l.b16 %v101
  %v1492 = vunpack.c.h.b16 %v101
  %v1493 = vunpack.c.l.b16 %v102
  %v1494 = vunpack.c.l.b16 %v103
  %v1495 = vunpack.c.h.b16 %v103
  %v1496 = vunpack.c.l.b16 %v104
  %v1497 = vunpack.c.l.b16 %v105
  %v1498 = vunpack.c.h.b16 %v105
  %v1499 = vunpack.c.l.b16 %v106
  %v1500 = vunpack.c.l.b16 %v107
  %v1501 = vunpack.c.h.b16 %v107
  %v1502 = vunpack.c.l.b16 %v108
  %v1503 = vunpack.c.l.b16 %v109
  %v1504 = vunpack.c.h.b16 %v109
  %v1505 = vunpack.c.l.b16 %v110
  %v1506 = vunpack.c.l.b16 %v111
  %v1507 = vunpack.c.h.b16 %v111
  %v1508 = vunpack.c.l.b16 %v112
  %v1509 = vunpack.c.l.b16 %v113
  %v1510 = vunpack.c.h.b16 %v113
  %v1511 = vunpack.c.l.b16 %v114
  %v1512 = vunpack.c.l.b16 %v115
  %v1513 = vunpack.c.h.b16 %v115
  %v1514 = vunpack.c.l.b16 %v116
  %v1515 = vunpack.c.l.b16 %v117
  %v1516 = vunpack.c.h.b16 %v117
  %v1517 = vunpack.c.l.b16 %v118
  %v1518 = vunpack.c.l.b16 %v119
  %v1519 = vunpack.c.h.b16 %v119
  %v1520 = vunpack.c.l.b16 %v120
  %v1521 = vunpack.c.l.b16 %v121
  %v1522 = vunpack.c.h.b16 %v121
  %v1523 = vunpack.c.l.b16 %v122
  %v1524 = vunpack.c.l.b16 %v123
  %v1525 = vunpack.c.h.b16 %v123
  %v1526 = vunpack.c.l.b16 %v124
  %v1527 = vunpack.c.l.b16 %v125
  %v1528 = vunpack.c.h.b16 %v125
  %v1529 = vunpack.c.l.b16 %v126
  %v1530 = vunpack.c.l.b16 %v127
  %v1531 = vunpack.c.h.b16 %v127
  %v1532 = vunpack.c.l.b16 %v128
  %v1533 = vunpack.c.l.b16 %v129
  %v1534 = vunpack.c.h.b16 %v129
  %v1535 = vunpack.c.l.b16 %v130
  %v1536 = vunpack.c.l.b16 %v131
  %v1537 = vunpack.c.h.b16 %v131
  %v1538 = vunpack.c.l.b16 %v132
  %v1539 = vunpack.c.l.b16 %v133
  %v1540 = vunpack.c.h.b16 %v133
  %v1541 = vunpack.c.l.b16 %v134
  %v1542 = vunpack.c.l.b16 %v135
  %v1543 = vunpack.c.h.b16 %v135
  %v1544 = vunpack.c.l.b16 %v136
  %v1545 = vunpack.c.l.b16 %v137
  %v1546 = vunpack.c.h.b16 %v137
  %v1547 = vunpack.c.l.b16 %v138
  %v1548 = vunpack.c.l.b16 %v139
  %v1549 = vunpack.c.h.b16 %v139
  %v1550 = vunpack.c.l.b16 %v140
  %v1551 = vunpack.c.l.b16 %v141
  %v1552 = vunpack.c.h.b16 %v141
  %v1553 = vunpack.c.l.b16 %v142
  %v1554 = vunpack.c.l.b16 %v143
  %v1555 = vunpack.c.h.b16 %v143
  %v1556 = vunpack.c.l.b16 %v144
  %v1557 = vunpack.c.l.b16 %v145
  %v1558 = vunpack.c.h.b16 %v145
  %v1559 = vunpack.c.l.b16 %v146
  %v1560 = vunpack.c.l.b16 %v147
  %v1561 = vunpack.c.h.b16 %v147
  %v1562 = vunpack.c.l.b16 %v148
  %v1563 = vunpack.c.l.b16 %v149
  %v1564 = vunpack.c.h.b16 %v149
  %v1565 = vunpack.c.l.b16 %v150
  %v1566 = vunpack.c.l.b16 %v151
  %v1567 = vunpack.c.h.b16 %v151
  %v1568 = vunpack.c.l.b16 %v152
  %v1569 = vunpack.c.l.b16 %v153
  %v1570 = vunpack.c.h.b16 %v153
  %v1571 = vunpack.c.l.b16 %v154
  %v1572 = vunpack.c.l.b16 %v155
  %v1573 = vunpack.c.h.b16 %v155
  %v1574 = vunpack.c.l.b16 %v156
  %v1575 = vunpack.c.l.b16 %v157
  %v1576 = vunpack.c.h.b16 %v157
  %v1577 = vunpack.c.l.b16 %v158
  %v1578 = vunpack.c.l.b16 %v159
  %v1579 = vunpack.c.h.b16 %v159
  %v1580 = vunpack.c.l.b16 %v160
  %v1581 = vunpack.c.l.b16 %v161
  %v1582 = vunpack.c.h.b16 %v161
  %v1583 = vunpack.c.l.b16 %v162
  %v1584 = vunpack.c.l.b16 %v163
  %v1585 = vunpack.c.h.b16 %v163
  %v1586 = vunpack.c.l.b16 %v164
  %v1587 = vunpack.c.l.b16 %v165
  %v1588 = vunpack.c.h.b16 %v165
  %v1589 = vunpack.c.l.b16 %v166
  %v1590 = vunpack.c.l.b16 %v167
  %v1591 = vunpack.c.h.b16 %v167
  %v1592 = vunpack.c.l.b16 %v168
  %v1593 = vunpack.c.l.b16 %v169
  %v1594 = vunpack.c.h.b16 %v169
  %v1595 = vunpack.c.l.b16 %v170
  %v1596 = vunpack.c.l.b16 %v171
  %v1597 = vunpack.c.h.b16 %v171
  %v1598 = vunpack.c.l.b16 %v172
  %v1599 = vunpack.c.l.b16 %v173
  %v1600 = vunpack.c.h.b16 %v173
  %v1601 = vunpack.c.l.b16 %v174
  %v1602 = vunpack.c.l.b16 %v175
  %v1603 = vunpack.c.h.b16 %v175
  %v1604 = vunpack.c.l.b16 %v176
  %v1605 = vunpack.c.l.b16 %v177
  %v1606 = vunpack.c.h.b16 %v177
  %v1607 = vunpack.c.l.b16 %v178
  %v1608 = vunpack.c.l.b16 %v179
  %v1609 = vunpack.c.h.b16 %v179
  %v1610 = vunpack.c.l.b16 %v180
  %v1611 = vunpack.c.l.b16 %v181
  %v1612 = vunpack.c.h.b16 %v181
  %v1613 = vunpack.c.l.b16 %v182
  %v1614 = vunpack.c.l.b16 %v183
  %v1615 = vunpack.c.h.b16 %v183
  %v1616 = vunpack.c.l.b16 %v184
  %v1617 = vunpack.c.l.b16 %v185
  %v1618 = vunpack.c.h.b16 %v185
  %v1619 = vunpack.c.l.b16 %v186
  %v1620 = vunpack.c.l.b16 %v187
  %v1621 = vunpack.c.h.b16 %v187
  %v1622 = vunpack.c.l.b16 %v188
  %v1623 = vunpack.c.l.b16 %v189
  %v1624 = vunpack.c.h.b16 %v189
  %v1625 = vunpack.c.l.b16 %v190
  %v1626 = vunpack.c.l.b16 %v191
  %v1627 = vunpack.c.h.b16 %v191
  %v1628 = vunpack.c.l.b16 %v192
  %v1629 = vunpack.c.l.b16 %v193
  %v1630 = vunpack.c.h.b16 %v193
  %v1631 = vunpack.c.l.b16 %v194
  %v1632 = vunpack.c.l.b16 %v195
  %v1633 = vunpack.c.h.b16 %v195
  %v1634 = vunpack.c.l.b16 %v196
  %v1635 = vunpack.c.l.b16 %v197
  %v1636 = vunpack.c.h.b16 %v197
  %v1637 = vunpack.c.l.b16 %v198
  %v1638 = vunpack.c.l.b16 %v199
  %v1639 = vunpack.c.h.b16 %v199
  %v1640 = vunpack.c.l.b16 %v200
  %v1641 = vunpack.c.l.b16 %v201
  %v1642 = vunpack.c.h.b16 %v201
  %v1643 = vunpack.c.l.b16 %v202
  %v1644 = vunpack.c.l.b16 %v203
  %v1645 = vunpack.c.h.b16 %v203
  %v1646 = vunpack.c.l.b16 %v204
  %v1647 = vunpack.c.l.b16 %v205
  %v1648 = vunpack.c.h.b16 %v205
  %v1649 = vunpack.c.l.b16 %v206
  %v1650 = vunpack.c.l.b16 %v207
  %v1651 = vunpack.c.h.b16 %v207
  %v1652 = vunpack.c.l.b16 %v208
  %v1653 = vunpack.c.l.b16 %v209
  %v1654 = vunpack.c.h.b16 %v209
  %v1655 = vunpack.c.l.b16 %v210
  %v1656 = vunpack.c.l.b16 %v211
  %v1657 = vunpack.c.h.b16 %v211
  %v1658 = vunpack.c.l.b16 %v212
  %v1659 = vunpack.c.l.b16 %v213
  %v1660 = vunpack.c.h.b16 %v213
  %v1661 = vunpack.c.l.b16 %v214
  %v1662 = vunpack.c.l.b16 %v215
  %v1663 = vunpack.c.h.b16 %v215
  %v1664 = vunpack.c.l.b16 %v216
  %v1665 = vunpack.c.l.b16 %v217
  %v1666 = vunpack.c.h.b16 %v217
  %v1667 = vunpack.c.l.b16 %v218
  %v1668 = vunpack.c.l.b16 %v219
  %v1669 = vunpack.c.h.b16 %v219
  %v1670 = vunpack.c.l.b16 %v220
  %v1671 = vunpack.c.l.b16 %v221
  %v1672 = vunpack.c.h.b16 %v221
  %v1673 = vunpack.c.l.b16 %v222
  %v1674 = vunpack.c.l.b16 %v223
  %v1675 = vunpack.c.h.b16 %v223
  %v1676 = vunpack.c.l.b16 %v224
  %v1677 = vunpack.c.l.b16 %v225
  %v1678 = vunpack.c.h.b16 %v225
  %v1679 = vunpack.c.l.b16 %v226
  %v1680 = vunpack.c.l.b16 %v227
  %v1681 = vunpack.c.h.b16 %v227
  %v1682 = vunpack.c.l.b16 %v228
  %v1683 = vunpack.c.l.b16 %v229
  %v1684 = vunpack.c.h.b16 %v229
  %v1685 = vunpack.c.l.b16 %v230
  %v1686 = vunpack.c.l.b16 %v231
  %v1687 = vunpack.c.h.b16 %v231
  %v1688 = vunpack.c.l.b16 %v232
  %v1689 = vunpack.c.l.b16 %v233
  %v1690 = vunpack.c.h.b16 %v233
  %v1691 = vunpack.c.l.b16 %v234
  %v1692 = vunpack.c.l.b16 %v235
  %v1693 = vunpack.c.h.b16 %v235
  %v1694 = vunpack.c.l.b16 %v236
  %v1695 = vunpack.c.l.b16 %v237
  %v1696 = vunpack.c.h.b16 %v237
  %v1697 = vunpack.c.l.b16 %v238
  %v1698 = vunpack.c.l.b16 %v239
  %v1699 = vunpack.c.h.b16 %v239
  %v1700 = vunpack.c.l.b16 %v240
  %v1701 = vunpack.c.l.b16 %v241
  %v1702 = vunpack.c.h.b16 %v241
  %v1703 = vunpack.c.l.b16 %v242
  %v1704 = vunpack.c.l.b16 %v243
  %v1705 = vunpack.c.h.b16 %v243
  %v1706 = vunpack.c.l.b16 %v244
  %v1707 = vunpack.c.l.b16 %v245
  %v1708 = vunpack.c.h.b16 %v245
  %v1709 = vunpack.c.l.b16 %v246
  %v1710 = vunpack.c.l.b16 %v247
  %v1711 = vunpack.c.h.b16 %v247
  %v1712 = vunpack.c.l.b16 %v248
  %v1713 = vunpack.c.l.b16 %v249
  %v1714 = vunpack.c.h.b16 %v249
  %v1715 = vunpack.c.l.b16 %v250
  %v1716 = vunpack.c.l.b16 %v251
  %v1717 = vunpack.c.h.b16 %v251
  %v1718 = vunpack.c.l.b16 %v252
  %v1719 = vunpack.c.l.b16 %v253
  %v1720 = vunpack.c.h.b16 %v253
  %v1721 = vunpack.c.l.b16 %v254
  %v1722 = vunpack.c.l.b16 %v255
  %v1723 = vunpack.c.h.b16 %v255
  %v1724 = vunpack.c.l.b16 %v256
  %v1725 = vunpack.c.l.b16 %v257
  %v1726 = vunpack.c.h.b16 %v257
  %v1727 = vunpack.c.l.b16 %v258
  %v1728 = vunpack.c.l.b16 %v259
  %v1729 = vunpack.c.h.b16 %v259
  %v1730 = vunpack.c.l.b16 %v260
  %v1731 = vunpack.c.l.b16 %v261
  %v1732 = vunpack.c.h.b16 %v261
  %v1733 = vunpack.c.l.b16 %v262
  %v1734 = vunpack.c.l.b16 %v263
  %v1735 = vunpack.c.h.b16 %v263
  %v1736 = vunpack.c.l.b16 %v264
  %v1737 = vunpack.c.l.b16 %v265
  %v1738 = vunpack.c.h.b16 %v265
  %v1739 = vunpack.c.l.b16 %v266
  %v1740 = vunpack.c.l.b16 %v267
  %v1741 = vunpack.c.h.b16 %v267
  %v1742 = vunpack.c.l.b16 %v268
  %v1743 = vunpack.c.l.b16 %v269
  %v1744 = vunpack.c.h.b16 %v269
  %v1745 = vunpack.c.l.b16 %v270
  %v1746 = vunpack.c.l.b16 %v271
  %v1747 = vunpack.c.h.b16 %v271
  %v1748 = vunpack.c.l.b16 %v272
  %v1749 = vunpack.c.l.b16 %v273
  %v1750 = vunpack.c.h.b16 %v273
  %v1751 = vunpack.c.l.b16 %v274
  %v1752 = vunpack.c.l.b16 %v275
  %v1753 = vunpack.c.h.b16 %v275
  %v1754 = vunpack.c.l.b16 %v276
  %v1755 = vunpack.c.l.b16 %v277
  %v1756 = vunpack.c.h.b16 %v277
  %v1757 = vunpack.c.l.b16 %v278
  %v1758 = vunpack.c.l.b16 %v279
  %v1759 = vunpack.c.h.b16 %v279
  %v1760 = vunpack.c.l.b16 %v280
  %v1761 = vunpack.c.l.b16 %v281
  %v1762 = vunpack.c.h.b16 %v281
  %v1763 = vunpack.c.l.b16 %v282
  %v1764 = vunpack.c.l.b16 %v283
  %v1765 = vunpack.c.h.b16 %v283
  %v1766 = vunpack.c.l.b16 %v284
  %v1767 = vunpack.c.l.b16 %v285
  %v1768 = vunpack.c.h.b16 %v285
  %v1769 = vunpack.c.l.b16 %v286
  %v1770 = vunpack.c.l.b16 %v287
  %v1771 = vunpack.c.h.b16 %v287
  %v1772 = vunpack.c.l.b16 %v288
  %v1773 = vunpack.c.l.b16 %v289
  %v1774 = vunpack.c.h.b16 %v289
  %v1775 = vunpack.c.l.b16 %v290
  %v1776 = vunpack.c.l.b16 %v291
  %v1777 = vunpack.c.h.b16 %v291
  %v1778 = vunpack.c.l.b16 %v292
  %v1779 = vunpack.c.l.b16 %v293
  %v1780 = vunpack.c.h.b16 %v293
  %v1781 = vunpack.c.l.b16 %v294
  %v1782 = vunpack.c.l.b16 %v295
  %v1783 = vunpack.c.h.b16 %v295
  %v1784 = vunpack.c.l.b16 %v296
  %v1785 = vunpack.c.l.b16 %v297
  %v1786 = vunpack.c.h.b16 %v297
  %v1787 = vunpack.c.l.b16 %v298
  %v1788 = vunpack.c.l.b16 %v299
  %v1789 = vunpack.c.h.b16 %v299
  %v1790 = vunpack.c.l.b16 %v300
  %v1791 = vunpack.c.l.b16 %v301
  %v1792 = vunpack.c.h.b16 %v301
  %v1793 = vunpack.c.l.b16 %v302
  %v1794 = vunpack.c.l.b16 %v303
  %v1795 = vunpack.c.h.b16 %v303
  %v1796 = vunpack.c.l.b16 %v304
  %v1797 = vunpack.c.l.b16 %v305
  %v1798 = vunpack.c.h.b16 %v305
  %v1799 = vunpack.c.l.b16 %v306
  %v1800 = vunpack.c.l.b16 %v307
  %v1801 = vunpack.c.h.b16 %v307
  %v1802 = vunpack.c.l.b16 %v308
  %v1803 = vunpack.c.l.b16 %v309
  %v1804 = vunpack.c.h.b16 %v309
  %v1805 = vunpack.c.l.b16 %v310
  %v1806 = vunpack.c.l.b16 %v311
  %v1807 = vunpack.c.h.b16 %v311
  %v1808 = vunpack.c.l.b16 %v312
  %v1809 = vunpack.c.l.b16 %v313
  %v1810 = vunpack.c.h.b16 %v313
  %v1811 = vunpack.c.l.b16 %v314
  %v1812 = vunpack.c.l.b16 %v315
  %v1813 = vunpack.c.h.b16 %v315
  %v1814 = vunpack.c.l.b16 %v316
  %v1815 = vunpack.c.l.b16 %v317
  %v1816 = vunpack.c.h.b16 %v317
  %v1817 = vunpack.c.l.b16 %v318
  %v1818 = vunpack.c.l.b16 %v319
  %v1819 = vunpack.c.h.b16 %v319
  %v1820 = vunpack.c.l.b16 %v320
  %v1821 = vunpack.c.l.b16 %v321
  %v1822 = vunpack.c.h.b16 %v321
  %v1823 = vunpack.c.l.b16 %v322
  %v1824 = vunpack.c.l.b16 %v323
  %v1825 = vunpack.c.h.b16 %v323
  %v1826 = vunpack.c.l.b16 %v324
  %v1827 = vunpack.c.l.b16 %v325
  %v1828 = vunpack.c.h.b16 %v325
  %v1829 = vunpack.c.l.b16 %v326
  %v1830 = vunpack.c.l.b16 %v327
  %v1831 = vunpack.c.h.b16 %v327
  %v1832 = vunpack.c.l.b16 %v328
  %v1833 = vunpack.c.l.b16 %v329
  %v1834 = vunpack.c.h.b16 %v329
  %v1835 = vunpack.c.l.b16 %v330
  %v1836 = vunpack.c.l.b16 %v331
  %v1837 = vunpack.c.h.b16 %v331
  %v1838 = vunpack.c.l.b16 %v332
  %v1839 = vunpack.c.l.b16 %v333
  %v1840 = vunpack.c.h.b16 %v333
  %v1841 = vunpack.c.l.b16 %v334
  %v1842 = vunpack.c.l.b16 %v335
  %v1843 = vunpack.c.h.b16 %v335
  %v1844 = vunpack.c.l.b16 %v336
  %v1845 = vunpack.c.l.b16 %v337
  %v1846 = vunpack.c.h.b16 %v337
  %v1847 = vunpack.c.l.b16 %v338
  %v1848 = vunpack.c.l.b16 %v339
  %v1849 = vunpack.c.h.b16 %v339
  %v1850 = vunpack.c.l.b16 %v340
  %v1851 = vunpack.c.l.b16 %v341
  %v1852 = vunpack.c.h.b16 %v341
  %v1853 = vunpack.c.l.b16 %v342
  %v1854 = vunpack.c.l.b16 %v343
  %v1855 = vunpack.c.h.b16 %v343
  %v1856 = vunpack.c.l.b16 %v344
  %v1857 = vunpack.c.l.b16 %v345
  %v1858 = vunpack.c.h.b16 %v345
  %v1859 = vunpack.c.l.b16 %v346
  %v1860 = vunpack.c.l.b16 %v347
  %v1861 = vunpack.c.h.b16 %v347
  %v1862 = vunpack.c.l.b16 %v348
  %v1863 = vunpack.c.l.b16 %v349
  %v1864 = vunpack.c.h.b16 %v349
  %v1865 = vunpack.c.l.b16 %v350
  %v1866 = vunpack.c.l.b16 %v351
  %v1867 = vunpack.c.h.b16 %v351
  %v1868 = vunpack.c.l.b16 %v352
  %v1869 = vunpack.c.l.b16 %v353
  %v1870 = vunpack.c.h.b16 %v353
  %v1871 = vunpack.c.l.b16 %v354
  %v1872 = vunpack.c.l.b16 %v355
  %v1873 = vunpack.c.h.b16 %v355
  %v1874 = vunpack.c.l.b16 %v356
  %v1875 = vunpack.c.l.b16 %v357
  %v1876 = vunpack.c.h.b16 %v357
  %v1877 = vunpack.c.l.b16 %v358
  %v1878 = vunpack.c.l.b16 %v359
  %v1879 = vunpack.c.h.b16 %v359
  %v1880 = vunpack.c.l.b16 %v360
  %v1881 = vunpack.c.l.b16 %v361
  %v1882 = vunpack.c.h.b16 %v361
  %v1883 = vunpack.c.l.b16 %v362
  %v1884 = vunpack.c.l.b16 %v363
  %v1885 = vunpack.c.h.b16 %v363
  %v1886 = vunpack.c.l.b16 %v364
  %v1887 = vunpack.c.l.b16 %v365
  %v1888 = vunpack.c.h.b16 %v365
  %v1889 = vunpack.c.l.b16 %v366
  %v1890 = vunpack.c.l.b16 %v367
  %v1891 = vunpack.c.h.b16 %v367
  %v1892 = vunpack.c.l.b16 %v368
  %v1893 = vunpack.c.l.b16 %v369
  %v1894 = vunpack.c.h.b16 %v369
  %v1895 = vunpack.c.l.b16 %v370
  %v1896 = vunpack.c.l.b16 %v371
  %v1897 = vunpack.c.h.b16 %v371
  %v1898 = vunpack.c.l.b16 %v372
  %v1899 = vunpack.c.l.b16 %v373
  %v1900 = vunpack.c.h.b16 %v373
  %v1901 = vunpack.c.l.b16 %v374
  %v1902 = vunpack.c.l.b16 %v375
  %v1903 = vunpack.c.h.b16 %v375
  %v1904 = vunpack.c.l.b16 %v376
  %v1905 = vunpack.c.l.b16 %v377
  %v1906 = vunpack.c.h.b16 %v377
  %v1907 = vunpack.c.l.b16 %v378
  %v1908 = vunpack.c.l.b16 %v379
  %v1909 = vunpack.c.h.b16 %v379
  %v1910 = vunpack.c.l.b16 %v380
  %v1911 = vunpack.c.l.b16 %v381
  %v1912 = vunpack.c.h.b16 %v381
  %v1913 = vunpack.c.l.b16 %v382
  %v1914 = vunpack.c.l.b16 %v383
  %v1915 = vunpack.c.h.b16 %v383
  %v1916 = vunpack.c.l.b16 %v384
  %v1917 = vunpack.c.l.b16 %v385
  %v1918 = vunpack.c.h.b16 %v385
  %v1919 = vunpack.c.l.b16 %v386
  %v1920 = vunpack.c.l.b16 %v387
  %v1921 = vunpack.c.h.b16 %v387
  %v1922 = vunpack.c.l.b16 %v388
  %v1923 = vunpack.c.l.b16 %v389
  %v1924 = vunpack.c.h.b16 %v389
  %v1925 = vunpack.c.l.b16 %v390
  %v1926 = vunpack.c.l.b16 %v391
  %v1927 = vunpack.c.h.b16 %v391
  %v1928 = vunpack.c.l.b16 %v392
  %v1929 = vunpack.c.l.b16 %v393
  %v1930 = vunpack.c.h.b16 %v393
  %v1931 = vunpack.c.l.b16 %v394
  %v1932 = vunpack.c.l.b16 %v395
  %v1933 = vunpack.c.h.b16 %v395
  %v1934 = vunpack.c.l.b16 %v396
  %v1935 = vunpack.c.l.b16 %v397
  %v1936 = vunpack.c.h.b16 %v397
  %v1937 = vunpack.c.l.b16 %v398
  %v1938 = vunpack.c.l.b16 %v399
  %v1939 = vunpack.c.h.b16 %v399
  %v1940 = vunpack.c.l.b16 %v400
  %v1941 = vunpack.c.l.b16 %v401
  %v1942 = vunpack.c.h.b16 %v401
  %v1943 = vunpack.c.l.b16 %v402
  %v1944 = vunpack.c.l.b16 %v403
  %v1945 = vunpack.c.h.b16 %v403
  %v1946 = vunpack.c.l.b16 %v404
  %v1947 = vunpack.c.l.b16 %v405
  %v1948 = vunpack.c.h.b16 %v405
  %v1949 = vunpack.c.l.b16 %v406
  %v1950 = vunpack.c.l.b16 %v407
  %v1951 = vunpack.c.h.b16 %v407
  %v1952 = vunpack.c.l.b16 %v408
  %v1953 = vunpack.c.l.b16 %v409
  %v1954 = vunpack.c.h.b16 %v409
  %v1955 = vunpack.c.l.b16 %v410
  %v1956 = vunpack.c.l.b16 %v411
  %v1957 = vunpack.c.h.b16 %v411
  %v1958 = vunpack.c.l.b16 %v412
  %v1959 = vunpack.c.l.b16 %v413
  %v1960 = vunpack.c.h.b16 %v413
  %v1961 = vunpack.c.l.b16 %v414
  %v1962 = vunpack.c.l.b16 %v415
  %v1963 = vunpack.c.h.b16 %v415
  %v1964 = vunpack.c.l.b16 %v416
  %v1965 = vunpack.c.l.b16 %v417
  %v1966 = vunpack.c.h.b16 %v417
  %v1967 = vunpack.c.l.b16 %v418
  %v1968 = vunpack.c.l.b16 %v419
  %v1969 = vunpack.c.h.b16 %v419
  %v1970 = vunpack.c.l.b16 %v420
  %v1971 = vunpack.c.l.b16 %v421
  %v1972 = vunpack.c.h.b16 %v421
  %v1973 = vunpack.c.l.b16 %v422
  %v1974 = vunpack.c.l.b16 %v423
  %v1975 = vunpack.c.h.b16 %v423
  %v1976 = vunpack.c.l.b16 %v424
  %v1977 = vunpack.c.l.b16 %v425
  %v1978 = vunpack.c.h.b16 %v425
  %v1979 = vunpack.c.l.b16 %v426
  %v1980 = vunpack.c.l.b16 %v427
  %v1981 = vunpack.c.h.b16 %v427
  %v1982 = vunpack.c.l.b16 %v428
  %v1983 = vunpack.c.l.b16 %v429
  %v1984 = vunpack.c.h.b16 %v429
  %v1985 = vunpack.c.l.b16 %v430
  %v1986 = vunpack.c.l.b16 %v431
  %v1987 = vunpack.c.h.b16 %v431
  %v1988 = vunpack.c.l.b16 %v432
  %v1989 = vunpack.c.l.b16 %v433
  %v1990 = vunpack.c.h.b16 %v433
  %v1991 = vunpack.c.l.b16 %v434
  %v1992 = vunpack.c.l.b16 %v435
  %v1993 = vunpack.c.h.b16 %v435
  %v1994 = vunpack.c.l.b16 %v436
  %v1995 = vunpack.c.l.b16 %v437
  %v1996 = vunpack.c.h.b16 %v437
  %v1997 = vunpack.c.l.b16 %v438
  %v1998 = vunpack.c.l.b16 %v439
  %v1999 = vunpack.c.h.b16 %v439
  %v2000 = vunpack.c.l.b16 %v440
  %v2001 = vunpack.c.l.b16 %v441
  %v2002 = vunpack.c.h.b16 %v441
  %v2003 = vunpack.c.l.b16 %v442
  %v2004 = vunpack.c.l.b16 %v443
  %v2005 = vunpack.c.h.b16 %v443
  %v2006 = vunpack.c.l.b16 %v444
  %v2007 = vunpack.c.l.b16 %v445
  %v2008 = vunpack.c.h.b16 %v445
  %v2009 = vunpack.c.l.b16 %v446
  %v2010 = vunpack.c.l.b16 %v447
  %v2011 = vunpack.c.h.b16 %v447
  %v2012 = vunpack.c.l.b16 %v448
  %v2013 = vunpack.c.l.b16 %v449
  %v2014 = vunpack.c.h.b16 %v449
  %v2015 = vunpack.c.l.b16 %v450
  %v2016 = vunpack.c.l.b16 %v451
  %v2017 = vunpack.c.h.b16 %v451
  %v2018 = vunpack.c.l.b16 %v452
  %v2019 = vunpack.c.l.b16 %v453
  %v2020 = vunpack.c.h.b16 %v453
  %v2021 = vunpack.c.l.b16 %v454
  %v2022 = vunpack.c.l.b16 %v455
  %v2023 = vunpack.c.h.b16 %v455
  %v2024 = vunpack.c.l.b16 %v456
  %v2025 = vunpack.c.l.b16 %v457
  %v2026 = vunpack.c.h.b16 %v457
  %v2027 = vunpack.c.l.b16 %v458
  %v2028 = vunpack.c.l.b16 %v459
  %v2029 = vunpack.c.h.b16 %v459
  %v2030 = vunpack.c.l.b16 %v460
  %v2031 = vunpack.c.l.b16 %v461
  %v2032 = vunpack.c.h.b16 %v461
  %v2033 = vunpack.c.l.b16 %v462
  %v2034 = vunpack.c.l.b16 %v463
  %v2035 = vunpack.c.h.b16 %v463
  %v2036 = vunpack.c.l.b16 %v464
  %v2037 = vunpack.c.l.b16 %v465
  %v2038 = vunpack.c.h.b16 %v465
  %v2039 = vunpack.c.l.b16 %v466
  %v2040 = vunpack.c.l.b16 %v467
  %v2041 = vunpack.c.h.b16 %v467
  %v2042 = vunpack.c.l.b16 %v468
  %v2043 = vunpack.c.l.b16 %v469
  %v2044 = vunpack.c.h.b16 %v469
  %v2045 = vunpack.c.l.b16 %v470
  %v2046 = vunpack.c.l.b16 %v471
  %v2047 = vunpack.c.h.b16 %v471
  %v2048 = vunpack.c.l.b16 %v472
  %v2049 = vunpack.c.l.b16 %v473
  %v2050 = vunpack.c.h.b16 %v473
  %v2051 = vunpack.c.l.b16 %v474
  %v2052 = vunpack.c.l.b16 %v475
  %v2053 = vunpack.c.h.b16 %v475
  %v2054 = vunpack.c.l.b16 %v476
  %v2055 = vunpack.c.l.b16 %v477
  %v2056 = vunpack.c.h.b16 %v477
  %v2057 = vunpack.c.l.b16 %v478
  %v2058 = vunpack.c.l.b16 %v479
  %v2059 = vunpack.c.h.b16 %v479
  %v2060 = vunpack.c.l.b16 %v480
  %v2061 = vunpack.c.l.b16 %v481
  %v2062 = vunpack.c.h.b16 %v481
  %v2063 = vunpack.c.l.b16 %v482
  %v2064 = vunpack.c.l.b16 %v483
  %v2065 = vunpack.c.h.b16 %v483
  %v2066 = vunpack.c.l.b16 %v484
  %v2067 = vunpack.c.l.b16 %v485
  %v2068 = vunpack.c.h.b16 %v485
  %v2069 = vunpack.c.l.b16 %v486
  %v2070 = vunpack.c.l.b16 %v487
  %v2071 = vunpack.c.h.b16 %v487
  %v2072 = vunpack.c.l.b16 %v488
  %v2073 = vunpack.c.l.b16 %v489
  %v2074 = vunpack.c.h.b16 %v489
  %v2075 = vunpack.c.l.b16 %v490
  %v2076 = vunpack.c.l.b16 %v491
  %v2077 = vunpack.c.h.b16 %v491
  %v2078 = vunpack.c.l.b16 %v492
  %v2079 = vunpack.c.l.b16 %v493
  %v2080 = vunpack.c.h.b16 %v493
  %v2081 = vunpack.c.l.b16 %v494
  %v2082 = vunpack.c.l.b16 %v495
  %v2083 = vunpack.c.h.b16 %v495
  %v2084 = vunpack.c.l.b16 %v496
  %v2085 = vunpack.c.l.b16 %v497
  %v2086 = vunpack.c.h.b16 %v497
  %v2087 = vunpack.c.l.b16 %v498
  %v2088 = vunpack.c.l.b16 %v499
  %v2089 = vunpack.c.h.b16 %v499
  %v2090 = vunpack.c.l.b16 %v500
  %v2091 = vunpack.c.l.b16 %v501
  %v2092 = vunpack.c.h.b16 %v501
  %v2093 = vunpack.c.l.b16 %v502
  %v2094 = vunpack.c.l.b16 %v503
  %v2095 = vunpack.c.h.b16 %v503
  %v2096 = vunpack.c.l.b16 %v504
  %v2097 = vunpack.c.l.b16 %v505
  %v2098 = vunpack.c.h.b16 %v505
  %v2099 = vunpack.c.l.b16 %v506
  %v2100 = vunpack.c.l.b16 %v507
  %v2101 = vunpack.c.h.b16 %v507
  %v2102 = vunpack.c.l.b16 %v508
  %v2103 = vunpack.c.l.b16 %v509
  %v2104 = vunpack.c.h.b16 %v509
  %v2105 = vunpack.c.l.b16 %v510
  %v2106 = vunpack.c.l.b16 %v511
  %v2107 = vunpack.c.h.b16 %v511
  %v2108 = vunpack.c.l.b16 %v512
  %v2109 = vunpack.c.l.b16 %v513
  %v2110 = vunpack.c.h.b16 %v513
  %v2111 = vunpack.c.l.b16 %v514
  %v2112 = vunpack.c.l.b16 %v515
  %v2113 = vunpack.c.h.b16 %v515
  %v2114 = vunpack.c.l.b16 %v516
  %v2115 = vunpack.c.l.b16 %v517
  %v2116 = vunpack.c.h.b16 %v517
  %v2117 = vunpack.c.l.b16 %v518
  %v2118 = vunpack.c.l.b16 %v519
  %v2119 = vunpack.c.h.b16 %v519
  %v2120 = vunpack.c.l.b16 %v520
  %v2121 = vunpack.c.l.b16 %v521
  %v2122 = vunpack.c.h.b16 %v521
  %v2123 = vunpack.c.l.b16 %v522
  %v2124 = vunpack.c.l.b16 %v523
  %v2125 = vunpack.c.h.b16 %v523
  %v2126 = vunpack.c.l.b16 %v524
  %v2127 = vunpack.c.l.b16 %v525
  %v2128 = vunpack.c.h.b16 %v525
  %v2129 = vunpack.c.l.b16 %v526
  %v2130 = vunpack.c.l.b16 %v527
  %v2131 = vunpack.c.h.b16 %v527
  %v2132 = vunpack.c.l.b16 %v528
  %v2133 = vunpack.c.l.b16 %v529
  %v2134 = vunpack.c.h.b16 %v529
  %v2135 = vunpack.c.l.b16 %v530
  %v2136 = vunpack.c.l.b16 %v531
  %v2137 = vunpack.c.h.b16 %v531
  %v2138 = vunpack.c.l.b16 %v532
  %v2139 = vunpack.c.l.b16 %v533
  %v2140 = vunpack.c.h.b16 %v533
  %v2141 = vunpack.c.l.b16 %v534
  %v2142 = vunpack.c.l.b16 %v535
  %v2143 = vunpack.c.h.b16 %v535
  %v2144 = vunpack.c.l.b16 %v536
  %v2145 = vunpack.c.l.b16 %v537
  %v2146 = vunpack.c.h.b16 %v537
  %v2147 = vunpack.c.l.b16 %v538
  %v2148 = vunpack.c.l.b16 %v539
  %v2149 = vunpack.c.h.b16 %v539
  %v2150 = vunpack.c.l.b16 %v540
  %v2151 = vunpack.c.l.b16 %v541
  %v2152 = vunpack.c.h.b16 %v541
  %v2153 = vunpack.c.l.b16 %v542
  %v2154 = vunpack.c.l.b16 %v543
  %v2155 = vunpack.c.h.b16 %v543
  %v2156 = vunpack.c.l.b16 %v544
  %v2157 = vunpack.c.l.b16 %v545
  %v2158 = vunpack.c.h.b16 %v545
  %v2159 = vunpack.c.l.b16 %v546
  %v2160 = vunpack.c.l.b16 %v547
  %v2161 = vunpack.c.h.b16 %v547
  %v2162 = vunpack.c.l.b16 %v548
  %v2163 = vunpack.c.l.b16 %v549
  %v2164 = vunpack.c.h.b16 %v549
  %v2165 = vunpack.c.l.b16 %v550
  %v2166 = vunpack.c.l.b16 %v551
  %v2167 = vunpack.c.h.b16 %v551
  %v2168 = vunpack.c.l.b16 %v552
  %v2169 = vunpack.c.l.b16 %v553
  %v2170 = vunpack.c.h.b16 %v553
  %v2171 = vunpack.c.l.b16 %v554
  %v2172 = vunpack.c.l.b16 %v555
  %v2173 = vunpack.c.h.b16 %v555
  %v2174 = vunpack.c.l.b16 %v556
  %v2175 = vunpack.c.l.b16 %v557
  %v2176 = vunpack.c.h.b16 %v557
  %v2177 = vunpack.c.l.b16 %v558
  %v2178 = vunpack.c.l.b16 %v559
  %v2179 = vunpack.c.h.b16 %v559
  %v2180 = vunpack.c.l.b16 %v560
  %v2181 = vunpack.c.l.b16 %v561
  %v2182 = vunpack.c.h.b16 %v561
  %v2183 = vunpack.c.l.b16 %v562
  %v2184 = vunpack.c.l.b16 %v563
  %v2185 = vunpack.c.h.b16 %v563
  %v2186 = vunpack.c.l.b16 %v564
  %v2187 = vunpack.c.l.b16 %v565
  %v2188 = vunpack.c.h.b16 %v565
  %v2189 = vunpack.c.l.b16 %v566
  %v2190 = vunpack.c.l.b16 %v567
  %v2191 = vunpack.c.h.b16 %v567
  %v2192 = vunpack.c.l.b16 %v568
  %v2193 = vunpack.c.l.b16 %v569
  %v2194 = vunpack.c.h.b16 %v569
  %v2195 = vunpack.c.l.b16 %v570
  %v2196 = vunpack.c.l.b16 %v571
  %v2197 = vunpack.c.h.b16 %v571
  %v2198 = vunpack.c.l.b16 %v572
  %v2199 = vunpack.c.l.b16 %v573
  %v2200 = vunpack.c.h.b16 %v573
  %v2201 = vunpack.c.l.b16 %v574
  %v2202 = vunpack.c.l.b16 %v575
  %v2203 = vunpack.c.h.b16 %v575
  %v2204 = vunpack.c.l.b16 %v576
  %v2205 = vunpack.c.l.b16 %v577
  %v2206 = vunpack.c.h.b16 %v577
  %v2207 = vunpack.c.l.b16 %v578
  %v2208 = vunpack.c.l.b16 %v579
  %v2209 = vunpack.c.h.b16 %v579
  %v2210 = vunpack.c.l.b16 %v580
  %v2211 = vunpack.c.l.b16 %v581
  %v2212 = vunpack.c.h.b16 %v581
  %v2213 = vunpack.c.l.b16 %v582
  %v2214 = vunpack.c.l.b16 %v583
  %v2215 = vunpack.c.h.b16 %v583
  %v2216 = vunpack.c.l.b16 %v584
  %v2217 = vunpack.c.l.b16 %v585
  %v2218 = vunpack.c.h.b16 %v585
  %v2219 = vunpack.c.l.b16 %v586
  %v2220 = vunpack.c.l.b16 %v587
  %v2221 = vunpack.c.h.b16 %v587
  %v2222 = vunpack.c.l.b16 %v588
  %v2223 = vunpack.c.l.b16 %v589
  %v2224 = vunpack.c.h.b16 %v589
  %v2225 = vunpack.c.l.b16 %v590
  %v2226 = vunpack.c.l.b16 %v591
  %v2227 = vunpack.c.h.b16 %v591
  %v2228 = vunpack.c.l.b16 %v592
  %v2229 = vunpack.c.l.b16 %v593
  %v2230 = vunpack.c.h.b16 %v593
  %v2231 = vunpack.c.l.b16 %v594
  %v2232 = vunpack.c.l.b16 %v595
  %v2233 = vunpack.c.h.b16 %v595
  %v2234 = vunpack.c.l.b16 %v596
  %v2235 = vunpack.c.l.b16 %v597
  %v2236 = vunpack.c.h.b16 %v597
  %v2237 = vunpack.c.l.b16 %v598
  %v2238 = vunpack.c.l.b16 %v599
  %v2239 = vunpack.c.h.b16 %v599
  %v2240 = vunpack.c.l.b16 %v600
  %v2241 = vunpack.c.l.b16 %v601
  %v2242 = vunpack.c.h.b16 %v601
  %v2243 = vunpack.c.l.b16 %v602
  %v2244 = vunpack.c.l.b16 %v603
  %v2245 = vunpack.c.h.b16 %v603
  %v2246 = vunpack.c.l.b16 %v604
  %v2247 = vunpack.c.l.b16 %v605
  %v2248 = vunpack.c.h.b16 %v605
  %v2249 = vunpack.c.l.b16 %v606
  %v2250 = vunpack.c.l.b16 %v607
  %v2251 = vunpack.c.h.b16 %v607
  %v2252 = vunpack.c.l.b16 %v608
  %v2253 = vunpack.c.l.b16 %v609
  %v2254 = vunpack.c.h.b16 %v609
  %v2255 = vunpack.c.l.b16 %v610
  %v2256 = vunpack.c.l.b16 %v611
  %v2257 = vunpack.c.h.b16 %v611
  %v2258 = vunpack.c.l.b16 %v612
  %v2259 = vunpack.c.l.b16 %v613
  %v2260 = vunpack.c.h.b16 %v613
  %v2261 = vunpack.c.l.b16 %v614
  %v2262 = vunpack.c.l.b16 %v615
  %v2263 = vunpack.c.h.b16 %v615
  %v2264 = vunpack.c.l.b16 %v616
  %v2265 = vunpack.c.l.b16 %v617
  %v2266 = vunpack.c.h.b16 %v617
  %v2267 = vunpack.c.l.b16 %v618
  %v2268 = vunpack.c.l.b16 %v619
  %v2269 = vunpack.c.h.b16 %v619
  %v2270 = vunpack.c.l.b16 %v620
  %v2271 = vunpack.c.l.b16 %v621
  %v2272 = vunpack.c.h.b16 %v621
  %v2273 = vunpack.c.l.b16 %v622
  %v2274 = vunpack.c.l.b16 %v623
  %v2275 = vunpack.c.h.b16 %v623
  %v2276 = vunpack.c.l.b16 %v624
  %v2277 = vunpack.c.l.b16 %v625
  %v2278 = vunpack.c.h.b16 %v625
  %v2279 = vunpack.c.l.b16 %v626
  %v2280 = vunpack.c.l.b16 %v627
  %v2281 = vunpack.c.h.b16 %v627
  %v2282 = vunpack.c.l.b16 %v628
  %v2283 = vunpack.c.l.b16 %v629
  %v2284 = vunpack.c.h.b16 %v629
  %v2285 = vunpack.c.l.b16 %v630
  %v2286 = vunpack.c.l.b16 %v631
  %v2287 = vunpack.c.h.b16 %v631
  %v2288 = vunpack.c.l.b16 %v632
  %v2289 = vunpack.c.l.b16 %v633
  %v2290 = vunpack.c.h.b16 %v633
  %v2291 = vunpack.c.l.b16 %v634
  %v2292 = vunpack.c.l.b16 %v635
  %v2293 = vunpack.c.h.b16 %v635
  %v2294 = vunpack.c.l.b16 %v636
  %v2295 = vunpack.c.l.b16 %v637
  %v2296 = vunpack.c.h.b16 %v637
  %v2297 = vunpack.c.l.b16 %v638
  %v2298 = vpack.c.b16 %v1401, %v1398
  %v2299 = vpack.c.b16 %v1402, %v1399
  %v2300 = vpack.c.b16 %v1403, %v1400
  %v2301 = vpack.c.b16 %v1407, %v1404
  %v2302 = vpack.c.b16 %v1408, %v1405
  %v2303 = vpack.c.b16 %v1409, %v1406
  %v2304 = vpack.c.b16 %v1413, %v1410
  %v2305 = vpack.c.b16 %v1414, %v1411
  %v2306 = vpack.c.b16 %v1415, %v1412
  %v2307 = vpack.c.b16 %v1419, %v1416
  %v2308 = vpack.c.b16 %v1420, %v1417
  %v2309 = vpack.c.b16 %v1421, %v1418
  %v2310 = vpack.c.b16 %v1425, %v1422
  %v2311 = vpack.c.b16 %v1426, %v1423
  %v2312 = vpack.c.b16 %v1427, %v1424
  %v2313 = vpack.c.b16 %v1431, %v1428
  %v2314 = vpack.c.b16 %v1432, %v1429
  %v2315 = vpack.c.b16 %v1433, %v1430
  %v2316 = vpack.c.b16 %v1437, %v1434
  %v2317 = vpack.c.b16 %v1438, %v1435
  %v2318 = vpack.c.b16 %v1439, %v1436
  %v2319 = vpack.c.b16 %v1443, %v1440
  %v2320 = vpack.c.b16 %v1444, %v1441
  %v2321 = vpack.c.b16 %v1445, %v1442
  %v2322 = vpack.c.b16 %v1449, %v1446
  %v2323 = vpack.c.b16 %v1450, %v1447
  %v2324 = vpack.c.b16 %v1451, %v1448
  %v2325 = vpack.c.b16 %v1455, %v1452
  %v2326 = vpack.c.b16 %v1456, %v1453
  %v2327 = vpack.c.b16 %v1457, %v1454
  %v2328 = vpack.c.b16 %v1461, %v1458
  %v2329 = vpack.c.b16 %v1462, %v1459
  %v2330 = vpack.c.b16 %v1463, %v1460
  %v2331 = vpack.c.b16 %v1467, %v1464
  %v2332 = vpack.c.b16 %v1468, %v1465
  %v2333 = vpack.c.b16 %v1469, %v1466
  %v2334 = vpack.c.b16 %v1473, %v1470
  %v2335 = vpack.c.b16 %v1474, %v1471
  %v2336 = vpack.c.b16 %v1475, %v1472
  %v2337 = vpack.c.b16 %v1479, %v1476
  %v2338 = vpack.c.b16 %v1480, %v1477
  %v2339 = vpack.c.b16 %v1481, %v1478
  %v2340 = vpack.c.b16 %v1485, %v1482
  %v2341 = vpack.c.b16 %v1486, %v1483
  %v2342 = vpack.c.b16 %v1487, %v1484
  %v2343 = vpack.c.b16 %v1491, %v1488
  %v2344 = vpack.c.b16 %v1492, %v1489
  %v2345 = vpack.c.b16 %v1493, %v1490
  %v2346 = vpack.c.b16 %v1497, %v1494
  %v2347 = vpack.c.b16 %v1498, %v1495
  %v2348 = vpack.c.b16 %v1499, %v1496
  %v2349 = vpack.c.b16 %v1503, %v1500
  %v2350 = vpack.c.b16 %v1504, %v1501
  %v2351 = vpack.c.b16 %v1505, %v1502
  %v2352 = vpack.c.b16 %v1509, %v1506
  %v2353 = vpack.c.b16 %v1510, %v1507
  %v2354 = vpack.c.b16 %v1511, %v1508
  %v2355 = vpack.c.b16 %v1515, %v1512
  %v2356 = vpack.c.b16 %v1516, %v1513
  %v2357 = vpack.c.b16 %v1517, %v1514
  %v2358 = vpack.c.b16 %v1521, %v1518
  %v2359 = vpack.c.b16 %v1522, %v1519
  %v2360 = vpack.c.b16 %v1523, %v1520
  %v2361 = vpack.c.b16 %v1527, %v1524
  %v2362 = vpack.c.b16 %v1528, %v1525
  %v2363 = vpack.c.b16 %v1529, %v1526
  %v2364 = vpack.c.b16 %v1533, %v1530
  %v2365 = vpack.c.b16 %v1534, %v1531
  %v2366 = vpack.c.b16 %v1535, %v1532
  %v2367 = vpack.c.b16 %v1539, %v1536
  %v2368 = vpack.c.b16 %v1540, %v1537
  %v2369 = vpack.c.b16 %v1541, %v1538
  %v2370 = vpack.c.b16 %v1545, %v1542
  %v2371 = vpack.c.b16 %v1546, %v1543
  %v2372 = vpack.c.b16 %v1547, %v1544
  %v2373 = vpack.c.b16 %v1551, %v1548
  %v2374 = vpack.c.b16 %v1552, %v1549
  %v2375 = vpack.c.b16 %v1553, %v1550
  %v2376 = vpack.c.b16 %v1557, %v1554
  %v2377 = vpack.c.b16 %v1558, %v1555
  %v2378 = vpack.c.b16 %v1559, %v1556
  %v2379 = vpack.c.b16 %v1563, %v1560
  %v2380 = vpack.c.b16 %v1564, %v1561
  %v2381 = vpack.c.b16 %v1565, %v1562
  %v2382 = vpack.c.b16 %v1569, %v1566
  %v2383 = vpack.c.b16 %v1570, %v1567
  %v2384 = vpack.c.b16 %v1571, %v1568
  %v2385 = vpack.c.b16 %v1575, %v1572
  %v2386 = vpack.c.b16 %v1576, %v1573
  %v2387 = vpack.c.b16 %v1577, %v1574
  %v2388 = vpack.c.b16 %v1581, %v1578
  %v2389 = vpack.c.b16 %v1582, %v1579
  %v2390 = vpack.c.b16 %v1583, %v1580
  %v2391 = vpack.c.b16 %v1587, %v1584
  %v2392 = vpack.c.b16 %v1588, %v1585
  %v2393 = vpack.c.b16 %v1589, %v1586
  %v2394 = vpack.c.b16 %v1593, %v1590
  %v2395 = vpack.c.b16 %v1594, %v1591
  %v2396 = vpack.c.b16 %v1595, %v1592
  %v2397 = vpack.c.b16 %v1599, %v1596
  %v2398 = vpack.c.b16 %v1600, %v1597
  %v2399 = vpack.c.b16 %v1601, %v1598
  %v2400 = vpack.c.b16 %v1605, %v1602
  %v2401 = vpack.c.b16 %v1606, %v1603
  %v2402 = vpack.c.b16 %v1607, %v1604
  %v2403 = vpack.c.b16 %v1611, %v1608
  %v2404 = vpack.c.b16 %v1612, %v1609
  %v2405 = vpack.c.b16 %v1613, %v1610
  %v2406 = vpack.c.b16 %v1617, %v1614
  %v2407 = vpack.c.b16 %v1618, %v1615
  %v2408 = vpack.c.b16 %v1619, %v1616
  %v2409 = vpack.c.b16 %v1623, %v1620
  %v2410 = vpack.c.b16 %v1624, %v1621
  %v2411 = vpack.c.b16 %v1625, %v1622
  %v2412 = vpack.c.b16 %v1629, %v1626
  %v2413 = vpack.c.b16 %v1630, %v1627
  %v2414 = vpack.c.b16 %v1631, %v1628
  %v2415 = vpack.c.b16 %v1635, %v1632
  %v2416 = vpack.c.b16 %v1636, %v1633
  %v2417 = vpack.c.b16 %v1637, %v1634
  %v2418 = vpack.c.b16 %v1641, %v1638
  %v2419 = vpack.c.b16 %v1642, %v1639
  %v2420 = vpack.c.b16 %v1643, %v1640
  %v2421 = vpack.c.b16 %v1647, %v1644
  %v2422 = vpack.c.b16 %v1648, %v1645
  %v2423 = vpack.c.b16 %v1649, %v1646
  %v2424 = vpack.c.b16 %v1653, %v1650
  %v2425 = vpack.c.b16 %v1654, %v1651
  %v2426 = vpack.c.b16 %v1655, %v1652
  %v2427 = vpack.c.b16 %v1659, %v1656
  %v2428 = vpack.c.b16 %v1660, %v1657
  %v2429 = vpack.c.b16 %v1661, %v1658
  %v2430 = vpack.c.b16 %v1665, %v1662
  %v2431 = vpack.c.b16 %v1666, %v1663
  %v2432 = vpack.c.b16 %v1667, %v1664
  %v2433 = vpack.c.b16 %v1671, %v1668
  %v2434 = vpack.c.b16 %v1672, %v1669
  %v2435 = vpack.c.b16 %v1673, %v1670
  %v2436 = vpack.c.b16 %v1677, %v1674
  %v2437 = vpack.c.b16 %v1678, %v1675
  %v2438 = vpack.c.b16 %v1679, %v1676
  %v2439 = vpack.c.b16 %v1683, %v1680
  %v2440 = vpack.c.b16 %v1684, %v1681
  %v2441 = vpack.c.b16 %v1685, %v1682
  %v2442 = vpack.c.b16 %v1689, %v1686
  %v2443 = vpack.c.b16 %v1690, %v1687
  %v2444 = vpack.c.b16 %v1691, %v1688
  %v2445 = vpack.c.b16 %v1695, %v1692
  %v2446 = vpack.c.b16 %v1696, %v1693
  %v2447 = vpack.c.b16 %v1697, %v1694
  %v2448 = vpack.c.b16 %v1701, %v1698
  %v2449 = vpack.c.b16 %v1702, %v1699
  %v2450 = vpack.c.b16 %v1703, %v1700
  %v2451 = vpack.c.b16 %v1707, %v1704
  %v2452 = vpack.c.b16 %v1708, %v1705
  %v2453 = vpack.c.b16 %v1709, %v1706
  %v2454 = vpack.c.b16 %v1713, %v1710
  %v2455 = vpack.c.b16 %v1714, %v1711
  %v2456 = vpack.c.b16 %v1715, %v1712
  %v2457 = vpack.c.b16 %v1719, %v1716
  %v2458 = vpack.c.b16 %v1720, %v1717
  %v2459 = vpack.c.b16 %v1721, %v1718
  %v2460 = vpack.c.b16 %v1725, %v1722
  %v2461 = vpack.c.b16 %v1726, %v1723
  %v2462 = vpack.c.b16 %v1727, %v1724
  %v2463 = vpack.c.b16 %v1731, %v1728
  %v2464 = vpack.c.b16 %v1732, %v1729
  %v2465 = vpack.c.b16 %v1733, %v1730
  %v2466 = vpack.c.b16 %v1737, %v1734
  %v2467 = vpack.c.b16 %v1738, %v1735
  %v2468 = vpack.c.b16 %v1739, %v1736
  %v2469 = vpack.c.b16 %v1743, %v1740
  %v2470 = vpack.c.b16 %v1744, %v1741
  %v2471 = vpack.c.b16 %v1745, %v1742
  %v2472 = vpack.c.b16 %v1749, %v1746
  %v2473 = vpack.c.b16 %v1750, %v1747
  %v2474 = vpack.c.b16 %v1751, %v1748
  %v2475 = vpack.c.b16 %v1755, %v1752
  %v2476 = vpack.c.b16 %v1756, %v1753
  %v2477 = vpack.c.b16 %v1757, %v1754
  %v2478 = vpack.c.b16 %v1761, %v1758
  %v2479 = vpack.c.b16 %v1762, %v1759
  %v2480 = vpack.c.b16 %v1763, %v1760
  %v2481 = vpack.c.b16 %v1767, %v1764
  %v2482 = vpack.c.b16 %v1768, %v1765
  %v2483 = vpack.c.b16 %v1769, %v1766
  %v2484 = vpack.c.b16 %v1773, %v1770
  %v2485 = vpack.c.b16 %v1774, %v1771
  %v2486 = vpack.c.b16 %v1775, %v1772
  %v2487 = vpack.c.b16 %v1779, %v1776
  %v2488 = vpack.c.b16 %v1780, %v1777
  %v2489 = vpack.c.b16 %v1781, %v1778
  %v2490 = vpack.c.b16 %v1785, %v1782
  %v2491 = vpack.c.b16 %v1786, %v1783
  %v2492 = vpack.c.b16 %v1787, %v1784
  %v2493 = vpack.c.b16 %v1791, %v1788
  %v2494 = vpack.c.b16 %v1792, %v1789
  %v2495 = vpack.c.b16 %v1793, %v1790
  %v2496 = vpack.c.b16 %v1797, %v1794
  %v2497 = vpack.c.b16 %v1798, %v1795
  %v2498 = vpack.c.b16 %v1799, %v1796
  %v2499 = vpack.c.b16 %v1803, %v1800
  %v2500 = vpack.c.b16 %v1804, %v1801
  %v2501 = vpack.c.b16 %v1805, %v1802
  %v2502 = vpack.c.b16 %v1809, %v1806
  %v2503 = vpack.c.b16 %v1810, %v1807
  %v2504 = vpack.c.b16 %v1811, %v1808
  %v2505 = vpack.c.b16 %v1815, %v1812
  %v2506 = vpack.c.b16 %v1816, %v1813
  %v2507 = vpack.c.b16 %v1817, %v1814
  %v2508 = vpack.c.b16 %v1821, %v1818
  %v2509 = vpack.c.b16 %v1822, %v1819
  %v2510 = vpack.c.b16 %v1823, %v1820
  %v2511 = vpack.c.b16 %v1827, %v1824
  %v2512 = vpack.c.b16 %v1828, %v1825
  %v2513 = vpack.c.b16 %v1829, %v1826
  %v2514 = vpack.c.b16 %v1833, %v1830
  %v2515 = vpack.c.b16 %v1834, %v1831
  %v2516 = vpack.c.b16 %v1835, %v1832
  %v2517 = vpack.c.b16 %v1839, %v1836
  %v2518 = vpack.c.b16 %v1840, %v1837
  %v2519 = vpack.c.b16 %v1841, %v1838
  %v2520 = vpack.c.b16 %v1845, %v1842
  %v2521 = vpack.c.b16 %v1846, %v1843
  %v2522 = vpack.c.b16 %v1847, %v1844
  %v2523 = vpack.c.b16 %v1851, %v1848
  %v2524 = vpack.c.b16 %v1852, %v1849
  %v2525 = vpack.c.b16 %v1853, %v1850
  %v2526 = vpack.c.b16 %v1857, %v1854
  %v2527 = vpack.c.b16 %v1858, %v1855
  %v2528 = vpack.c.b16 %v1859, %v1856
  %v2529 = vpack.c.b16 %v1863, %v1860
  %v2530 = vpack.c.b16 %v1864, %v1861
  %v2531 = vpack.c.b16 %v1865, %v1862
  %v2532 = vpack.c.b16 %v1869, %v1866
  %v2533 = vpack.c.b16 %v1870, %v1867
  %v2534 = vpack.c.b16 %v1871, %v1868
  %v2535 = vpack.c.b16 %v1875, %v1872
  %v2536 = vpack.c.b16 %v1876, %v1873
  %v2537 = vpack.c.b16 %v1877, %v1874
  %v2538 = vpack.c.b16 %v1881, %v1878
  %v2539 = vpack.c.b16 %v1882, %v1879
  %v2540 = vpack.c.b16 %v1883, %v1880
  %v2541 = vpack.c.b16 %v1887, %v1884
  %v2542 = vpack.c.b16 %v1888, %v1885
  %v2543 = vpack.c.b16 %v1889, %v1886
  %v2544 = vpack.c.b16 %v1893, %v1890
  %v2545 = vpack.c.b16 %v1894, %v1891
  %v2546 = vpack.c.b16 %v1895, %v1892
  %v2547 = vpack.c.b16 %v1899, %v1896
  %v2548 = vpack.c.b16 %v1900, %v1897
  %v2549 = vpack.c.b16 %v1901, %v1898
  %v2550 = vpack.c.b16 %v1905, %v1902
  %v2551 = vpack.c.b16 %v1906, %v1903
  %v2552 = vpack.c.b16 %v1907, %v1904
  %v2553 = vpack.c.b16 %v1911, %v1908
  %v2554 = vpack.c.b16 %v1912, %v1909
  %v2555 = vpack.c.b16 %v1913, %v1910
  %v2556 = vpack.c.b16 %v1917, %v1914
  %v2557 = vpack.c.b16 %v1918, %v1915
  %v2558 = vpack.c.b16 %v1919, %v1916
  %v2559 = vpack.c.b16 %v1923, %v1920
  %v2560 = vpack.c.b16 %v1924, %v1921
  %v2561 = vpack.c.b16 %v1925, %v1922
  %v2562 = vpack.c.b16 %v1929, %v1926
  %v2563 = vpack.c.b16 %v1930, %v1927
  %v2564 = vpack.c.b16 %v1931, %v1928
  %v2565 = vpack.c.b16 %v1935, %v1932
  %v2566 = vpack.c.b16 %v1936, %v1933
  %v2567 = vpack.c.b16 %v1937, %v1934
  %v2568 = vpack.c.b16 %v1941, %v1938
  %v2569 = vpack.c.b16 %v1942, %v1939
  %v2570 = vpack.c.b16 %v1943, %v1940
  %v2571 = vpack.c.b16 %v1947, %v1944
  %v2572 = vpack.c.b16 %v1948, %v1945
  %v2573 = vpack.c.b16 %v1949, %v1946
  %v2574 = vpack.c.b16 %v1953, %v1950
  %v2575 = vpack.c.b16 %v1954, %v1951
  %v2576 = vpack.c.b16 %v1955, %v1952
  %v2577 = vpack.c.b16 %v1959, %v1956
  %v2578 = vpack.c.b16 %v1960, %v1957
  %v2579 = vpack.c.b16 %v1961, %v1958
  %v2580 = vpack.c.b16 %v1965, %v1962
  %v2581 = vpack.c.b16 %v1966, %v1963
  %v2582 = vpack.c.b16 %v1967, %v1964
  %v2583 = vpack.c.b16 %v1971, %v1968
  %v2584 = vpack.c.b16 %v1972, %v1969
  %v2585 = vpack.c.b16 %v1973, %v1970
  %v2586 = vpack.c.b16 %v1977, %v1974
  %v2587 = vpack.c.b16 %v1978, %v1975
  %v2588 = vpack.c.b16 %v1979, %v1976
  %v2589 = vpack.c.b16 %v1983, %v1980
  %v2590 = vpack.c.b16 %v1984, %v1981
  %v2591 = vpack.c.b16 %v1985, %v1982
  %v2592 = vpack.c.b16 %v1989, %v1986
  %v2593 = vpack.c.b16 %v1990, %v1987
  %v2594 = vpack.c.b16 %v1991, %v1988
  %v2595 = vpack.c.b16 %v1995, %v1992
  %v2596 = vpack.c.b16 %v1996, %v1993
  %v2597 = vpack.c.b16 %v1997, %v1994
  %v2598 = vpack.c.b16 %v2001, %v1998
  %v2599 = vpack.c.b16 %v2002, %v1999
  %v2600 = vpack.c.b16 %v2003, %v2000
  %v2601 = vpack.c.b16 %v2007, %v2004
  %v2602 = vpack.c.b16 %v2008, %v2005
  %v2603 = vpack.c.b16 %v2009, %v2006
  %v2604 = vpack.c.b16 %v2013, %v2010
  %v2605 = vpack.c.b16 %v2014, %v2011
  %v2606 = vpack.c.b16 %v2015, %v2012
  %v2607 = vpack.c.b16 %v2019, %v2016
  %v2608 = vpack.c.b16 %v2020, %v2017
  %v2609 = vpack.c.b16 %v2021, %v2018
  %v2610 = vpack.c.b16 %v2025, %v2022
  %v2611 = vpack.c.b16 %v2026, %v2023
  %v2612 = vpack.c.b16 %v2027, %v2024
  %v2613 = vpack.c.b16 %v2031, %v2028
  %v2614 = vpack.c.b16 %v2032, %v2029
  %v2615 = vpack.c.b16 %v2033, %v2030
  %v2616 = vpack.c.b16 %v2037, %v2034
  %v2617 = vpack.c.b16 %v2038, %v2035
  %v2618 = vpack.c.b16 %v2039, %v2036
  %v2619 = vpack.c.b16 %v2043, %v2040
  %v2620 = vpack.c.b16 %v2044, %v2041
  %v2621 = vpack.c.b16 %v2045, %v2042
  %v2622 = vpack.c.b16 %v2049, %v2046
  %v2623 = vpack.c.b16 %v2050, %v2047
  %v2624 = vpack.c.b16 %v2051, %v2048
  %v2625 = vpack.c.b16 %v2055, %v2052
  %v2626 = vpack.c.b16 %v2056, %v2053
  %v2627 = vpack.c.b16 %v2057, %v2054
  %v2628 = vpack.c.b16 %v2061, %v2058
  %v2629 = vpack.c.b16 %v2062, %v2059
  %v2630 = vpack.c.b16 %v2063, %v2060
  %v2631 = vpack.c.b16 %v2067, %v2064
  %v2632 = vpack.c.b16 %v2068, %v2065
  %v2633 = vpack.c.b16 %v2069, %v2066
  %v2634 = vpack.c.b16 %v2073, %v2070
  %v2635 = vpack.c.b16 %v2074, %v2071
  %v2636 = vpack.c.b16 %v2075, %v2072
  %v2637 = vpack.c.b16 %v2079, %v2076
  %v2638 = vpack.c.b16 %v2080, %v2077
  %v2639 = vpack.c.b16 %v2081, %v2078
  %v2640 = vpack.c.b16 %v2085, %v2082
  %v2641 = vpack.c.b16 %v2086, %v2083
  %v2642 = vpack.c.b16 %v2087, %v2084
  %v2643 = vpack.c.b16 %v2091, %v2088
  %v2644 = vpack.c.b16 %v2092, %v2089
  %v2645 = vpack.c.b16 %v2093, %v2090
  %v2646 = vpack.c.b16 %v2097, %v2094
  %v2647 = vpack.c.b16 %v2098, %v2095
  %v2648 = vpack.c.b16 %v2099, %v2096
  %v2649 = vpack.c.b16 %v2103, %v2100
  %v2650 = vpack.c.b16 %v2104, %v2101
  %v2651 = vpack.c.b16 %v2105, %v2102
  %v2652 = vpack.c.b16 %v2109, %v2106
  %v2653 = vpack.c.b16 %v2110, %v2107
  %v2654 = vpack.c.b16 %v2111, %v2108
  %v2655 = vpack.c.b16 %v2115, %v2112
  %v2656 = vpack.c.b16 %v2116, %v2113
  %v2657 = vpack.c.b16 %v2117, %v2114
  %v2658 = vpack.c.b16 %v2121, %v2118
  %v2659 = vpack.c.b16 %v2122, %v2119
  %v2660 = vpack.c.b16 %v2123, %v2120
  %v2661 = vpack.c.b16 %v2127, %v2124
  %v2662 = vpack.c.b16 %v2128, %v2125
  %v2663 = vpack.c.b16 %v2129, %v2126
  %v2664 = vpack.c.b16 %v2133, %v2130
  %v2665 = vpack.c.b16 %v2134, %v2131
  %v2666 = vpack.c.b16 %v2135, %v2132
  %v2667 = vpack.c.b16 %v2139, %v2136
  %v2668 = vpack.c.b16 %v2140, %v2137
  %v2669 = vpack.c.b16 %v2141, %v2138
  %v2670 = vpack.c.b16 %v2145, %v2142
  %v2671 = vpack.c.b16 %v2146, %v2143
  %v2672 = vpack.c.b16 %v2147, %v2144
  %v2673 = vpack.c.b16 %v2151, %v2148
  %v2674 = vpack.c.b16 %v2152, %v2149
  %v2675 = vpack.c.b16 %v2153, %v2150
  %v2676 = vpack.c.b16 %v2157, %v2154
  %v2677 = vpack.c.b16 %v2158, %v2155
  %v2678 = vpack.c.b16 %v2159, %v2156
  %v2679 = vpack.c.b16 %v2163, %v2160
  %v2680 = vpack.c.b16 %v2164, %v2161
  %v2681 = vpack.c.b16 %v2165, %v2162
  %v2682 = vpack.c.b16 %v2169, %v2166
  %v2683 = vpack.c.b16 %v2170, %v2167
  %v2684 = vpack.c.b16 %v2171, %v2168
  %v2685 = vpack.c.b16 %v2175, %v2172
  %v2686 = vpack.c.b16 %v2176, %v2173
  %v2687 = vpack.c.b16 %v2177, %v2174
  %v2688 = vpack.c.b16 %v2181, %v2178
  %v2689 = vpack.c.b16 %v2182, %v2179
  %v2690 = vpack.c.b16 %v2183, %v2180
  %v2691 = vpack.c.b16 %v2187, %v2184
  %v2692 = vpack.c.b16 %v2188, %v2185
  %v2693 = vpack.c.b16 %v2189, %v2186
  %v2694 = vpack.c.b16 %v2193, %v2190
  %v2695 = vpack.c.b16 %v2194, %v2191
  %v2696 = vpack.c.b16 %v2195, %v2192
  %v2697 = vpack.c.b16 %v2199, %v2196
  %v2698 = vpack.c.b16 %v2200, %v2197
  %v2699 = vpack.c.b16 %v2201, %v2198
  %v2700 = vpack.c.b16 %v2205, %v2202
  %v2701 = vpack.c.b16 %v2206, %v2203
  %v2702 = vpack.c.b16 %v2207, %v2204
  %v2703 = vpack.c.b16 %v2211, %v2208
  %v2704 = vpack.c.b16 %v2212, %v2209
  %v2705 = vpack.c.b16 %v2213, %v2210
  %v2706 = vpack.c.b16 %v2217, %v2214
  %v2707 = vpack.c.b16 %v2218, %v2215
  %v2708 = vpack.c.b16 %v2219, %v2216
  %v2709 = vpack.c.b16 %v2223, %v2220
  %v2710 = vpack.c.b16 %v2224, %v2221
  %v2711 = vpack.c.b16 %v2225, %v2222
  %v2712 = vpack.c.b16 %v2229, %v2226
  %v2713 = vpack.c.b16 %v2230, %v2227
  %v2714 = vpack.c.b16 %v2231, %v2228
  %v2715 = vpack.c.b16 %v2235, %v2232
  %v2716 = vpack.c.b16 %v2236, %v2233
  %v2717 = vpack.c.b16 %v2237, %v2234
  %v2718 = vpack.c.b16 %v2241, %v2238
  %v2719 = vpack.c.b16 %v2242, %v2239
  %v2720 = vpack.c.b16 %v2243, %v2240
  %v2721 = vpack.c.b16 %v2247, %v2244
  %v2722 = vpack.c.b16 %v2248, %v2245
  %v2723 = vpack.c.b16 %v2249, %v2246
  %v2724 = vpack.c.b16 %v2253, %v2250
  %v2725 = vpack.c.b16 %v2254, %v2251
  %v2726 = vpack.c.b16 %v2255, %v2252
  %v2727 = vpack.c.b16 %v2259, %v2256
  %v2728 = vpack.c.b16 %v2260, %v2257
  %v2729 = vpack.c.b16 %v2261, %v2258
  %v2730 = vpack.c.b16 %v2265, %v2262
  %v2731 = vpack.c.b16 %v2266, %v2263
  %v2732 = vpack.c.b16 %v2267, %v2264
  %v2733 = vpack.c.b16 %v2271, %v2268
  %v2734 = vpack.c.b16 %v2272, %v2269
  %v2735 = vpack.c.b16 %v2273, %v2270
  %v2736 = vpack.c.b16 %v2277, %v2274
  %v2737 = vpack.c.b16 %v2278, %v2275
  %v2738 = vpack.c.b16 %v2279, %v2276
  %v2739 = vpack.c.b16 %v2283, %v2280
  %v2740 = vpack.c.b16 %v2284, %v2281
  %v2741 = vpack.c.b16 %v2285, %v2282
  %v2742 = vpack.c.b16 %v2289, %v2286
  %v2743 = vpack.c.b16 %v2290, %v2287
  %v2744 = vpack.c.b16 %v2291, %v2288
  %v2745 = vpack.c.b16 %v2295, %v2292
  %v2746 = vpack.c.b16 %v2296, %v2293
  %v2747 = vpack.c.b16 %v2297, %v2294
  %vm3198 = vcmask 785408
  %v3200 = vsel %vm3198, %v779, 0
  %3202 = vmatprep.subr.bf16.mxu0 %v2299
  %3203 = vmatpush1.bf16.msra.mxu0 %v2298
  %3204 = vmatprep.subr.bf16.mxu0 %v2302
  %3205 = vmatpush1.bf16.msra.mxu0 %v2301
  %3206 = vmatprep.subr.bf16.mxu0 %v2305
  %3207 = vmatpush1.bf16.msra.mxu0 %v2304
  %3208 = vmatprep.subr.bf16.mxu0 %v2308
  %3209 = vmatpush1.bf16.msra.mxu0 %v2307
  %3210 = vmatprep.subr.bf16.mxu0 %v2311
  %3211 = vmatpush1.bf16.msra.mxu0 %v2310
  %3212 = vmatprep.subr.bf16.mxu0 %v2314
  %3213 = vmatpush1.bf16.msra.mxu0 %v2313
  %3214 = vmatprep.subr.bf16.mxu0 %v2317
  %3215 = vmatpush1.bf16.msra.mxu0 %v2316
  %3216 = vmatprep.subr.bf16.mxu0 %v2320
  %3217 = vmatpush1.bf16.msra.mxu0 %v2319
  %3218 = vmatprep.subr.bf16.mxu0 %v2323
  %3219 = vmatpush1.bf16.msra.mxu0 %v2322
  %3220 = vmatprep.subr.bf16.mxu0 %v2326
  %3221 = vmatpush1.bf16.msra.mxu0 %v2325
  %3222 = vmatprep.subr.bf16.mxu0 %v2329
  %3223 = vmatpush1.bf16.msra.mxu0 %v2328
  %3224 = vmatprep.subr.bf16.mxu0 %v2332
  %3225 = vmatpush1.bf16.msra.mxu0 %v2331
  %3226 = vmatprep.subr.bf16.mxu0 %v2335
  %3227 = vmatpush1.bf16.msra.mxu0 %v2334
  %3228 = vmatprep.subr.bf16.mxu0 %v2338
  %3229 = vmatpush1.bf16.msra.mxu0 %v2337
  %3230 = vmatprep.subr.bf16.mxu0 %v2341
  %3231 = vmatpush1.bf16.msra.mxu0 %v2340
  %3232 = vmatprep.subr.bf16.mxu0 %v2344
  %3233 = vmatpush1.bf16.msra.mxu0 %v2343
  %3234 = vmatprep.mubr.bf16.mxu0 %v696
  %3235 = vmatmul.mubr.bf16.gmra.mrb[0].mxu0 %v682
  %v3236 = vpop.f32.mrb[0].mxu0
  %v3237 = vadd.f32 %v644, %v3236
  %v3238 = vpop.f32.mrb[0].mxu0
  %v3239 = vadd.f32 %v648, %v3238
  %v3240 = vpop.f32.mrb[0].mxu0
  %v3241 = vpop.f32.mrb[0].mxu0
  %3242 = vdwg.mxu0
  %3243 = vmatprep.subr.bf16.mxu0 %v2347
  %3244 = vmatpush1.bf16.msra.mxu0 %v2346
  %3245 = vmatprep.subr.bf16.mxu0 %v2350
  %3246 = vmatpush1.bf16.msra.mxu0 %v2349
  %3247 = vmatprep.subr.bf16.mxu0 %v2353
  %3248 = vmatpush1.bf16.msra.mxu0 %v2352
  %3249 = vmatprep.subr.bf16.mxu0 %v2356
  %3250 = vmatpush1.bf16.msra.mxu0 %v2355
  %3251 = vmatprep.subr.bf16.mxu0 %v2359
  %3252 = vmatpush1.bf16.msra.mxu0 %v2358
  %3253 = vmatprep.subr.bf16.mxu0 %v2362
  %3254 = vmatpush1.bf16.msra.mxu0 %v2361
  %3255 = vmatprep.subr.bf16.mxu0 %v2365
  %3256 = vmatpush1.bf16.msra.mxu0 %v2364
  %3257 = vmatprep.subr.bf16.mxu0 %v2368
  %3258 = vmatpush1.bf16.msra.mxu0 %v2367
  %3259 = vmatprep.subr.bf16.mxu0 %v2371
  %3260 = vmatpush1.bf16.msra.mxu0 %v2370
  %3261 = vmatprep.subr.bf16.mxu0 %v2374
  %3262 = vmatpush1.bf16.msra.mxu0 %v2373
  %3263 = vmatprep.subr.bf16.mxu0 %v2377
  %3264 = vmatpush1.bf16.msra.mxu0 %v2376
  %3265 = vmatprep.subr.bf16.mxu0 %v2380
  %3266 = vmatpush1.bf16.msra.mxu0 %v2379
  %3267 = vmatprep.subr.bf16.mxu0 %v2383
  %3268 = vmatpush1.bf16.msra.mxu0 %v2382
  %3269 = vmatprep.subr.bf16.mxu0 %v2386
  %3270 = vmatpush1.bf16.msra.mxu0 %v2385
  %3271 = vmatprep.subr.bf16.mxu0 %v2389
  %3272 = vmatpush1.bf16.msra.mxu0 %v2388
  %3273 = vmatprep.subr.bf16.mxu0 %v2392
  %3274 = vmatpush1.bf16.msra.mxu0 %v2391
  %3275 = vmatprep.mubr.bf16.mxu0 %v706
  %3276 = vmatmul.mubr.bf16.gmra.mrb[0].mxu0 %v704
  %v3277 = vpop.f32.mrb[0].mxu0
  %v3278 = vadd.f32 %v3237, %v3277
  %v3279 = vpop.f32.mrb[0].mxu0
  %v3280 = vadd.f32 %v3239, %v3279
  %v3281 = vpop.f32.mrb[0].mxu0
  %v3282 = vpop.f32.mrb[0].mxu0
  %3283 = vdwg.mxu0
  %3284 = vmatprep.subr.bf16.mxu0 %v2395
  %3285 = vmatpush1.bf16.msra.mxu0 %v2394
  %3286 = vmatprep.subr.bf16.mxu0 %v2398
  %3287 = vmatpush1.bf16.msra.mxu0 %v2397
  %3288 = vmatprep.subr.bf16.mxu0 %v2401
  %3289 = vmatpush1.bf16.msra.mxu0 %v2400
  %3290 = vmatprep.subr.bf16.mxu0 %v2404
  %3291 = vmatpush1.bf16.msra.mxu0 %v2403
  %3292 = vmatprep.subr.bf16.mxu0 %v2407
  %3293 = vmatpush1.bf16.msra.mxu0 %v2406
  %3294 = vmatprep.subr.bf16.mxu0 %v2410
  %3295 = vmatpush1.bf16.msra.mxu0 %v2409
  %3296 = vmatprep.subr.bf16.mxu0 %v2413
  %3297 = vmatpush1.bf16.msra.mxu0 %v2412
  %3298 = vmatprep.subr.bf16.mxu0 %v2416
  %3299 = vmatpush1.bf16.msra.mxu0 %v2415
  %3300 = vmatprep.subr.bf16.mxu0 %v2419
  %3301 = vmatpush1.bf16.msra.mxu0 %v2418
  %3302 = vmatprep.subr.bf16.mxu0 %v2422
  %3303 = vmatpush1.bf16.msra.mxu0 %v2421
  %3304 = vmatprep.subr.bf16.mxu0 %v2425
  %3305 = vmatpush1.bf16.msra.mxu0 %v2424
  %3306 = vmatprep.subr.bf16.mxu0 %v2428
  %3307 = vmatpush1.bf16.msra.mxu0 %v2427
  %3308 = vmatprep.subr.bf16.mxu0 %v2431
  %3309 = vmatpush1.bf16.msra.mxu0 %v2430
  %3310 = vmatprep.subr.bf16.mxu0 %v2434
  %3311 = vmatpush1.bf16.msra.mxu0 %v2433
  %3312 = vmatprep.subr.bf16.mxu0 %v2437
  %3313 = vmatpush1.bf16.msra.mxu0 %v2436
  %3314 = vmatprep.subr.bf16.mxu0 %v2440
  %3315 = vmatpush1.bf16.msra.mxu0 %v2439
  %3316 = vmatprep.mubr.bf16.mxu0 %v703
  %3317 = vmatmul.mubr.bf16.gmra.mrb[0].mxu0 %v689
  %v3318 = vpop.f32.mrb[0].mxu0
  %v3319 = vadd.f32 %v3278, %v3318
  %v3320 = vpop.f32.mrb[0].mxu0
  %v3321 = vadd.f32 %v3280, %v3320
  %v3322 = vpop.f32.mrb[0].mxu0
  %v3323 = vpop.f32.mrb[0].mxu0
  %3324 = vdwg.mxu0
  %3325 = vmatprep.subr.bf16.mxu0 %v2443
  %3326 = vmatpush1.bf16.msra.mxu0 %v2442
  %3327 = vmatprep.subr.bf16.mxu0 %v2446
  %3328 = vmatpush1.bf16.msra.mxu0 %v2445
  %3329 = vmatprep.subr.bf16.mxu0 %v2449
  %3330 = vmatpush1.bf16.msra.mxu0 %v2448
  %3331 = vmatprep.subr.bf16.mxu0 %v2452
  %3332 = vmatpush1.bf16.msra.mxu0 %v2451
  %3333 = vmatprep.subr.bf16.mxu0 %v2455
  %3334 = vmatpush1.bf16.msra.mxu0 %v2454
  %3335 = vmatprep.subr.bf16.mxu0 %v2458
  %3336 = vmatpush1.bf16.msra.mxu0 %v2457
  %3337 = vmatprep.subr.bf16.mxu0 %v2461
  %3338 = vmatpush1.bf16.msra.mxu0 %v2460
  %3339 = vmatprep.subr.bf16.mxu0 %v2464
  %3340 = vmatpush1.bf16.msra.mxu0 %v2463
  %3341 = vmatprep.subr.bf16.mxu0 %v2467
  %3342 = vmatpush1.bf16.msra.mxu0 %v2466
  %3343 = vmatprep.subr.bf16.mxu0 %v2470
  %3344 = vmatpush1.bf16.msra.mxu0 %v2469
  %3345 = vmatprep.subr.bf16.mxu0 %v2473
  %3346 = vmatpush1.bf16.msra.mxu0 %v2472
  %3347 = vmatprep.subr.bf16.mxu0 %v2476
  %3348 = vmatpush1.bf16.msra.mxu0 %v2475
  %3349 = vmatprep.subr.bf16.mxu0 %v2479
  %3350 = vmatpush1.bf16.msra.mxu0 %v2478
  %3351 = vmatprep.subr.bf16.mxu0 %v2482
  %3352 = vmatpush1.bf16.msra.mxu0 %v2481
  %3353 = vmatprep.subr.bf16.mxu0 %v2485
  %3354 = vmatpush1.bf16.msra.mxu0 %v2484
  %3355 = vmatprep.subr.bf16.mxu0 %v2488
  %3356 = vmatpush1.bf16.msra.mxu0 %v2487
  %3357 = vmatprep.mubr.bf16.mxu0 %v707
  %3358 = vmatmul.mubr.bf16.gmra.mrb[0].mxu0 %v705
  %v3359 = vpop.f32.mrb[0].mxu0
  %v3360 = vadd.f32 %v3319, %v3359
  %v3361 = vpop.f32.mrb[0].mxu0
  %v3362 = vadd.f32 %v3321, %v3361
  %v3363 = vpop.f32.mrb[0].mxu0
  %v3364 = vpop.f32.mrb[0].mxu0
  %3365 = vdwg.mxu0
  %3366 = vmatprep.subr.bf16.mxu0 %v2491
  %3367 = vmatpush1.bf16.msra.mxu0 %v2490
  %3368 = vmatprep.subr.bf16.mxu0 %v2494
  %3369 = vmatpush1.bf16.msra.mxu0 %v2493
  %3370 = vmatprep.subr.bf16.mxu0 %v2497
  %3371 = vmatpush1.bf16.msra.mxu0 %v2496
  %3372 = vmatprep.subr.bf16.mxu0 %v2500
  %3373 = vmatpush1.bf16.msra.mxu0 %v2499
  %3374 = vmatprep.subr.bf16.mxu0 %v2503
  %3375 = vmatpush1.bf16.msra.mxu0 %v2502
  %3376 = vmatprep.subr.bf16.mxu0 %v2506
  %3377 = vmatpush1.bf16.msra.mxu0 %v2505
  %3378 = vmatprep.subr.bf16.mxu0 %v2509
  %3379 = vmatpush1.bf16.msra.mxu0 %v2508
  %3380 = vmatprep.subr.bf16.mxu0 %v2512
  %3381 = vmatpush1.bf16.msra.mxu0 %v2511
  %3382 = vmatprep.subr.bf16.mxu0 %v2515
  %3383 = vmatpush1.bf16.msra.mxu0 %v2514
  %3384 = vmatprep.subr.bf16.mxu0 %v2518
  %3385 = vmatpush1.bf16.msra.mxu0 %v2517
  %3386 = vmatprep.subr.bf16.mxu0 %v2521
  %3387 = vmatpush1.bf16.msra.mxu0 %v2520
  %3388 = vmatprep.subr.bf16.mxu0 %v2524
  %3389 = vmatpush1.bf16.msra.mxu0 %v2523
  %3390 = vmatprep.subr.bf16.mxu0 %v2527
  %3391 = vmatpush1.bf16.msra.mxu0 %v2526
  %3392 = vmatprep.subr.bf16.mxu0 %v2530
  %3393 = vmatpush1.bf16.msra.mxu0 %v2529
  %3394 = vmatprep.subr.bf16.mxu0 %v2533
  %3395 = vmatpush1.bf16.msra.mxu0 %v2532
  %3396 = vmatprep.subr.bf16.mxu0 %v2536
  %3397 = vmatpush1.bf16.msra.mxu0 %v2535
  %3398 = vmatprep.mubr.bf16.mxu0 %v745
  %3399 = vmatmul.mubr.bf16.gmra.mrb[0].mxu0 %v731
  %v3400 = vpop.f32.mrb[0].mxu0
  %v3401 = vadd.f32 %v3360, %v3400
  %v3402 = vpop.f32.mrb[0].mxu0
  %v3403 = vadd.f32 %v3362, %v3402
  %v3404 = vpop.f32.mrb[0].mxu0
  %v3405 = vpop.f32.mrb[0].mxu0
  %3406 = vdwg.mxu0
  %3407 = vmatprep.subr.bf16.mxu0 %v2539
  %3408 = vmatpush1.bf16.msra.mxu0 %v2538
  %3409 = vmatprep.subr.bf16.mxu0 %v2542
  %3410 = vmatpush1.bf16.msra.mxu0 %v2541
  %3411 = vmatprep.subr.bf16.mxu0 %v2545
  %3412 = vmatpush1.bf16.msra.mxu0 %v2544
  %3413 = vmatprep.subr.bf16.mxu0 %v2548
  %3414 = vmatpush1.bf16.msra.mxu0 %v2547
  %3415 = vmatprep.subr.bf16.mxu0 %v2551
  %3416 = vmatpush1.bf16.msra.mxu0 %v2550
  %3417 = vmatprep.subr.bf16.mxu0 %v2554
  %3418 = vmatpush1.bf16.msra.mxu0 %v2553
  %3419 = vmatprep.subr.bf16.mxu0 %v2557
  %3420 = vmatpush1.bf16.msra.mxu0 %v2556
  %3421 = vmatprep.subr.bf16.mxu0 %v2560
  %3422 = vmatpush1.bf16.msra.mxu0 %v2559
  %3423 = vmatprep.subr.bf16.mxu0 %v2563
  %3424 = vmatpush1.bf16.msra.mxu0 %v2562
  %3425 = vmatprep.subr.bf16.mxu0 %v2566
  %3426 = vmatpush1.bf16.msra.mxu0 %v2565
  %3427 = vmatprep.subr.bf16.mxu0 %v2569
  %3428 = vmatpush1.bf16.msra.mxu0 %v2568
  %3429 = vmatprep.subr.bf16.mxu0 %v2572
  %3430 = vmatpush1.bf16.msra.mxu0 %v2571
  %3431 = vmatprep.subr.bf16.mxu0 %v2575
  %3432 = vmatpush1.bf16.msra.mxu0 %v2574
  %3433 = vmatprep.subr.bf16.mxu0 %v2578
  %3434 = vmatpush1.bf16.msra.mxu0 %v2577
  %3435 = vmatprep.subr.bf16.mxu0 %v2581
  %3436 = vmatpush1.bf16.msra.mxu0 %v2580
  %3437 = vmatprep.subr.bf16.mxu0 %v2584
  %3438 = vmatpush1.bf16.msra.mxu0 %v2583
  %3439 = vmatprep.mubr.bf16.mxu0 %v755
  %3440 = vmatmul.mubr.bf16.gmra.mrb[0].mxu0 %v753
  %v3441 = vpop.f32.mrb[0].mxu0
  %v3442 = vadd.f32 %v3401, %v3441
  %v3443 = vpop.f32.mrb[0].mxu0
  %v3444 = vadd.f32 %v3403, %v3443
  %v3445 = vpop.f32.mrb[0].mxu0
  %v3446 = vpop.f32.mrb[0].mxu0
  %3447 = vdwg.mxu0
  %3448 = vmatprep.subr.bf16.mxu0 %v2587
  %3449 = vmatpush1.bf16.msra.mxu0 %v2586
  %3450 = vmatprep.subr.bf16.mxu0 %v2590
  %3451 = vmatpush1.bf16.msra.mxu0 %v2589
  %3452 = vmatprep.subr.bf16.mxu0 %v2593
  %3453 = vmatpush1.bf16.msra.mxu0 %v2592
  %3454 = vmatprep.subr.bf16.mxu0 %v2596
  %3455 = vmatpush1.bf16.msra.mxu0 %v2595
  %3456 = vmatprep.subr.bf16.mxu0 %v2599
  %3457 = vmatpush1.bf16.msra.mxu0 %v2598
  %3458 = vmatprep.subr.bf16.mxu0 %v2602
  %3459 = vmatpush1.bf16.msra.mxu0 %v2601
  %3460 = vmatprep.subr.bf16.mxu0 %v2605
  %3461 = vmatpush1.bf16.msra.mxu0 %v2604
  %3462 = vmatprep.subr.bf16.mxu0 %v2608
  %3463 = vmatpush1.bf16.msra.mxu0 %v2607
  %3464 = vmatprep.subr.bf16.mxu0 %v2611
  %3465 = vmatpush1.bf16.msra.mxu0 %v2610
  %3466 = vmatprep.subr.bf16.mxu0 %v2614
  %3467 = vmatpush1.bf16.msra.mxu0 %v2613
  %3468 = vmatprep.subr.bf16.mxu0 %v2617
  %3469 = vmatpush1.bf16.msra.mxu0 %v2616
  %3470 = vmatprep.subr.bf16.mxu0 %v2620
  %3471 = vmatpush1.bf16.msra.mxu0 %v2619
  %3472 = vmatprep.subr.bf16.mxu0 %v2623
  %3473 = vmatpush1.bf16.msra.mxu0 %v2622
  %3474 = vmatprep.subr.bf16.mxu0 %v2626
  %3475 = vmatpush1.bf16.msra.mxu0 %v2625
  %3476 = vmatprep.subr.bf16.mxu0 %v2629
  %3477 = vmatpush1.bf16.msra.mxu0 %v2628
  %3478 = vmatprep.subr.bf16.mxu0 %v2632
  %3479 = vmatpush1.bf16.msra.mxu0 %v2631
  %3480 = vmatprep.mubr.bf16.mxu0 %v752
  %3481 = vmatmul.mubr.bf16.gmra.mrb[0].mxu0 %v738
  %v3482 = vpop.f32.mrb[0].mxu0
  %v3483 = vadd.f32 %v3442, %v3482
  %v3484 = vpop.f32.mrb[0].mxu0
  %v3485 = vadd.f32 %v3444, %v3484
  %v3486 = vpop.f32.mrb[0].mxu0
  %v3487 = vpop.f32.mrb[0].mxu0
  %3488 = vdwg.mxu0
  %3489 = vmatprep.subr.bf16.mxu0 %v2635
  %3490 = vmatpush1.bf16.msra.mxu0 %v2634
  %3491 = vmatprep.subr.bf16.mxu0 %v2638
  %3492 = vmatpush1.bf16.msra.mxu0 %v2637
  %3493 = vmatprep.subr.bf16.mxu0 %v2641
  %3494 = vmatpush1.bf16.msra.mxu0 %v2640
  %3495 = vmatprep.subr.bf16.mxu0 %v2644
  %3496 = vmatpush1.bf16.msra.mxu0 %v2643
  %3497 = vmatprep.subr.bf16.mxu0 %v2647
  %3498 = vmatpush1.bf16.msra.mxu0 %v2646
  %3499 = vmatprep.subr.bf16.mxu0 %v2650
  %3500 = vmatpush1.bf16.msra.mxu0 %v2649
  %3501 = vmatprep.subr.bf16.mxu0 %v2653
  %3502 = vmatpush1.bf16.msra.mxu0 %v2652
  %3503 = vmatprep.subr.bf16.mxu0 %v2656
  %3504 = vmatpush1.bf16.msra.mxu0 %v2655
  %3505 = vmatprep.subr.bf16.mxu0 %v2659
  %3506 = vmatpush1.bf16.msra.mxu0 %v2658
  %3507 = vmatprep.subr.bf16.mxu0 %v2662
  %3508 = vmatpush1.bf16.msra.mxu0 %v2661
  %3509 = vmatprep.subr.bf16.mxu0 %v2665
  %3510 = vmatpush1.bf16.msra.mxu0 %v2664
  %3511 = vmatprep.subr.bf16.mxu0 %v2668
  %3512 = vmatpush1.bf16.msra.mxu0 %v2667
  %3513 = vmatprep.subr.bf16.mxu0 %v2671
  %3514 = vmatpush1.bf16.msra.mxu0 %v2670
  %3515 = vmatprep.subr.bf16.mxu0 %v2674
  %3516 = vmatpush1.bf16.msra.mxu0 %v2673
  %3517 = vmatprep.subr.bf16.mxu0 %v2677
  %3518 = vmatpush1.bf16.msra.mxu0 %v2676
  %3519 = vmatprep.subr.bf16.mxu0 %v2680
  %3520 = vmatpush1.bf16.msra.mxu0 %v2679
  %3521 = vmatprep.mubr.bf16.mxu0 %v756
  %3522 = vmatmul.mubr.bf16.gmra.mrb[0].mxu0 %v754
  %v3523 = vpop.f32.mrb[0].mxu0
  %v3524 = vadd.f32 %v3483, %v3523
  %v3525 = vpop.f32.mrb[0].mxu0
  %v3526 = vadd.f32 %v3485, %v3525
  %v3527 = vpop.f32.mrb[0].mxu0
  %v3528 = vpop.f32.mrb[0].mxu0
  %3529 = vdwg.mxu0
  %3530 = vmatprep.subr.bf16.mxu0 %v2683
  %3531 = vmatpush1.bf16.msra.mxu0 %v2682
  %3532 = vmatprep.subr.bf16.mxu0 %v2686
  %3533 = vmatpush1.bf16.msra.mxu0 %v2685
  %3534 = vmatprep.subr.bf16.mxu0 %v2689
  %3535 = vmatpush1.bf16.msra.mxu0 %v2688
  %3536 = vmatprep.subr.bf16.mxu0 %v2692
  %3537 = vmatpush1.bf16.msra.mxu0 %v2691
  %3538 = vmatprep.subr.bf16.mxu0 %v2695
  %3539 = vmatpush1.bf16.msra.mxu0 %v2694
  %3540 = vmatprep.subr.bf16.mxu0 %v2698
  %3541 = vmatpush1.bf16.msra.mxu0 %v2697
  %3542 = vmatprep.subr.bf16.mxu0 %v2701
  %3543 = vmatpush1.bf16.msra.mxu0 %v2700
  %3544 = vmatprep.subr.bf16.mxu0 %v2704
  %3545 = vmatpush1.bf16.msra.mxu0 %v2703
  %3546 = vmatprep.subr.bf16.mxu0 %v2707
  %3547 = vmatpush1.bf16.msra.mxu0 %v2706
  %3548 = vmatprep.subr.bf16.mxu0 %v2710
  %3549 = vmatpush1.bf16.msra.mxu0 %v2709
  %3550 = vmatprep.subr.bf16.mxu0 %v2713
  %3551 = vmatpush1.bf16.msra.mxu0 %v2712
  %3552 = vmatprep.subr.bf16.mxu0 %v2716
  %3553 = vmatpush1.bf16.msra.mxu0 %v2715
  %3554 = vmatprep.subr.bf16.mxu0 %v2719
  %3555 = vmatpush1.bf16.msra.mxu0 %v2718
  %3556 = vmatprep.subr.bf16.mxu0 %v2722
  %3557 = vmatpush1.bf16.msra.mxu0 %v2721
  %3558 = vmatprep.subr.bf16.mxu0 %v2725
  %3559 = vmatpush1.bf16.msra.mxu0 %v2724
  %3560 = vmatprep.subr.bf16.mxu0 %v2728
  %3561 = vmatpush1.bf16.msra.mxu0 %v2727
  %3562 = vmatprep.mubr.bf16.mxu0 %v778
  %3563 = vmatmul.mubr.bf16.gmra.mrb[0].mxu0 %v771
  %v3564 = vpop.f32.mrb[0].mxu0
  %v3565 = vadd.f32 %v3524, %v3564
  %v3566 = vpop.f32.mrb[0].mxu0
  %v3567 = vadd.f32 %v3526, %v3566
  %v3568 = vpop.f32.mrb[0].mxu0
  %v3569 = vpop.f32.mrb[0].mxu0
  %3570 = vdwg.mxu0
  %3571 = vmatprep.subr.bf16.mxu0 %v2731
  %3572 = vmatpush1.bf16.msra.mxu0 %v2730
  %3573 = vmatprep.subr.bf16.mxu0 %v2734
  %3574 = vmatpush1.bf16.msra.mxu0 %v2733
  %3575 = vmatprep.subr.bf16.mxu0 %v2737
  %3576 = vmatpush1.bf16.msra.mxu0 %v2736
  %3577 = vmatprep.subr.bf16.mxu0 %v2740
  %3578 = vmatpush1.bf16.msra.mxu0 %v2739
  %3579 = vmatprep.subr.bf16.mxu0 %v2743
  %3580 = vmatpush1.bf16.msra.mxu0 %v2742
  %3581 = vmatprep.subr.bf16.mxu0 %v2746
  %3582 = vmatpush1.bf16.msra.mxu0 %v2745
  %3583 = vmatprep.subr.bf16.mxu0 0
  %3584 = vmatpush1.bf16.msra.mxu0 0
  %3585 = vmatprep.subr.bf16.mxu0 0
  %3586 = vmatpush1.bf16.msra.mxu0 0
  %3587 = vmatprep.subr.bf16.mxu0 0
  %3588 = vmatpush1.bf16.msra.mxu0 0
  %3589 = vmatprep.subr.bf16.mxu0 0
  %3590 = vmatpush1.bf16.msra.mxu0 0
  %3591 = vmatprep.subr.bf16.mxu0 0
  %3592 = vmatpush1.bf16.msra.mxu0 0
  %3593 = vmatprep.subr.bf16.mxu0 0
  %3594 = vmatpush1.bf16.msra.mxu0 0
  %3595 = vmatprep.subr.bf16.mxu0 0
  %3596 = vmatpush1.bf16.msra.mxu0 0
  %3597 = vmatprep.subr.bf16.mxu0 0
  %3598 = vmatpush1.bf16.msra.mxu0 0
  %3599 = vmatprep.subr.bf16.mxu0 0
  %3600 = vmatpush1.bf16.msra.mxu0 0
  %3601 = vmatprep.subr.bf16.mxu0 0
  %3602 = vmatpush1.bf16.msra.mxu0 0
  %3603 = vmatprep.mubr.bf16.mxu0 0
  %3604 = vmatmul.mubr.bf16.gmra.mrb[0].mxu0 %v3200
  %v3605 = vpop.f32.mrb[0].mxu0
  %v3606 = vadd.f32 %v3565, %v3605
  %v3607 = vpop.f32.mrb[0].mxu0
  %v3608 = vadd.f32 %v3567, %v3607
  %v3609 = vpop.f32.mrb[0].mxu0
  %v3610 = vpop.f32.mrb[0].mxu0
  %3611 = vdwg.mxu0
  %3612 = vmatprep.subr.bf16.mxu0 0
  %3613 = vmatpush1.bf16.msra.mxu0 %v2300
  %3614 = vmatprep.subr.bf16.mxu0 0
  %3615 = vmatpush1.bf16.msra.mxu0 %v2303
  %3616 = vmatprep.subr.bf16.mxu0 0
  %3617 = vmatpush1.bf16.msra.mxu0 %v2306
  %3618 = vmatprep.subr.bf16.mxu0 0
  %3619 = vmatpush1.bf16.msra.mxu0 %v2309
  %3620 = vmatprep.subr.bf16.mxu0 0
  %3621 = vmatpush1.bf16.msra.mxu0 %v2312
  %3622 = vmatprep.subr.bf16.mxu0 0
  %3623 = vmatpush1.bf16.msra.mxu0 %v2315
  %3624 = vmatprep.subr.bf16.mxu0 0
  %3625 = vmatpush1.bf16.msra.mxu0 %v2318
  %3626 = vmatprep.subr.bf16.mxu0 0
  %3627 = vmatpush1.bf16.msra.mxu0 %v2321
  %3628 = vmatprep.subr.bf16.mxu0 0
  %3629 = vmatpush1.bf16.msra.mxu0 %v2324
  %3630 = vmatprep.subr.bf16.mxu0 0
  %3631 = vmatpush1.bf16.msra.mxu0 %v2327
  %3632 = vmatprep.subr.bf16.mxu0 0
  %3633 = vmatpush1.bf16.msra.mxu0 %v2330
  %3634 = vmatprep.subr.bf16.mxu0 0
  %3635 = vmatpush1.bf16.msra.mxu0 %v2333
  %3636 = vmatprep.subr.bf16.mxu0 0
  %3637 = vmatpush1.bf16.msra.mxu0 %v2336
  %3638 = vmatprep.subr.bf16.mxu0 0
  %3639 = vmatpush1.bf16.msra.mxu0 %v2339
  %3640 = vmatprep.subr.bf16.mxu0 0
  %3641 = vmatpush1.bf16.msra.mxu0 %v2342
  %3642 = vmatprep.subr.bf16.mxu0 0
  %3643 = vmatpush1.bf16.msra.mxu0 %v2345
  %3644 = vmatprep.mubr.bf16.mxu0 %v696
  %3645 = vmatmul.mubr.bf16.gmra.mrb[0].mxu0 %v682
  %v3646 = vpop.f32.mrb[0].mxu0
  %v3647 = vadd.f32 %v652, %v3646
  %v3648 = vpop.f32.mrb[0].mxu0
  %v3649 = vpop.f32.mrb[0].mxu0
  %v3650 = vpop.f32.mrb[0].mxu0
  %3651 = vdwg.mxu0
  %3652 = vmatprep.subr.bf16.mxu0 0
  %3653 = vmatpush1.bf16.msra.mxu0 %v2348
  %3654 = vmatprep.subr.bf16.mxu0 0
  %3655 = vmatpush1.bf16.msra.mxu0 %v2351
  %3656 = vmatprep.subr.bf16.mxu0 0
  %3657 = vmatpush1.bf16.msra.mxu0 %v2354
  %3658 = vmatprep.subr.bf16.mxu0 0
  %3659 = vmatpush1.bf16.msra.mxu0 %v2357
  %3660 = vmatprep.subr.bf16.mxu0 0
  %3661 = vmatpush1.bf16.msra.mxu0 %v2360
  %3662 = vmatprep.subr.bf16.mxu0 0
  %3663 = vmatpush1.bf16.msra.mxu0 %v2363
  %3664 = vmatprep.subr.bf16.mxu0 0
  %3665 = vmatpush1.bf16.msra.mxu0 %v2366
  %3666 = vmatprep.subr.bf16.mxu0 0
  %3667 = vmatpush1.bf16.msra.mxu0 %v2369
  %3668 = vmatprep.subr.bf16.mxu0 0
  %3669 = vmatpush1.bf16.msra.mxu0 %v2372
  %3670 = vmatprep.subr.bf16.mxu0 0
  %3671 = vmatpush1.bf16.msra.mxu0 %v2375
  %3672 = vmatprep.subr.bf16.mxu0 0
  %3673 = vmatpush1.bf16.msra.mxu0 %v2378
  %3674 = vmatprep.subr.bf16.mxu0 0
  %3675 = vmatpush1.bf16.msra.mxu0 %v2381
  %3676 = vmatprep.subr.bf16.mxu0 0
  %3677 = vmatpush1.bf16.msra.mxu0 %v2384
  %3678 = vmatprep.subr.bf16.mxu0 0
  %3679 = vmatpush1.bf16.msra.mxu0 %v2387
  %3680 = vmatprep.subr.bf16.mxu0 0
  %3681 = vmatpush1.bf16.msra.mxu0 %v2390
  %3682 = vmatprep.subr.bf16.mxu0 0
  %3683 = vmatpush1.bf16.msra.mxu0 %v2393
  %3684 = vmatprep.mubr.bf16.mxu0 %v706
  %3685 = vmatmul.mubr.bf16.gmra.mrb[0].mxu0 %v704
  %v3686 = vpop.f32.mrb[0].mxu0
  %v3687 = vadd.f32 %v3647, %v3686
  %v3688 = vpop.f32.mrb[0].mxu0
  %v3689 = vpop.f32.mrb[0].mxu0
  %v3690 = vpop.f32.mrb[0].mxu0
  %3691 = vdwg.mxu0
  %3692 = vmatprep.subr.bf16.mxu0 0
  %3693 = vmatpush1.bf16.msra.mxu0 %v2396
  %3694 = vmatprep.subr.bf16.mxu0 0
  %3695 = vmatpush1.bf16.msra.mxu0 %v2399
  %3696 = vmatprep.subr.bf16.mxu0 0
  %3697 = vmatpush1.bf16.msra.mxu0 %v2402
  %3698 = vmatprep.subr.bf16.mxu0 0
  %3699 = vmatpush1.bf16.msra.mxu0 %v2405
  %3700 = vmatprep.subr.bf16.mxu0 0
  %3701 = vmatpush1.bf16.msra.mxu0 %v2408
  %3702 = vmatprep.subr.bf16.mxu0 0
  %3703 = vmatpush1.bf16.msra.mxu0 %v2411
  %3704 = vmatprep.subr.bf16.mxu0 0
  %3705 = vmatpush1.bf16.msra.mxu0 %v2414
  %3706 = vmatprep.subr.bf16.mxu0 0
  %3707 = vmatpush1.bf16.msra.mxu0 %v2417
  %3708 = vmatprep.subr.bf16.mxu0 0
  %3709 = vmatpush1.bf16.msra.mxu0 %v2420
  %3710 = vmatprep.subr.bf16.mxu0 0
  %3711 = vmatpush1.bf16.msra.mxu0 %v2423
  %3712 = vmatprep.subr.bf16.mxu0 0
  %3713 = vmatpush1.bf16.msra.mxu0 %v2426
  %3714 = vmatprep.subr.bf16.mxu0 0
  %3715 = vmatpush1.bf16.msra.mxu0 %v2429
  %3716 = vmatprep.subr.bf16.mxu0 0
  %3717 = vmatpush1.bf16.msra.mxu0 %v2432
  %3718 = vmatprep.subr.bf16.mxu0 0
  %3719 = vmatpush1.bf16.msra.mxu0 %v2435
  %3720 = vmatprep.subr.bf16.mxu0 0
  %3721 = vmatpush1.bf16.msra.mxu0 %v2438
  %3722 = vmatprep.subr.bf16.mxu0 0
  %3723 = vmatpush1.bf16.msra.mxu0 %v2441
  %3724 = vmatprep.mubr.bf16.mxu0 %v703
  %3725 = vmatmul.mubr.bf16.gmra.mrb[0].mxu0 %v689
  %v3726 = vpop.f32.mrb[0].mxu0
  %v3727 = vadd.f32 %v3687, %v3726
  %v3728 = vpop.f32.mrb[0].mxu0
  %v3729 = vpop.f32.mrb[0].mxu0
  %v3730 = vpop.f32.mrb[0].mxu0
  %3731 = vdwg.mxu0
  %3732 = vmatprep.subr.bf16.mxu0 0
  %3733 = vmatpush1.bf16.msra.mxu0 %v2444
  %3734 = vmatprep.subr.bf16.mxu0 0
  %3735 = vmatpush1.bf16.msra.mxu0 %v2447
  %3736 = vmatprep.subr.bf16.mxu0 0
  %3737 = vmatpush1.bf16.msra.mxu0 %v2450
  %3738 = vmatprep.subr.bf16.mxu0 0
  %3739 = vmatpush1.bf16.msra.mxu0 %v2453
  %3740 = vmatprep.subr.bf16.mxu0 0
  %3741 = vmatpush1.bf16.msra.mxu0 %v2456
  %3742 = vmatprep.subr.bf16.mxu0 0
  %3743 = vmatpush1.bf16.msra.mxu0 %v2459
  %3744 = vmatprep.subr.bf16.mxu0 0
  %3745 = vmatpush1.bf16.msra.mxu0 %v2462
  %3746 = vmatprep.subr.bf16.mxu0 0
  %3747 = vmatpush1.bf16.msra.mxu0 %v2465
  %3748 = vmatprep.subr.bf16.mxu0 0
  %3749 = vmatpush1.bf16.msra.mxu0 %v2468
  %3750 = vmatprep.subr.bf16.mxu0 0
  %3751 = vmatpush1.bf16.msra.mxu0 %v2471
  %3752 = vmatprep.subr.bf16.mxu0 0
  %3753 = vmatpush1.bf16.msra.mxu0 %v2474
  %3754 = vmatprep.subr.bf16.mxu0 0
  %3755 = vmatpush1.bf16.msra.mxu0 %v2477
  %3756 = vmatprep.subr.bf16.mxu0 0
  %3757 = vmatpush1.bf16.msra.mxu0 %v2480
  %3758 = vmatprep.subr.bf16.mxu0 0
  %3759 = vmatpush1.bf16.msra.mxu0 %v2483
  %3760 = vmatprep.subr.bf16.mxu0 0
  %3761 = vmatpush1.bf16.msra.mxu0 %v2486
  %3762 = vmatprep.subr.bf16.mxu0 0
  %3763 = vmatpush1.bf16.msra.mxu0 %v2489
  %3764 = vmatprep.mubr.bf16.mxu0 %v707
  %3765 = vmatmul.mubr.bf16.gmra.mrb[0].mxu0 %v705
  %v3766 = vpop.f32.mrb[0].mxu0
  %v3767 = vadd.f32 %v3727, %v3766
  %v3768 = vpop.f32.mrb[0].mxu0
  %v3769 = vpop.f32.mrb[0].mxu0
  %v3770 = vpop.f32.mrb[0].mxu0
  %3771 = vdwg.mxu0
  %3772 = vmatprep.subr.bf16.mxu0 0
  %3773 = vmatpush1.bf16.msra.mxu0 %v2492
  %3774 = vmatprep.subr.bf16.mxu0 0
  %3775 = vmatpush1.bf16.msra.mxu0 %v2495
  %3776 = vmatprep.subr.bf16.mxu0 0
  %3777 = vmatpush1.bf16.msra.mxu0 %v2498
  %3778 = vmatprep.subr.bf16.mxu0 0
  %3779 = vmatpush1.bf16.msra.mxu0 %v2501
  %3780 = vmatprep.subr.bf16.mxu0 0
  %3781 = vmatpush1.bf16.msra.mxu0 %v2504
  %3782 = vmatprep.subr.bf16.mxu0 0
  %3783 = vmatpush1.bf16.msra.mxu0 %v2507
  %3784 = vmatprep.subr.bf16.mxu0 0
  %3785 = vmatpush1.bf16.msra.mxu0 %v2510
  %3786 = vmatprep.subr.bf16.mxu0 0
  %3787 = vmatpush1.bf16.msra.mxu0 %v2513
  %3788 = vmatprep.subr.bf16.mxu0 0
  %3789 = vmatpush1.bf16.msra.mxu0 %v2516
  %3790 = vmatprep.subr.bf16.mxu0 0
  %3791 = vmatpush1.bf16.msra.mxu0 %v2519
  %3792 = vmatprep.subr.bf16.mxu0 0
  %3793 = vmatpush1.bf16.msra.mxu0 %v2522
  %3794 = vmatprep.subr.bf16.mxu0 0
  %3795 = vmatpush1.bf16.msra.mxu0 %v2525
  %3796 = vmatprep.subr.bf16.mxu0 0
  %3797 = vmatpush1.bf16.msra.mxu0 %v2528
  %3798 = vmatprep.subr.bf16.mxu0 0
  %3799 = vmatpush1.bf16.msra.mxu0 %v2531
  %3800 = vmatprep.subr.bf16.mxu0 0
  %3801 = vmatpush1.bf16.msra.mxu0 %v2534
  %3802 = vmatprep.subr.bf16.mxu0 0
  %3803 = vmatpush1.bf16.msra.mxu0 %v2537
  %3804 = vmatprep.mubr.bf16.mxu0 %v745
  %3805 = vmatmul.mubr.bf16.gmra.mrb[0].mxu0 %v731
  %v3806 = vpop.f32.mrb[0].mxu0
  %v3807 = vadd.f32 %v3767, %v3806
  %v3808 = vpop.f32.mrb[0].mxu0
  %v3809 = vpop.f32.mrb[0].mxu0
  %v3810 = vpop.f32.mrb[0].mxu0
  %3811 = vdwg.mxu0
  %3812 = vmatprep.subr.bf16.mxu0 0
  %3813 = vmatpush1.bf16.msra.mxu0 %v2540
  %3814 = vmatprep.subr.bf16.mxu0 0
  %3815 = vmatpush1.bf16.msra.mxu0 %v2543
  %3816 = vmatprep.subr.bf16.mxu0 0
  %3817 = vmatpush1.bf16.msra.mxu0 %v2546
  %3818 = vmatprep.subr.bf16.mxu0 0
  %3819 = vmatpush1.bf16.msra.mxu0 %v2549
  %3820 = vmatprep.subr.bf16.mxu0 0
  %3821 = vmatpush1.bf16.msra.mxu0 %v2552
  %3822 = vmatprep.subr.bf16.mxu0 0
  %3823 = vmatpush1.bf16.msra.mxu0 %v2555
  %3824 = vmatprep.subr.bf16.mxu0 0
  %3825 = vmatpush1.bf16.msra.mxu0 %v2558
  %3826 = vmatprep.subr.bf16.mxu0 0
  %3827 = vmatpush1.bf16.msra.mxu0 %v2561
  %3828 = vmatprep.subr.bf16.mxu0 0
  %3829 = vmatpush1.bf16.msra.mxu0 %v2564
  %3830 = vmatprep.subr.bf16.mxu0 0
  %3831 = vmatpush1.bf16.msra.mxu0 %v2567
  %3832 = vmatprep.subr.bf16.mxu0 0
  %3833 = vmatpush1.bf16.msra.mxu0 %v2570
  %3834 = vmatprep.subr.bf16.mxu0 0
  %3835 = vmatpush1.bf16.msra.mxu0 %v2573
  %3836 = vmatprep.subr.bf16.mxu0 0
  %3837 = vmatpush1.bf16.msra.mxu0 %v2576
  %3838 = vmatprep.subr.bf16.mxu0 0
  %3839 = vmatpush1.bf16.msra.mxu0 %v2579
  %3840 = vmatprep.subr.bf16.mxu0 0
  %3841 = vmatpush1.bf16.msra.mxu0 %v2582
  %3842 = vmatprep.subr.bf16.mxu0 0
  %3843 = vmatpush1.bf16.msra.mxu0 %v2585
  %3844 = vmatprep.mubr.bf16.mxu0 %v755
  %3845 = vmatmul.mubr.bf16.gmra.mrb[0].mxu0 %v753
  %v3846 = vpop.f32.mrb[0].mxu0
  %v3847 = vadd.f32 %v3807, %v3846
  %v3848 = vpop.f32.mrb[0].mxu0
  %v3849 = vpop.f32.mrb[0].mxu0
  %v3850 = vpop.f32.mrb[0].mxu0
  %3851 = vdwg.mxu0
  %3852 = vmatprep.subr.bf16.mxu0 0
  %3853 = vmatpush1.bf16.msra.mxu0 %v2588
  %3854 = vmatprep.subr.bf16.mxu0 0
  %3855 = vmatpush1.bf16.msra.mxu0 %v2591
  %3856 = vmatprep.subr.bf16.mxu0 0
  %3857 = vmatpush1.bf16.msra.mxu0 %v2594
  %3858 = vmatprep.subr.bf16.mxu0 0
  %3859 = vmatpush1.bf16.msra.mxu0 %v2597
  %3860 = vmatprep.subr.bf16.mxu0 0
  %3861 = vmatpush1.bf16.msra.mxu0 %v2600
  %3862 = vmatprep.subr.bf16.mxu0 0
  %3863 = vmatpush1.bf16.msra.mxu0 %v2603
  %3864 = vmatprep.subr.bf16.mxu0 0
  %3865 = vmatpush1.bf16.msra.mxu0 %v2606
  %3866 = vmatprep.subr.bf16.mxu0 0
  %3867 = vmatpush1.bf16.msra.mxu0 %v2609
  %3868 = vmatprep.subr.bf16.mxu0 0
  %3869 = vmatpush1.bf16.msra.mxu0 %v2612
  %3870 = vmatprep.subr.bf16.mxu0 0
  %3871 = vmatpush1.bf16.msra.mxu0 %v2615
  %3872 = vmatprep.subr.bf16.mxu0 0
  %3873 = vmatpush1.bf16.msra.mxu0 %v2618
  %3874 = vmatprep.subr.bf16.mxu0 0
  %3875 = vmatpush1.bf16.msra.mxu0 %v2621
  %3876 = vmatprep.subr.bf16.mxu0 0
  %3877 = vmatpush1.bf16.msra.mxu0 %v2624
  %3878 = vmatprep.subr.bf16.mxu0 0
  %3879 = vmatpush1.bf16.msra.mxu0 %v2627
  %3880 = vmatprep.subr.bf16.mxu0 0
  %3881 = vmatpush1.bf16.msra.mxu0 %v2630
  %3882 = vmatprep.subr.bf16.mxu0 0
  %3883 = vmatpush1.bf16.msra.mxu0 %v2633
  %3884 = vmatprep.mubr.bf16.mxu0 %v752
  %3885 = vmatmul.mubr.bf16.gmra.mrb[0].mxu0 %v738
  %v3886 = vpop.f32.mrb[0].mxu0
  %v3887 = vadd.f32 %v3847, %v3886
  %v3888 = vpop.f32.mrb[0].mxu0
  %v3889 = vpop.f32.mrb[0].mxu0
  %v3890 = vpop.f32.mrb[0].mxu0
  %3891 = vdwg.mxu0
  %3892 = vmatprep.subr.bf16.mxu0 0
  %3893 = vmatpush1.bf16.msra.mxu0 %v2636
  %3894 = vmatprep.subr.bf16.mxu0 0
  %3895 = vmatpush1.bf16.msra.mxu0 %v2639
  %3896 = vmatprep.subr.bf16.mxu0 0
  %3897 = vmatpush1.bf16.msra.mxu0 %v2642
  %3898 = vmatprep.subr.bf16.mxu0 0
  %3899 = vmatpush1.bf16.msra.mxu0 %v2645
  %3900 = vmatprep.subr.bf16.mxu0 0
  %3901 = vmatpush1.bf16.msra.mxu0 %v2648
  %3902 = vmatprep.subr.bf16.mxu0 0
  %3903 = vmatpush1.bf16.msra.mxu0 %v2651
  %3904 = vmatprep.subr.bf16.mxu0 0
  %3905 = vmatpush1.bf16.msra.mxu0 %v2654
  %3906 = vmatprep.subr.bf16.mxu0 0
  %3907 = vmatpush1.bf16.msra.mxu0 %v2657
  %3908 = vmatprep.subr.bf16.mxu0 0
  %3909 = vmatpush1.bf16.msra.mxu0 %v2660
  %3910 = vmatprep.subr.bf16.mxu0 0
  %3911 = vmatpush1.bf16.msra.mxu0 %v2663
  %3912 = vmatprep.subr.bf16.mxu0 0
  %3913 = vmatpush1.bf16.msra.mxu0 %v2666
  %3914 = vmatprep.subr.bf16.mxu0 0
  %3915 = vmatpush1.bf16.msra.mxu0 %v2669
  %3916 = vmatprep.subr.bf16.mxu0 0
  %3917 = vmatpush1.bf16.msra.mxu0 %v2672
  %3918 = vmatprep.subr.bf16.mxu0 0
  %3919 = vmatpush1.bf16.msra.mxu0 %v2675
  %3920 = vmatprep.subr.bf16.mxu0 0
  %3921 = vmatpush1.bf16.msra.mxu0 %v2678
  %3922 = vmatprep.subr.bf16.mxu0 0
  %3923 = vmatpush1.bf16.msra.mxu0 %v2681
  %3924 = vmatprep.mubr.bf16.mxu0 %v756
  %3925 = vmatmul.mubr.bf16.gmra.mrb[0].mxu0 %v754
  %v3926 = vpop.f32.mrb[0].mxu0
  %v3927 = vadd.f32 %v3887, %v3926
  %v3928 = vpop.f32.mrb[0].mxu0
  %v3929 = vpop.f32.mrb[0].mxu0
  %v3930 = vpop.f32.mrb[0].mxu0
  %3931 = vdwg.mxu0
  %3932 = vmatprep.subr.bf16.mxu0 0
  %3933 = vmatpush1.bf16.msra.mxu0 %v2684
  %3934 = vmatprep.subr.bf16.mxu0 0
  %3935 = vmatpush1.bf16.msra.mxu0 %v2687
  %3936 = vmatprep.subr.bf16.mxu0 0
  %3937 = vmatpush1.bf16.msra.mxu0 %v2690
  %3938 = vmatprep.subr.bf16.mxu0 0
  %3939 = vmatpush1.bf16.msra.mxu0 %v2693
  %3940 = vmatprep.subr.bf16.mxu0 0
  %3941 = vmatpush1.bf16.msra.mxu0 %v2696
  %3942 = vmatprep.subr.bf16.mxu0 0
  %3943 = vmatpush1.bf16.msra.mxu0 %v2699
  %3944 = vmatprep.subr.bf16.mxu0 0
  %3945 = vmatpush1.bf16.msra.mxu0 %v2702
  %3946 = vmatprep.subr.bf16.mxu0 0
  %3947 = vmatpush1.bf16.msra.mxu0 %v2705
  %3948 = vmatprep.subr.bf16.mxu0 0
  %3949 = vmatpush1.bf16.msra.mxu0 %v2708
  %3950 = vmatprep.subr.bf16.mxu0 0
  %3951 = vmatpush1.bf16.msra.mxu0 %v2711
  %3952 = vmatprep.subr.bf16.mxu0 0
  %3953 = vmatpush1.bf16.msra.mxu0 %v2714
  %3954 = vmatprep.subr.bf16.mxu0 0
  %3955 = vmatpush1.bf16.msra.mxu0 %v2717
  %3956 = vmatprep.subr.bf16.mxu0 0
  %3957 = vmatpush1.bf16.msra.mxu0 %v2720
  %3958 = vmatprep.subr.bf16.mxu0 0
  %3959 = vmatpush1.bf16.msra.mxu0 %v2723
  %3960 = vmatprep.subr.bf16.mxu0 0
  %3961 = vmatpush1.bf16.msra.mxu0 %v2726
  %3962 = vmatprep.subr.bf16.mxu0 0
  %3963 = vmatpush1.bf16.msra.mxu0 %v2729
  %3964 = vmatprep.mubr.bf16.mxu0 %v778
  %3965 = vmatmul.mubr.bf16.gmra.mrb[0].mxu0 %v771
  %v3966 = vpop.f32.mrb[0].mxu0
  %v3967 = vadd.f32 %v3927, %v3966
  %v3968 = vpop.f32.mrb[0].mxu0
  %v3969 = vpop.f32.mrb[0].mxu0
  %v3970 = vpop.f32.mrb[0].mxu0
  %3971 = vdwg.mxu0
  %3972 = vmatprep.subr.bf16.mxu0 0
  %3973 = vmatpush1.bf16.msra.mxu0 %v2732
  %3974 = vmatprep.subr.bf16.mxu0 0
  %3975 = vmatpush1.bf16.msra.mxu0 %v2735
  %3976 = vmatprep.subr.bf16.mxu0 0
  %3977 = vmatpush1.bf16.msra.mxu0 %v2738
  %3978 = vmatprep.subr.bf16.mxu0 0
  %3979 = vmatpush1.bf16.msra.mxu0 %v2741
  %3980 = vmatprep.subr.bf16.mxu0 0
  %3981 = vmatpush1.bf16.msra.mxu0 %v2744
  %3982 = vmatprep.subr.bf16.mxu0 0
  %3983 = vmatpush1.bf16.msra.mxu0 %v2747
  %3984 = vmatprep.subr.bf16.mxu0 0
  %3985 = vmatpush1.bf16.msra.mxu0 0
  %3986 = vmatprep.subr.bf16.mxu0 0
  %3987 = vmatpush1.bf16.msra.mxu0 0
  %3988 = vmatprep.subr.bf16.mxu0 0
  %3989 = vmatpush1.bf16.msra.mxu0 0
  %3990 = vmatprep.subr.bf16.mxu0 0
  %3991 = vmatpush1.bf16.msra.mxu0 0
  %3992 = vmatprep.subr.bf16.mxu0 0
  %3993 = vmatpush1.bf16.msra.mxu0 0
  %3994 = vmatprep.subr.bf16.mxu0 0
  %3995 = vmatpush1.bf16.msra.mxu0 0
  %3996 = vmatprep.subr.bf16.mxu0 0
  %3997 = vmatpush1.bf16.msra.mxu0 0
  %3998 = vmatprep.subr.bf16.mxu0 0
  %3999 = vmatpush1.bf16.msra.mxu0 0
  %4000 = vmatprep.subr.bf16.mxu0 0
  %4001 = vmatpush1.bf16.msra.mxu0 0
  %4002 = vmatprep.subr.bf16.mxu0 0
  %4003 = vmatpush1.bf16.msra.mxu0 0
  %4004 = vmatprep.mubr.bf16.mxu0 0
  %4005 = vmatmul.mubr.bf16.gmra.mrb[0].mxu0 %v3200
  %v4006 = vpop.f32.mrb[0].mxu0
  %v4007 = vadd.f32 %v3967, %v4006
  %v4008 = vpop.f32.mrb[0].mxu0
  %v4009 = vpop.f32.mrb[0].mxu0
  %v4010 = vpop.f32.mrb[0].mxu0
  %4011 = vdwg.mxu0
  %v4012 = vmax.f32 %v3606, 0.0
  %v4013 = vmax.f32 %v3608, 0.0
  %v4014 = vmax.f32 %v4007, 0.0
  %v4015 = vpack.c.bf16 %v4012, %v4012
  %v4016 = vpack.c.bf16 %v4013, %v4013
  %v4017 = vpack.c.bf16 %v4014, %v4014
  %v4018 = vld [vmem:[%s3] sm:$0xff]
  %v4019 = vld [vmem:[%s3 + $0x8] sm:$0xff]
  %v4020 = vld [vmem:[%s3 + $0x10] sm:$0xff]
  %v4021 = vld [vmem:[%s3 + $0x18] sm:$0xff]
  %v4022 = vld [vmem:[%s3 + $0x20] sm:$0xff]
  %v4023 = vld [vmem:[%s3 + $0x28] sm:$0xff]
  %v4024 = vld [vmem:[%s3 + $0x30] sm:$0xff]
  %v4025 = vld [vmem:[%s3 + $0x38] sm:$0xff]
  %v4026 = vld [vmem:[%s3 + $0x40] sm:$0xff]
  %v4027 = vld [vmem:[%s3 + $0x48] sm:$0xff]
  %v4028 = vld [vmem:[%s3 + $0x50] sm:$0xff]
  %v4029 = vld [vmem:[%s3 + $0x58] sm:$0xff]
  %v4030 = vld [vmem:[%s3 + $0x60] sm:$0xff]
  %v4031 = vld [vmem:[%s3 + $0x68] sm:$0xff]
  %v4032 = vld [vmem:[%s3 + $0x70] sm:$0xff]
  %v4033 = vld [vmem:[%s3 + $0x78] sm:$0xff]
  %v4034 = vld [vmem:[%s3 + $0x80] sm:$0xff]
  %v4035 = vld [vmem:[%s3 + $0x88] sm:$0xff]
  %v4036 = vld [vmem:[%s3 + $0x90] sm:$0xff]
  %v4037 = vld [vmem:[%s3 + $0x98] sm:$0xff]
  %v4038 = vld [vmem:[%s3 + $0xa0] sm:$0xff]
  %v4039 = vld [vmem:[%s3 + $0xa8] sm:$0xff]
  %v4040 = vld [vmem:[%s3 + $0xb0] sm:$0xff]
  %v4041 = vld [vmem:[%s3 + $0xb8] sm:$0xff]
  %v4042 = vld [vmem:[%s3 + $0xc0] sm:$0xff]
  %v4043 = vld [vmem:[%s3 + $0xc8] sm:$0xff]
  %v4044 = vld [vmem:[%s3 + $0xd0] sm:$0xff]
  %v4045 = vld [vmem:[%s3 + $0xd8] sm:$0xff]
  %v4046 = vld [vmem:[%s3 + $0xe0] sm:$0xff]
  %v4047 = vld [vmem:[%s3 + $0xe8] sm:$0xff]
  %v4048 = vld [vmem:[%s3 + $0xf0] sm:$0xff]
  %v4049 = vld [vmem:[%s3 + $0xf8] sm:$0xff]
  %v4050 = vld [vmem:[%s3 + $0x100] sm:$0xff]
  %v4051 = vld [vmem:[%s3 + $0x108] sm:$0xff]
  %v4052 = vld [vmem:[%s3 + $0x110] sm:$0xff]
  %v4053 = vld [vmem:[%s3 + $0x118] sm:$0xff]
  %v4054 = vld [vmem:[%s3 + $0x120] sm:$0xff]
  %v4055 = vld [vmem:[%s3 + $0x128] sm:$0xff]
  %v4056 = vld [vmem:[%s3 + $0x130] sm:$0xff]
  %v4057 = vld [vmem:[%s3 + $0x138] sm:$0xff]
  %v4058 = vld [vmem:[%s3 + $0x140] sm:$0xff]
  %v4059 = vld [vmem:[%s3 + $0x148] sm:$0xff]
  %v4060 = vld [vmem:[%s3 + $0x150] sm:$0xff]
  %v4061 = vld [vmem:[%s3 + $0x158] sm:$0xff]
  %v4062 = vld [vmem:[%s3 + $0x160] sm:$0xff]
  %v4063 = vld [vmem:[%s3 + $0x168] sm:$0xff]
  %v4064 = vld [vmem:[%s3 + $0x170] sm:$0xff]
  %v4065 = vld [vmem:[%s3 + $0x178] sm:$0xff]
  %v4114 = vunpack.c.l.b16 %v4018
  %v4115 = vunpack.c.h.b16 %v4018
  %v4116 = vunpack.c.l.b16 %v4019
  %v4117 = vunpack.c.h.b16 %v4019
  %v4118 = vunpack.c.l.b16 %v4020
  %v4119 = vunpack.c.h.b16 %v4020
  %v4120 = vunpack.c.l.b16 %v4021
  %v4121 = vunpack.c.h.b16 %v4021
  %v4122 = vunpack.c.l.b16 %v4022
  %v4123 = vunpack.c.h.b16 %v4022
  %v4124 = vunpack.c.l.b16 %v4023
  %v4125 = vunpack.c.h.b16 %v4023
  %v4126 = vunpack.c.l.b16 %v4024
  %v4127 = vunpack.c.h.b16 %v4024
  %v4128 = vunpack.c.l.b16 %v4025
  %v4129 = vunpack.c.h.b16 %v4025
  %v4130 = vunpack.c.l.b16 %v4026
  %v4131 = vunpack.c.h.b16 %v4026
  %v4132 = vunpack.c.l.b16 %v4027
  %v4133 = vunpack.c.h.b16 %v4027
  %v4134 = vunpack.c.l.b16 %v4028
  %v4135 = vunpack.c.h.b16 %v4028
  %v4136 = vunpack.c.l.b16 %v4029
  %v4137 = vunpack.c.h.b16 %v4029
  %v4138 = vunpack.c.l.b16 %v4030
  %v4139 = vunpack.c.h.b16 %v4030
  %v4140 = vunpack.c.l.b16 %v4031
  %v4141 = vunpack.c.h.b16 %v4031
  %v4142 = vunpack.c.l.b16 %v4032
  %v4143 = vunpack.c.h.b16 %v4032
  %v4144 = vunpack.c.l.b16 %v4033
  %v4145 = vunpack.c.h.b16 %v4033
  %v4146 = vunpack.c.l.b16 %v4034
  %v4147 = vunpack.c.h.b16 %v4034
  %v4148 = vunpack.c.l.b16 %v4035
  %v4149 = vunpack.c.h.b16 %v4035
  %v4150 = vunpack.c.l.b16 %v4036
  %v4151 = vunpack.c.h.b16 %v4036
  %v4152 = vunpack.c.l.b16 %v4037
  %v4153 = vunpack.c.h.b16 %v4037
  %v4154 = vunpack.c.l.b16 %v4038
  %v4155 = vunpack.c.h.b16 %v4038
  %v4156 = vunpack.c.l.b16 %v4039
  %v4157 = vunpack.c.h.b16 %v4039
  %v4158 = vunpack.c.l.b16 %v4040
  %v4159 = vunpack.c.h.b16 %v4040
  %v4160 = vunpack.c.l.b16 %v4041
  %v4161 = vunpack.c.h.b16 %v4041
  %v4162 = vunpack.c.l.b16 %v4042
  %v4163 = vunpack.c.h.b16 %v4042
  %v4164 = vunpack.c.l.b16 %v4043
  %v4165 = vunpack.c.h.b16 %v4043
  %v4166 = vunpack.c.l.b16 %v4044
  %v4167 = vunpack.c.h.b16 %v4044
  %v4168 = vunpack.c.l.b16 %v4045
  %v4169 = vunpack.c.h.b16 %v4045
  %v4170 = vunpack.c.l.b16 %v4046
  %v4171 = vunpack.c.h.b16 %v4046
  %v4172 = vunpack.c.l.b16 %v4047
  %v4173 = vunpack.c.h.b16 %v4047
  %v4174 = vunpack.c.l.b16 %v4048
  %v4175 = vunpack.c.h.b16 %v4048
  %v4176 = vunpack.c.l.b16 %v4049
  %v4177 = vunpack.c.h.b16 %v4049
  %v4178 = vunpack.c.l.b16 %v4050
  %v4179 = vunpack.c.h.b16 %v4050
  %v4180 = vunpack.c.l.b16 %v4051
  %v4181 = vunpack.c.h.b16 %v4051
  %v4182 = vunpack.c.l.b16 %v4052
  %v4183 = vunpack.c.h.b16 %v4052
  %v4184 = vunpack.c.l.b16 %v4053
  %v4185 = vunpack.c.h.b16 %v4053
  %v4186 = vunpack.c.l.b16 %v4054
  %v4187 = vunpack.c.h.b16 %v4054
  %v4188 = vunpack.c.l.b16 %v4055
  %v4189 = vunpack.c.h.b16 %v4055
  %v4190 = vunpack.c.l.b16 %v4056
  %v4191 = vunpack.c.h.b16 %v4056
  %v4192 = vunpack.c.l.b16 %v4057
  %v4193 = vunpack.c.h.b16 %v4057
  %v4194 = vunpack.c.l.b16 %v4058
  %v4195 = vunpack.c.h.b16 %v4058
  %v4196 = vunpack.c.l.b16 %v4059
  %v4197 = vunpack.c.h.b16 %v4059
  %v4198 = vunpack.c.l.b16 %v4060
  %v4199 = vunpack.c.h.b16 %v4060
  %v4200 = vunpack.c.l.b16 %v4061
  %v4201 = vunpack.c.h.b16 %v4061
  %v4202 = vunpack.c.l.b16 %v4062
  %v4203 = vunpack.c.h.b16 %v4062
  %v4204 = vunpack.c.l.b16 %v4063
  %v4205 = vunpack.c.h.b16 %v4063
  %v4206 = vunpack.c.l.b16 %v4064
  %v4207 = vunpack.c.h.b16 %v4064
  %v4208 = vunpack.c.l.b16 %v4065
  %v4209 = vunpack.c.h.b16 %v4065
  %v4210 = vpack.c.b16 %v4116, %v4114
  %v4211 = vpack.c.b16 %v4117, %v4115
  %v4212 = vpack.c.b16 %v4120, %v4118
  %v4213 = vpack.c.b16 %v4121, %v4119
  %v4214 = vpack.c.b16 %v4124, %v4122
  %v4215 = vpack.c.b16 %v4125, %v4123
  %v4216 = vpack.c.b16 %v4128, %v4126
  %v4217 = vpack.c.b16 %v4129, %v4127
  %v4218 = vpack.c.b16 %v4132, %v4130
  %v4219 = vpack.c.b16 %v4133, %v4131
  %v4220 = vpack.c.b16 %v4136, %v4134
  %v4221 = vpack.c.b16 %v4137, %v4135
  %v4222 = vpack.c.b16 %v4140, %v4138
  %v4223 = vpack.c.b16 %v4141, %v4139
  %v4224 = vpack.c.b16 %v4144, %v4142
  %v4225 = vpack.c.b16 %v4145, %v4143
  %v4226 = vpack.c.b16 %v4148, %v4146
  %v4227 = vpack.c.b16 %v4149, %v4147
  %v4228 = vpack.c.b16 %v4152, %v4150
  %v4229 = vpack.c.b16 %v4153, %v4151
  %v4230 = vpack.c.b16 %v4156, %v4154
  %v4231 = vpack.c.b16 %v4157, %v4155
  %v4232 = vpack.c.b16 %v4160, %v4158
  %v4233 = vpack.c.b16 %v4161, %v4159
  %v4234 = vpack.c.b16 %v4164, %v4162
  %v4235 = vpack.c.b16 %v4165, %v4163
  %v4236 = vpack.c.b16 %v4168, %v4166
  %v4237 = vpack.c.b16 %v4169, %v4167
  %v4238 = vpack.c.b16 %v4172, %v4170
  %v4239 = vpack.c.b16 %v4173, %v4171
  %v4240 = vpack.c.b16 %v4176, %v4174
  %v4241 = vpack.c.b16 %v4177, %v4175
  %v4242 = vpack.c.b16 %v4180, %v4178
  %v4243 = vpack.c.b16 %v4181, %v4179
  %v4244 = vpack.c.b16 %v4184, %v4182
  %v4245 = vpack.c.b16 %v4185, %v4183
  %v4246 = vpack.c.b16 %v4188, %v4186
  %v4247 = vpack.c.b16 %v4189, %v4187
  %v4248 = vpack.c.b16 %v4192, %v4190
  %v4249 = vpack.c.b16 %v4193, %v4191
  %v4250 = vpack.c.b16 %v4196, %v4194
  %v4251 = vpack.c.b16 %v4197, %v4195
  %v4252 = vpack.c.b16 %v4200, %v4198
  %v4253 = vpack.c.b16 %v4201, %v4199
  %v4254 = vpack.c.b16 %v4204, %v4202
  %v4255 = vpack.c.b16 %v4205, %v4203
  %v4256 = vpack.c.b16 %v4208, %v4206
  %v4257 = vpack.c.b16 %v4209, %v4207
  %4306 = vmatprep.subr.bf16.mxu0 %v4211
  %4307 = vmatpush1.bf16.msra.mxu0 %v4210
  %4308 = vmatprep.subr.bf16.mxu0 %v4213
  %4309 = vmatpush1.bf16.msra.mxu0 %v4212
  %4310 = vmatprep.subr.bf16.mxu0 %v4215
  %4311 = vmatpush1.bf16.msra.mxu0 %v4214
  %4312 = vmatprep.subr.bf16.mxu0 %v4217
  %4313 = vmatpush1.bf16.msra.mxu0 %v4216
  %4314 = vmatprep.subr.bf16.mxu0 %v4219
  %4315 = vmatpush1.bf16.msra.mxu0 %v4218
  %4316 = vmatprep.subr.bf16.mxu0 %v4221
  %4317 = vmatpush1.bf16.msra.mxu0 %v4220
  %4318 = vmatprep.subr.bf16.mxu0 %v4223
  %4319 = vmatpush1.bf16.msra.mxu0 %v4222
  %4320 = vmatprep.subr.bf16.mxu0 %v4225
  %4321 = vmatpush1.bf16.msra.mxu0 %v4224
  %4322 = vmatprep.subr.bf16.mxu0 %v4227
  %4323 = vmatpush1.bf16.msra.mxu0 %v4226
  %4324 = vmatprep.subr.bf16.mxu0 %v4229
  %4325 = vmatpush1.bf16.msra.mxu0 %v4228
  %4326 = vmatprep.subr.bf16.mxu0 %v4231
  %4327 = vmatpush1.bf16.msra.mxu0 %v4230
  %4328 = vmatprep.subr.bf16.mxu0 %v4233
  %4329 = vmatpush1.bf16.msra.mxu0 %v4232
  %4330 = vmatprep.subr.bf16.mxu0 %v4235
  %4331 = vmatpush1.bf16.msra.mxu0 %v4234
  %4332 = vmatprep.subr.bf16.mxu0 %v4237
  %4333 = vmatpush1.bf16.msra.mxu0 %v4236
  %4334 = vmatprep.subr.bf16.mxu0 %v4239
  %4335 = vmatpush1.bf16.msra.mxu0 %v4238
  %4336 = vmatprep.subr.bf16.mxu0 %v4241
  %4337 = vmatpush1.bf16.msra.mxu0 %v4240
  %4338 = vmatprep.mubr.bf16.mxu0 %v4016
  %4339 = vmatmul.mubr.bf16.gmra.mrb[0].mxu0 %v4015
  %v4340 = vpop.f32.mrb[0].mxu0
  %v4341 = vadd.f32 0.0, %v4340
  %v4342 = vpop.f32.mrb[0].mxu0
  %v4343 = vadd.f32 0.0, %v4342
  %v4344 = vpop.f32.mrb[0].mxu0
  %v4345 = vpop.f32.mrb[0].mxu0
  %4346 = vdwg.mxu0
  %4347 = vmatprep.subr.bf16.mxu0 %v4243
  %4348 = vmatpush1.bf16.msra.mxu0 %v4242
  %4349 = vmatprep.subr.bf16.mxu0 %v4245
  %4350 = vmatpush1.bf16.msra.mxu0 %v4244
  %4351 = vmatprep.subr.bf16.mxu0 %v4247
  %4352 = vmatpush1.bf16.msra.mxu0 %v4246
  %4353 = vmatprep.subr.bf16.mxu0 %v4249
  %4354 = vmatpush1.bf16.msra.mxu0 %v4248
  %4355 = vmatprep.subr.bf16.mxu0 %v4251
  %4356 = vmatpush1.bf16.msra.mxu0 %v4250
  %4357 = vmatprep.subr.bf16.mxu0 %v4253
  %4358 = vmatpush1.bf16.msra.mxu0 %v4252
  %4359 = vmatprep.subr.bf16.mxu0 %v4255
  %4360 = vmatpush1.bf16.msra.mxu0 %v4254
  %4361 = vmatprep.subr.bf16.mxu0 %v4257
  %4362 = vmatpush1.bf16.msra.mxu0 %v4256
  %4363 = vmatprep.subr.bf16.mxu0 0
  %4364 = vmatpush1.bf16.msra.mxu0 0
  %4365 = vmatprep.subr.bf16.mxu0 0
  %4366 = vmatpush1.bf16.msra.mxu0 0
  %4367 = vmatprep.subr.bf16.mxu0 0
  %4368 = vmatpush1.bf16.msra.mxu0 0
  %4369 = vmatprep.subr.bf16.mxu0 0
  %4370 = vmatpush1.bf16.msra.mxu0 0
  %4371 = vmatprep.subr.bf16.mxu0 0
  %4372 = vmatpush1.bf16.msra.mxu0 0
  %4373 = vmatprep.subr.bf16.mxu0 0
  %4374 = vmatpush1.bf16.msra.mxu0 0
  %4375 = vmatprep.subr.bf16.mxu0 0
  %4376 = vmatpush1.bf16.msra.mxu0 0
  %4377 = vmatprep.subr.bf16.mxu0 0
  %4378 = vmatpush1.bf16.msra.mxu0 0
  %4379 = vmatprep.mubr.bf16.mxu0 0
  %4380 = vmatmul.mubr.bf16.gmra.mrb[0].mxu0 %v4017
  %v4381 = vpop.f32.mrb[0].mxu0
  %v4382 = vadd.f32 %v4341, %v4381
  %v4383 = vpop.f32.mrb[0].mxu0
  %v4384 = vadd.f32 %v4343, %v4383
  %v4385 = vpop.f32.mrb[0].mxu0
  %v4386 = vpop.f32.mrb[0].mxu0
  %4387 = vdwg.mxu0
  %s4388 = scalar_lea.vmem %s3, 384
  %v4389 = vld [vmem:[%s4388] sm:$0xff]
  %v4390 = vld [vmem:[%s4388 + $0x8] sm:$0xff]
  %v4391 = vld [vmem:[%s4388 + $0x10] sm:$0xff]
  %v4392 = vld [vmem:[%s4388 + $0x18] sm:$0xff]
  %v4393 = vld [vmem:[%s4388 + $0x20] sm:$0xff]
  %v4394 = vld [vmem:[%s4388 + $0x28] sm:$0xff]
  %v4395 = vld [vmem:[%s4388 + $0x30] sm:$0xff]
  %v4396 = vld [vmem:[%s4388 + $0x38] sm:$0xff]
  %v4397 = vld [vmem:[%s4388 + $0x40] sm:$0xff]
  %v4398 = vld [vmem:[%s4388 + $0x48] sm:$0xff]
  %v4399 = vld [vmem:[%s4388 + $0x50] sm:$0xff]
  %v4400 = vld [vmem:[%s4388 + $0x58] sm:$0xff]
  %v4401 = vld [vmem:[%s4388 + $0x60] sm:$0xff]
  %v4402 = vld [vmem:[%s4388 + $0x68] sm:$0xff]
  %v4403 = vld [vmem:[%s4388 + $0x70] sm:$0xff]
  %v4404 = vld [vmem:[%s4388 + $0x78] sm:$0xff]
  %v4405 = vld [vmem:[%s4388 + $0x80] sm:$0xff]
  %v4406 = vld [vmem:[%s4388 + $0x88] sm:$0xff]
  %v4407 = vld [vmem:[%s4388 + $0x90] sm:$0xff]
  %v4408 = vld [vmem:[%s4388 + $0x98] sm:$0xff]
  %v4409 = vld [vmem:[%s4388 + $0xa0] sm:$0xff]
  %v4410 = vld [vmem:[%s4388 + $0xa8] sm:$0xff]
  %v4411 = vld [vmem:[%s4388 + $0xb0] sm:$0xff]
  %v4412 = vld [vmem:[%s4388 + $0xb8] sm:$0xff]
  %v4413 = vld [vmem:[%s4388 + $0xc0] sm:$0xff]
  %v4414 = vld [vmem:[%s4388 + $0xc8] sm:$0xff]
  %v4415 = vld [vmem:[%s4388 + $0xd0] sm:$0xff]
  %v4416 = vld [vmem:[%s4388 + $0xd8] sm:$0xff]
  %v4417 = vld [vmem:[%s4388 + $0xe0] sm:$0xff]
  %v4418 = vld [vmem:[%s4388 + $0xe8] sm:$0xff]
  %v4419 = vld [vmem:[%s4388 + $0xf0] sm:$0xff]
  %v4420 = vld [vmem:[%s4388 + $0xf8] sm:$0xff]
  %v4421 = vld [vmem:[%s4388 + $0x100] sm:$0xff]
  %v4422 = vld [vmem:[%s4388 + $0x108] sm:$0xff]
  %v4423 = vld [vmem:[%s4388 + $0x110] sm:$0xff]
  %v4424 = vld [vmem:[%s4388 + $0x118] sm:$0xff]
  %v4425 = vld [vmem:[%s4388 + $0x120] sm:$0xff]
  %v4426 = vld [vmem:[%s4388 + $0x128] sm:$0xff]
  %v4427 = vld [vmem:[%s4388 + $0x130] sm:$0xff]
  %v4428 = vld [vmem:[%s4388 + $0x138] sm:$0xff]
  %v4429 = vld [vmem:[%s4388 + $0x140] sm:$0xff]
  %v4430 = vld [vmem:[%s4388 + $0x148] sm:$0xff]
  %v4431 = vld [vmem:[%s4388 + $0x150] sm:$0xff]
  %v4432 = vld [vmem:[%s4388 + $0x158] sm:$0xff]
  %v4433 = vld [vmem:[%s4388 + $0x160] sm:$0xff]
  %v4434 = vld [vmem:[%s4388 + $0x168] sm:$0xff]
  %v4435 = vld [vmem:[%s4388 + $0x170] sm:$0xff]
  %v4436 = vld [vmem:[%s4388 + $0x178] sm:$0xff]
  %v4485 = vunpack.c.l.b16 %v4389
  %v4486 = vunpack.c.h.b16 %v4389
  %v4487 = vunpack.c.l.b16 %v4390
  %v4488 = vunpack.c.h.b16 %v4390
  %v4489 = vunpack.c.l.b16 %v4391
  %v4490 = vunpack.c.h.b16 %v4391
  %v4491 = vunpack.c.l.b16 %v4392
  %v4492 = vunpack.c.h.b16 %v4392
  %v4493 = vunpack.c.l.b16 %v4393
  %v4494 = vunpack.c.h.b16 %v4393
  %v4495 = vunpack.c.l.b16 %v4394
  %v4496 = vunpack.c.h.b16 %v4394
  %v4497 = vunpack.c.l.b16 %v4395
  %v4498 = vunpack.c.h.b16 %v4395
  %v4499 = vunpack.c.l.b16 %v4396
  %v4500 = vunpack.c.h.b16 %v4396
  %v4501 = vunpack.c.l.b16 %v4397
  %v4502 = vunpack.c.h.b16 %v4397
  %v4503 = vunpack.c.l.b16 %v4398
  %v4504 = vunpack.c.h.b16 %v4398
  %v4505 = vunpack.c.l.b16 %v4399
  %v4506 = vunpack.c.h.b16 %v4399
  %v4507 = vunpack.c.l.b16 %v4400
  %v4508 = vunpack.c.h.b16 %v4400
  %v4509 = vunpack.c.l.b16 %v4401
  %v4510 = vunpack.c.h.b16 %v4401
  %v4511 = vunpack.c.l.b16 %v4402
  %v4512 = vunpack.c.h.b16 %v4402
  %v4513 = vunpack.c.l.b16 %v4403
  %v4514 = vunpack.c.h.b16 %v4403
  %v4515 = vunpack.c.l.b16 %v4404
  %v4516 = vunpack.c.h.b16 %v4404
  %v4517 = vunpack.c.l.b16 %v4405
  %v4518 = vunpack.c.h.b16 %v4405
  %v4519 = vunpack.c.l.b16 %v4406
  %v4520 = vunpack.c.h.b16 %v4406
  %v4521 = vunpack.c.l.b16 %v4407
  %v4522 = vunpack.c.h.b16 %v4407
  %v4523 = vunpack.c.l.b16 %v4408
  %v4524 = vunpack.c.h.b16 %v4408
  %v4525 = vunpack.c.l.b16 %v4409
  %v4526 = vunpack.c.h.b16 %v4409
  %v4527 = vunpack.c.l.b16 %v4410
  %v4528 = vunpack.c.h.b16 %v4410
  %v4529 = vunpack.c.l.b16 %v4411
  %v4530 = vunpack.c.h.b16 %v4411
  %v4531 = vunpack.c.l.b16 %v4412
  %v4532 = vunpack.c.h.b16 %v4412
  %v4533 = vunpack.c.l.b16 %v4413
  %v4534 = vunpack.c.h.b16 %v4413
  %v4535 = vunpack.c.l.b16 %v4414
  %v4536 = vunpack.c.h.b16 %v4414
  %v4537 = vunpack.c.l.b16 %v4415
  %v4538 = vunpack.c.h.b16 %v4415
  %v4539 = vunpack.c.l.b16 %v4416
  %v4540 = vunpack.c.h.b16 %v4416
  %v4541 = vunpack.c.l.b16 %v4417
  %v4542 = vunpack.c.h.b16 %v4417
  %v4543 = vunpack.c.l.b16 %v4418
  %v4544 = vunpack.c.h.b16 %v4418
  %v4545 = vunpack.c.l.b16 %v4419
  %v4546 = vunpack.c.h.b16 %v4419
  %v4547 = vunpack.c.l.b16 %v4420
  %v4548 = vunpack.c.h.b16 %v4420
  %v4549 = vunpack.c.l.b16 %v4421
  %v4550 = vunpack.c.h.b16 %v4421
  %v4551 = vunpack.c.l.b16 %v4422
  %v4552 = vunpack.c.h.b16 %v4422
  %v4553 = vunpack.c.l.b16 %v4423
  %v4554 = vunpack.c.h.b16 %v4423
  %v4555 = vunpack.c.l.b16 %v4424
  %v4556 = vunpack.c.h.b16 %v4424
  %v4557 = vunpack.c.l.b16 %v4425
  %v4558 = vunpack.c.h.b16 %v4425
  %v4559 = vunpack.c.l.b16 %v4426
  %v4560 = vunpack.c.h.b16 %v4426
  %v4561 = vunpack.c.l.b16 %v4427
  %v4562 = vunpack.c.h.b16 %v4427
  %v4563 = vunpack.c.l.b16 %v4428
  %v4564 = vunpack.c.h.b16 %v4428
  %v4565 = vunpack.c.l.b16 %v4429
  %v4566 = vunpack.c.h.b16 %v4429
  %v4567 = vunpack.c.l.b16 %v4430
  %v4568 = vunpack.c.h.b16 %v4430
  %v4569 = vunpack.c.l.b16 %v4431
  %v4570 = vunpack.c.h.b16 %v4431
  %v4571 = vunpack.c.l.b16 %v4432
  %v4572 = vunpack.c.h.b16 %v4432
  %v4573 = vunpack.c.l.b16 %v4433
  %v4574 = vunpack.c.h.b16 %v4433
  %v4575 = vunpack.c.l.b16 %v4434
  %v4576 = vunpack.c.h.b16 %v4434
  %v4577 = vunpack.c.l.b16 %v4435
  %v4578 = vunpack.c.h.b16 %v4435
  %v4579 = vunpack.c.l.b16 %v4436
  %v4580 = vunpack.c.h.b16 %v4436
  %v4581 = vpack.c.b16 %v4487, %v4485
  %v4582 = vpack.c.b16 %v4488, %v4486
  %v4583 = vpack.c.b16 %v4491, %v4489
  %v4584 = vpack.c.b16 %v4492, %v4490
  %v4585 = vpack.c.b16 %v4495, %v4493
  %v4586 = vpack.c.b16 %v4496, %v4494
  %v4587 = vpack.c.b16 %v4499, %v4497
  %v4588 = vpack.c.b16 %v4500, %v4498
  %v4589 = vpack.c.b16 %v4503, %v4501
  %v4590 = vpack.c.b16 %v4504, %v4502
  %v4591 = vpack.c.b16 %v4507, %v4505
  %v4592 = vpack.c.b16 %v4508, %v4506
  %v4593 = vpack.c.b16 %v4511, %v4509
  %v4594 = vpack.c.b16 %v4512, %v4510
  %v4595 = vpack.c.b16 %v4515, %v4513
  %v4596 = vpack.c.b16 %v4516, %v4514
  %v4597 = vpack.c.b16 %v4519, %v4517
  %v4598 = vpack.c.b16 %v4520, %v4518
  %v4599 = vpack.c.b16 %v4523, %v4521
  %v4600 = vpack.c.b16 %v4524, %v4522
  %v4601 = vpack.c.b16 %v4527, %v4525
  %v4602 = vpack.c.b16 %v4528, %v4526
  %v4603 = vpack.c.b16 %v4531, %v4529
  %v4604 = vpack.c.b16 %v4532, %v4530
  %v4605 = vpack.c.b16 %v4535, %v4533
  %v4606 = vpack.c.b16 %v4536, %v4534
  %v4607 = vpack.c.b16 %v4539, %v4537
  %v4608 = vpack.c.b16 %v4540, %v4538
  %v4609 = vpack.c.b16 %v4543, %v4541
  %v4610 = vpack.c.b16 %v4544, %v4542
  %v4611 = vpack.c.b16 %v4547, %v4545
  %v4612 = vpack.c.b16 %v4548, %v4546
  %v4613 = vpack.c.b16 %v4551, %v4549
  %v4614 = vpack.c.b16 %v4552, %v4550
  %v4615 = vpack.c.b16 %v4555, %v4553
  %v4616 = vpack.c.b16 %v4556, %v4554
  %v4617 = vpack.c.b16 %v4559, %v4557
  %v4618 = vpack.c.b16 %v4560, %v4558
  %v4619 = vpack.c.b16 %v4563, %v4561
  %v4620 = vpack.c.b16 %v4564, %v4562
  %v4621 = vpack.c.b16 %v4567, %v4565
  %v4622 = vpack.c.b16 %v4568, %v4566
  %v4623 = vpack.c.b16 %v4571, %v4569
  %v4624 = vpack.c.b16 %v4572, %v4570
  %v4625 = vpack.c.b16 %v4575, %v4573
  %v4626 = vpack.c.b16 %v4576, %v4574
  %v4627 = vpack.c.b16 %v4579, %v4577
  %v4628 = vpack.c.b16 %v4580, %v4578
  %4677 = vmatprep.subr.bf16.mxu0 %v4582
  %4678 = vmatpush1.bf16.msra.mxu0 %v4581
  %4679 = vmatprep.subr.bf16.mxu0 %v4584
  %4680 = vmatpush1.bf16.msra.mxu0 %v4583
  %4681 = vmatprep.subr.bf16.mxu0 %v4586
  %4682 = vmatpush1.bf16.msra.mxu0 %v4585
  %4683 = vmatprep.subr.bf16.mxu0 %v4588
  %4684 = vmatpush1.bf16.msra.mxu0 %v4587
  %4685 = vmatprep.subr.bf16.mxu0 %v4590
  %4686 = vmatpush1.bf16.msra.mxu0 %v4589
  %4687 = vmatprep.subr.bf16.mxu0 %v4592
  %4688 = vmatpush1.bf16.msra.mxu0 %v4591
  %4689 = vmatprep.subr.bf16.mxu0 %v4594
  %4690 = vmatpush1.bf16.msra.mxu0 %v4593
  %4691 = vmatprep.subr.bf16.mxu0 %v4596
  %4692 = vmatpush1.bf16.msra.mxu0 %v4595
  %4693 = vmatprep.subr.bf16.mxu0 %v4598
  %4694 = vmatpush1.bf16.msra.mxu0 %v4597
  %4695 = vmatprep.subr.bf16.mxu0 %v4600
  %4696 = vmatpush1.bf16.msra.mxu0 %v4599
  %4697 = vmatprep.subr.bf16.mxu0 %v4602
  %4698 = vmatpush1.bf16.msra.mxu0 %v4601
  %4699 = vmatprep.subr.bf16.mxu0 %v4604
  %4700 = vmatpush1.bf16.msra.mxu0 %v4603
  %4701 = vmatprep.subr.bf16.mxu0 %v4606
  %4702 = vmatpush1.bf16.msra.mxu0 %v4605
  %4703 = vmatprep.subr.bf16.mxu0 %v4608
  %4704 = vmatpush1.bf16.msra.mxu0 %v4607
  %4705 = vmatprep.subr.bf16.mxu0 %v4610
  %4706 = vmatpush1.bf16.msra.mxu0 %v4609
  %4707 = vmatprep.subr.bf16.mxu0 %v4612
  %4708 = vmatpush1.bf16.msra.mxu0 %v4611
  %4709 = vmatprep.mubr.bf16.mxu0 %v4016
  %4710 = vmatmul.mubr.bf16.gmra.mrb[0].mxu0 %v4015
  %v4711 = vpop.f32.mrb[0].mxu0
  %v4712 = vadd.f32 0.0, %v4711
  %v4713 = vpop.f32.mrb[0].mxu0
  %v4714 = vadd.f32 0.0, %v4713
  %v4715 = vpop.f32.mrb[0].mxu0
  %v4716 = vpop.f32.mrb[0].mxu0
  %4717 = vdwg.mxu0
  %4718 = vmatprep.subr.bf16.mxu0 %v4614
  %4719 = vmatpush1.bf16.msra.mxu0 %v4613
  %4720 = vmatprep.subr.bf16.mxu0 %v4616
  %4721 = vmatpush1.bf16.msra.mxu0 %v4615
  %4722 = vmatprep.subr.bf16.mxu0 %v4618
  %4723 = vmatpush1.bf16.msra.mxu0 %v4617
  %4724 = vmatprep.subr.bf16.mxu0 %v4620
  %4725 = vmatpush1.bf16.msra.mxu0 %v4619
  %4726 = vmatprep.subr.bf16.mxu0 %v4622
  %4727 = vmatpush1.bf16.msra.mxu0 %v4621
  %4728 = vmatprep.subr.bf16.mxu0 %v4624
  %4729 = vmatpush1.bf16.msra.mxu0 %v4623
  %4730 = vmatprep.subr.bf16.mxu0 %v4626
  %4731 = vmatpush1.bf16.msra.mxu0 %v4625
  %4732 = vmatprep.subr.bf16.mxu0 %v4628
  %4733 = vmatpush1.bf16.msra.mxu0 %v4627
  %4734 = vmatprep.subr.bf16.mxu0 0
  %4735 = vmatpush1.bf16.msra.mxu0 0
  %4736 = vmatprep.subr.bf16.mxu0 0
  %4737 = vmatpush1.bf16.msra.mxu0 0
  %4738 = vmatprep.subr.bf16.mxu0 0
  %4739 = vmatpush1.bf16.msra.mxu0 0
  %4740 = vmatprep.subr.bf16.mxu0 0
  %4741 = vmatpush1.bf16.msra.mxu0 0
  %4742 = vmatprep.subr.bf16.mxu0 0
  %4743 = vmatpush1.bf16.msra.mxu0 0
  %4744 = vmatprep.subr.bf16.mxu0 0
  %4745 = vmatpush1.bf16.msra.mxu0 0
  %4746 = vmatprep.subr.bf16.mxu0 0
  %4747 = vmatpush1.bf16.msra.mxu0 0
  %4748 = vmatprep.subr.bf16.mxu0 0
  %4749 = vmatpush1.bf16.msra.mxu0 0
  %4750 = vmatprep.mubr.bf16.mxu0 0
  %4751 = vmatmul.mubr.bf16.gmra.mrb[0].mxu0 %v4017
  %v4752 = vpop.f32.mrb[0].mxu0
  %v4753 = vadd.f32 %v4712, %v4752
  %v4754 = vpop.f32.mrb[0].mxu0
  %v4755 = vadd.f32 %v4714, %v4754
  %v4756 = vpop.f32.mrb[0].mxu0
  %v4757 = vpop.f32.mrb[0].mxu0
  %4758 = vdwg.mxu0
  %v4759 = vmax.f32 %v4382, %v4753
  %v4760 = vmax.f32 %v4384, %v4755
  %s4761 = scalar_lea.vmem %s3, 768
  %v4762 = vld [vmem:[%s4761] sm:$0xff]
  %v4763 = vld [vmem:[%s4761 + $0x8] sm:$0xff]
  %v4764 = vld [vmem:[%s4761 + $0x10] sm:$0xff]
  %v4765 = vld [vmem:[%s4761 + $0x18] sm:$0xff]
  %v4766 = vld [vmem:[%s4761 + $0x20] sm:$0xff]
  %v4767 = vld [vmem:[%s4761 + $0x28] sm:$0xff]
  %v4768 = vld [vmem:[%s4761 + $0x30] sm:$0xff]
  %v4769 = vld [vmem:[%s4761 + $0x38] sm:$0xff]
  %v4770 = vld [vmem:[%s4761 + $0x40] sm:$0xff]
  %v4771 = vld [vmem:[%s4761 + $0x48] sm:$0xff]
  %v4772 = vld [vmem:[%s4761 + $0x50] sm:$0xff]
  %v4773 = vld [vmem:[%s4761 + $0x58] sm:$0xff]
  %v4774 = vld [vmem:[%s4761 + $0x60] sm:$0xff]
  %v4775 = vld [vmem:[%s4761 + $0x68] sm:$0xff]
  %v4776 = vld [vmem:[%s4761 + $0x70] sm:$0xff]
  %v4777 = vld [vmem:[%s4761 + $0x78] sm:$0xff]
  %v4778 = vld [vmem:[%s4761 + $0x80] sm:$0xff]
  %v4779 = vld [vmem:[%s4761 + $0x88] sm:$0xff]
  %v4780 = vld [vmem:[%s4761 + $0x90] sm:$0xff]
  %v4781 = vld [vmem:[%s4761 + $0x98] sm:$0xff]
  %v4782 = vld [vmem:[%s4761 + $0xa0] sm:$0xff]
  %v4783 = vld [vmem:[%s4761 + $0xa8] sm:$0xff]
  %v4784 = vld [vmem:[%s4761 + $0xb0] sm:$0xff]
  %v4785 = vld [vmem:[%s4761 + $0xb8] sm:$0xff]
  %v4786 = vld [vmem:[%s4761 + $0xc0] sm:$0xff]
  %v4787 = vld [vmem:[%s4761 + $0xc8] sm:$0xff]
  %v4788 = vld [vmem:[%s4761 + $0xd0] sm:$0xff]
  %v4789 = vld [vmem:[%s4761 + $0xd8] sm:$0xff]
  %v4790 = vld [vmem:[%s4761 + $0xe0] sm:$0xff]
  %v4791 = vld [vmem:[%s4761 + $0xe8] sm:$0xff]
  %v4792 = vld [vmem:[%s4761 + $0xf0] sm:$0xff]
  %v4793 = vld [vmem:[%s4761 + $0xf8] sm:$0xff]
  %v4794 = vld [vmem:[%s4761 + $0x100] sm:$0xff]
  %v4795 = vld [vmem:[%s4761 + $0x108] sm:$0xff]
  %v4796 = vld [vmem:[%s4761 + $0x110] sm:$0xff]
  %v4797 = vld [vmem:[%s4761 + $0x118] sm:$0xff]
  %v4798 = vld [vmem:[%s4761 + $0x120] sm:$0xff]
  %v4799 = vld [vmem:[%s4761 + $0x128] sm:$0xff]
  %v4800 = vld [vmem:[%s4761 + $0x130] sm:$0xff]
  %v4801 = vld [vmem:[%s4761 + $0x138] sm:$0xff]
  %v4802 = vld [vmem:[%s4761 + $0x140] sm:$0xff]
  %v4803 = vld [vmem:[%s4761 + $0x148] sm:$0xff]
  %v4804 = vld [vmem:[%s4761 + $0x150] sm:$0xff]
  %v4805 = vld [vmem:[%s4761 + $0x158] sm:$0xff]
  %v4806 = vld [vmem:[%s4761 + $0x160] sm:$0xff]
  %v4807 = vld [vmem:[%s4761 + $0x168] sm:$0xff]
  %v4808 = vld [vmem:[%s4761 + $0x170] sm:$0xff]
  %v4809 = vld [vmem:[%s4761 + $0x178] sm:$0xff]
  %v4858 = vunpack.c.l.b16 %v4762
  %v4859 = vunpack.c.h.b16 %v4762
  %v4860 = vunpack.c.l.b16 %v4763
  %v4861 = vunpack.c.h.b16 %v4763
  %v4862 = vunpack.c.l.b16 %v4764
  %v4863 = vunpack.c.h.b16 %v4764
  %v4864 = vunpack.c.l.b16 %v4765
  %v4865 = vunpack.c.h.b16 %v4765
  %v4866 = vunpack.c.l.b16 %v4766
  %v4867 = vunpack.c.h.b16 %v4766
  %v4868 = vunpack.c.l.b16 %v4767
  %v4869 = vunpack.c.h.b16 %v4767
  %v4870 = vunpack.c.l.b16 %v4768
  %v4871 = vunpack.c.h.b16 %v4768
  %v4872 = vunpack.c.l.b16 %v4769
  %v4873 = vunpack.c.h.b16 %v4769
  %v4874 = vunpack.c.l.b16 %v4770
  %v4875 = vunpack.c.h.b16 %v4770
  %v4876 = vunpack.c.l.b16 %v4771
  %v4877 = vunpack.c.h.b16 %v4771
  %v4878 = vunpack.c.l.b16 %v4772
  %v4879 = vunpack.c.h.b16 %v4772
  %v4880 = vunpack.c.l.b16 %v4773
  %v4881 = vunpack.c.h.b16 %v4773
  %v4882 = vunpack.c.l.b16 %v4774
  %v4883 = vunpack.c.h.b16 %v4774
  %v4884 = vunpack.c.l.b16 %v4775
  %v4885 = vunpack.c.h.b16 %v4775
  %v4886 = vunpack.c.l.b16 %v4776
  %v4887 = vunpack.c.h.b16 %v4776
  %v4888 = vunpack.c.l.b16 %v4777
  %v4889 = vunpack.c.h.b16 %v4777
  %v4890 = vunpack.c.l.b16 %v4778
  %v4891 = vunpack.c.h.b16 %v4778
  %v4892 = vunpack.c.l.b16 %v4779
  %v4893 = vunpack.c.h.b16 %v4779
  %v4894 = vunpack.c.l.b16 %v4780
  %v4895 = vunpack.c.h.b16 %v4780
  %v4896 = vunpack.c.l.b16 %v4781
  %v4897 = vunpack.c.h.b16 %v4781
  %v4898 = vunpack.c.l.b16 %v4782
  %v4899 = vunpack.c.h.b16 %v4782
  %v4900 = vunpack.c.l.b16 %v4783
  %v4901 = vunpack.c.h.b16 %v4783
  %v4902 = vunpack.c.l.b16 %v4784
  %v4903 = vunpack.c.h.b16 %v4784
  %v4904 = vunpack.c.l.b16 %v4785
  %v4905 = vunpack.c.h.b16 %v4785
  %v4906 = vunpack.c.l.b16 %v4786
  %v4907 = vunpack.c.h.b16 %v4786
  %v4908 = vunpack.c.l.b16 %v4787
  %v4909 = vunpack.c.h.b16 %v4787
  %v4910 = vunpack.c.l.b16 %v4788
  %v4911 = vunpack.c.h.b16 %v4788
  %v4912 = vunpack.c.l.b16 %v4789
  %v4913 = vunpack.c.h.b16 %v4789
  %v4914 = vunpack.c.l.b16 %v4790
  %v4915 = vunpack.c.h.b16 %v4790
  %v4916 = vunpack.c.l.b16 %v4791
  %v4917 = vunpack.c.h.b16 %v4791
  %v4918 = vunpack.c.l.b16 %v4792
  %v4919 = vunpack.c.h.b16 %v4792
  %v4920 = vunpack.c.l.b16 %v4793
  %v4921 = vunpack.c.h.b16 %v4793
  %v4922 = vunpack.c.l.b16 %v4794
  %v4923 = vunpack.c.h.b16 %v4794
  %v4924 = vunpack.c.l.b16 %v4795
  %v4925 = vunpack.c.h.b16 %v4795
  %v4926 = vunpack.c.l.b16 %v4796
  %v4927 = vunpack.c.h.b16 %v4796
  %v4928 = vunpack.c.l.b16 %v4797
  %v4929 = vunpack.c.h.b16 %v4797
  %v4930 = vunpack.c.l.b16 %v4798
  %v4931 = vunpack.c.h.b16 %v4798
  %v4932 = vunpack.c.l.b16 %v4799
  %v4933 = vunpack.c.h.b16 %v4799
  %v4934 = vunpack.c.l.b16 %v4800
  %v4935 = vunpack.c.h.b16 %v4800
  %v4936 = vunpack.c.l.b16 %v4801
  %v4937 = vunpack.c.h.b16 %v4801
  %v4938 = vunpack.c.l.b16 %v4802
  %v4939 = vunpack.c.h.b16 %v4802
  %v4940 = vunpack.c.l.b16 %v4803
  %v4941 = vunpack.c.h.b16 %v4803
  %v4942 = vunpack.c.l.b16 %v4804
  %v4943 = vunpack.c.h.b16 %v4804
  %v4944 = vunpack.c.l.b16 %v4805
  %v4945 = vunpack.c.h.b16 %v4805
  %v4946 = vunpack.c.l.b16 %v4806
  %v4947 = vunpack.c.h.b16 %v4806
  %v4948 = vunpack.c.l.b16 %v4807
  %v4949 = vunpack.c.h.b16 %v4807
  %v4950 = vunpack.c.l.b16 %v4808
  %v4951 = vunpack.c.h.b16 %v4808
  %v4952 = vunpack.c.l.b16 %v4809
  %v4953 = vunpack.c.h.b16 %v4809
  %v4954 = vpack.c.b16 %v4860, %v4858
  %v4955 = vpack.c.b16 %v4861, %v4859
  %v4956 = vpack.c.b16 %v4864, %v4862
  %v4957 = vpack.c.b16 %v4865, %v4863
  %v4958 = vpack.c.b16 %v4868, %v4866
  %v4959 = vpack.c.b16 %v4869, %v4867
  %v4960 = vpack.c.b16 %v4872, %v4870
  %v4961 = vpack.c.b16 %v4873, %v4871
  %v4962 = vpack.c.b16 %v4876, %v4874
  %v4963 = vpack.c.b16 %v4877, %v4875
  %v4964 = vpack.c.b16 %v4880, %v4878
  %v4965 = vpack.c.b16 %v4881, %v4879
  %v4966 = vpack.c.b16 %v4884, %v4882
  %v4967 = vpack.c.b16 %v4885, %v4883
  %v4968 = vpack.c.b16 %v4888, %v4886
  %v4969 = vpack.c.b16 %v4889, %v4887
  %v4970 = vpack.c.b16 %v4892, %v4890
  %v4971 = vpack.c.b16 %v4893, %v4891
  %v4972 = vpack.c.b16 %v4896, %v4894
  %v4973 = vpack.c.b16 %v4897, %v4895
  %v4974 = vpack.c.b16 %v4900, %v4898
  %v4975 = vpack.c.b16 %v4901, %v4899
  %v4976 = vpack.c.b16 %v4904, %v4902
  %v4977 = vpack.c.b16 %v4905, %v4903
  %v4978 = vpack.c.b16 %v4908, %v4906
  %v4979 = vpack.c.b16 %v4909, %v4907
  %v4980 = vpack.c.b16 %v4912, %v4910
  %v4981 = vpack.c.b16 %v4913, %v4911
  %v4982 = vpack.c.b16 %v4916, %v4914
  %v4983 = vpack.c.b16 %v4917, %v4915
  %v4984 = vpack.c.b16 %v4920, %v4918
  %v4985 = vpack.c.b16 %v4921, %v4919
  %v4986 = vpack.c.b16 %v4924, %v4922
  %v4987 = vpack.c.b16 %v4925, %v4923
  %v4988 = vpack.c.b16 %v4928, %v4926
  %v4989 = vpack.c.b16 %v4929, %v4927
  %v4990 = vpack.c.b16 %v4932, %v4930
  %v4991 = vpack.c.b16 %v4933, %v4931
  %v4992 = vpack.c.b16 %v4936, %v4934
  %v4993 = vpack.c.b16 %v4937, %v4935
  %v4994 = vpack.c.b16 %v4940, %v4938
  %v4995 = vpack.c.b16 %v4941, %v4939
  %v4996 = vpack.c.b16 %v4944, %v4942
  %v4997 = vpack.c.b16 %v4945, %v4943
  %v4998 = vpack.c.b16 %v4948, %v4946
  %v4999 = vpack.c.b16 %v4949, %v4947
  %v5000 = vpack.c.b16 %v4952, %v4950
  %v5001 = vpack.c.b16 %v4953, %v4951
  %5050 = vmatprep.subr.bf16.mxu0 %v4955
  %5051 = vmatpush1.bf16.msra.mxu0 %v4954
  %5052 = vmatprep.subr.bf16.mxu0 %v4957
  %5053 = vmatpush1.bf16.msra.mxu0 %v4956
  %5054 = vmatprep.subr.bf16.mxu0 %v4959
  %5055 = vmatpush1.bf16.msra.mxu0 %v4958
  %5056 = vmatprep.subr.bf16.mxu0 %v4961
  %5057 = vmatpush1.bf16.msra.mxu0 %v4960
  %5058 = vmatprep.subr.bf16.mxu0 %v4963
  %5059 = vmatpush1.bf16.msra.mxu0 %v4962
  %5060 = vmatprep.subr.bf16.mxu0 %v4965
  %5061 = vmatpush1.bf16.msra.mxu0 %v4964
  %5062 = vmatprep.subr.bf16.mxu0 %v4967
  %5063 = vmatpush1.bf16.msra.mxu0 %v4966
  %5064 = vmatprep.subr.bf16.mxu0 %v4969
  %5065 = vmatpush1.bf16.msra.mxu0 %v4968
  %5066 = vmatprep.subr.bf16.mxu0 %v4971
  %5067 = vmatpush1.bf16.msra.mxu0 %v4970
  %5068 = vmatprep.subr.bf16.mxu0 %v4973
  %5069 = vmatpush1.bf16.msra.mxu0 %v4972
  %5070 = vmatprep.subr.bf16.mxu0 %v4975
  %5071 = vmatpush1.bf16.msra.mxu0 %v4974
  %5072 = vmatprep.subr.bf16.mxu0 %v4977
  %5073 = vmatpush1.bf16.msra.mxu0 %v4976
  %5074 = vmatprep.subr.bf16.mxu0 %v4979
  %5075 = vmatpush1.bf16.msra.mxu0 %v4978
  %5076 = vmatprep.subr.bf16.mxu0 %v4981
  %5077 = vmatpush1.bf16.msra.mxu0 %v4980
  %5078 = vmatprep.subr.bf16.mxu0 %v4983
  %5079 = vmatpush1.bf16.msra.mxu0 %v4982
  %5080 = vmatprep.subr.bf16.mxu0 %v4985
  %5081 = vmatpush1.bf16.msra.mxu0 %v4984
  %5082 = vmatprep.mubr.bf16.mxu0 %v4016
  %5083 = vmatmul.mubr.bf16.gmra.mrb[0].mxu0 %v4015
  %v5084 = vpop.f32.mrb[0].mxu0
  %v5085 = vadd.f32 0.0, %v5084
  %v5086 = vpop.f32.mrb[0].mxu0
  %v5087 = vadd.f32 0.0, %v5086
  %v5088 = vpop.f32.mrb[0].mxu0
  %v5089 = vpop.f32.mrb[0].mxu0
  %5090 = vdwg.mxu0
  %5091 = vmatprep.subr.bf16.mxu0 %v4987
  %5092 = vmatpush1.bf16.msra.mxu0 %v4986
  %5093 = vmatprep.subr.bf16.mxu0 %v4989
  %5094 = vmatpush1.bf16.msra.mxu0 %v4988
  %5095 = vmatprep.subr.bf16.mxu0 %v4991
  %5096 = vmatpush1.bf16.msra.mxu0 %v4990
  %5097 = vmatprep.subr.bf16.mxu0 %v4993
  %5098 = vmatpush1.bf16.msra.mxu0 %v4992
  %5099 = vmatprep.subr.bf16.mxu0 %v4995
  %5100 = vmatpush1.bf16.msra.mxu0 %v4994
  %5101 = vmatprep.subr.bf16.mxu0 %v4997
  %5102 = vmatpush1.bf16.msra.mxu0 %v4996
  %5103 = vmatprep.subr.bf16.mxu0 %v4999
  %5104 = vmatpush1.bf16.msra.mxu0 %v4998
  %5105 = vmatprep.subr.bf16.mxu0 %v5001
  %5106 = vmatpush1.bf16.msra.mxu0 %v5000
  %5107 = vmatprep.subr.bf16.mxu0 0
  %5108 = vmatpush1.bf16.msra.mxu0 0
  %5109 = vmatprep.subr.bf16.mxu0 0
  %5110 = vmatpush1.bf16.msra.mxu0 0
  %5111 = vmatprep.subr.bf16.mxu0 0
  %5112 = vmatpush1.bf16.msra.mxu0 0
  %5113 = vmatprep.subr.bf16.mxu0 0
  %5114 = vmatpush1.bf16.msra.mxu0 0
  %5115 = vmatprep.subr.bf16.mxu0 0
  %5116 = vmatpush1.bf16.msra.mxu0 0
  %5117 = vmatprep.subr.bf16.mxu0 0
  %5118 = vmatpush1.bf16.msra.mxu0 0
  %5119 = vmatprep.subr.bf16.mxu0 0
  %5120 = vmatpush1.bf16.msra.mxu0 0
  %5121 = vmatprep.subr.bf16.mxu0 0
  %5122 = vmatpush1.bf16.msra.mxu0 0
  %5123 = vmatprep.mubr.bf16.mxu0 0
  %5124 = vmatmul.mubr.bf16.gmra.mrb[0].mxu0 %v4017
  %v5125 = vpop.f32.mrb[0].mxu0
  %v5126 = vadd.f32 %v5085, %v5125
  %v5127 = vpop.f32.mrb[0].mxu0
  %v5128 = vadd.f32 %v5087, %v5127
  %v5129 = vpop.f32.mrb[0].mxu0
  %v5130 = vpop.f32.mrb[0].mxu0
  %5131 = vdwg.mxu0
  %v5132 = vmax.f32 %v4759, %v5126
  %v5133 = vmax.f32 %v4760, %v5128
  %v5134 = vpack.c.bf16 %v5132, %v5132
  %v5135 = vpack.c.bf16 %v5133, %v5133
  %v5136 = vld [vmem:[%s4] sm:$0xf]
  %v5137 = vld [vmem:[%s4 + $0x4] sm:$0xf]
  %v5138 = vld [vmem:[%s4 + $0x8] sm:$0xf]
  %v5139 = vld [vmem:[%s4 + $0xc] sm:$0xf]
  %v5140 = vld [vmem:[%s4 + $0x10] sm:$0xf]
  %v5141 = vld [vmem:[%s4 + $0x14] sm:$0xf]
  %v5142 = vld [vmem:[%s4 + $0x18] sm:$0xf]
  %v5143 = vld [vmem:[%s4 + $0x1c] sm:$0xf]
  %v5144 = vld [vmem:[%s4 + $0x20] sm:$0xf]
  %v5145 = vld [vmem:[%s4 + $0x24] sm:$0xf]
  %v5146 = vld [vmem:[%s4 + $0x28] sm:$0xf]
  %v5147 = vld [vmem:[%s4 + $0x2c] sm:$0xf]
  %v5148 = vld [vmem:[%s4 + $0x30] sm:$0xf]
  %v5149 = vld [vmem:[%s4 + $0x34] sm:$0xf]
  %v5150 = vld [vmem:[%s4 + $0x38] sm:$0xf]
  %v5151 = vld [vmem:[%s4 + $0x3c] sm:$0xf]
  %v5152 = vld [vmem:[%s4 + $0x40] sm:$0xf]
  %v5153 = vld [vmem:[%s4 + $0x44] sm:$0xf]
  %v5154 = vld [vmem:[%s4 + $0x48] sm:$0xf]
  %v5155 = vld [vmem:[%s4 + $0x4c] sm:$0xf]
  %v5156 = vld [vmem:[%s4 + $0x50] sm:$0xf]
  %v5157 = vld [vmem:[%s4 + $0x54] sm:$0xf]
  %v5158 = vld [vmem:[%s4 + $0x58] sm:$0xf]
  %v5159 = vld [vmem:[%s4 + $0x5c] sm:$0xf]
  %v5160 = vld [vmem:[%s4 + $0x60] sm:$0xf]
  %v5161 = vld [vmem:[%s4 + $0x64] sm:$0xf]
  %v5162 = vld [vmem:[%s4 + $0x68] sm:$0xf]
  %v5163 = vld [vmem:[%s4 + $0x6c] sm:$0xf]
  %v5164 = vld [vmem:[%s4 + $0x70] sm:$0xf]
  %v5165 = vld [vmem:[%s4 + $0x74] sm:$0xf]
  %v5166 = vld [vmem:[%s4 + $0x78] sm:$0xf]
  %v5167 = vld [vmem:[%s4 + $0x7c] sm:$0xf]
  %v5168 = vld [vmem:[%s5] sm:$0xff]
  %v5169 = vld [vmem:[%s5 + $0x8] sm:$0xf]
  %v5170 = vld [vmem:[%s5 + $0xc] sm:$0xff]
  %v5171 = vld [vmem:[%s5 + $0x14] sm:$0xf]
  %v5172 = vld [vmem:[%s5 + $0x18] sm:$0xff]
  %v5173 = vld [vmem:[%s5 + $0x20] sm:$0xf]
  %v5174 = vld [vmem:[%s5 + $0x24] sm:$0xff]
  %v5175 = vld [vmem:[%s5 + $0x2c] sm:$0xf]
  %v5176 = vld [vmem:[%s5 + $0x30] sm:$0xff]
  %v5177 = vld [vmem:[%s5 + $0x38] sm:$0xf]
  %v5178 = vld [vmem:[%s5 + $0x3c] sm:$0xff]
  %v5179 = vld [vmem:[%s5 + $0x44] sm:$0xf]
  %v5180 = vld [vmem:[%s5 + $0x48] sm:$0xff]
  %v5181 = vld [vmem:[%s5 + $0x50] sm:$0xf]
  %v5182 = vld [vmem:[%s5 + $0x54] sm:$0xff]
  %v5183 = vld [vmem:[%s5 + $0x5c] sm:$0xf]
  %v5184 = vld [vmem:[%s5 + $0x60] sm:$0xff]
  %v5185 = vld [vmem:[%s5 + $0x68] sm:$0xf]
  %v5186 = vld [vmem:[%s5 + $0x6c] sm:$0xff]
  %v5187 = vld [vmem:[%s5 + $0x74] sm:$0xf]
  %v5188 = vld [vmem:[%s5 + $0x78] sm:$0xff]
  %v5189 = vld [vmem:[%s5 + $0x80] sm:$0xf]
  %v5190 = vld [vmem:[%s5 + $0x84] sm:$0xff]
  %v5191 = vld [vmem:[%s5 + $0x8c] sm:$0xf]
  %v5192 = vld [vmem:[%s5 + $0x90] sm:$0xff]
  %v5193 = vld [vmem:[%s5 + $0x98] sm:$0xf]
  %v5194 = vld [vmem:[%s5 + $0x9c] sm:$0xff]
  %v5195 = vld [vmem:[%s5 + $0xa4] sm:$0xf]
  %v5196 = vld [vmem:[%s5 + $0xa8] sm:$0xff]
  %v5197 = vld [vmem:[%s5 + $0xb0] sm:$0xf]
  %v5198 = vld [vmem:[%s5 + $0xb4] sm:$0xff]
  %v5199 = vld [vmem:[%s5 + $0xbc] sm:$0xf]
  %v5200 = vld [vmem:[%s5 + $0xc0] sm:$0xff]
  %v5201 = vld [vmem:[%s5 + $0xc8] sm:$0xf]
  %v5202 = vld [vmem:[%s5 + $0xcc] sm:$0xff]
  %v5203 = vld [vmem:[%s5 + $0xd4] sm:$0xf]
  %v5204 = vld [vmem:[%s5 + $0xd8] sm:$0xff]
  %v5205 = vld [vmem:[%s5 + $0xe0] sm:$0xf]
  %v5206 = vld [vmem:[%s5 + $0xe4] sm:$0xff]
  %v5207 = vld [vmem:[%s5 + $0xec] sm:$0xf]
  %v5208 = vld [vmem:[%s5 + $0xf0] sm:$0xff]
  %v5209 = vld [vmem:[%s5 + $0xf8] sm:$0xf]
  %v5210 = vld [vmem:[%s5 + $0xfc] sm:$0xff]
  %v5211 = vld [vmem:[%s5 + $0x104] sm:$0xf]
  %v5212 = vld [vmem:[%s5 + $0x108] sm:$0xff]
  %v5213 = vld [vmem:[%s5 + $0x110] sm:$0xf]
  %v5214 = vld [vmem:[%s5 + $0x114] sm:$0xff]
  %v5215 = vld [vmem:[%s5 + $0x11c] sm:$0xf]
  %v5216 = vld [vmem:[%s5 + $0x120] sm:$0xff]
  %v5217 = vld [vmem:[%s5 + $0x128] sm:$0xf]
  %v5218 = vld [vmem:[%s5 + $0x12c] sm:$0xff]
  %v5219 = vld [vmem:[%s5 + $0x134] sm:$0xf]
  %v5220 = vld [vmem:[%s5 + $0x138] sm:$0xff]
  %v5221 = vld [vmem:[%s5 + $0x140] sm:$0xf]
  %v5222 = vld [vmem:[%s5 + $0x144] sm:$0xff]
  %v5223 = vld [vmem:[%s5 + $0x14c] sm:$0xf]
  %v5224 = vld [vmem:[%s5 + $0x150] sm:$0xff]
  %v5225 = vld [vmem:[%s5 + $0x158] sm:$0xf]
  %v5226 = vld [vmem:[%s5 + $0x15c] sm:$0xff]
  %v5227 = vld [vmem:[%s5 + $0x164] sm:$0xf]
  %v5228 = vld [vmem:[%s5 + $0x168] sm:$0xff]
  %v5229 = vld [vmem:[%s5 + $0x170] sm:$0xf]
  %v5230 = vld [vmem:[%s5 + $0x174] sm:$0xff]
  %v5231 = vld [vmem:[%s5 + $0x17c] sm:$0xf]
  %v5232 = vld [vmem:[%s5 + $0x180] sm:$0xff]
  %v5233 = vld [vmem:[%s5 + $0x188] sm:$0xf]
  %v5234 = vld [vmem:[%s5 + $0x18c] sm:$0xff]
  %v5235 = vld [vmem:[%s5 + $0x194] sm:$0xf]
  %v5236 = vld [vmem:[%s5 + $0x198] sm:$0xff]
  %v5237 = vld [vmem:[%s5 + $0x1a0] sm:$0xf]
  %v5238 = vld [vmem:[%s5 + $0x1a4] sm:$0xff]
  %v5239 = vld [vmem:[%s5 + $0x1ac] sm:$0xf]
  %v5240 = vld [vmem:[%s5 + $0x1b0] sm:$0xff]
  %v5241 = vld [vmem:[%s5 + $0x1b8] sm:$0xf]
  %v5242 = vld [vmem:[%s5 + $0x1bc] sm:$0xff]
  %v5243 = vld [vmem:[%s5 + $0x1c4] sm:$0xf]
  %v5244 = vld [vmem:[%s5 + $0x1c8] sm:$0xff]
  %v5245 = vld [vmem:[%s5 + $0x1d0] sm:$0xf]
  %v5246 = vld [vmem:[%s5 + $0x1d4] sm:$0xff]
  %v5247 = vld [vmem:[%s5 + $0x1dc] sm:$0xf]
  %v5248 = vld [vmem:[%s5 + $0x1e0] sm:$0xff]
  %v5249 = vld [vmem:[%s5 + $0x1e8] sm:$0xf]
  %v5250 = vld [vmem:[%s5 + $0x1ec] sm:$0xff]
  %v5251 = vld [vmem:[%s5 + $0x1f4] sm:$0xf]
  %v5252 = vld [vmem:[%s5 + $0x1f8] sm:$0xff]
  %v5253 = vld [vmem:[%s5 + $0x200] sm:$0xf]
  %v5254 = vld [vmem:[%s5 + $0x204] sm:$0xff]
  %v5255 = vld [vmem:[%s5 + $0x20c] sm:$0xf]
  %v5256 = vld [vmem:[%s5 + $0x210] sm:$0xff]
  %v5257 = vld [vmem:[%s5 + $0x218] sm:$0xf]
  %v5258 = vld [vmem:[%s5 + $0x21c] sm:$0xff]
  %v5259 = vld [vmem:[%s5 + $0x224] sm:$0xf]
  %v5260 = vld [vmem:[%s5 + $0x228] sm:$0xff]
  %v5261 = vld [vmem:[%s5 + $0x230] sm:$0xf]
  %v5262 = vld [vmem:[%s5 + $0x234] sm:$0xff]
  %v5263 = vld [vmem:[%s5 + $0x23c] sm:$0xf]
  %v5264 = vld [vmem:[%s5 + $0x240] sm:$0xff]
  %v5265 = vld [vmem:[%s5 + $0x248] sm:$0xf]
  %v5266 = vld [vmem:[%s5 + $0x24c] sm:$0xff]
  %v5267 = vld [vmem:[%s5 + $0x254] sm:$0xf]
  %v5268 = vld [vmem:[%s5 + $0x258] sm:$0xff]
  %v5269 = vld [vmem:[%s5 + $0x260] sm:$0xf]
  %v5270 = vld [vmem:[%s5 + $0x264] sm:$0xff]
  %v5271 = vld [vmem:[%s5 + $0x26c] sm:$0xf]
  %v5272 = vld [vmem:[%s5 + $0x270] sm:$0xff]
  %v5273 = vld [vmem:[%s5 + $0x278] sm:$0xf]
  %v5274 = vld [vmem:[%s5 + $0x27c] sm:$0xff]
  %v5275 = vld [vmem:[%s5 + $0x284] sm:$0xf]
  %v5276 = vld [vmem:[%s5 + $0x288] sm:$0xff]
  %v5277 = vld [vmem:[%s5 + $0x290] sm:$0xf]
  %v5278 = vld [vmem:[%s5 + $0x294] sm:$0xff]
  %v5279 = vld [vmem:[%s5 + $0x29c] sm:$0xf]
  %v5280 = vld [vmem:[%s5 + $0x2a0] sm:$0xff]
  %v5281 = vld [vmem:[%s5 + $0x2a8] sm:$0xf]
  %v5282 = vld [vmem:[%s5 + $0x2ac] sm:$0xff]
  %v5283 = vld [vmem:[%s5 + $0x2b4] sm:$0xf]
  %v5284 = vld [vmem:[%s5 + $0x2b8] sm:$0xff]
  %v5285 = vld [vmem:[%s5 + $0x2c0] sm:$0xf]
  %v5286 = vld [vmem:[%s5 + $0x2c4] sm:$0xff]
  %v5287 = vld [vmem:[%s5 + $0x2cc] sm:$0xf]
  %v5288 = vld [vmem:[%s5 + $0x2d0] sm:$0xff]
  %v5289 = vld [vmem:[%s5 + $0x2d8] sm:$0xf]
  %v5290 = vld [vmem:[%s5 + $0x2dc] sm:$0xff]
  %v5291 = vld [vmem:[%s5 + $0x2e4] sm:$0xf]
  %v5292 = vld [vmem:[%s5 + $0x2e8] sm:$0xff]
  %v5293 = vld [vmem:[%s5 + $0x2f0] sm:$0xf]
  %v5294 = vld [vmem:[%s5 + $0x2f4] sm:$0xff]
  %v5295 = vld [vmem:[%s5 + $0x2fc] sm:$0xf]
  %v5296 = vld [vmem:[%s5 + $0x300] sm:$0xff]
  %v5297 = vld [vmem:[%s5 + $0x308] sm:$0xf]
  %v5298 = vld [vmem:[%s5 + $0x30c] sm:$0xff]
  %v5299 = vld [vmem:[%s5 + $0x314] sm:$0xf]
  %v5300 = vld [vmem:[%s5 + $0x318] sm:$0xff]
  %v5301 = vld [vmem:[%s5 + $0x320] sm:$0xf]
  %v5302 = vld [vmem:[%s5 + $0x324] sm:$0xff]
  %v5303 = vld [vmem:[%s5 + $0x32c] sm:$0xf]
  %v5304 = vld [vmem:[%s5 + $0x330] sm:$0xff]
  %v5305 = vld [vmem:[%s5 + $0x338] sm:$0xf]
  %v5306 = vld [vmem:[%s5 + $0x33c] sm:$0xff]
  %v5307 = vld [vmem:[%s5 + $0x344] sm:$0xf]
  %v5308 = vld [vmem:[%s5 + $0x348] sm:$0xff]
  %v5309 = vld [vmem:[%s5 + $0x350] sm:$0xf]
  %v5310 = vld [vmem:[%s5 + $0x354] sm:$0xff]
  %v5311 = vld [vmem:[%s5 + $0x35c] sm:$0xf]
  %v5312 = vld [vmem:[%s5 + $0x360] sm:$0xff]
  %v5313 = vld [vmem:[%s5 + $0x368] sm:$0xf]
  %v5314 = vld [vmem:[%s5 + $0x36c] sm:$0xff]
  %v5315 = vld [vmem:[%s5 + $0x374] sm:$0xf]
  %v5316 = vld [vmem:[%s5 + $0x378] sm:$0xff]
  %v5317 = vld [vmem:[%s5 + $0x380] sm:$0xf]
  %v5318 = vld [vmem:[%s5 + $0x384] sm:$0xff]
  %v5319 = vld [vmem:[%s5 + $0x38c] sm:$0xf]
  %v5320 = vld [vmem:[%s5 + $0x390] sm:$0xff]
  %v5321 = vld [vmem:[%s5 + $0x398] sm:$0xf]
  %v5322 = vld [vmem:[%s5 + $0x39c] sm:$0xff]
  %v5323 = vld [vmem:[%s5 + $0x3a4] sm:$0xf]
  %v5324 = vld [vmem:[%s5 + $0x3a8] sm:$0xff]
  %v5325 = vld [vmem:[%s5 + $0x3b0] sm:$0xf]
  %v5326 = vld [vmem:[%s5 + $0x3b4] sm:$0xff]
  %v5327 = vld [vmem:[%s5 + $0x3bc] sm:$0xf]
  %v5328 = vld [vmem:[%s5 + $0x3c0] sm:$0xff]
  %v5329 = vld [vmem:[%s5 + $0x3c8] sm:$0xf]
  %v5330 = vld [vmem:[%s5 + $0x3cc] sm:$0xff]
  %v5331 = vld [vmem:[%s5 + $0x3d4] sm:$0xf]
  %v5332 = vld [vmem:[%s5 + $0x3d8] sm:$0xff]
  %v5333 = vld [vmem:[%s5 + $0x3e0] sm:$0xf]
  %v5334 = vld [vmem:[%s5 + $0x3e4] sm:$0xff]
  %v5335 = vld [vmem:[%s5 + $0x3ec] sm:$0xf]
  %v5336 = vld [vmem:[%s5 + $0x3f0] sm:$0xff]
  %v5337 = vld [vmem:[%s5 + $0x3f8] sm:$0xf]
  %v5338 = vld [vmem:[%s5 + $0x3fc] sm:$0xff]
  %v5339 = vld [vmem:[%s5 + $0x404] sm:$0xf]
  %v5340 = vld [vmem:[%s5 + $0x408] sm:$0xff]
  %v5341 = vld [vmem:[%s5 + $0x410] sm:$0xf]
  %v5342 = vld [vmem:[%s5 + $0x414] sm:$0xff]
  %v5343 = vld [vmem:[%s5 + $0x41c] sm:$0xf]
  %v5344 = vld [vmem:[%s5 + $0x420] sm:$0xff]
  %v5345 = vld [vmem:[%s5 + $0x428] sm:$0xf]
  %v5346 = vld [vmem:[%s5 + $0x42c] sm:$0xff]
  %v5347 = vld [vmem:[%s5 + $0x434] sm:$0xf]
  %v5348 = vld [vmem:[%s5 + $0x438] sm:$0xff]
  %v5349 = vld [vmem:[%s5 + $0x440] sm:$0xf]
  %v5350 = vld [vmem:[%s5 + $0x444] sm:$0xff]
  %v5351 = vld [vmem:[%s5 + $0x44c] sm:$0xf]
  %v5352 = vld [vmem:[%s5 + $0x450] sm:$0xff]
  %v5353 = vld [vmem:[%s5 + $0x458] sm:$0xf]
  %v5354 = vld [vmem:[%s5 + $0x45c] sm:$0xff]
  %v5355 = vld [vmem:[%s5 + $0x464] sm:$0xf]
  %v5356 = vld [vmem:[%s5 + $0x468] sm:$0xff]
  %v5357 = vld [vmem:[%s5 + $0x470] sm:$0xf]
  %v5358 = vld [vmem:[%s5 + $0x474] sm:$0xff]
  %v5359 = vld [vmem:[%s5 + $0x47c] sm:$0xf]
  %v5360 = vld [vmem:[%s5 + $0x480] sm:$0xff]
  %v5361 = vld [vmem:[%s5 + $0x488] sm:$0xf]
  %v5362 = vld [vmem:[%s5 + $0x48c] sm:$0xff]
  %v5363 = vld [vmem:[%s5 + $0x494] sm:$0xf]
  %v5364 = vld [vmem:[%s5 + $0x498] sm:$0xff]
  %v5365 = vld [vmem:[%s5 + $0x4a0] sm:$0xf]
  %v5366 = vld [vmem:[%s5 + $0x4a4] sm:$0xff]
  %v5367 = vld [vmem:[%s5 + $0x4ac] sm:$0xf]
  %v5368 = vld [vmem:[%s5 + $0x4b0] sm:$0xff]
  %v5369 = vld [vmem:[%s5 + $0x4b8] sm:$0xf]
  %v5370 = vld [vmem:[%s5 + $0x4bc] sm:$0xff]
  %v5371 = vld [vmem:[%s5 + $0x4c4] sm:$0xf]
  %v5372 = vld [vmem:[%s5 + $0x4c8] sm:$0xff]
  %v5373 = vld [vmem:[%s5 + $0x4d0] sm:$0xf]
  %v5374 = vld [vmem:[%s5 + $0x4d4] sm:$0xff]
  %v5375 = vld [vmem:[%s5 + $0x4dc] sm:$0xf]
  %v5376 = vld [vmem:[%s5 + $0x4e0] sm:$0xff]
  %v5377 = vld [vmem:[%s5 + $0x4e8] sm:$0xf]
  %v5378 = vld [vmem:[%s5 + $0x4ec] sm:$0xff]
  %v5379 = vld [vmem:[%s5 + $0x4f4] sm:$0xf]
  %v5380 = vld [vmem:[%s5 + $0x4f8] sm:$0xff]
  %v5381 = vld [vmem:[%s5 + $0x500] sm:$0xf]
  %v5382 = vld [vmem:[%s5 + $0x504] sm:$0xff]
  %v5383 = vld [vmem:[%s5 + $0x50c] sm:$0xf]
  %v5384 = vld [vmem:[%s5 + $0x510] sm:$0xff]
  %v5385 = vld [vmem:[%s5 + $0x518] sm:$0xf]
  %v5386 = vld [vmem:[%s5 + $0x51c] sm:$0xff]
  %v5387 = vld [vmem:[%s5 + $0x524] sm:$0xf]
  %v5388 = vld [vmem:[%s5 + $0x528] sm:$0xff]
  %v5389 = vld [vmem:[%s5 + $0x530] sm:$0xf]
  %v5390 = vld [vmem:[%s5 + $0x534] sm:$0xff]
  %v5391 = vld [vmem:[%s5 + $0x53c] sm:$0xf]
  %v5392 = vld [vmem:[%s5 + $0x540] sm:$0xff]
  %v5393 = vld [vmem:[%s5 + $0x548] sm:$0xf]
  %v5394 = vld [vmem:[%s5 + $0x54c] sm:$0xff]
  %v5395 = vld [vmem:[%s5 + $0x554] sm:$0xf]
  %v5396 = vld [vmem:[%s5 + $0x558] sm:$0xff]
  %v5397 = vld [vmem:[%s5 + $0x560] sm:$0xf]
  %v5398 = vld [vmem:[%s5 + $0x564] sm:$0xff]
  %v5399 = vld [vmem:[%s5 + $0x56c] sm:$0xf]
  %v5400 = vld [vmem:[%s5 + $0x570] sm:$0xff]
  %v5401 = vld [vmem:[%s5 + $0x578] sm:$0xf]
  %v5402 = vld [vmem:[%s5 + $0x57c] sm:$0xff]
  %v5403 = vld [vmem:[%s5 + $0x584] sm:$0xf]
  %v5404 = vld [vmem:[%s5 + $0x588] sm:$0xff]
  %v5405 = vld [vmem:[%s5 + $0x590] sm:$0xf]
  %v5406 = vld [vmem:[%s5 + $0x594] sm:$0xff]
  %v5407 = vld [vmem:[%s5 + $0x59c] sm:$0xf]
  %v5408 = vld [vmem:[%s5 + $0x5a0] sm:$0xff]
  %v5409 = vld [vmem:[%s5 + $0x5a8] sm:$0xf]
  %v5410 = vld [vmem:[%s5 + $0x5ac] sm:$0xff]
  %v5411 = vld [vmem:[%s5 + $0x5b4] sm:$0xf]
  %v5412 = vld [vmem:[%s5 + $0x5b8] sm:$0xff]
  %v5413 = vld [vmem:[%s5 + $0x5c0] sm:$0xf]
  %v5414 = vld [vmem:[%s5 + $0x5c4] sm:$0xff]
  %v5415 = vld [vmem:[%s5 + $0x5cc] sm:$0xf]
  %v5416 = vld [vmem:[%s5 + $0x5d0] sm:$0xff]
  %v5417 = vld [vmem:[%s5 + $0x5d8] sm:$0xf]
  %v5418 = vld [vmem:[%s5 + $0x5dc] sm:$0xff]
  %v5419 = vld [vmem:[%s5 + $0x5e4] sm:$0xf]
  %v5420 = vld [vmem:[%s5 + $0x5e8] sm:$0xff]
  %v5421 = vld [vmem:[%s5 + $0x5f0] sm:$0xf]
  %v5422 = vld [vmem:[%s5 + $0x5f4] sm:$0xff]
  %v5423 = vld [vmem:[%s5 + $0x5fc] sm:$0xf]
  %v5424 = vld [vmem:[%s5 + $0x600] sm:$0xff]
  %v5425 = vld [vmem:[%s5 + $0x608] sm:$0xf]
  %v5426 = vld [vmem:[%s5 + $0x60c] sm:$0xff]
  %v5427 = vld [vmem:[%s5 + $0x614] sm:$0xf]
  %v5428 = vld [vmem:[%s5 + $0x618] sm:$0xff]
  %v5429 = vld [vmem:[%s5 + $0x620] sm:$0xf]
  %v5430 = vld [vmem:[%s5 + $0x624] sm:$0xff]
  %v5431 = vld [vmem:[%s5 + $0x62c] sm:$0xf]
  %v5432 = vld [vmem:[%s5 + $0x630] sm:$0xff]
  %v5433 = vld [vmem:[%s5 + $0x638] sm:$0xf]
  %v5434 = vld [vmem:[%s5 + $0x63c] sm:$0xff]
  %v5435 = vld [vmem:[%s5 + $0x644] sm:$0xf]
  %v5436 = vld [vmem:[%s5 + $0x648] sm:$0xff]
  %v5437 = vld [vmem:[%s5 + $0x650] sm:$0xf]
  %v5438 = vld [vmem:[%s5 + $0x654] sm:$0xff]
  %v5439 = vld [vmem:[%s5 + $0x65c] sm:$0xf]
  %v5440 = vld [vmem:[%s5 + $0x660] sm:$0xff]
  %v5441 = vld [vmem:[%s5 + $0x668] sm:$0xf]
  %v5442 = vld [vmem:[%s5 + $0x66c] sm:$0xff]
  %v5443 = vld [vmem:[%s5 + $0x674] sm:$0xf]
  %v5444 = vld [vmem:[%s5 + $0x678] sm:$0xff]
  %v5445 = vld [vmem:[%s5 + $0x680] sm:$0xf]
  %v5446 = vld [vmem:[%s5 + $0x684] sm:$0xff]
  %v5447 = vld [vmem:[%s5 + $0x68c] sm:$0xf]
  %v5448 = vld [vmem:[%s5 + $0x690] sm:$0xff]
  %v5449 = vld [vmem:[%s5 + $0x698] sm:$0xf]
  %v5450 = vld [vmem:[%s5 + $0x69c] sm:$0xff]
  %v5451 = vld [vmem:[%s5 + $0x6a4] sm:$0xf]
  %v5452 = vld [vmem:[%s5 + $0x6a8] sm:$0xff]
  %v5453 = vld [vmem:[%s5 + $0x6b0] sm:$0xf]
  %v5454 = vld [vmem:[%s5 + $0x6b4] sm:$0xff]
  %v5455 = vld [vmem:[%s5 + $0x6bc] sm:$0xf]
  %v5456 = vld [vmem:[%s5 + $0x6c0] sm:$0xff]
  %v5457 = vld [vmem:[%s5 + $0x6c8] sm:$0xf]
  %v5458 = vld [vmem:[%s5 + $0x6cc] sm:$0xff]
  %v5459 = vld [vmem:[%s5 + $0x6d4] sm:$0xf]
  %v5460 = vld [vmem:[%s5 + $0x6d8] sm:$0xff]
  %v5461 = vld [vmem:[%s5 + $0x6e0] sm:$0xf]
  %v5462 = vld [vmem:[%s5 + $0x6e4] sm:$0xff]
  %v5463 = vld [vmem:[%s5 + $0x6ec] sm:$0xf]
  %v5464 = vld [vmem:[%s5 + $0x6f0] sm:$0xff]
  %v5465 = vld [vmem:[%s5 + $0x6f8] sm:$0xf]
  %v5466 = vld [vmem:[%s5 + $0x6fc] sm:$0xff]
  %v5467 = vld [vmem:[%s5 + $0x704] sm:$0xf]
  %v5468 = vld [vmem:[%s5 + $0x708] sm:$0xff]
  %v5469 = vld [vmem:[%s5 + $0x710] sm:$0xf]
  %v5470 = vld [vmem:[%s5 + $0x714] sm:$0xff]
  %v5471 = vld [vmem:[%s5 + $0x71c] sm:$0xf]
  %v5472 = vld [vmem:[%s5 + $0x720] sm:$0xff]
  %v5473 = vld [vmem:[%s5 + $0x728] sm:$0xf]
  %v5474 = vld [vmem:[%s5 + $0x72c] sm:$0xff]
  %v5475 = vld [vmem:[%s5 + $0x734] sm:$0xf]
  %v5476 = vld [vmem:[%s5 + $0x738] sm:$0xff]
  %v5477 = vld [vmem:[%s5 + $0x740] sm:$0xf]
  %v5478 = vld [vmem:[%s5 + $0x744] sm:$0xff]
  %v5479 = vld [vmem:[%s5 + $0x74c] sm:$0xf]
  %v5480 = vld [vmem:[%s5 + $0x750] sm:$0xff]
  %v5481 = vld [vmem:[%s5 + $0x758] sm:$0xf]
  %v5482 = vld [vmem:[%s5 + $0x75c] sm:$0xff]
  %v5483 = vld [vmem:[%s5 + $0x764] sm:$0xf]
  %v5484 = vld [vmem:[%s5 + $0x768] sm:$0xff]
  %v5485 = vld [vmem:[%s5 + $0x770] sm:$0xf]
  %v5486 = vld [vmem:[%s5 + $0x774] sm:$0xff]
  %v5487 = vld [vmem:[%s5 + $0x77c] sm:$0xf]
  %v5488 = vld [vmem:[%s5 + $0x780] sm:$0xff]
  %v5489 = vld [vmem:[%s5 + $0x788] sm:$0xf]
  %v5490 = vld [vmem:[%s5 + $0x78c] sm:$0xff]
  %v5491 = vld [vmem:[%s5 + $0x794] sm:$0xf]
  %v5492 = vld [vmem:[%s5 + $0x798] sm:$0xff]
  %v5493 = vld [vmem:[%s5 + $0x7a0] sm:$0xf]
  %v5494 = vld [vmem:[%s5 + $0x7a4] sm:$0xff]
  %v5495 = vld [vmem:[%s5 + $0x7ac] sm:$0xf]
  %v5496 = vld [vmem:[%s5 + $0x7b0] sm:$0xff]
  %v5497 = vld [vmem:[%s5 + $0x7b8] sm:$0xf]
  %v5498 = vld [vmem:[%s5 + $0x7bc] sm:$0xff]
  %v5499 = vld [vmem:[%s5 + $0x7c4] sm:$0xf]
  %v5500 = vld [vmem:[%s5 + $0x7c8] sm:$0xff]
  %v5501 = vld [vmem:[%s5 + $0x7d0] sm:$0xf]
  %v5502 = vld [vmem:[%s5 + $0x7d4] sm:$0xff]
  %v5503 = vld [vmem:[%s5 + $0x7dc] sm:$0xf]
  %v5504 = vld [vmem:[%s5 + $0x7e0] sm:$0xff]
  %v5505 = vld [vmem:[%s5 + $0x7e8] sm:$0xf]
  %v5506 = vld [vmem:[%s5 + $0x7ec] sm:$0xff]
  %v5507 = vld [vmem:[%s5 + $0x7f4] sm:$0xf]
  %v5508 = vld [vmem:[%s5 + $0x7f8] sm:$0xff]
  %v5509 = vld [vmem:[%s5 + $0x800] sm:$0xf]
  %v5510 = vld [vmem:[%s5 + $0x804] sm:$0xff]
  %v5511 = vld [vmem:[%s5 + $0x80c] sm:$0xf]
  %v5512 = vld [vmem:[%s5 + $0x810] sm:$0xff]
  %v5513 = vld [vmem:[%s5 + $0x818] sm:$0xf]
  %v5514 = vld [vmem:[%s5 + $0x81c] sm:$0xff]
  %v5515 = vld [vmem:[%s5 + $0x824] sm:$0xf]
  %v5516 = vld [vmem:[%s5 + $0x828] sm:$0xff]
  %v5517 = vld [vmem:[%s5 + $0x830] sm:$0xf]
  %v5518 = vld [vmem:[%s5 + $0x834] sm:$0xff]
  %v5519 = vld [vmem:[%s5 + $0x83c] sm:$0xf]
  %v5520 = vld [vmem:[%s5 + $0x840] sm:$0xff]
  %v5521 = vld [vmem:[%s5 + $0x848] sm:$0xf]
  %v5522 = vld [vmem:[%s5 + $0x84c] sm:$0xff]
  %v5523 = vld [vmem:[%s5 + $0x854] sm:$0xf]
  %v5524 = vld [vmem:[%s5 + $0x858] sm:$0xff]
  %v5525 = vld [vmem:[%s5 + $0x860] sm:$0xf]
  %v5526 = vld [vmem:[%s5 + $0x864] sm:$0xff]
  %v5527 = vld [vmem:[%s5 + $0x86c] sm:$0xf]
  %v5528 = vld [vmem:[%s5 + $0x870] sm:$0xff]
  %v5529 = vld [vmem:[%s5 + $0x878] sm:$0xf]
  %v5530 = vld [vmem:[%s5 + $0x87c] sm:$0xff]
  %v5531 = vld [vmem:[%s5 + $0x884] sm:$0xf]
  %v5532 = vld [vmem:[%s5 + $0x888] sm:$0xff]
  %v5533 = vld [vmem:[%s5 + $0x890] sm:$0xf]
  %v5534 = vld [vmem:[%s5 + $0x894] sm:$0xff]
  %v5535 = vld [vmem:[%s5 + $0x89c] sm:$0xf]
  %v5536 = vld [vmem:[%s5 + $0x8a0] sm:$0xff]
  %v5537 = vld [vmem:[%s5 + $0x8a8] sm:$0xf]
  %v5538 = vld [vmem:[%s5 + $0x8ac] sm:$0xff]
  %v5539 = vld [vmem:[%s5 + $0x8b4] sm:$0xf]
  %v5540 = vld [vmem:[%s5 + $0x8b8] sm:$0xff]
  %v5541 = vld [vmem:[%s5 + $0x8c0] sm:$0xf]
  %v5542 = vld [vmem:[%s5 + $0x8c4] sm:$0xff]
  %v5543 = vld [vmem:[%s5 + $0x8cc] sm:$0xf]
  %v5544 = vld [vmem:[%s5 + $0x8d0] sm:$0xff]
  %v5545 = vld [vmem:[%s5 + $0x8d8] sm:$0xf]
  %v5546 = vld [vmem:[%s5 + $0x8dc] sm:$0xff]
  %v5547 = vld [vmem:[%s5 + $0x8e4] sm:$0xf]
  %v5548 = vld [vmem:[%s5 + $0x8e8] sm:$0xff]
  %v5549 = vld [vmem:[%s5 + $0x8f0] sm:$0xf]
  %v5550 = vld [vmem:[%s5 + $0x8f4] sm:$0xff]
  %v5551 = vld [vmem:[%s5 + $0x8fc] sm:$0xf]
  %v5552 = vld [vmem:[%s5 + $0x900] sm:$0xff]
  %v5553 = vld [vmem:[%s5 + $0x908] sm:$0xf]
  %v5554 = vld [vmem:[%s5 + $0x90c] sm:$0xff]
  %v5555 = vld [vmem:[%s5 + $0x914] sm:$0xf]
  %v5556 = vld [vmem:[%s5 + $0x918] sm:$0xff]
  %v5557 = vld [vmem:[%s5 + $0x920] sm:$0xf]
  %v5558 = vld [vmem:[%s5 + $0x924] sm:$0xff]
  %v5559 = vld [vmem:[%s5 + $0x92c] sm:$0xf]
  %v5560 = vld [vmem:[%s5 + $0x930] sm:$0xff]
  %v5561 = vld [vmem:[%s5 + $0x938] sm:$0xf]
  %v5562 = vld [vmem:[%s5 + $0x93c] sm:$0xff]
  %v5563 = vld [vmem:[%s5 + $0x944] sm:$0xf]
  %v5564 = vld [vmem:[%s5 + $0x948] sm:$0xff]
  %v5565 = vld [vmem:[%s5 + $0x950] sm:$0xf]
  %v5566 = vld [vmem:[%s5 + $0x954] sm:$0xff]
  %v5567 = vld [vmem:[%s5 + $0x95c] sm:$0xf]
  %v5568 = vld [vmem:[%s5 + $0x960] sm:$0xff]
  %v5569 = vld [vmem:[%s5 + $0x968] sm:$0xf]
  %v5570 = vld [vmem:[%s5 + $0x96c] sm:$0xff]
  %v5571 = vld [vmem:[%s5 + $0x974] sm:$0xf]
  %v5572 = vld [vmem:[%s5 + $0x978] sm:$0xff]
  %v5573 = vld [vmem:[%s5 + $0x980] sm:$0xf]
  %v5574 = vld [vmem:[%s5 + $0x984] sm:$0xff]
  %v5575 = vld [vmem:[%s5 + $0x98c] sm:$0xf]
  %v5576 = vld [vmem:[%s5 + $0x990] sm:$0xff]
  %v5577 = vld [vmem:[%s5 + $0x998] sm:$0xf]
  %v5578 = vld [vmem:[%s5 + $0x99c] sm:$0xff]
  %v5579 = vld [vmem:[%s5 + $0x9a4] sm:$0xf]
  %v5580 = vld [vmem:[%s5 + $0x9a8] sm:$0xff]
  %v5581 = vld [vmem:[%s5 + $0x9b0] sm:$0xf]
  %v5582 = vld [vmem:[%s5 + $0x9b4] sm:$0xff]
  %v5583 = vld [vmem:[%s5 + $0x9bc] sm:$0xf]
  %v5584 = vld [vmem:[%s5 + $0x9c0] sm:$0xff]
  %v5585 = vld [vmem:[%s5 + $0x9c8] sm:$0xf]
  %v5586 = vld [vmem:[%s5 + $0x9cc] sm:$0xff]
  %v5587 = vld [vmem:[%s5 + $0x9d4] sm:$0xf]
  %v5588 = vld [vmem:[%s5 + $0x9d8] sm:$0xff]
  %v5589 = vld [vmem:[%s5 + $0x9e0] sm:$0xf]
  %v5590 = vld [vmem:[%s5 + $0x9e4] sm:$0xff]
  %v5591 = vld [vmem:[%s5 + $0x9ec] sm:$0xf]
  %v5592 = vld [vmem:[%s5 + $0x9f0] sm:$0xff]
  %v5593 = vld [vmem:[%s5 + $0x9f8] sm:$0xf]
  %v5594 = vld [vmem:[%s5 + $0x9fc] sm:$0xff]
  %v5595 = vld [vmem:[%s5 + $0xa04] sm:$0xf]
  %v5596 = vld [vmem:[%s5 + $0xa08] sm:$0xff]
  %v5597 = vld [vmem:[%s5 + $0xa10] sm:$0xf]
  %v5598 = vld [vmem:[%s5 + $0xa14] sm:$0xff]
  %v5599 = vld [vmem:[%s5 + $0xa1c] sm:$0xf]
  %v5600 = vld [vmem:[%s5 + $0xa20] sm:$0xff]
  %v5601 = vld [vmem:[%s5 + $0xa28] sm:$0xf]
  %v5602 = vld [vmem:[%s5 + $0xa2c] sm:$0xff]
  %v5603 = vld [vmem:[%s5 + $0xa34] sm:$0xf]
  %v5604 = vld [vmem:[%s5 + $0xa38] sm:$0xff]
  %v5605 = vld [vmem:[%s5 + $0xa40] sm:$0xf]
  %v5606 = vld [vmem:[%s5 + $0xa44] sm:$0xff]
  %v5607 = vld [vmem:[%s5 + $0xa4c] sm:$0xf]
  %v5608 = vld [vmem:[%s5 + $0xa50] sm:$0xff]
  %v5609 = vld [vmem:[%s5 + $0xa58] sm:$0xf]
  %v5610 = vld [vmem:[%s5 + $0xa5c] sm:$0xff]
  %v5611 = vld [vmem:[%s5 + $0xa64] sm:$0xf]
  %v5612 = vld [vmem:[%s5 + $0xa68] sm:$0xff]
  %v5613 = vld [vmem:[%s5 + $0xa70] sm:$0xf]
  %v5614 = vld [vmem:[%s5 + $0xa74] sm:$0xff]
  %v5615 = vld [vmem:[%s5 + $0xa7c] sm:$0xf]
  %v5616 = vld [vmem:[%s5 + $0xa80] sm:$0xff]
  %v5617 = vld [vmem:[%s5 + $0xa88] sm:$0xf]
  %v5618 = vld [vmem:[%s5 + $0xa8c] sm:$0xff]
  %v5619 = vld [vmem:[%s5 + $0xa94] sm:$0xf]
  %v5620 = vld [vmem:[%s5 + $0xa98] sm:$0xff]
  %v5621 = vld [vmem:[%s5 + $0xaa0] sm:$0xf]
  %v5622 = vld [vmem:[%s5 + $0xaa4] sm:$0xff]
  %v5623 = vld [vmem:[%s5 + $0xaac] sm:$0xf]
  %v5624 = vld [vmem:[%s5 + $0xab0] sm:$0xff]
  %v5625 = vld [vmem:[%s5 + $0xab8] sm:$0xf]
  %v5626 = vld [vmem:[%s5 + $0xabc] sm:$0xff]
  %v5627 = vld [vmem:[%s5 + $0xac4] sm:$0xf]
  %v5628 = vld [vmem:[%s5 + $0xac8] sm:$0xff]
  %v5629 = vld [vmem:[%s5 + $0xad0] sm:$0xf]
  %v5630 = vld [vmem:[%s5 + $0xad4] sm:$0xff]
  %v5631 = vld [vmem:[%s5 + $0xadc] sm:$0xf]
  %v5632 = vld [vmem:[%s5 + $0xae0] sm:$0xff]
  %v5633 = vld [vmem:[%s5 + $0xae8] sm:$0xf]
  %v5634 = vld [vmem:[%s5 + $0xaec] sm:$0xff]
  %v5635 = vld [vmem:[%s5 + $0xaf4] sm:$0xf]
  %v5636 = vld [vmem:[%s5 + $0xaf8] sm:$0xff]
  %v5637 = vld [vmem:[%s5 + $0xb00] sm:$0xf]
  %v5638 = vld [vmem:[%s5 + $0xb04] sm:$0xff]
  %v5639 = vld [vmem:[%s5 + $0xb0c] sm:$0xf]
  %v5640 = vld [vmem:[%s5 + $0xb10] sm:$0xff]
  %v5641 = vld [vmem:[%s5 + $0xb18] sm:$0xf]
  %v5642 = vld [vmem:[%s5 + $0xb1c] sm:$0xff]
  %v5643 = vld [vmem:[%s5 + $0xb24] sm:$0xf]
  %v5644 = vld [vmem:[%s5 + $0xb28] sm:$0xff]
  %v5645 = vld [vmem:[%s5 + $0xb30] sm:$0xf]
  %v5646 = vld [vmem:[%s5 + $0xb34] sm:$0xff]
  %v5647 = vld [vmem:[%s5 + $0xb3c] sm:$0xf]
  %v5648 = vld [vmem:[%s5 + $0xb40] sm:$0xff]
  %v5649 = vld [vmem:[%s5 + $0xb48] sm:$0xf]
  %v5650 = vld [vmem:[%s5 + $0xb4c] sm:$0xff]
  %v5651 = vld [vmem:[%s5 + $0xb54] sm:$0xf]
  %v5652 = vld [vmem:[%s5 + $0xb58] sm:$0xff]
  %v5653 = vld [vmem:[%s5 + $0xb60] sm:$0xf]
  %v5654 = vld [vmem:[%s5 + $0xb64] sm:$0xff]
  %v5655 = vld [vmem:[%s5 + $0xb6c] sm:$0xf]
  %v5656 = vld [vmem:[%s5 + $0xb70] sm:$0xff]
  %v5657 = vld [vmem:[%s5 + $0xb78] sm:$0xf]
  %v5658 = vld [vmem:[%s5 + $0xb7c] sm:$0xff]
  %v5659 = vld [vmem:[%s5 + $0xb84] sm:$0xf]
  %v5660 = vld [vmem:[%s5 + $0xb88] sm:$0xff]
  %v5661 = vld [vmem:[%s5 + $0xb90] sm:$0xf]
  %v5662 = vld [vmem:[%s5 + $0xb94] sm:$0xff]
  %v5663 = vld [vmem:[%s5 + $0xb9c] sm:$0xf]
  %v5664 = vld [vmem:[%s5 + $0xba0] sm:$0xff]
  %v5665 = vld [vmem:[%s5 + $0xba8] sm:$0xf]
  %v5666 = vld [vmem:[%s5 + $0xbac] sm:$0xff]
  %v5667 = vld [vmem:[%s5 + $0xbb4] sm:$0xf]
  %v5668 = vld [vmem:[%s5 + $0xbb8] sm:$0xff]
  %v5669 = vld [vmem:[%s5 + $0xbc0] sm:$0xf]
  %v5670 = vld [vmem:[%s5 + $0xbc4] sm:$0xff]
  %v5671 = vld [vmem:[%s5 + $0xbcc] sm:$0xf]
  %v5672 = vld [vmem:[%s5 + $0xbd0] sm:$0xff]
  %v5673 = vld [vmem:[%s5 + $0xbd8] sm:$0xf]
  %v5674 = vld [vmem:[%s5 + $0xbdc] sm:$0xff]
  %v5675 = vld [vmem:[%s5 + $0xbe4] sm:$0xf]
  %v5676 = vld [vmem:[%s5 + $0xbe8] sm:$0xff]
  %v5677 = vld [vmem:[%s5 + $0xbf0] sm:$0xf]
  %v5678 = vld [vmem:[%s5 + $0xbf4] sm:$0xff]
  %v5679 = vld [vmem:[%s5 + $0xbfc] sm:$0xf]
  %v5680 = vld [vmem:[%s5 + $0xc00] sm:$0xff]
  %v5681 = vld [vmem:[%s5 + $0xc08] sm:$0xf]
  %v5682 = vld [vmem:[%s5 + $0xc0c] sm:$0xff]
  %v5683 = vld [vmem:[%s5 + $0xc14] sm:$0xf]
  %v5684 = vld [vmem:[%s5 + $0xc18] sm:$0xff]
  %v5685 = vld [vmem:[%s5 + $0xc20] sm:$0xf]
  %v5686 = vld [vmem:[%s5 + $0xc24] sm:$0xff]
  %v5687 = vld [vmem:[%s5 + $0xc2c] sm:$0xf]
  %v5688 = vld [vmem:[%s5 + $0xc30] sm:$0xff]
  %v5689 = vld [vmem:[%s5 + $0xc38] sm:$0xf]
  %v5690 = vld [vmem:[%s5 + $0xc3c] sm:$0xff]
  %v5691 = vld [vmem:[%s5 + $0xc44] sm:$0xf]
  %v5692 = vld [vmem:[%s5 + $0xc48] sm:$0xff]
  %v5693 = vld [vmem:[%s5 + $0xc50] sm:$0xf]
  %v5694 = vld [vmem:[%s5 + $0xc54] sm:$0xff]
  %v5695 = vld [vmem:[%s5 + $0xc5c] sm:$0xf]
  %v5696 = vld [vmem:[%s5 + $0xc60] sm:$0xff]
  %v5697 = vld [vmem:[%s5 + $0xc68] sm:$0xf]
  %v5698 = vld [vmem:[%s5 + $0xc6c] sm:$0xff]
  %v5699 = vld [vmem:[%s5 + $0xc74] sm:$0xf]
  %v5700 = vld [vmem:[%s5 + $0xc78] sm:$0xff]
  %v5701 = vld [vmem:[%s5 + $0xc80] sm:$0xf]
  %v5702 = vld [vmem:[%s5 + $0xc84] sm:$0xff]
  %v5703 = vld [vmem:[%s5 + $0xc8c] sm:$0xf]
  %v5704 = vld [vmem:[%s5 + $0xc90] sm:$0xff]
  %v5705 = vld [vmem:[%s5 + $0xc98] sm:$0xf]
  %v5706 = vld [vmem:[%s5 + $0xc9c] sm:$0xff]
  %v5707 = vld [vmem:[%s5 + $0xca4] sm:$0xf]
  %v5708 = vld [vmem:[%s5 + $0xca8] sm:$0xff]
  %v5709 = vld [vmem:[%s5 + $0xcb0] sm:$0xf]
  %v5710 = vld [vmem:[%s5 + $0xcb4] sm:$0xff]
  %v5711 = vld [vmem:[%s5 + $0xcbc] sm:$0xf]
  %v5712 = vld [vmem:[%s5 + $0xcc0] sm:$0xff]
  %v5713 = vld [vmem:[%s5 + $0xcc8] sm:$0xf]
  %v5714 = vld [vmem:[%s5 + $0xccc] sm:$0xff]
  %v5715 = vld [vmem:[%s5 + $0xcd4] sm:$0xf]
  %v5716 = vld [vmem:[%s5 + $0xcd8] sm:$0xff]
  %v5717 = vld [vmem:[%s5 + $0xce0] sm:$0xf]
  %v5718 = vld [vmem:[%s5 + $0xce4] sm:$0xff]
  %v5719 = vld [vmem:[%s5 + $0xcec] sm:$0xf]
  %v5720 = vld [vmem:[%s5 + $0xcf0] sm:$0xff]
  %v5721 = vld [vmem:[%s5 + $0xcf8] sm:$0xf]
  %v5722 = vld [vmem:[%s5 + $0xcfc] sm:$0xff]
  %v5723 = vld [vmem:[%s5 + $0xd04] sm:$0xf]
  %v5724 = vld [vmem:[%s5 + $0xd08] sm:$0xff]
  %v5725 = vld [vmem:[%s5 + $0xd10] sm:$0xf]
  %v5726 = vld [vmem:[%s5 + $0xd14] sm:$0xff]
  %v5727 = vld [vmem:[%s5 + $0xd1c] sm:$0xf]
  %v5728 = vld [vmem:[%s5 + $0xd20] sm:$0xff]
  %v5729 = vld [vmem:[%s5 + $0xd28] sm:$0xf]
  %v5730 = vld [vmem:[%s5 + $0xd2c] sm:$0xff]
  %v5731 = vld [vmem:[%s5 + $0xd34] sm:$0xf]
  %v5732 = vld [vmem:[%s5 + $0xd38] sm:$0xff]
  %v5733 = vld [vmem:[%s5 + $0xd40] sm:$0xf]
  %v5734 = vld [vmem:[%s5 + $0xd44] sm:$0xff]
  %v5735 = vld [vmem:[%s5 + $0xd4c] sm:$0xf]
  %v5736 = vld [vmem:[%s5 + $0xd50] sm:$0xff]
  %v5737 = vld [vmem:[%s5 + $0xd58] sm:$0xf]
  %v5738 = vld [vmem:[%s5 + $0xd5c] sm:$0xff]
  %v5739 = vld [vmem:[%s5 + $0xd64] sm:$0xf]
  %v5740 = vld [vmem:[%s5 + $0xd68] sm:$0xff]
  %v5741 = vld [vmem:[%s5 + $0xd70] sm:$0xf]
  %v5742 = vld [vmem:[%s5 + $0xd74] sm:$0xff]
  %v5743 = vld [vmem:[%s5 + $0xd7c] sm:$0xf]
  %v5744 = vld [vmem:[%s5 + $0xd80] sm:$0xff]
  %v5745 = vld [vmem:[%s5 + $0xd88] sm:$0xf]
  %v5746 = vld [vmem:[%s5 + $0xd8c] sm:$0xff]
  %v5747 = vld [vmem:[%s5 + $0xd94] sm:$0xf]
  %v5748 = vld [vmem:[%s5 + $0xd98] sm:$0xff]
  %v5749 = vld [vmem:[%s5 + $0xda0] sm:$0xf]
  %v5750 = vld [vmem:[%s5 + $0xda4] sm:$0xff]
  %v5751 = vld [vmem:[%s5 + $0xdac] sm:$0xf]
  %v5752 = vld [vmem:[%s5 + $0xdb0] sm:$0xff]
  %v5753 = vld [vmem:[%s5 + $0xdb8] sm:$0xf]
  %v5754 = vld [vmem:[%s5 + $0xdbc] sm:$0xff]
  %v5755 = vld [vmem:[%s5 + $0xdc4] sm:$0xf]
  %v5756 = vld [vmem:[%s5 + $0xdc8] sm:$0xff]
  %v5757 = vld [vmem:[%s5 + $0xdd0] sm:$0xf]
  %v5758 = vld [vmem:[%s5 + $0xdd4] sm:$0xff]
  %v5759 = vld [vmem:[%s5 + $0xddc] sm:$0xf]
  %v5760 = vld [vmem:[%s5 + $0xde0] sm:$0xff]
  %v5761 = vld [vmem:[%s5 + $0xde8] sm:$0xf]
  %v5762 = vld [vmem:[%s5 + $0xdec] sm:$0xff]
  %v5763 = vld [vmem:[%s5 + $0xdf4] sm:$0xf]
  %v5764 = vld [vmem:[%s5 + $0xdf8] sm:$0xff]
  %v5765 = vld [vmem:[%s5 + $0xe00] sm:$0xf]
  %v5766 = vld [vmem:[%s5 + $0xe04] sm:$0xff]
  %v5767 = vld [vmem:[%s5 + $0xe0c] sm:$0xf]
  %v5768 = vld [vmem:[%s6] sm:$0x7]
  %v5770 = vlaneseq
  %v5771 = vshrl.u32 %v5770, 7
  %v5772 = vsub.s32 0, %v5771
  %v5773 = vrot.slane %v5768, %v5772
  %v5774 = vlaneseq
  %v5775 = vshrl.u32 %v5774, 7
  %v5776 = vsub.s32 1, %v5775
  %v5777 = vrot.slane %v5768, %v5776
  %v5778 = vlaneseq
  %v5779 = vshrl.u32 %v5778, 7
  %v5780 = vsub.s32 2, %v5779
  %v5781 = vrot.slane %v5768, %v5780
  %v6385 = vunpack.c.l.b16 %v5168
  %v6386 = vunpack.c.h.b16 %v5168
  %v6387 = vunpack.c.l.b16 %v5169
  %v6388 = vunpack.c.l.b16 %v5170
  %v6389 = vunpack.c.h.b16 %v5170
  %v6390 = vunpack.c.l.b16 %v5171
  %v6391 = vunpack.c.l.b16 %v5172
  %v6392 = vunpack.c.h.b16 %v5172
  %v6393 = vunpack.c.l.b16 %v5173
  %v6394 = vunpack.c.l.b16 %v5174
  %v6395 = vunpack.c.h.b16 %v5174
  %v6396 = vunpack.c.l.b16 %v5175
  %v6397 = vunpack.c.l.b16 %v5176
  %v6398 = vunpack.c.h.b16 %v5176
  %v6399 = vunpack.c.l.b16 %v5177
  %v6400 = vunpack.c.l.b16 %v5178
  %v6401 = vunpack.c.h.b16 %v5178
  %v6402 = vunpack.c.l.b16 %v5179
  %v6403 = vunpack.c.l.b16 %v5180
  %v6404 = vunpack.c.h.b16 %v5180
  %v6405 = vunpack.c.l.b16 %v5181
  %v6406 = vunpack.c.l.b16 %v5182
  %v6407 = vunpack.c.h.b16 %v5182
  %v6408 = vunpack.c.l.b16 %v5183
  %v6409 = vunpack.c.l.b16 %v5184
  %v6410 = vunpack.c.h.b16 %v5184
  %v6411 = vunpack.c.l.b16 %v5185
  %v6412 = vunpack.c.l.b16 %v5186
  %v6413 = vunpack.c.h.b16 %v5186
  %v6414 = vunpack.c.l.b16 %v5187
  %v6415 = vunpack.c.l.b16 %v5188
  %v6416 = vunpack.c.h.b16 %v5188
  %v6417 = vunpack.c.l.b16 %v5189
  %v6418 = vunpack.c.l.b16 %v5190
  %v6419 = vunpack.c.h.b16 %v5190
  %v6420 = vunpack.c.l.b16 %v5191
  %v6421 = vunpack.c.l.b16 %v5192
  %v6422 = vunpack.c.h.b16 %v5192
  %v6423 = vunpack.c.l.b16 %v5193
  %v6424 = vunpack.c.l.b16 %v5194
  %v6425 = vunpack.c.h.b16 %v5194
  %v6426 = vunpack.c.l.b16 %v5195
  %v6427 = vunpack.c.l.b16 %v5196
  %v6428 = vunpack.c.h.b16 %v5196
  %v6429 = vunpack.c.l.b16 %v5197
  %v6430 = vunpack.c.l.b16 %v5198
  %v6431 = vunpack.c.h.b16 %v5198
  %v6432 = vunpack.c.l.b16 %v5199
  %v6433 = vunpack.c.l.b16 %v5200
  %v6434 = vunpack.c.h.b16 %v5200
  %v6435 = vunpack.c.l.b16 %v5201
  %v6436 = vunpack.c.l.b16 %v5202
  %v6437 = vunpack.c.h.b16 %v5202
  %v6438 = vunpack.c.l.b16 %v5203
  %v6439 = vunpack.c.l.b16 %v5204
  %v6440 = vunpack.c.h.b16 %v5204
  %v6441 = vunpack.c.l.b16 %v5205
  %v6442 = vunpack.c.l.b16 %v5206
  %v6443 = vunpack.c.h.b16 %v5206
  %v6444 = vunpack.c.l.b16 %v5207
  %v6445 = vunpack.c.l.b16 %v5208
  %v6446 = vunpack.c.h.b16 %v5208
  %v6447 = vunpack.c.l.b16 %v5209
  %v6448 = vunpack.c.l.b16 %v5210
  %v6449 = vunpack.c.h.b16 %v5210
  %v6450 = vunpack.c.l.b16 %v5211
  %v6451 = vunpack.c.l.b16 %v5212
  %v6452 = vunpack.c.h.b16 %v5212
  %v6453 = vunpack.c.l.b16 %v5213
  %v6454 = vunpack.c.l.b16 %v5214
  %v6455 = vunpack.c.h.b16 %v5214
  %v6456 = vunpack.c.l.b16 %v5215
  %v6457 = vunpack.c.l.b16 %v5216
  %v6458 = vunpack.c.h.b16 %v5216
  %v6459 = vunpack.c.l.b16 %v5217
  %v6460 = vunpack.c.l.b16 %v5218
  %v6461 = vunpack.c.h.b16 %v5218
  %v6462 = vunpack.c.l.b16 %v5219
  %v6463 = vunpack.c.l.b16 %v5220
  %v6464 = vunpack.c.h.b16 %v5220
  %v6465 = vunpack.c.l.b16 %v5221
  %v6466 = vunpack.c.l.b16 %v5222
  %v6467 = vunpack.c.h.b16 %v5222
  %v6468 = vunpack.c.l.b16 %v5223
  %v6469 = vunpack.c.l.b16 %v5224
  %v6470 = vunpack.c.h.b16 %v5224
  %v6471 = vunpack.c.l.b16 %v5225
  %v6472 = vunpack.c.l.b16 %v5226
  %v6473 = vunpack.c.h.b16 %v5226
  %v6474 = vunpack.c.l.b16 %v5227
  %v6475 = vunpack.c.l.b16 %v5228
  %v6476 = vunpack.c.h.b16 %v5228
  %v6477 = vunpack.c.l.b16 %v5229
  %v6478 = vunpack.c.l.b16 %v5230
  %v6479 = vunpack.c.h.b16 %v5230
  %v6480 = vunpack.c.l.b16 %v5231
  %v6481 = vunpack.c.l.b16 %v5232
  %v6482 = vunpack.c.h.b16 %v5232
  %v6483 = vunpack.c.l.b16 %v5233
  %v6484 = vunpack.c.l.b16 %v5234
  %v6485 = vunpack.c.h.b16 %v5234
  %v6486 = vunpack.c.l.b16 %v5235
  %v6487 = vunpack.c.l.b16 %v5236
  %v6488 = vunpack.c.h.b16 %v5236
  %v6489 = vunpack.c.l.b16 %v5237
  %v6490 = vunpack.c.l.b16 %v5238
  %v6491 = vunpack.c.h.b16 %v5238
  %v6492 = vunpack.c.l.b16 %v5239
  %v6493 = vunpack.c.l.b16 %v5240
  %v6494 = vunpack.c.h.b16 %v5240
  %v6495 = vunpack.c.l.b16 %v5241
  %v6496 = vunpack.c.l.b16 %v5242
  %v6497 = vunpack.c.h.b16 %v5242
  %v6498 = vunpack.c.l.b16 %v5243
  %v6499 = vunpack.c.l.b16 %v5244
  %v6500 = vunpack.c.h.b16 %v5244
  %v6501 = vunpack.c.l.b16 %v5245
  %v6502 = vunpack.c.l.b16 %v5246
  %v6503 = vunpack.c.h.b16 %v5246
  %v6504 = vunpack.c.l.b16 %v5247
  %v6505 = vunpack.c.l.b16 %v5248
  %v6506 = vunpack.c.h.b16 %v5248
  %v6507 = vunpack.c.l.b16 %v5249
  %v6508 = vunpack.c.l.b16 %v5250
  %v6509 = vunpack.c.h.b16 %v5250
  %v6510 = vunpack.c.l.b16 %v5251
  %v6511 = vunpack.c.l.b16 %v5252
  %v6512 = vunpack.c.h.b16 %v5252
  %v6513 = vunpack.c.l.b16 %v5253
  %v6514 = vunpack.c.l.b16 %v5254
  %v6515 = vunpack.c.h.b16 %v5254
  %v6516 = vunpack.c.l.b16 %v5255
  %v6517 = vunpack.c.l.b16 %v5256
  %v6518 = vunpack.c.h.b16 %v5256
  %v6519 = vunpack.c.l.b16 %v5257
  %v6520 = vunpack.c.l.b16 %v5258
  %v6521 = vunpack.c.h.b16 %v5258
  %v6522 = vunpack.c.l.b16 %v5259
  %v6523 = vunpack.c.l.b16 %v5260
  %v6524 = vunpack.c.h.b16 %v5260
  %v6525 = vunpack.c.l.b16 %v5261
  %v6526 = vunpack.c.l.b16 %v5262
  %v6527 = vunpack.c.h.b16 %v5262
  %v6528 = vunpack.c.l.b16 %v5263
  %v6529 = vunpack.c.l.b16 %v5264
  %v6530 = vunpack.c.h.b16 %v5264
  %v6531 = vunpack.c.l.b16 %v5265
  %v6532 = vunpack.c.l.b16 %v5266
  %v6533 = vunpack.c.h.b16 %v5266
  %v6534 = vunpack.c.l.b16 %v5267
  %v6535 = vunpack.c.l.b16 %v5268
  %v6536 = vunpack.c.h.b16 %v5268
  %v6537 = vunpack.c.l.b16 %v5269
  %v6538 = vunpack.c.l.b16 %v5270
  %v6539 = vunpack.c.h.b16 %v5270
  %v6540 = vunpack.c.l.b16 %v5271
  %v6541 = vunpack.c.l.b16 %v5272
  %v6542 = vunpack.c.h.b16 %v5272
  %v6543 = vunpack.c.l.b16 %v5273
  %v6544 = vunpack.c.l.b16 %v5274
  %v6545 = vunpack.c.h.b16 %v5274
  %v6546 = vunpack.c.l.b16 %v5275
  %v6547 = vunpack.c.l.b16 %v5276
  %v6548 = vunpack.c.h.b16 %v5276
  %v6549 = vunpack.c.l.b16 %v5277
  %v6550 = vunpack.c.l.b16 %v5278
  %v6551 = vunpack.c.h.b16 %v5278
  %v6552 = vunpack.c.l.b16 %v5279
  %v6553 = vunpack.c.l.b16 %v5280
  %v6554 = vunpack.c.h.b16 %v5280
  %v6555 = vunpack.c.l.b16 %v5281
  %v6556 = vunpack.c.l.b16 %v5282
  %v6557 = vunpack.c.h.b16 %v5282
  %v6558 = vunpack.c.l.b16 %v5283
  %v6559 = vunpack.c.l.b16 %v5284
  %v6560 = vunpack.c.h.b16 %v5284
  %v6561 = vunpack.c.l.b16 %v5285
  %v6562 = vunpack.c.l.b16 %v5286
  %v6563 = vunpack.c.h.b16 %v5286
  %v6564 = vunpack.c.l.b16 %v5287
  %v6565 = vunpack.c.l.b16 %v5288
  %v6566 = vunpack.c.h.b16 %v5288
  %v6567 = vunpack.c.l.b16 %v5289
  %v6568 = vunpack.c.l.b16 %v5290
  %v6569 = vunpack.c.h.b16 %v5290
  %v6570 = vunpack.c.l.b16 %v5291
  %v6571 = vunpack.c.l.b16 %v5292
  %v6572 = vunpack.c.h.b16 %v5292
  %v6573 = vunpack.c.l.b16 %v5293
  %v6574 = vunpack.c.l.b16 %v5294
  %v6575 = vunpack.c.h.b16 %v5294
  %v6576 = vunpack.c.l.b16 %v5295
  %v6577 = vunpack.c.l.b16 %v5296
  %v6578 = vunpack.c.h.b16 %v5296
  %v6579 = vunpack.c.l.b16 %v5297
  %v6580 = vunpack.c.l.b16 %v5298
  %v6581 = vunpack.c.h.b16 %v5298
  %v6582 = vunpack.c.l.b16 %v5299
  %v6583 = vunpack.c.l.b16 %v5300
  %v6584 = vunpack.c.h.b16 %v5300
  %v6585 = vunpack.c.l.b16 %v5301
  %v6586 = vunpack.c.l.b16 %v5302
  %v6587 = vunpack.c.h.b16 %v5302
  %v6588 = vunpack.c.l.b16 %v5303
  %v6589 = vunpack.c.l.b16 %v5304
  %v6590 = vunpack.c.h.b16 %v5304
  %v6591 = vunpack.c.l.b16 %v5305
  %v6592 = vunpack.c.l.b16 %v5306
  %v6593 = vunpack.c.h.b16 %v5306
  %v6594 = vunpack.c.l.b16 %v5307
  %v6595 = vunpack.c.l.b16 %v5308
  %v6596 = vunpack.c.h.b16 %v5308
  %v6597 = vunpack.c.l.b16 %v5309
  %v6598 = vunpack.c.l.b16 %v5310
  %v6599 = vunpack.c.h.b16 %v5310
  %v6600 = vunpack.c.l.b16 %v5311
  %v6601 = vunpack.c.l.b16 %v5312
  %v6602 = vunpack.c.h.b16 %v5312
  %v6603 = vunpack.c.l.b16 %v5313
  %v6604 = vunpack.c.l.b16 %v5314
  %v6605 = vunpack.c.h.b16 %v5314
  %v6606 = vunpack.c.l.b16 %v5315
  %v6607 = vunpack.c.l.b16 %v5316
  %v6608 = vunpack.c.h.b16 %v5316
  %v6609 = vunpack.c.l.b16 %v5317
  %v6610 = vunpack.c.l.b16 %v5318
  %v6611 = vunpack.c.h.b16 %v5318
  %v6612 = vunpack.c.l.b16 %v5319
  %v6613 = vunpack.c.l.b16 %v5320
  %v6614 = vunpack.c.h.b16 %v5320
  %v6615 = vunpack.c.l.b16 %v5321
  %v6616 = vunpack.c.l.b16 %v5322
  %v6617 = vunpack.c.h.b16 %v5322
  %v6618 = vunpack.c.l.b16 %v5323
  %v6619 = vunpack.c.l.b16 %v5324
  %v6620 = vunpack.c.h.b16 %v5324
  %v6621 = vunpack.c.l.b16 %v5325
  %v6622 = vunpack.c.l.b16 %v5326
  %v6623 = vunpack.c.h.b16 %v5326
  %v6624 = vunpack.c.l.b16 %v5327
  %v6625 = vunpack.c.l.b16 %v5328
  %v6626 = vunpack.c.h.b16 %v5328
  %v6627 = vunpack.c.l.b16 %v5329
  %v6628 = vunpack.c.l.b16 %v5330
  %v6629 = vunpack.c.h.b16 %v5330
  %v6630 = vunpack.c.l.b16 %v5331
  %v6631 = vunpack.c.l.b16 %v5332
  %v6632 = vunpack.c.h.b16 %v5332
  %v6633 = vunpack.c.l.b16 %v5333
  %v6634 = vunpack.c.l.b16 %v5334
  %v6635 = vunpack.c.h.b16 %v5334
  %v6636 = vunpack.c.l.b16 %v5335
  %v6637 = vunpack.c.l.b16 %v5336
  %v6638 = vunpack.c.h.b16 %v5336
  %v6639 = vunpack.c.l.b16 %v5337
  %v6640 = vunpack.c.l.b16 %v5338
  %v6641 = vunpack.c.h.b16 %v5338
  %v6642 = vunpack.c.l.b16 %v5339
  %v6643 = vunpack.c.l.b16 %v5340
  %v6644 = vunpack.c.h.b16 %v5340
  %v6645 = vunpack.c.l.b16 %v5341
  %v6646 = vunpack.c.l.b16 %v5342
  %v6647 = vunpack.c.h.b16 %v5342
  %v6648 = vunpack.c.l.b16 %v5343
  %v6649 = vunpack.c.l.b16 %v5344
  %v6650 = vunpack.c.h.b16 %v5344
  %v6651 = vunpack.c.l.b16 %v5345
  %v6652 = vunpack.c.l.b16 %v5346
  %v6653 = vunpack.c.h.b16 %v5346
  %v6654 = vunpack.c.l.b16 %v5347
  %v6655 = vunpack.c.l.b16 %v5348
  %v6656 = vunpack.c.h.b16 %v5348
  %v6657 = vunpack.c.l.b16 %v5349
  %v6658 = vunpack.c.l.b16 %v5350
  %v6659 = vunpack.c.h.b16 %v5350
  %v6660 = vunpack.c.l.b16 %v5351
  %v6661 = vunpack.c.l.b16 %v5352
  %v6662 = vunpack.c.h.b16 %v5352
  %v6663 = vunpack.c.l.b16 %v5353
  %v6664 = vunpack.c.l.b16 %v5354
  %v6665 = vunpack.c.h.b16 %v5354
  %v6666 = vunpack.c.l.b16 %v5355
  %v6667 = vunpack.c.l.b16 %v5356
  %v6668 = vunpack.c.h.b16 %v5356
  %v6669 = vunpack.c.l.b16 %v5357
  %v6670 = vunpack.c.l.b16 %v5358
  %v6671 = vunpack.c.h.b16 %v5358
  %v6672 = vunpack.c.l.b16 %v5359
  %v6673 = vunpack.c.l.b16 %v5360
  %v6674 = vunpack.c.h.b16 %v5360
  %v6675 = vunpack.c.l.b16 %v5361
  %v6676 = vunpack.c.l.b16 %v5362
  %v6677 = vunpack.c.h.b16 %v5362
  %v6678 = vunpack.c.l.b16 %v5363
  %v6679 = vunpack.c.l.b16 %v5364
  %v6680 = vunpack.c.h.b16 %v5364
  %v6681 = vunpack.c.l.b16 %v5365
  %v6682 = vunpack.c.l.b16 %v5366
  %v6683 = vunpack.c.h.b16 %v5366
  %v6684 = vunpack.c.l.b16 %v5367
  %v6685 = vunpack.c.l.b16 %v5368
  %v6686 = vunpack.c.h.b16 %v5368
  %v6687 = vunpack.c.l.b16 %v5369
  %v6688 = vunpack.c.l.b16 %v5370
  %v6689 = vunpack.c.h.b16 %v5370
  %v6690 = vunpack.c.l.b16 %v5371
  %v6691 = vunpack.c.l.b16 %v5372
  %v6692 = vunpack.c.h.b16 %v5372
  %v6693 = vunpack.c.l.b16 %v5373
  %v6694 = vunpack.c.l.b16 %v5374
  %v6695 = vunpack.c.h.b16 %v5374
  %v6696 = vunpack.c.l.b16 %v5375
  %v6697 = vunpack.c.l.b16 %v5376
  %v6698 = vunpack.c.h.b16 %v5376
  %v6699 = vunpack.c.l.b16 %v5377
  %v6700 = vunpack.c.l.b16 %v5378
  %v6701 = vunpack.c.h.b16 %v5378
  %v6702 = vunpack.c.l.b16 %v5379
  %v6703 = vunpack.c.l.b16 %v5380
  %v6704 = vunpack.c.h.b16 %v5380
  %v6705 = vunpack.c.l.b16 %v5381
  %v6706 = vunpack.c.l.b16 %v5382
  %v6707 = vunpack.c.h.b16 %v5382
  %v6708 = vunpack.c.l.b16 %v5383
  %v6709 = vunpack.c.l.b16 %v5384
  %v6710 = vunpack.c.h.b16 %v5384
  %v6711 = vunpack.c.l.b16 %v5385
  %v6712 = vunpack.c.l.b16 %v5386
  %v6713 = vunpack.c.h.b16 %v5386
  %v6714 = vunpack.c.l.b16 %v5387
  %v6715 = vunpack.c.l.b16 %v5388
  %v6716 = vunpack.c.h.b16 %v5388
  %v6717 = vunpack.c.l.b16 %v5389
  %v6718 = vunpack.c.l.b16 %v5390
  %v6719 = vunpack.c.h.b16 %v5390
  %v6720 = vunpack.c.l.b16 %v5391
  %v6721 = vunpack.c.l.b16 %v5392
  %v6722 = vunpack.c.h.b16 %v5392
  %v6723 = vunpack.c.l.b16 %v5393
  %v6724 = vunpack.c.l.b16 %v5394
  %v6725 = vunpack.c.h.b16 %v5394
  %v6726 = vunpack.c.l.b16 %v5395
  %v6727 = vunpack.c.l.b16 %v5396
  %v6728 = vunpack.c.h.b16 %v5396
  %v6729 = vunpack.c.l.b16 %v5397
  %v6730 = vunpack.c.l.b16 %v5398
  %v6731 = vunpack.c.h.b16 %v5398
  %v6732 = vunpack.c.l.b16 %v5399
  %v6733 = vunpack.c.l.b16 %v5400
  %v6734 = vunpack.c.h.b16 %v5400
  %v6735 = vunpack.c.l.b16 %v5401
  %v6736 = vunpack.c.l.b16 %v5402
  %v6737 = vunpack.c.h.b16 %v5402
  %v6738 = vunpack.c.l.b16 %v5403
  %v6739 = vunpack.c.l.b16 %v5404
  %v6740 = vunpack.c.h.b16 %v5404
  %v6741 = vunpack.c.l.b16 %v5405
  %v6742 = vunpack.c.l.b16 %v5406
  %v6743 = vunpack.c.h.b16 %v5406
  %v6744 = vunpack.c.l.b16 %v5407
  %v6745 = vunpack.c.l.b16 %v5408
  %v6746 = vunpack.c.h.b16 %v5408
  %v6747 = vunpack.c.l.b16 %v5409
  %v6748 = vunpack.c.l.b16 %v5410
  %v6749 = vunpack.c.h.b16 %v5410
  %v6750 = vunpack.c.l.b16 %v5411
  %v6751 = vunpack.c.l.b16 %v5412
  %v6752 = vunpack.c.h.b16 %v5412
  %v6753 = vunpack.c.l.b16 %v5413
  %v6754 = vunpack.c.l.b16 %v5414
  %v6755 = vunpack.c.h.b16 %v5414
  %v6756 = vunpack.c.l.b16 %v5415
  %v6757 = vunpack.c.l.b16 %v5416
  %v6758 = vunpack.c.h.b16 %v5416
  %v6759 = vunpack.c.l.b16 %v5417
  %v6760 = vunpack.c.l.b16 %v5418
  %v6761 = vunpack.c.h.b16 %v5418
  %v6762 = vunpack.c.l.b16 %v5419
  %v6763 = vunpack.c.l.b16 %v5420
  %v6764 = vunpack.c.h.b16 %v5420
  %v6765 = vunpack.c.l.b16 %v5421
  %v6766 = vunpack.c.l.b16 %v5422
  %v6767 = vunpack.c.h.b16 %v5422
  %v6768 = vunpack.c.l.b16 %v5423
  %v6769 = vunpack.c.l.b16 %v5424
  %v6770 = vunpack.c.h.b16 %v5424
  %v6771 = vunpack.c.l.b16 %v5425
  %v6772 = vunpack.c.l.b16 %v5426
  %v6773 = vunpack.c.h.b16 %v5426
  %v6774 = vunpack.c.l.b16 %v5427
  %v6775 = vunpack.c.l.b16 %v5428
  %v6776 = vunpack.c.h.b16 %v5428
  %v6777 = vunpack.c.l.b16 %v5429
  %v6778 = vunpack.c.l.b16 %v5430
  %v6779 = vunpack.c.h.b16 %v5430
  %v6780 = vunpack.c.l.b16 %v5431
  %v6781 = vunpack.c.l.b16 %v5432
  %v6782 = vunpack.c.h.b16 %v5432
  %v6783 = vunpack.c.l.b16 %v5433
  %v6784 = vunpack.c.l.b16 %v5434
  %v6785 = vunpack.c.h.b16 %v5434
  %v6786 = vunpack.c.l.b16 %v5435
  %v6787 = vunpack.c.l.b16 %v5436
  %v6788 = vunpack.c.h.b16 %v5436
  %v6789 = vunpack.c.l.b16 %v5437
  %v6790 = vunpack.c.l.b16 %v5438
  %v6791 = vunpack.c.h.b16 %v5438
  %v6792 = vunpack.c.l.b16 %v5439
  %v6793 = vunpack.c.l.b16 %v5440
  %v6794 = vunpack.c.h.b16 %v5440
  %v6795 = vunpack.c.l.b16 %v5441
  %v6796 = vunpack.c.l.b16 %v5442
  %v6797 = vunpack.c.h.b16 %v5442
  %v6798 = vunpack.c.l.b16 %v5443
  %v6799 = vunpack.c.l.b16 %v5444
  %v6800 = vunpack.c.h.b16 %v5444
  %v6801 = vunpack.c.l.b16 %v5445
  %v6802 = vunpack.c.l.b16 %v5446
  %v6803 = vunpack.c.h.b16 %v5446
  %v6804 = vunpack.c.l.b16 %v5447
  %v6805 = vunpack.c.l.b16 %v5448
  %v6806 = vunpack.c.h.b16 %v5448
  %v6807 = vunpack.c.l.b16 %v5449
  %v6808 = vunpack.c.l.b16 %v5450
  %v6809 = vunpack.c.h.b16 %v5450
  %v6810 = vunpack.c.l.b16 %v5451
  %v6811 = vunpack.c.l.b16 %v5452
  %v6812 = vunpack.c.h.b16 %v5452
  %v6813 = vunpack.c.l.b16 %v5453
  %v6814 = vunpack.c.l.b16 %v5454
  %v6815 = vunpack.c.h.b16 %v5454
  %v6816 = vunpack.c.l.b16 %v5455
  %v6817 = vunpack.c.l.b16 %v5456
  %v6818 = vunpack.c.h.b16 %v5456
  %v6819 = vunpack.c.l.b16 %v5457
  %v6820 = vunpack.c.l.b16 %v5458
  %v6821 = vunpack.c.h.b16 %v5458
  %v6822 = vunpack.c.l.b16 %v5459
  %v6823 = vunpack.c.l.b16 %v5460
  %v6824 = vunpack.c.h.b16 %v5460
  %v6825 = vunpack.c.l.b16 %v5461
  %v6826 = vunpack.c.l.b16 %v5462
  %v6827 = vunpack.c.h.b16 %v5462
  %v6828 = vunpack.c.l.b16 %v5463
  %v6829 = vunpack.c.l.b16 %v5464
  %v6830 = vunpack.c.h.b16 %v5464
  %v6831 = vunpack.c.l.b16 %v5465
  %v6832 = vunpack.c.l.b16 %v5466
  %v6833 = vunpack.c.h.b16 %v5466
  %v6834 = vunpack.c.l.b16 %v5467
  %v6835 = vunpack.c.l.b16 %v5468
  %v6836 = vunpack.c.h.b16 %v5468
  %v6837 = vunpack.c.l.b16 %v5469
  %v6838 = vunpack.c.l.b16 %v5470
  %v6839 = vunpack.c.h.b16 %v5470
  %v6840 = vunpack.c.l.b16 %v5471
  %v6841 = vunpack.c.l.b16 %v5472
  %v6842 = vunpack.c.h.b16 %v5472
  %v6843 = vunpack.c.l.b16 %v5473
  %v6844 = vunpack.c.l.b16 %v5474
  %v6845 = vunpack.c.h.b16 %v5474
  %v6846 = vunpack.c.l.b16 %v5475
  %v6847 = vunpack.c.l.b16 %v5476
  %v6848 = vunpack.c.h.b16 %v5476
  %v6849 = vunpack.c.l.b16 %v5477
  %v6850 = vunpack.c.l.b16 %v5478
  %v6851 = vunpack.c.h.b16 %v5478
  %v6852 = vunpack.c.l.b16 %v5479
  %v6853 = vunpack.c.l.b16 %v5480
  %v6854 = vunpack.c.h.b16 %v5480
  %v6855 = vunpack.c.l.b16 %v5481
  %v6856 = vunpack.c.l.b16 %v5482
  %v6857 = vunpack.c.h.b16 %v5482
  %v6858 = vunpack.c.l.b16 %v5483
  %v6859 = vunpack.c.l.b16 %v5484
  %v6860 = vunpack.c.h.b16 %v5484
  %v6861 = vunpack.c.l.b16 %v5485
  %v6862 = vunpack.c.l.b16 %v5486
  %v6863 = vunpack.c.h.b16 %v5486
  %v6864 = vunpack.c.l.b16 %v5487
  %v6865 = vunpack.c.l.b16 %v5488
  %v6866 = vunpack.c.h.b16 %v5488
  %v6867 = vunpack.c.l.b16 %v5489
  %v6868 = vunpack.c.l.b16 %v5490
  %v6869 = vunpack.c.h.b16 %v5490
  %v6870 = vunpack.c.l.b16 %v5491
  %v6871 = vunpack.c.l.b16 %v5492
  %v6872 = vunpack.c.h.b16 %v5492
  %v6873 = vunpack.c.l.b16 %v5493
  %v6874 = vunpack.c.l.b16 %v5494
  %v6875 = vunpack.c.h.b16 %v5494
  %v6876 = vunpack.c.l.b16 %v5495
  %v6877 = vunpack.c.l.b16 %v5496
  %v6878 = vunpack.c.h.b16 %v5496
  %v6879 = vunpack.c.l.b16 %v5497
  %v6880 = vunpack.c.l.b16 %v5498
  %v6881 = vunpack.c.h.b16 %v5498
  %v6882 = vunpack.c.l.b16 %v5499
  %v6883 = vunpack.c.l.b16 %v5500
  %v6884 = vunpack.c.h.b16 %v5500
  %v6885 = vunpack.c.l.b16 %v5501
  %v6886 = vunpack.c.l.b16 %v5502
  %v6887 = vunpack.c.h.b16 %v5502
  %v6888 = vunpack.c.l.b16 %v5503
  %v6889 = vunpack.c.l.b16 %v5504
  %v6890 = vunpack.c.h.b16 %v5504
  %v6891 = vunpack.c.l.b16 %v5505
  %v6892 = vunpack.c.l.b16 %v5506
  %v6893 = vunpack.c.h.b16 %v5506
  %v6894 = vunpack.c.l.b16 %v5507
  %v6895 = vunpack.c.l.b16 %v5508
  %v6896 = vunpack.c.h.b16 %v5508
  %v6897 = vunpack.c.l.b16 %v5509
  %v6898 = vunpack.c.l.b16 %v5510
  %v6899 = vunpack.c.h.b16 %v5510
  %v6900 = vunpack.c.l.b16 %v5511
  %v6901 = vunpack.c.l.b16 %v5512
  %v6902 = vunpack.c.h.b16 %v5512
  %v6903 = vunpack.c.l.b16 %v5513
  %v6904 = vunpack.c.l.b16 %v5514
  %v6905 = vunpack.c.h.b16 %v5514
  %v6906 = vunpack.c.l.b16 %v5515
  %v6907 = vunpack.c.l.b16 %v5516
  %v6908 = vunpack.c.h.b16 %v5516
  %v6909 = vunpack.c.l.b16 %v5517
  %v6910 = vunpack.c.l.b16 %v5518
  %v6911 = vunpack.c.h.b16 %v5518
  %v6912 = vunpack.c.l.b16 %v5519
  %v6913 = vunpack.c.l.b16 %v5520
  %v6914 = vunpack.c.h.b16 %v5520
  %v6915 = vunpack.c.l.b16 %v5521
  %v6916 = vunpack.c.l.b16 %v5522
  %v6917 = vunpack.c.h.b16 %v5522
  %v6918 = vunpack.c.l.b16 %v5523
  %v6919 = vunpack.c.l.b16 %v5524
  %v6920 = vunpack.c.h.b16 %v5524
  %v6921 = vunpack.c.l.b16 %v5525
  %v6922 = vunpack.c.l.b16 %v5526
  %v6923 = vunpack.c.h.b16 %v5526
  %v6924 = vunpack.c.l.b16 %v5527
  %v6925 = vunpack.c.l.b16 %v5528
  %v6926 = vunpack.c.h.b16 %v5528
  %v6927 = vunpack.c.l.b16 %v5529
  %v6928 = vunpack.c.l.b16 %v5530
  %v6929 = vunpack.c.h.b16 %v5530
  %v6930 = vunpack.c.l.b16 %v5531
  %v6931 = vunpack.c.l.b16 %v5532
  %v6932 = vunpack.c.h.b16 %v5532
  %v6933 = vunpack.c.l.b16 %v5533
  %v6934 = vunpack.c.l.b16 %v5534
  %v6935 = vunpack.c.h.b16 %v5534
  %v6936 = vunpack.c.l.b16 %v5535
  %v6937 = vunpack.c.l.b16 %v5536
  %v6938 = vunpack.c.h.b16 %v5536
  %v6939 = vunpack.c.l.b16 %v5537
  %v6940 = vunpack.c.l.b16 %v5538
  %v6941 = vunpack.c.h.b16 %v5538
  %v6942 = vunpack.c.l.b16 %v5539
  %v6943 = vunpack.c.l.b16 %v5540
  %v6944 = vunpack.c.h.b16 %v5540
  %v6945 = vunpack.c.l.b16 %v5541
  %v6946 = vunpack.c.l.b16 %v5542
  %v6947 = vunpack.c.h.b16 %v5542
  %v6948 = vunpack.c.l.b16 %v5543
  %v6949 = vunpack.c.l.b16 %v5544
  %v6950 = vunpack.c.h.b16 %v5544
  %v6951 = vunpack.c.l.b16 %v5545
  %v6952 = vunpack.c.l.b16 %v5546
  %v6953 = vunpack.c.h.b16 %v5546
  %v6954 = vunpack.c.l.b16 %v5547
  %v6955 = vunpack.c.l.b16 %v5548
  %v6956 = vunpack.c.h.b16 %v5548
  %v6957 = vunpack.c.l.b16 %v5549
  %v6958 = vunpack.c.l.b16 %v5550
  %v6959 = vunpack.c.h.b16 %v5550
  %v6960 = vunpack.c.l.b16 %v5551
  %v6961 = vunpack.c.l.b16 %v5552
  %v6962 = vunpack.c.h.b16 %v5552
  %v6963 = vunpack.c.l.b16 %v5553
  %v6964 = vunpack.c.l.b16 %v5554
  %v6965 = vunpack.c.h.b16 %v5554
  %v6966 = vunpack.c.l.b16 %v5555
  %v6967 = vunpack.c.l.b16 %v5556
  %v6968 = vunpack.c.h.b16 %v5556
  %v6969 = vunpack.c.l.b16 %v5557
  %v6970 = vunpack.c.l.b16 %v5558
  %v6971 = vunpack.c.h.b16 %v5558
  %v6972 = vunpack.c.l.b16 %v5559
  %v6973 = vunpack.c.l.b16 %v5560
  %v6974 = vunpack.c.h.b16 %v5560
  %v6975 = vunpack.c.l.b16 %v5561
  %v6976 = vunpack.c.l.b16 %v5562
  %v6977 = vunpack.c.h.b16 %v5562
  %v6978 = vunpack.c.l.b16 %v5563
  %v6979 = vunpack.c.l.b16 %v5564
  %v6980 = vunpack.c.h.b16 %v5564
  %v6981 = vunpack.c.l.b16 %v5565
  %v6982 = vunpack.c.l.b16 %v5566
  %v6983 = vunpack.c.h.b16 %v5566
  %v6984 = vunpack.c.l.b16 %v5567
  %v6985 = vunpack.c.l.b16 %v5568
  %v6986 = vunpack.c.h.b16 %v5568
  %v6987 = vunpack.c.l.b16 %v5569
  %v6988 = vunpack.c.l.b16 %v5570
  %v6989 = vunpack.c.h.b16 %v5570
  %v6990 = vunpack.c.l.b16 %v5571
  %v6991 = vunpack.c.l.b16 %v5572
  %v6992 = vunpack.c.h.b16 %v5572
  %v6993 = vunpack.c.l.b16 %v5573
  %v6994 = vunpack.c.l.b16 %v5574
  %v6995 = vunpack.c.h.b16 %v5574
  %v6996 = vunpack.c.l.b16 %v5575
  %v6997 = vunpack.c.l.b16 %v5576
  %v6998 = vunpack.c.h.b16 %v5576
  %v6999 = vunpack.c.l.b16 %v5577
  %v7000 = vunpack.c.l.b16 %v5578
  %v7001 = vunpack.c.h.b16 %v5578
  %v7002 = vunpack.c.l.b16 %v5579
  %v7003 = vunpack.c.l.b16 %v5580
  %v7004 = vunpack.c.h.b16 %v5580
  %v7005 = vunpack.c.l.b16 %v5581
  %v7006 = vunpack.c.l.b16 %v5582
  %v7007 = vunpack.c.h.b16 %v5582
  %v7008 = vunpack.c.l.b16 %v5583
  %v7009 = vunpack.c.l.b16 %v5584
  %v7010 = vunpack.c.h.b16 %v5584
  %v7011 = vunpack.c.l.b16 %v5585
  %v7012 = vunpack.c.l.b16 %v5586
  %v7013 = vunpack.c.h.b16 %v5586
  %v7014 = vunpack.c.l.b16 %v5587
  %v7015 = vunpack.c.l.b16 %v5588
  %v7016 = vunpack.c.h.b16 %v5588
  %v7017 = vunpack.c.l.b16 %v5589
  %v7018 = vunpack.c.l.b16 %v5590
  %v7019 = vunpack.c.h.b16 %v5590
  %v7020 = vunpack.c.l.b16 %v5591
  %v7021 = vunpack.c.l.b16 %v5592
  %v7022 = vunpack.c.h.b16 %v5592
  %v7023 = vunpack.c.l.b16 %v5593
  %v7024 = vunpack.c.l.b16 %v5594
  %v7025 = vunpack.c.h.b16 %v5594
  %v7026 = vunpack.c.l.b16 %v5595
  %v7027 = vunpack.c.l.b16 %v5596
  %v7028 = vunpack.c.h.b16 %v5596
  %v7029 = vunpack.c.l.b16 %v5597
  %v7030 = vunpack.c.l.b16 %v5598
  %v7031 = vunpack.c.h.b16 %v5598
  %v7032 = vunpack.c.l.b16 %v5599
  %v7033 = vunpack.c.l.b16 %v5600
  %v7034 = vunpack.c.h.b16 %v5600
  %v7035 = vunpack.c.l.b16 %v5601
  %v7036 = vunpack.c.l.b16 %v5602
  %v7037 = vunpack.c.h.b16 %v5602
  %v7038 = vunpack.c.l.b16 %v5603
  %v7039 = vunpack.c.l.b16 %v5604
  %v7040 = vunpack.c.h.b16 %v5604
  %v7041 = vunpack.c.l.b16 %v5605
  %v7042 = vunpack.c.l.b16 %v5606
  %v7043 = vunpack.c.h.b16 %v5606
  %v7044 = vunpack.c.l.b16 %v5607
  %v7045 = vunpack.c.l.b16 %v5608
  %v7046 = vunpack.c.h.b16 %v5608
  %v7047 = vunpack.c.l.b16 %v5609
  %v7048 = vunpack.c.l.b16 %v5610
  %v7049 = vunpack.c.h.b16 %v5610
  %v7050 = vunpack.c.l.b16 %v5611
  %v7051 = vunpack.c.l.b16 %v5612
  %v7052 = vunpack.c.h.b16 %v5612
  %v7053 = vunpack.c.l.b16 %v5613
  %v7054 = vunpack.c.l.b16 %v5614
  %v7055 = vunpack.c.h.b16 %v5614
  %v7056 = vunpack.c.l.b16 %v5615
  %v7057 = vunpack.c.l.b16 %v5616
  %v7058 = vunpack.c.h.b16 %v5616
  %v7059 = vunpack.c.l.b16 %v5617
  %v7060 = vunpack.c.l.b16 %v5618
  %v7061 = vunpack.c.h.b16 %v5618
  %v7062 = vunpack.c.l.b16 %v5619
  %v7063 = vunpack.c.l.b16 %v5620
  %v7064 = vunpack.c.h.b16 %v5620
  %v7065 = vunpack.c.l.b16 %v5621
  %v7066 = vunpack.c.l.b16 %v5622
  %v7067 = vunpack.c.h.b16 %v5622
  %v7068 = vunpack.c.l.b16 %v5623
  %v7069 = vunpack.c.l.b16 %v5624
  %v7070 = vunpack.c.h.b16 %v5624
  %v7071 = vunpack.c.l.b16 %v5625
  %v7072 = vunpack.c.l.b16 %v5626
  %v7073 = vunpack.c.h.b16 %v5626
  %v7074 = vunpack.c.l.b16 %v5627
  %v7075 = vunpack.c.l.b16 %v5628
  %v7076 = vunpack.c.h.b16 %v5628
  %v7077 = vunpack.c.l.b16 %v5629
  %v7078 = vunpack.c.l.b16 %v5630
  %v7079 = vunpack.c.h.b16 %v5630
  %v7080 = vunpack.c.l.b16 %v5631
  %v7081 = vunpack.c.l.b16 %v5632
  %v7082 = vunpack.c.h.b16 %v5632
  %v7083 = vunpack.c.l.b16 %v5633
  %v7084 = vunpack.c.l.b16 %v5634
  %v7085 = vunpack.c.h.b16 %v5634
  %v7086 = vunpack.c.l.b16 %v5635
  %v7087 = vunpack.c.l.b16 %v5636
  %v7088 = vunpack.c.h.b16 %v5636
  %v7089 = vunpack.c.l.b16 %v5637
  %v7090 = vunpack.c.l.b16 %v5638
  %v7091 = vunpack.c.h.b16 %v5638
  %v7092 = vunpack.c.l.b16 %v5639
  %v7093 = vunpack.c.l.b16 %v5640
  %v7094 = vunpack.c.h.b16 %v5640
  %v7095 = vunpack.c.l.b16 %v5641
  %v7096 = vunpack.c.l.b16 %v5642
  %v7097 = vunpack.c.h.b16 %v5642
  %v7098 = vunpack.c.l.b16 %v5643
  %v7099 = vunpack.c.l.b16 %v5644
  %v7100 = vunpack.c.h.b16 %v5644
  %v7101 = vunpack.c.l.b16 %v5645
  %v7102 = vunpack.c.l.b16 %v5646
  %v7103 = vunpack.c.h.b16 %v5646
  %v7104 = vunpack.c.l.b16 %v5647
  %v7105 = vunpack.c.l.b16 %v5648
  %v7106 = vunpack.c.h.b16 %v5648
  %v7107 = vunpack.c.l.b16 %v5649
  %v7108 = vunpack.c.l.b16 %v5650
  %v7109 = vunpack.c.h.b16 %v5650
  %v7110 = vunpack.c.l.b16 %v5651
  %v7111 = vunpack.c.l.b16 %v5652
  %v7112 = vunpack.c.h.b16 %v5652
  %v7113 = vunpack.c.l.b16 %v5653
  %v7114 = vunpack.c.l.b16 %v5654
  %v7115 = vunpack.c.h.b16 %v5654
  %v7116 = vunpack.c.l.b16 %v5655
  %v7117 = vunpack.c.l.b16 %v5656
  %v7118 = vunpack.c.h.b16 %v5656
  %v7119 = vunpack.c.l.b16 %v5657
  %v7120 = vunpack.c.l.b16 %v5658
  %v7121 = vunpack.c.h.b16 %v5658
  %v7122 = vunpack.c.l.b16 %v5659
  %v7123 = vunpack.c.l.b16 %v5660
  %v7124 = vunpack.c.h.b16 %v5660
  %v7125 = vunpack.c.l.b16 %v5661
  %v7126 = vunpack.c.l.b16 %v5662
  %v7127 = vunpack.c.h.b16 %v5662
  %v7128 = vunpack.c.l.b16 %v5663
  %v7129 = vunpack.c.l.b16 %v5664
  %v7130 = vunpack.c.h.b16 %v5664
  %v7131 = vunpack.c.l.b16 %v5665
  %v7132 = vunpack.c.l.b16 %v5666
  %v7133 = vunpack.c.h.b16 %v5666
  %v7134 = vunpack.c.l.b16 %v5667
  %v7135 = vunpack.c.l.b16 %v5668
  %v7136 = vunpack.c.h.b16 %v5668
  %v7137 = vunpack.c.l.b16 %v5669
  %v7138 = vunpack.c.l.b16 %v5670
  %v7139 = vunpack.c.h.b16 %v5670
  %v7140 = vunpack.c.l.b16 %v5671
  %v7141 = vunpack.c.l.b16 %v5672
  %v7142 = vunpack.c.h.b16 %v5672
  %v7143 = vunpack.c.l.b16 %v5673
  %v7144 = vunpack.c.l.b16 %v5674
  %v7145 = vunpack.c.h.b16 %v5674
  %v7146 = vunpack.c.l.b16 %v5675
  %v7147 = vunpack.c.l.b16 %v5676
  %v7148 = vunpack.c.h.b16 %v5676
  %v7149 = vunpack.c.l.b16 %v5677
  %v7150 = vunpack.c.l.b16 %v5678
  %v7151 = vunpack.c.h.b16 %v5678
  %v7152 = vunpack.c.l.b16 %v5679
  %v7153 = vunpack.c.l.b16 %v5680
  %v7154 = vunpack.c.h.b16 %v5680
  %v7155 = vunpack.c.l.b16 %v5681
  %v7156 = vunpack.c.l.b16 %v5682
  %v7157 = vunpack.c.h.b16 %v5682
  %v7158 = vunpack.c.l.b16 %v5683
  %v7159 = vunpack.c.l.b16 %v5684
  %v7160 = vunpack.c.h.b16 %v5684
  %v7161 = vunpack.c.l.b16 %v5685
  %v7162 = vunpack.c.l.b16 %v5686
  %v7163 = vunpack.c.h.b16 %v5686
  %v7164 = vunpack.c.l.b16 %v5687
  %v7165 = vunpack.c.l.b16 %v5688
  %v7166 = vunpack.c.h.b16 %v5688
  %v7167 = vunpack.c.l.b16 %v5689
  %v7168 = vunpack.c.l.b16 %v5690
  %v7169 = vunpack.c.h.b16 %v5690
  %v7170 = vunpack.c.l.b16 %v5691
  %v7171 = vunpack.c.l.b16 %v5692
  %v7172 = vunpack.c.h.b16 %v5692
  %v7173 = vunpack.c.l.b16 %v5693
  %v7174 = vunpack.c.l.b16 %v5694
  %v7175 = vunpack.c.h.b16 %v5694
  %v7176 = vunpack.c.l.b16 %v5695
  %v7177 = vunpack.c.l.b16 %v5696
  %v7178 = vunpack.c.h.b16 %v5696
  %v7179 = vunpack.c.l.b16 %v5697
  %v7180 = vunpack.c.l.b16 %v5698
  %v7181 = vunpack.c.h.b16 %v5698
  %v7182 = vunpack.c.l.b16 %v5699
  %v7183 = vunpack.c.l.b16 %v5700
  %v7184 = vunpack.c.h.b16 %v5700
  %v7185 = vunpack.c.l.b16 %v5701
  %v7186 = vunpack.c.l.b16 %v5702
  %v7187 = vunpack.c.h.b16 %v5702
  %v7188 = vunpack.c.l.b16 %v5703
  %v7189 = vunpack.c.l.b16 %v5704
  %v7190 = vunpack.c.h.b16 %v5704
  %v7191 = vunpack.c.l.b16 %v5705
  %v7192 = vunpack.c.l.b16 %v5706
  %v7193 = vunpack.c.h.b16 %v5706
  %v7194 = vunpack.c.l.b16 %v5707
  %v7195 = vunpack.c.l.b16 %v5708
  %v7196 = vunpack.c.h.b16 %v5708
  %v7197 = vunpack.c.l.b16 %v5709
  %v7198 = vunpack.c.l.b16 %v5710
  %v7199 = vunpack.c.h.b16 %v5710
  %v7200 = vunpack.c.l.b16 %v5711
  %v7201 = vunpack.c.l.b16 %v5712
  %v7202 = vunpack.c.h.b16 %v5712
  %v7203 = vunpack.c.l.b16 %v5713
  %v7204 = vunpack.c.l.b16 %v5714
  %v7205 = vunpack.c.h.b16 %v5714
  %v7206 = vunpack.c.l.b16 %v5715
  %v7207 = vunpack.c.l.b16 %v5716
  %v7208 = vunpack.c.h.b16 %v5716
  %v7209 = vunpack.c.l.b16 %v5717
  %v7210 = vunpack.c.l.b16 %v5718
  %v7211 = vunpack.c.h.b16 %v5718
  %v7212 = vunpack.c.l.b16 %v5719
  %v7213 = vunpack.c.l.b16 %v5720
  %v7214 = vunpack.c.h.b16 %v5720
  %v7215 = vunpack.c.l.b16 %v5721
  %v7216 = vunpack.c.l.b16 %v5722
  %v7217 = vunpack.c.h.b16 %v5722
  %v7218 = vunpack.c.l.b16 %v5723
  %v7219 = vunpack.c.l.b16 %v5724
  %v7220 = vunpack.c.h.b16 %v5724
  %v7221 = vunpack.c.l.b16 %v5725
  %v7222 = vunpack.c.l.b16 %v5726
  %v7223 = vunpack.c.h.b16 %v5726
  %v7224 = vunpack.c.l.b16 %v5727
  %v7225 = vunpack.c.l.b16 %v5728
  %v7226 = vunpack.c.h.b16 %v5728
  %v7227 = vunpack.c.l.b16 %v5729
  %v7228 = vunpack.c.l.b16 %v5730
  %v7229 = vunpack.c.h.b16 %v5730
  %v7230 = vunpack.c.l.b16 %v5731
  %v7231 = vunpack.c.l.b16 %v5732
  %v7232 = vunpack.c.h.b16 %v5732
  %v7233 = vunpack.c.l.b16 %v5733
  %v7234 = vunpack.c.l.b16 %v5734
  %v7235 = vunpack.c.h.b16 %v5734
  %v7236 = vunpack.c.l.b16 %v5735
  %v7237 = vunpack.c.l.b16 %v5736
  %v7238 = vunpack.c.h.b16 %v5736
  %v7239 = vunpack.c.l.b16 %v5737
  %v7240 = vunpack.c.l.b16 %v5738
  %v7241 = vunpack.c.h.b16 %v5738
  %v7242 = vunpack.c.l.b16 %v5739
  %v7243 = vunpack.c.l.b16 %v5740
  %v7244 = vunpack.c.h.b16 %v5740
  %v7245 = vunpack.c.l.b16 %v5741
  %v7246 = vunpack.c.l.b16 %v5742
  %v7247 = vunpack.c.h.b16 %v5742
  %v7248 = vunpack.c.l.b16 %v5743
  %v7249 = vunpack.c.l.b16 %v5744
  %v7250 = vunpack.c.h.b16 %v5744
  %v7251 = vunpack.c.l.b16 %v5745
  %v7252 = vunpack.c.l.b16 %v5746
  %v7253 = vunpack.c.h.b16 %v5746
  %v7254 = vunpack.c.l.b16 %v5747
  %v7255 = vunpack.c.l.b16 %v5748
  %v7256 = vunpack.c.h.b16 %v5748
  %v7257 = vunpack.c.l.b16 %v5749
  %v7258 = vunpack.c.l.b16 %v5750
  %v7259 = vunpack.c.h.b16 %v5750
  %v7260 = vunpack.c.l.b16 %v5751
  %v7261 = vunpack.c.l.b16 %v5752
  %v7262 = vunpack.c.h.b16 %v5752
  %v7263 = vunpack.c.l.b16 %v5753
  %v7264 = vunpack.c.l.b16 %v5754
  %v7265 = vunpack.c.h.b16 %v5754
  %v7266 = vunpack.c.l.b16 %v5755
  %v7267 = vunpack.c.l.b16 %v5756
  %v7268 = vunpack.c.h.b16 %v5756
  %v7269 = vunpack.c.l.b16 %v5757
  %v7270 = vunpack.c.l.b16 %v5758
  %v7271 = vunpack.c.h.b16 %v5758
  %v7272 = vunpack.c.l.b16 %v5759
  %v7273 = vunpack.c.l.b16 %v5760
  %v7274 = vunpack.c.h.b16 %v5760
  %v7275 = vunpack.c.l.b16 %v5761
  %v7276 = vunpack.c.l.b16 %v5762
  %v7277 = vunpack.c.h.b16 %v5762
  %v7278 = vunpack.c.l.b16 %v5763
  %v7279 = vunpack.c.l.b16 %v5764
  %v7280 = vunpack.c.h.b16 %v5764
  %v7281 = vunpack.c.l.b16 %v5765
  %v7282 = vunpack.c.l.b16 %v5766
  %v7283 = vunpack.c.h.b16 %v5766
  %v7284 = vunpack.c.l.b16 %v5767
  %v7285 = vpack.c.b16 %v6388, %v6385
  %v7286 = vpack.c.b16 %v6389, %v6386
  %v7287 = vpack.c.b16 %v6390, %v6387
  %v7288 = vpack.c.b16 %v6394, %v6391
  %v7289 = vpack.c.b16 %v6395, %v6392
  %v7290 = vpack.c.b16 %v6396, %v6393
  %v7291 = vpack.c.b16 %v6400, %v6397
  %v7292 = vpack.c.b16 %v6401, %v6398
  %v7293 = vpack.c.b16 %v6402, %v6399
  %v7294 = vpack.c.b16 %v6406, %v6403
  %v7295 = vpack.c.b16 %v6407, %v6404
  %v7296 = vpack.c.b16 %v6408, %v6405
  %v7297 = vpack.c.b16 %v6412, %v6409
  %v7298 = vpack.c.b16 %v6413, %v6410
  %v7299 = vpack.c.b16 %v6414, %v6411
  %v7300 = vpack.c.b16 %v6418, %v6415
  %v7301 = vpack.c.b16 %v6419, %v6416
  %v7302 = vpack.c.b16 %v6420, %v6417
  %v7303 = vpack.c.b16 %v6424, %v6421
  %v7304 = vpack.c.b16 %v6425, %v6422
  %v7305 = vpack.c.b16 %v6426, %v6423
  %v7306 = vpack.c.b16 %v6430, %v6427
  %v7307 = vpack.c.b16 %v6431, %v6428
  %v7308 = vpack.c.b16 %v6432, %v6429
  %v7309 = vpack.c.b16 %v6436, %v6433
  %v7310 = vpack.c.b16 %v6437, %v6434
  %v7311 = vpack.c.b16 %v6438, %v6435
  %v7312 = vpack.c.b16 %v6442, %v6439
  %v7313 = vpack.c.b16 %v6443, %v6440
  %v7314 = vpack.c.b16 %v6444, %v6441
  %v7315 = vpack.c.b16 %v6448, %v6445
  %v7316 = vpack.c.b16 %v6449, %v6446
  %v7317 = vpack.c.b16 %v6450, %v6447
  %v7318 = vpack.c.b16 %v6454, %v6451
  %v7319 = vpack.c.b16 %v6455, %v6452
  %v7320 = vpack.c.b16 %v6456, %v6453
  %v7321 = vpack.c.b16 %v6460, %v6457
  %v7322 = vpack.c.b16 %v6461, %v6458
  %v7323 = vpack.c.b16 %v6462, %v6459
  %v7324 = vpack.c.b16 %v6466, %v6463
  %v7325 = vpack.c.b16 %v6467, %v6464
  %v7326 = vpack.c.b16 %v6468, %v6465
  %v7327 = vpack.c.b16 %v6472, %v6469
  %v7328 = vpack.c.b16 %v6473, %v6470
  %v7329 = vpack.c.b16 %v6474, %v6471
  %v7330 = vpack.c.b16 %v6478, %v6475
  %v7331 = vpack.c.b16 %v6479, %v6476
  %v7332 = vpack.c.b16 %v6480, %v6477
  %v7333 = vpack.c.b16 %v6484, %v6481
  %v7334 = vpack.c.b16 %v6485, %v6482
  %v7335 = vpack.c.b16 %v6486, %v6483
  %v7336 = vpack.c.b16 %v6490, %v6487
  %v7337 = vpack.c.b16 %v6491, %v6488
  %v7338 = vpack.c.b16 %v6492, %v6489
  %v7339 = vpack.c.b16 %v6496, %v6493
  %v7340 = vpack.c.b16 %v6497, %v6494
  %v7341 = vpack.c.b16 %v6498, %v6495
  %v7342 = vpack.c.b16 %v6502, %v6499
  %v7343 = vpack.c.b16 %v6503, %v6500
  %v7344 = vpack.c.b16 %v6504, %v6501
  %v7345 = vpack.c.b16 %v6508, %v6505
  %v7346 = vpack.c.b16 %v6509, %v6506
  %v7347 = vpack.c.b16 %v6510, %v6507
  %v7348 = vpack.c.b16 %v6514, %v6511
  %v7349 = vpack.c.b16 %v6515, %v6512
  %v7350 = vpack.c.b16 %v6516, %v6513
  %v7351 = vpack.c.b16 %v6520, %v6517
  %v7352 = vpack.c.b16 %v6521, %v6518
  %v7353 = vpack.c.b16 %v6522, %v6519
  %v7354 = vpack.c.b16 %v6526, %v6523
  %v7355 = vpack.c.b16 %v6527, %v6524
  %v7356 = vpack.c.b16 %v6528, %v6525
  %v7357 = vpack.c.b16 %v6532, %v6529
  %v7358 = vpack.c.b16 %v6533, %v6530
  %v7359 = vpack.c.b16 %v6534, %v6531
  %v7360 = vpack.c.b16 %v6538, %v6535
  %v7361 = vpack.c.b16 %v6539, %v6536
  %v7362 = vpack.c.b16 %v6540, %v6537
  %v7363 = vpack.c.b16 %v6544, %v6541
  %v7364 = vpack.c.b16 %v6545, %v6542
  %v7365 = vpack.c.b16 %v6546, %v6543
  %v7366 = vpack.c.b16 %v6550, %v6547
  %v7367 = vpack.c.b16 %v6551, %v6548
  %v7368 = vpack.c.b16 %v6552, %v6549
  %v7369 = vpack.c.b16 %v6556, %v6553
  %v7370 = vpack.c.b16 %v6557, %v6554
  %v7371 = vpack.c.b16 %v6558, %v6555
  %v7372 = vpack.c.b16 %v6562, %v6559
  %v7373 = vpack.c.b16 %v6563, %v6560
  %v7374 = vpack.c.b16 %v6564, %v6561
  %v7375 = vpack.c.b16 %v6568, %v6565
  %v7376 = vpack.c.b16 %v6569, %v6566
  %v7377 = vpack.c.b16 %v6570, %v6567
  %v7378 = vpack.c.b16 %v6574, %v6571
  %v7379 = vpack.c.b16 %v6575, %v6572
  %v7380 = vpack.c.b16 %v6576, %v6573
  %v7381 = vpack.c.b16 %v6580, %v6577
  %v7382 = vpack.c.b16 %v6581, %v6578
  %v7383 = vpack.c.b16 %v6582, %v6579
  %v7384 = vpack.c.b16 %v6586, %v6583
  %v7385 = vpack.c.b16 %v6587, %v6584
  %v7386 = vpack.c.b16 %v6588, %v6585
  %v7387 = vpack.c.b16 %v6592, %v6589
  %v7388 = vpack.c.b16 %v6593, %v6590
  %v7389 = vpack.c.b16 %v6594, %v6591
  %v7390 = vpack.c.b16 %v6598, %v6595
  %v7391 = vpack.c.b16 %v6599, %v6596
  %v7392 = vpack.c.b16 %v6600, %v6597
  %v7393 = vpack.c.b16 %v6604, %v6601
  %v7394 = vpack.c.b16 %v6605, %v6602
  %v7395 = vpack.c.b16 %v6606, %v6603
  %v7396 = vpack.c.b16 %v6610, %v6607
  %v7397 = vpack.c.b16 %v6611, %v6608
  %v7398 = vpack.c.b16 %v6612, %v6609
  %v7399 = vpack.c.b16 %v6616, %v6613
  %v7400 = vpack.c.b16 %v6617, %v6614
  %v7401 = vpack.c.b16 %v6618, %v6615
  %v7402 = vpack.c.b16 %v6622, %v6619
  %v7403 = vpack.c.b16 %v6623, %v6620
  %v7404 = vpack.c.b16 %v6624, %v6621
  %v7405 = vpack.c.b16 %v6628, %v6625
  %v7406 = vpack.c.b16 %v6629, %v6626
  %v7407 = vpack.c.b16 %v6630, %v6627
  %v7408 = vpack.c.b16 %v6634, %v6631
  %v7409 = vpack.c.b16 %v6635, %v6632
  %v7410 = vpack.c.b16 %v6636, %v6633
  %v7411 = vpack.c.b16 %v6640, %v6637
  %v7412 = vpack.c.b16 %v6641, %v6638
  %v7413 = vpack.c.b16 %v6642, %v6639
  %v7414 = vpack.c.b16 %v6646, %v6643
  %v7415 = vpack.c.b16 %v6647, %v6644
  %v7416 = vpack.c.b16 %v6648, %v6645
  %v7417 = vpack.c.b16 %v6652, %v6649
  %v7418 = vpack.c.b16 %v6653, %v6650
  %v7419 = vpack.c.b16 %v6654, %v6651
  %v7420 = vpack.c.b16 %v6658, %v6655
  %v7421 = vpack.c.b16 %v6659, %v6656
  %v7422 = vpack.c.b16 %v6660, %v6657
  %v7423 = vpack.c.b16 %v6664, %v6661
  %v7424 = vpack.c.b16 %v6665, %v6662
  %v7425 = vpack.c.b16 %v6666, %v6663
  %v7426 = vpack.c.b16 %v6670, %v6667
  %v7427 = vpack.c.b16 %v6671, %v6668
  %v7428 = vpack.c.b16 %v6672, %v6669
  %v7429 = vpack.c.b16 %v6676, %v6673
  %v7430 = vpack.c.b16 %v6677, %v6674
  %v7431 = vpack.c.b16 %v6678, %v6675
  %v7432 = vpack.c.b16 %v6682, %v6679
  %v7433 = vpack.c.b16 %v6683, %v6680
  %v7434 = vpack.c.b16 %v6684, %v6681
  %v7435 = vpack.c.b16 %v6688, %v6685
  %v7436 = vpack.c.b16 %v6689, %v6686
  %v7437 = vpack.c.b16 %v6690, %v6687
  %v7438 = vpack.c.b16 %v6694, %v6691
  %v7439 = vpack.c.b16 %v6695, %v6692
  %v7440 = vpack.c.b16 %v6696, %v6693
  %v7441 = vpack.c.b16 %v6700, %v6697
  %v7442 = vpack.c.b16 %v6701, %v6698
  %v7443 = vpack.c.b16 %v6702, %v6699
  %v7444 = vpack.c.b16 %v6706, %v6703
  %v7445 = vpack.c.b16 %v6707, %v6704
  %v7446 = vpack.c.b16 %v6708, %v6705
  %v7447 = vpack.c.b16 %v6712, %v6709
  %v7448 = vpack.c.b16 %v6713, %v6710
  %v7449 = vpack.c.b16 %v6714, %v6711
  %v7450 = vpack.c.b16 %v6718, %v6715
  %v7451 = vpack.c.b16 %v6719, %v6716
  %v7452 = vpack.c.b16 %v6720, %v6717
  %v7453 = vpack.c.b16 %v6724, %v6721
  %v7454 = vpack.c.b16 %v6725, %v6722
  %v7455 = vpack.c.b16 %v6726, %v6723
  %v7456 = vpack.c.b16 %v6730, %v6727
  %v7457 = vpack.c.b16 %v6731, %v6728
  %v7458 = vpack.c.b16 %v6732, %v6729
  %v7459 = vpack.c.b16 %v6736, %v6733
  %v7460 = vpack.c.b16 %v6737, %v6734
  %v7461 = vpack.c.b16 %v6738, %v6735
  %v7462 = vpack.c.b16 %v6742, %v6739
  %v7463 = vpack.c.b16 %v6743, %v6740
  %v7464 = vpack.c.b16 %v6744, %v6741
  %v7465 = vpack.c.b16 %v6748, %v6745
  %v7466 = vpack.c.b16 %v6749, %v6746
  %v7467 = vpack.c.b16 %v6750, %v6747
  %v7468 = vpack.c.b16 %v6754, %v6751
  %v7469 = vpack.c.b16 %v6755, %v6752
  %v7470 = vpack.c.b16 %v6756, %v6753
  %v7471 = vpack.c.b16 %v6760, %v6757
  %v7472 = vpack.c.b16 %v6761, %v6758
  %v7473 = vpack.c.b16 %v6762, %v6759
  %v7474 = vpack.c.b16 %v6766, %v6763
  %v7475 = vpack.c.b16 %v6767, %v6764
  %v7476 = vpack.c.b16 %v6768, %v6765
  %v7477 = vpack.c.b16 %v6772, %v6769
  %v7478 = vpack.c.b16 %v6773, %v6770
  %v7479 = vpack.c.b16 %v6774, %v6771
  %v7480 = vpack.c.b16 %v6778, %v6775
  %v7481 = vpack.c.b16 %v6779, %v6776
  %v7482 = vpack.c.b16 %v6780, %v6777
  %v7483 = vpack.c.b16 %v6784, %v6781
  %v7484 = vpack.c.b16 %v6785, %v6782
  %v7485 = vpack.c.b16 %v6786, %v6783
  %v7486 = vpack.c.b16 %v6790, %v6787
  %v7487 = vpack.c.b16 %v6791, %v6788
  %v7488 = vpack.c.b16 %v6792, %v6789
  %v7489 = vpack.c.b16 %v6796, %v6793
  %v7490 = vpack.c.b16 %v6797, %v6794
  %v7491 = vpack.c.b16 %v6798, %v6795
  %v7492 = vpack.c.b16 %v6802, %v6799
  %v7493 = vpack.c.b16 %v6803, %v6800
  %v7494 = vpack.c.b16 %v6804, %v6801
  %v7495 = vpack.c.b16 %v6808, %v6805
  %v7496 = vpack.c.b16 %v6809, %v6806
  %v7497 = vpack.c.b16 %v6810, %v6807
  %v7498 = vpack.c.b16 %v6814, %v6811
  %v7499 = vpack.c.b16 %v6815, %v6812
  %v7500 = vpack.c.b16 %v6816, %v6813
  %v7501 = vpack.c.b16 %v6820, %v6817
  %v7502 = vpack.c.b16 %v6821, %v6818
  %v7503 = vpack.c.b16 %v6822, %v6819
  %v7504 = vpack.c.b16 %v6826, %v6823
  %v7505 = vpack.c.b16 %v6827, %v6824
  %v7506 = vpack.c.b16 %v6828, %v6825
  %v7507 = vpack.c.b16 %v6832, %v6829
  %v7508 = vpack.c.b16 %v6833, %v6830
  %v7509 = vpack.c.b16 %v6834, %v6831
  %v7510 = vpack.c.b16 %v6838, %v6835
  %v7511 = vpack.c.b16 %v6839, %v6836
  %v7512 = vpack.c.b16 %v6840, %v6837
  %v7513 = vpack.c.b16 %v6844, %v6841
  %v7514 = vpack.c.b16 %v6845, %v6842
  %v7515 = vpack.c.b16 %v6846, %v6843
  %v7516 = vpack.c.b16 %v6850, %v6847
  %v7517 = vpack.c.b16 %v6851, %v6848
  %v7518 = vpack.c.b16 %v6852, %v6849
  %v7519 = vpack.c.b16 %v6856, %v6853
  %v7520 = vpack.c.b16 %v6857, %v6854
  %v7521 = vpack.c.b16 %v6858, %v6855
  %v7522 = vpack.c.b16 %v6862, %v6859
  %v7523 = vpack.c.b16 %v6863, %v6860
  %v7524 = vpack.c.b16 %v6864, %v6861
  %v7525 = vpack.c.b16 %v6868, %v6865
  %v7526 = vpack.c.b16 %v6869, %v6866
  %v7527 = vpack.c.b16 %v6870, %v6867
  %v7528 = vpack.c.b16 %v6874, %v6871
  %v7529 = vpack.c.b16 %v6875, %v6872
  %v7530 = vpack.c.b16 %v6876, %v6873
  %v7531 = vpack.c.b16 %v6880, %v6877
  %v7532 = vpack.c.b16 %v6881, %v6878
  %v7533 = vpack.c.b16 %v6882, %v6879
  %v7534 = vpack.c.b16 %v6886, %v6883
  %v7535 = vpack.c.b16 %v6887, %v6884
  %v7536 = vpack.c.b16 %v6888, %v6885
  %v7537 = vpack.c.b16 %v6892, %v6889
  %v7538 = vpack.c.b16 %v6893, %v6890
  %v7539 = vpack.c.b16 %v6894, %v6891
  %v7540 = vpack.c.b16 %v6898, %v6895
  %v7541 = vpack.c.b16 %v6899, %v6896
  %v7542 = vpack.c.b16 %v6900, %v6897
  %v7543 = vpack.c.b16 %v6904, %v6901
  %v7544 = vpack.c.b16 %v6905, %v6902
  %v7545 = vpack.c.b16 %v6906, %v6903
  %v7546 = vpack.c.b16 %v6910, %v6907
  %v7547 = vpack.c.b16 %v6911, %v6908
  %v7548 = vpack.c.b16 %v6912, %v6909
  %v7549 = vpack.c.b16 %v6916, %v6913
  %v7550 = vpack.c.b16 %v6917, %v6914
  %v7551 = vpack.c.b16 %v6918, %v6915
  %v7552 = vpack.c.b16 %v6922, %v6919
  %v7553 = vpack.c.b16 %v6923, %v6920
  %v7554 = vpack.c.b16 %v6924, %v6921
  %v7555 = vpack.c.b16 %v6928, %v6925
  %v7556 = vpack.c.b16 %v6929, %v6926
  %v7557 = vpack.c.b16 %v6930, %v6927
  %v7558 = vpack.c.b16 %v6934, %v6931
  %v7559 = vpack.c.b16 %v6935, %v6932
  %v7560 = vpack.c.b16 %v6936, %v6933
  %v7561 = vpack.c.b16 %v6940, %v6937
  %v7562 = vpack.c.b16 %v6941, %v6938
  %v7563 = vpack.c.b16 %v6942, %v6939
  %v7564 = vpack.c.b16 %v6946, %v6943
  %v7565 = vpack.c.b16 %v6947, %v6944
  %v7566 = vpack.c.b16 %v6948, %v6945
  %v7567 = vpack.c.b16 %v6952, %v6949
  %v7568 = vpack.c.b16 %v6953, %v6950
  %v7569 = vpack.c.b16 %v6954, %v6951
  %v7570 = vpack.c.b16 %v6958, %v6955
  %v7571 = vpack.c.b16 %v6959, %v6956
  %v7572 = vpack.c.b16 %v6960, %v6957
  %v7573 = vpack.c.b16 %v6964, %v6961
  %v7574 = vpack.c.b16 %v6965, %v6962
  %v7575 = vpack.c.b16 %v6966, %v6963
  %v7576 = vpack.c.b16 %v6970, %v6967
  %v7577 = vpack.c.b16 %v6971, %v6968
  %v7578 = vpack.c.b16 %v6972, %v6969
  %v7579 = vpack.c.b16 %v6976, %v6973
  %v7580 = vpack.c.b16 %v6977, %v6974
  %v7581 = vpack.c.b16 %v6978, %v6975
  %v7582 = vpack.c.b16 %v6982, %v6979
  %v7583 = vpack.c.b16 %v6983, %v6980
  %v7584 = vpack.c.b16 %v6984, %v6981
  %v7585 = vpack.c.b16 %v6988, %v6985
  %v7586 = vpack.c.b16 %v6989, %v6986
  %v7587 = vpack.c.b16 %v6990, %v6987
  %v7588 = vpack.c.b16 %v6994, %v6991
  %v7589 = vpack.c.b16 %v6995, %v6992
  %v7590 = vpack.c.b16 %v6996, %v6993
  %v7591 = vpack.c.b16 %v7000, %v6997
  %v7592 = vpack.c.b16 %v7001, %v6998
  %v7593 = vpack.c.b16 %v7002, %v6999
  %v7594 = vpack.c.b16 %v7006, %v7003
  %v7595 = vpack.c.b16 %v7007, %v7004
  %v7596 = vpack.c.b16 %v7008, %v7005
  %v7597 = vpack.c.b16 %v7012, %v7009
  %v7598 = vpack.c.b16 %v7013, %v7010
  %v7599 = vpack.c.b16 %v7014, %v7011
  %v7600 = vpack.c.b16 %v7018, %v7015
  %v7601 = vpack.c.b16 %v7019, %v7016
  %v7602 = vpack.c.b16 %v7020, %v7017
  %v7603 = vpack.c.b16 %v7024, %v7021
  %v7604 = vpack.c.b16 %v7025, %v7022
  %v7605 = vpack.c.b16 %v7026, %v7023
  %v7606 = vpack.c.b16 %v7030, %v7027
  %v7607 = vpack.c.b16 %v7031, %v7028
  %v7608 = vpack.c.b16 %v7032, %v7029
  %v7609 = vpack.c.b16 %v7036, %v7033
  %v7610 = vpack.c.b16 %v7037, %v7034
  %v7611 = vpack.c.b16 %v7038, %v7035
  %v7612 = vpack.c.b16 %v7042, %v7039
  %v7613 = vpack.c.b16 %v7043, %v7040
  %v7614 = vpack.c.b16 %v7044, %v7041
  %v7615 = vpack.c.b16 %v7048, %v7045
  %v7616 = vpack.c.b16 %v7049, %v7046
  %v7617 = vpack.c.b16 %v7050, %v7047
  %v7618 = vpack.c.b16 %v7054, %v7051
  %v7619 = vpack.c.b16 %v7055, %v7052
  %v7620 = vpack.c.b16 %v7056, %v7053
  %v7621 = vpack.c.b16 %v7060, %v7057
  %v7622 = vpack.c.b16 %v7061, %v7058
  %v7623 = vpack.c.b16 %v7062, %v7059
  %v7624 = vpack.c.b16 %v7066, %v7063
  %v7625 = vpack.c.b16 %v7067, %v7064
  %v7626 = vpack.c.b16 %v7068, %v7065
  %v7627 = vpack.c.b16 %v7072, %v7069
  %v7628 = vpack.c.b16 %v7073, %v7070
  %v7629 = vpack.c.b16 %v7074, %v7071
  %v7630 = vpack.c.b16 %v7078, %v7075
  %v7631 = vpack.c.b16 %v7079, %v7076
  %v7632 = vpack.c.b16 %v7080, %v7077
  %v7633 = vpack.c.b16 %v7084, %v7081
  %v7634 = vpack.c.b16 %v7085, %v7082
  %v7635 = vpack.c.b16 %v7086, %v7083
  %v7636 = vpack.c.b16 %v7090, %v7087
  %v7637 = vpack.c.b16 %v7091, %v7088
  %v7638 = vpack.c.b16 %v7092, %v7089
  %v7639 = vpack.c.b16 %v7096, %v7093
  %v7640 = vpack.c.b16 %v7097, %v7094
  %v7641 = vpack.c.b16 %v7098, %v7095
  %v7642 = vpack.c.b16 %v7102, %v7099
  %v7643 = vpack.c.b16 %v7103, %v7100
  %v7644 = vpack.c.b16 %v7104, %v7101
  %v7645 = vpack.c.b16 %v7108, %v7105
  %v7646 = vpack.c.b16 %v7109, %v7106
  %v7647 = vpack.c.b16 %v7110, %v7107
  %v7648 = vpack.c.b16 %v7114, %v7111
  %v7649 = vpack.c.b16 %v7115, %v7112
  %v7650 = vpack.c.b16 %v7116, %v7113
  %v7651 = vpack.c.b16 %v7120, %v7117
  %v7652 = vpack.c.b16 %v7121, %v7118
  %v7653 = vpack.c.b16 %v7122, %v7119
  %v7654 = vpack.c.b16 %v7126, %v7123
  %v7655 = vpack.c.b16 %v7127, %v7124
  %v7656 = vpack.c.b16 %v7128, %v7125
  %v7657 = vpack.c.b16 %v7132, %v7129
  %v7658 = vpack.c.b16 %v7133, %v7130
  %v7659 = vpack.c.b16 %v7134, %v7131
  %v7660 = vpack.c.b16 %v7138, %v7135
  %v7661 = vpack.c.b16 %v7139, %v7136
  %v7662 = vpack.c.b16 %v7140, %v7137
  %v7663 = vpack.c.b16 %v7144, %v7141
  %v7664 = vpack.c.b16 %v7145, %v7142
  %v7665 = vpack.c.b16 %v7146, %v7143
  %v7666 = vpack.c.b16 %v7150, %v7147
  %v7667 = vpack.c.b16 %v7151, %v7148
  %v7668 = vpack.c.b16 %v7152, %v7149
  %v7669 = vpack.c.b16 %v7156, %v7153
  %v7670 = vpack.c.b16 %v7157, %v7154
  %v7671 = vpack.c.b16 %v7158, %v7155
  %v7672 = vpack.c.b16 %v7162, %v7159
  %v7673 = vpack.c.b16 %v7163, %v7160
  %v7674 = vpack.c.b16 %v7164, %v7161
  %v7675 = vpack.c.b16 %v7168, %v7165
  %v7676 = vpack.c.b16 %v7169, %v7166
  %v7677 = vpack.c.b16 %v7170, %v7167
  %v7678 = vpack.c.b16 %v7174, %v7171
  %v7679 = vpack.c.b16 %v7175, %v7172
  %v7680 = vpack.c.b16 %v7176, %v7173
  %v7681 = vpack.c.b16 %v7180, %v7177
  %v7682 = vpack.c.b16 %v7181, %v7178
  %v7683 = vpack.c.b16 %v7182, %v7179
  %v7684 = vpack.c.b16 %v7186, %v7183
  %v7685 = vpack.c.b16 %v7187, %v7184
  %v7686 = vpack.c.b16 %v7188, %v7185
  %v7687 = vpack.c.b16 %v7192, %v7189
  %v7688 = vpack.c.b16 %v7193, %v7190
  %v7689 = vpack.c.b16 %v7194, %v7191
  %v7690 = vpack.c.b16 %v7198, %v7195
  %v7691 = vpack.c.b16 %v7199, %v7196
  %v7692 = vpack.c.b16 %v7200, %v7197
  %v7693 = vpack.c.b16 %v7204, %v7201
  %v7694 = vpack.c.b16 %v7205, %v7202
  %v7695 = vpack.c.b16 %v7206, %v7203
  %v7696 = vpack.c.b16 %v7210, %v7207
  %v7697 = vpack.c.b16 %v7211, %v7208
  %v7698 = vpack.c.b16 %v7212, %v7209
  %v7699 = vpack.c.b16 %v7216, %v7213
  %v7700 = vpack.c.b16 %v7217, %v7214
  %v7701 = vpack.c.b16 %v7218, %v7215
  %v7702 = vpack.c.b16 %v7222, %v7219
  %v7703 = vpack.c.b16 %v7223, %v7220
  %v7704 = vpack.c.b16 %v7224, %v7221
  %v7705 = vpack.c.b16 %v7228, %v7225
  %v7706 = vpack.c.b16 %v7229, %v7226
  %v7707 = vpack.c.b16 %v7230, %v7227
  %v7708 = vpack.c.b16 %v7234, %v7231
  %v7709 = vpack.c.b16 %v7235, %v7232
  %v7710 = vpack.c.b16 %v7236, %v7233
  %v7711 = vpack.c.b16 %v7240, %v7237
  %v7712 = vpack.c.b16 %v7241, %v7238
  %v7713 = vpack.c.b16 %v7242, %v7239
  %v7714 = vpack.c.b16 %v7246, %v7243
  %v7715 = vpack.c.b16 %v7247, %v7244
  %v7716 = vpack.c.b16 %v7248, %v7245
  %v7717 = vpack.c.b16 %v7252, %v7249
  %v7718 = vpack.c.b16 %v7253, %v7250
  %v7719 = vpack.c.b16 %v7254, %v7251
  %v7720 = vpack.c.b16 %v7258, %v7255
  %v7721 = vpack.c.b16 %v7259, %v7256
  %v7722 = vpack.c.b16 %v7260, %v7257
  %v7723 = vpack.c.b16 %v7264, %v7261
  %v7724 = vpack.c.b16 %v7265, %v7262
  %v7725 = vpack.c.b16 %v7266, %v7263
  %v7726 = vpack.c.b16 %v7270, %v7267
  %v7727 = vpack.c.b16 %v7271, %v7268
  %v7728 = vpack.c.b16 %v7272, %v7269
  %v7729 = vpack.c.b16 %v7276, %v7273
  %v7730 = vpack.c.b16 %v7277, %v7274
  %v7731 = vpack.c.b16 %v7278, %v7275
  %v7732 = vpack.c.b16 %v7282, %v7279
  %v7733 = vpack.c.b16 %v7283, %v7280
  %v7734 = vpack.c.b16 %v7284, %v7281
  %8185 = vmatprep.subr.bf16.mxu0 %v7286
  %8186 = vmatpush1.bf16.msra.mxu0 %v7285
  %8187 = vmatprep.subr.bf16.mxu0 %v7289
  %8188 = vmatpush1.bf16.msra.mxu0 %v7288
  %8189 = vmatprep.subr.bf16.mxu0 %v7292
  %8190 = vmatpush1.bf16.msra.mxu0 %v7291
  %8191 = vmatprep.subr.bf16.mxu0 %v7295
  %8192 = vmatpush1.bf16.msra.mxu0 %v7294
  %8193 = vmatprep.subr.bf16.mxu0 %v7298
  %8194 = vmatpush1.bf16.msra.mxu0 %v7297
  %8195 = vmatprep.subr.bf16.mxu0 %v7301
  %8196 = vmatpush1.bf16.msra.mxu0 %v7300
  %8197 = vmatprep.subr.bf16.mxu0 %v7304
  %8198 = vmatpush1.bf16.msra.mxu0 %v7303
  %8199 = vmatprep.subr.bf16.mxu0 %v7307
  %8200 = vmatpush1.bf16.msra.mxu0 %v7306
  %8201 = vmatprep.subr.bf16.mxu0 %v7310
  %8202 = vmatpush1.bf16.msra.mxu0 %v7309
  %8203 = vmatprep.subr.bf16.mxu0 %v7313
  %8204 = vmatpush1.bf16.msra.mxu0 %v7312
  %8205 = vmatprep.subr.bf16.mxu0 %v7316
  %8206 = vmatpush1.bf16.msra.mxu0 %v7315
  %8207 = vmatprep.subr.bf16.mxu0 %v7319
  %8208 = vmatpush1.bf16.msra.mxu0 %v7318
  %8209 = vmatprep.subr.bf16.mxu0 %v7322
  %8210 = vmatpush1.bf16.msra.mxu0 %v7321
  %8211 = vmatprep.subr.bf16.mxu0 %v7325
  %8212 = vmatpush1.bf16.msra.mxu0 %v7324
  %8213 = vmatprep.subr.bf16.mxu0 %v7328
  %8214 = vmatpush1.bf16.msra.mxu0 %v7327
  %8215 = vmatprep.subr.bf16.mxu0 %v7331
  %8216 = vmatpush1.bf16.msra.mxu0 %v7330
  %8217 = vmatprep.mubr.bf16.mxu0 %v696
  %8218 = vmatmul.mubr.bf16.gmra.mrb[0].mxu0 %v682
  %v8219 = vpop.f32.mrb[0].mxu0
  %v8220 = vadd.f32 %v5773, %v8219
  %v8221 = vpop.f32.mrb[0].mxu0
  %v8222 = vadd.f32 %v5777, %v8221
  %v8223 = vpop.f32.mrb[0].mxu0
  %v8224 = vpop.f32.mrb[0].mxu0
  %8225 = vdwg.mxu0
  %8226 = vmatprep.subr.bf16.mxu0 %v7334
  %8227 = vmatpush1.bf16.msra.mxu0 %v7333
  %8228 = vmatprep.subr.bf16.mxu0 %v7337
  %8229 = vmatpush1.bf16.msra.mxu0 %v7336
  %8230 = vmatprep.subr.bf16.mxu0 %v7340
  %8231 = vmatpush1.bf16.msra.mxu0 %v7339
  %8232 = vmatprep.subr.bf16.mxu0 %v7343
  %8233 = vmatpush1.bf16.msra.mxu0 %v7342
  %8234 = vmatprep.subr.bf16.mxu0 %v7346
  %8235 = vmatpush1.bf16.msra.mxu0 %v7345
  %8236 = vmatprep.subr.bf16.mxu0 %v7349
  %8237 = vmatpush1.bf16.msra.mxu0 %v7348
  %8238 = vmatprep.subr.bf16.mxu0 %v7352
  %8239 = vmatpush1.bf16.msra.mxu0 %v7351
  %8240 = vmatprep.subr.bf16.mxu0 %v7355
  %8241 = vmatpush1.bf16.msra.mxu0 %v7354
  %8242 = vmatprep.subr.bf16.mxu0 %v7358
  %8243 = vmatpush1.bf16.msra.mxu0 %v7357
  %8244 = vmatprep.subr.bf16.mxu0 %v7361
  %8245 = vmatpush1.bf16.msra.mxu0 %v7360
  %8246 = vmatprep.subr.bf16.mxu0 %v7364
  %8247 = vmatpush1.bf16.msra.mxu0 %v7363
  %8248 = vmatprep.subr.bf16.mxu0 %v7367
  %8249 = vmatpush1.bf16.msra.mxu0 %v7366
  %8250 = vmatprep.subr.bf16.mxu0 %v7370
  %8251 = vmatpush1.bf16.msra.mxu0 %v7369
  %8252 = vmatprep.subr.bf16.mxu0 %v7373
  %8253 = vmatpush1.bf16.msra.mxu0 %v7372
  %8254 = vmatprep.subr.bf16.mxu0 %v7376
  %8255 = vmatpush1.bf16.msra.mxu0 %v7375
  %8256 = vmatprep.subr.bf16.mxu0 %v7379
  %8257 = vmatpush1.bf16.msra.mxu0 %v7378
  %8258 = vmatprep.mubr.bf16.mxu0 %v706
  %8259 = vmatmul.mubr.bf16.gmra.mrb[0].mxu0 %v704
  %v8260 = vpop.f32.mrb[0].mxu0
  %v8261 = vadd.f32 %v8220, %v8260
  %v8262 = vpop.f32.mrb[0].mxu0
  %v8263 = vadd.f32 %v8222, %v8262
  %v8264 = vpop.f32.mrb[0].mxu0
  %v8265 = vpop.f32.mrb[0].mxu0
  %8266 = vdwg.mxu0
  %8267 = vmatprep.subr.bf16.mxu0 %v7382
  %8268 = vmatpush1.bf16.msra.mxu0 %v7381
  %8269 = vmatprep.subr.bf16.mxu0 %v7385
  %8270 = vmatpush1.bf16.msra.mxu0 %v7384
  %8271 = vmatprep.subr.bf16.mxu0 %v7388
  %8272 = vmatpush1.bf16.msra.mxu0 %v7387
  %8273 = vmatprep.subr.bf16.mxu0 %v7391
  %8274 = vmatpush1.bf16.msra.mxu0 %v7390
  %8275 = vmatprep.subr.bf16.mxu0 %v7394
  %8276 = vmatpush1.bf16.msra.mxu0 %v7393
  %8277 = vmatprep.subr.bf16.mxu0 %v7397
  %8278 = vmatpush1.bf16.msra.mxu0 %v7396
  %8279 = vmatprep.subr.bf16.mxu0 %v7400
  %8280 = vmatpush1.bf16.msra.mxu0 %v7399
  %8281 = vmatprep.subr.bf16.mxu0 %v7403
  %8282 = vmatpush1.bf16.msra.mxu0 %v7402
  %8283 = vmatprep.subr.bf16.mxu0 %v7406
  %8284 = vmatpush1.bf16.msra.mxu0 %v7405
  %8285 = vmatprep.subr.bf16.mxu0 %v7409
  %8286 = vmatpush1.bf16.msra.mxu0 %v7408
  %8287 = vmatprep.subr.bf16.mxu0 %v7412
  %8288 = vmatpush1.bf16.msra.mxu0 %v7411
  %8289 = vmatprep.subr.bf16.mxu0 %v7415
  %8290 = vmatpush1.bf16.msra.mxu0 %v7414
  %8291 = vmatprep.subr.bf16.mxu0 %v7418
  %8292 = vmatpush1.bf16.msra.mxu0 %v7417
  %8293 = vmatprep.subr.bf16.mxu0 %v7421
  %8294 = vmatpush1.bf16.msra.mxu0 %v7420
  %8295 = vmatprep.subr.bf16.mxu0 %v7424
  %8296 = vmatpush1.bf16.msra.mxu0 %v7423
  %8297 = vmatprep.subr.bf16.mxu0 %v7427
  %8298 = vmatpush1.bf16.msra.mxu0 %v7426
  %8299 = vmatprep.mubr.bf16.mxu0 %v703
  %8300 = vmatmul.mubr.bf16.gmra.mrb[0].mxu0 %v689
  %v8301 = vpop.f32.mrb[0].mxu0
  %v8302 = vadd.f32 %v8261, %v8301
  %v8303 = vpop.f32.mrb[0].mxu0
  %v8304 = vadd.f32 %v8263, %v8303
  %v8305 = vpop.f32.mrb[0].mxu0
  %v8306 = vpop.f32.mrb[0].mxu0
  %8307 = vdwg.mxu0
  %8308 = vmatprep.subr.bf16.mxu0 %v7430
  %8309 = vmatpush1.bf16.msra.mxu0 %v7429
  %8310 = vmatprep.subr.bf16.mxu0 %v7433
  %8311 = vmatpush1.bf16.msra.mxu0 %v7432
  %8312 = vmatprep.subr.bf16.mxu0 %v7436
  %8313 = vmatpush1.bf16.msra.mxu0 %v7435
  %8314 = vmatprep.subr.bf16.mxu0 %v7439
  %8315 = vmatpush1.bf16.msra.mxu0 %v7438
  %8316 = vmatprep.subr.bf16.mxu0 %v7442
  %8317 = vmatpush1.bf16.msra.mxu0 %v7441
  %8318 = vmatprep.subr.bf16.mxu0 %v7445
  %8319 = vmatpush1.bf16.msra.mxu0 %v7444
  %8320 = vmatprep.subr.bf16.mxu0 %v7448
  %8321 = vmatpush1.bf16.msra.mxu0 %v7447
  %8322 = vmatprep.subr.bf16.mxu0 %v7451
  %8323 = vmatpush1.bf16.msra.mxu0 %v7450
  %8324 = vmatprep.subr.bf16.mxu0 %v7454
  %8325 = vmatpush1.bf16.msra.mxu0 %v7453
  %8326 = vmatprep.subr.bf16.mxu0 %v7457
  %8327 = vmatpush1.bf16.msra.mxu0 %v7456
  %8328 = vmatprep.subr.bf16.mxu0 %v7460
  %8329 = vmatpush1.bf16.msra.mxu0 %v7459
  %8330 = vmatprep.subr.bf16.mxu0 %v7463
  %8331 = vmatpush1.bf16.msra.mxu0 %v7462
  %8332 = vmatprep.subr.bf16.mxu0 %v7466
  %8333 = vmatpush1.bf16.msra.mxu0 %v7465
  %8334 = vmatprep.subr.bf16.mxu0 %v7469
  %8335 = vmatpush1.bf16.msra.mxu0 %v7468
  %8336 = vmatprep.subr.bf16.mxu0 %v7472
  %8337 = vmatpush1.bf16.msra.mxu0 %v7471
  %8338 = vmatprep.subr.bf16.mxu0 %v7475
  %8339 = vmatpush1.bf16.msra.mxu0 %v7474
  %8340 = vmatprep.mubr.bf16.mxu0 %v707
  %8341 = vmatmul.mubr.bf16.gmra.mrb[0].mxu0 %v705
  %v8342 = vpop.f32.mrb[0].mxu0
  %v8343 = vadd.f32 %v8302, %v8342
  %v8344 = vpop.f32.mrb[0].mxu0
  %v8345 = vadd.f32 %v8304, %v8344
  %v8346 = vpop.f32.mrb[0].mxu0
  %v8347 = vpop.f32.mrb[0].mxu0
  %8348 = vdwg.mxu0
  %8349 = vmatprep.subr.bf16.mxu0 %v7478
  %8350 = vmatpush1.bf16.msra.mxu0 %v7477
  %8351 = vmatprep.subr.bf16.mxu0 %v7481
  %8352 = vmatpush1.bf16.msra.mxu0 %v7480
  %8353 = vmatprep.subr.bf16.mxu0 %v7484
  %8354 = vmatpush1.bf16.msra.mxu0 %v7483
  %8355 = vmatprep.subr.bf16.mxu0 %v7487
  %8356 = vmatpush1.bf16.msra.mxu0 %v7486
  %8357 = vmatprep.subr.bf16.mxu0 %v7490
  %8358 = vmatpush1.bf16.msra.mxu0 %v7489
  %8359 = vmatprep.subr.bf16.mxu0 %v7493
  %8360 = vmatpush1.bf16.msra.mxu0 %v7492
  %8361 = vmatprep.subr.bf16.mxu0 %v7496
  %8362 = vmatpush1.bf16.msra.mxu0 %v7495
  %8363 = vmatprep.subr.bf16.mxu0 %v7499
  %8364 = vmatpush1.bf16.msra.mxu0 %v7498
  %8365 = vmatprep.subr.bf16.mxu0 %v7502
  %8366 = vmatpush1.bf16.msra.mxu0 %v7501
  %8367 = vmatprep.subr.bf16.mxu0 %v7505
  %8368 = vmatpush1.bf16.msra.mxu0 %v7504
  %8369 = vmatprep.subr.bf16.mxu0 %v7508
  %8370 = vmatpush1.bf16.msra.mxu0 %v7507
  %8371 = vmatprep.subr.bf16.mxu0 %v7511
  %8372 = vmatpush1.bf16.msra.mxu0 %v7510
  %8373 = vmatprep.subr.bf16.mxu0 %v7514
  %8374 = vmatpush1.bf16.msra.mxu0 %v7513
  %8375 = vmatprep.subr.bf16.mxu0 %v7517
  %8376 = vmatpush1.bf16.msra.mxu0 %v7516
  %8377 = vmatprep.subr.bf16.mxu0 %v7520
  %8378 = vmatpush1.bf16.msra.mxu0 %v7519
  %8379 = vmatprep.subr.bf16.mxu0 %v7523
  %8380 = vmatpush1.bf16.msra.mxu0 %v7522
  %8381 = vmatprep.mubr.bf16.mxu0 %v745
  %8382 = vmatmul.mubr.bf16.gmra.mrb[0].mxu0 %v731
  %v8383 = vpop.f32.mrb[0].mxu0
  %v8384 = vadd.f32 %v8343, %v8383
  %v8385 = vpop.f32.mrb[0].mxu0
  %v8386 = vadd.f32 %v8345, %v8385
  %v8387 = vpop.f32.mrb[0].mxu0
  %v8388 = vpop.f32.mrb[0].mxu0
  %8389 = vdwg.mxu0
  %8390 = vmatprep.subr.bf16.mxu0 %v7526
  %8391 = vmatpush1.bf16.msra.mxu0 %v7525
  %8392 = vmatprep.subr.bf16.mxu0 %v7529
  %8393 = vmatpush1.bf16.msra.mxu0 %v7528
  %8394 = vmatprep.subr.bf16.mxu0 %v7532
  %8395 = vmatpush1.bf16.msra.mxu0 %v7531
  %8396 = vmatprep.subr.bf16.mxu0 %v7535
  %8397 = vmatpush1.bf16.msra.mxu0 %v7534
  %8398 = vmatprep.subr.bf16.mxu0 %v7538
  %8399 = vmatpush1.bf16.msra.mxu0 %v7537
  %8400 = vmatprep.subr.bf16.mxu0 %v7541
  %8401 = vmatpush1.bf16.msra.mxu0 %v7540
  %8402 = vmatprep.subr.bf16.mxu0 %v7544
  %8403 = vmatpush1.bf16.msra.mxu0 %v7543
  %8404 = vmatprep.subr.bf16.mxu0 %v7547
  %8405 = vmatpush1.bf16.msra.mxu0 %v7546
  %8406 = vmatprep.subr.bf16.mxu0 %v7550
  %8407 = vmatpush1.bf16.msra.mxu0 %v7549
  %8408 = vmatprep.subr.bf16.mxu0 %v7553
  %8409 = vmatpush1.bf16.msra.mxu0 %v7552
  %8410 = vmatprep.subr.bf16.mxu0 %v7556
  %8411 = vmatpush1.bf16.msra.mxu0 %v7555
  %8412 = vmatprep.subr.bf16.mxu0 %v7559
  %8413 = vmatpush1.bf16.msra.mxu0 %v7558
  %8414 = vmatprep.subr.bf16.mxu0 %v7562
  %8415 = vmatpush1.bf16.msra.mxu0 %v7561
  %8416 = vmatprep.subr.bf16.mxu0 %v7565
  %8417 = vmatpush1.bf16.msra.mxu0 %v7564
  %8418 = vmatprep.subr.bf16.mxu0 %v7568
  %8419 = vmatpush1.bf16.msra.mxu0 %v7567
  %8420 = vmatprep.subr.bf16.mxu0 %v7571
  %8421 = vmatpush1.bf16.msra.mxu0 %v7570
  %8422 = vmatprep.mubr.bf16.mxu0 %v755
  %8423 = vmatmul.mubr.bf16.gmra.mrb[0].mxu0 %v753
  %v8424 = vpop.f32.mrb[0].mxu0
  %v8425 = vadd.f32 %v8384, %v8424
  %v8426 = vpop.f32.mrb[0].mxu0
  %v8427 = vadd.f32 %v8386, %v8426
  %v8428 = vpop.f32.mrb[0].mxu0
  %v8429 = vpop.f32.mrb[0].mxu0
  %8430 = vdwg.mxu0
  %8431 = vmatprep.subr.bf16.mxu0 %v7574
  %8432 = vmatpush1.bf16.msra.mxu0 %v7573
  %8433 = vmatprep.subr.bf16.mxu0 %v7577
  %8434 = vmatpush1.bf16.msra.mxu0 %v7576
  %8435 = vmatprep.subr.bf16.mxu0 %v7580
  %8436 = vmatpush1.bf16.msra.mxu0 %v7579
  %8437 = vmatprep.subr.bf16.mxu0 %v7583
  %8438 = vmatpush1.bf16.msra.mxu0 %v7582
  %8439 = vmatprep.subr.bf16.mxu0 %v7586
  %8440 = vmatpush1.bf16.msra.mxu0 %v7585
  %8441 = vmatprep.subr.bf16.mxu0 %v7589
  %8442 = vmatpush1.bf16.msra.mxu0 %v7588
  %8443 = vmatprep.subr.bf16.mxu0 %v7592
  %8444 = vmatpush1.bf16.msra.mxu0 %v7591
  %8445 = vmatprep.subr.bf16.mxu0 %v7595
  %8446 = vmatpush1.bf16.msra.mxu0 %v7594
  %8447 = vmatprep.subr.bf16.mxu0 %v7598
  %8448 = vmatpush1.bf16.msra.mxu0 %v7597
  %8449 = vmatprep.subr.bf16.mxu0 %v7601
  %8450 = vmatpush1.bf16.msra.mxu0 %v7600
  %8451 = vmatprep.subr.bf16.mxu0 %v7604
  %8452 = vmatpush1.bf16.msra.mxu0 %v7603
  %8453 = vmatprep.subr.bf16.mxu0 %v7607
  %8454 = vmatpush1.bf16.msra.mxu0 %v7606
  %8455 = vmatprep.subr.bf16.mxu0 %v7610
  %8456 = vmatpush1.bf16.msra.mxu0 %v7609
  %8457 = vmatprep.subr.bf16.mxu0 %v7613
  %8458 = vmatpush1.bf16.msra.mxu0 %v7612
  %8459 = vmatprep.subr.bf16.mxu0 %v7616
  %8460 = vmatpush1.bf16.msra.mxu0 %v7615
  %8461 = vmatprep.subr.bf16.mxu0 %v7619
  %8462 = vmatpush1.bf16.msra.mxu0 %v7618
  %8463 = vmatprep.mubr.bf16.mxu0 %v752
  %8464 = vmatmul.mubr.bf16.gmra.mrb[0].mxu0 %v738
  %v8465 = vpop.f32.mrb[0].mxu0
  %v8466 = vadd.f32 %v8425, %v8465
  %v8467 = vpop.f32.mrb[0].mxu0
  %v8468 = vadd.f32 %v8427, %v8467
  %v8469 = vpop.f32.mrb[0].mxu0
  %v8470 = vpop.f32.mrb[0].mxu0
  %8471 = vdwg.mxu0
  %8472 = vmatprep.subr.bf16.mxu0 %v7622
  %8473 = vmatpush1.bf16.msra.mxu0 %v7621
  %8474 = vmatprep.subr.bf16.mxu0 %v7625
  %8475 = vmatpush1.bf16.msra.mxu0 %v7624
  %8476 = vmatprep.subr.bf16.mxu0 %v7628
  %8477 = vmatpush1.bf16.msra.mxu0 %v7627
  %8478 = vmatprep.subr.bf16.mxu0 %v7631
  %8479 = vmatpush1.bf16.msra.mxu0 %v7630
  %8480 = vmatprep.subr.bf16.mxu0 %v7634
  %8481 = vmatpush1.bf16.msra.mxu0 %v7633
  %8482 = vmatprep.subr.bf16.mxu0 %v7637
  %8483 = vmatpush1.bf16.msra.mxu0 %v7636
  %8484 = vmatprep.subr.bf16.mxu0 %v7640
  %8485 = vmatpush1.bf16.msra.mxu0 %v7639
  %8486 = vmatprep.subr.bf16.mxu0 %v7643
  %8487 = vmatpush1.bf16.msra.mxu0 %v7642
  %8488 = vmatprep.subr.bf16.mxu0 %v7646
  %8489 = vmatpush1.bf16.msra.mxu0 %v7645
  %8490 = vmatprep.subr.bf16.mxu0 %v7649
  %8491 = vmatpush1.bf16.msra.mxu0 %v7648
  %8492 = vmatprep.subr.bf16.mxu0 %v7652
  %8493 = vmatpush1.bf16.msra.mxu0 %v7651
  %8494 = vmatprep.subr.bf16.mxu0 %v7655
  %8495 = vmatpush1.bf16.msra.mxu0 %v7654
  %8496 = vmatprep.subr.bf16.mxu0 %v7658
  %8497 = vmatpush1.bf16.msra.mxu0 %v7657
  %8498 = vmatprep.subr.bf16.mxu0 %v7661
  %8499 = vmatpush1.bf16.msra.mxu0 %v7660
  %8500 = vmatprep.subr.bf16.mxu0 %v7664
  %8501 = vmatpush1.bf16.msra.mxu0 %v7663
  %8502 = vmatprep.subr.bf16.mxu0 %v7667
  %8503 = vmatpush1.bf16.msra.mxu0 %v7666
  %8504 = vmatprep.mubr.bf16.mxu0 %v756
  %8505 = vmatmul.mubr.bf16.gmra.mrb[0].mxu0 %v754
  %v8506 = vpop.f32.mrb[0].mxu0
  %v8507 = vadd.f32 %v8466, %v8506
  %v8508 = vpop.f32.mrb[0].mxu0
  %v8509 = vadd.f32 %v8468, %v8508
  %v8510 = vpop.f32.mrb[0].mxu0
  %v8511 = vpop.f32.mrb[0].mxu0
  %8512 = vdwg.mxu0
  %8513 = vmatprep.subr.bf16.mxu0 %v7670
  %8514 = vmatpush1.bf16.msra.mxu0 %v7669
  %8515 = vmatprep.subr.bf16.mxu0 %v7673
  %8516 = vmatpush1.bf16.msra.mxu0 %v7672
  %8517 = vmatprep.subr.bf16.mxu0 %v7676
  %8518 = vmatpush1.bf16.msra.mxu0 %v7675
  %8519 = vmatprep.subr.bf16.mxu0 %v7679
  %8520 = vmatpush1.bf16.msra.mxu0 %v7678
  %8521 = vmatprep.subr.bf16.mxu0 %v7682
  %8522 = vmatpush1.bf16.msra.mxu0 %v7681
  %8523 = vmatprep.subr.bf16.mxu0 %v7685
  %8524 = vmatpush1.bf16.msra.mxu0 %v7684
  %8525 = vmatprep.subr.bf16.mxu0 %v7688
  %8526 = vmatpush1.bf16.msra.mxu0 %v7687
  %8527 = vmatprep.subr.bf16.mxu0 %v7691
  %8528 = vmatpush1.bf16.msra.mxu0 %v7690
  %8529 = vmatprep.subr.bf16.mxu0 %v7694
  %8530 = vmatpush1.bf16.msra.mxu0 %v7693
  %8531 = vmatprep.subr.bf16.mxu0 %v7697
  %8532 = vmatpush1.bf16.msra.mxu0 %v7696
  %8533 = vmatprep.subr.bf16.mxu0 %v7700
  %8534 = vmatpush1.bf16.msra.mxu0 %v7699
  %8535 = vmatprep.subr.bf16.mxu0 %v7703
  %8536 = vmatpush1.bf16.msra.mxu0 %v7702
  %8537 = vmatprep.subr.bf16.mxu0 %v7706
  %8538 = vmatpush1.bf16.msra.mxu0 %v7705
  %8539 = vmatprep.subr.bf16.mxu0 %v7709
  %8540 = vmatpush1.bf16.msra.mxu0 %v7708
  %8541 = vmatprep.subr.bf16.mxu0 %v7712
  %8542 = vmatpush1.bf16.msra.mxu0 %v7711
  %8543 = vmatprep.subr.bf16.mxu0 %v7715
  %8544 = vmatpush1.bf16.msra.mxu0 %v7714
  %8545 = vmatprep.mubr.bf16.mxu0 %v778
  %8546 = vmatmul.mubr.bf16.gmra.mrb[0].mxu0 %v771
  %v8547 = vpop.f32.mrb[0].mxu0
  %v8548 = vadd.f32 %v8507, %v8547
  %v8549 = vpop.f32.mrb[0].mxu0
  %v8550 = vadd.f32 %v8509, %v8549
  %v8551 = vpop.f32.mrb[0].mxu0
  %v8552 = vpop.f32.mrb[0].mxu0
  %8553 = vdwg.mxu0
  %8554 = vmatprep.subr.bf16.mxu0 %v7718
  %8555 = vmatpush1.bf16.msra.mxu0 %v7717
  %8556 = vmatprep.subr.bf16.mxu0 %v7721
  %8557 = vmatpush1.bf16.msra.mxu0 %v7720
  %8558 = vmatprep.subr.bf16.mxu0 %v7724
  %8559 = vmatpush1.bf16.msra.mxu0 %v7723
  %8560 = vmatprep.subr.bf16.mxu0 %v7727
  %8561 = vmatpush1.bf16.msra.mxu0 %v7726
  %8562 = vmatprep.subr.bf16.mxu0 %v7730
  %8563 = vmatpush1.bf16.msra.mxu0 %v7729
  %8564 = vmatprep.subr.bf16.mxu0 %v7733
  %8565 = vmatpush1.bf16.msra.mxu0 %v7732
  %8566 = vmatprep.subr.bf16.mxu0 0
  %8567 = vmatpush1.bf16.msra.mxu0 0
  %8568 = vmatprep.subr.bf16.mxu0 0
  %8569 = vmatpush1.bf16.msra.mxu0 0
  %8570 = vmatprep.subr.bf16.mxu0 0
  %8571 = vmatpush1.bf16.msra.mxu0 0
  %8572 = vmatprep.subr.bf16.mxu0 0
  %8573 = vmatpush1.bf16.msra.mxu0 0
  %8574 = vmatprep.subr.bf16.mxu0 0
  %8575 = vmatpush1.bf16.msra.mxu0 0
  %8576 = vmatprep.subr.bf16.mxu0 0
  %8577 = vmatpush1.bf16.msra.mxu0 0
  %8578 = vmatprep.subr.bf16.mxu0 0
  %8579 = vmatpush1.bf16.msra.mxu0 0
  %8580 = vmatprep.subr.bf16.mxu0 0
  %8581 = vmatpush1.bf16.msra.mxu0 0
  %8582 = vmatprep.subr.bf16.mxu0 0
  %8583 = vmatpush1.bf16.msra.mxu0 0
  %8584 = vmatprep.subr.bf16.mxu0 0
  %8585 = vmatpush1.bf16.msra.mxu0 0
  %8586 = vmatprep.mubr.bf16.mxu0 0
  %8587 = vmatmul.mubr.bf16.gmra.mrb[0].mxu0 %v3200
  %v8588 = vpop.f32.mrb[0].mxu0
  %v8589 = vadd.f32 %v8548, %v8588
  %v8590 = vpop.f32.mrb[0].mxu0
  %v8591 = vadd.f32 %v8550, %v8590
  %v8592 = vpop.f32.mrb[0].mxu0
  %v8593 = vpop.f32.mrb[0].mxu0
  %8594 = vdwg.mxu0
  %8595 = vmatprep.subr.bf16.mxu0 0
  %8596 = vmatpush1.bf16.msra.mxu0 %v7287
  %8597 = vmatprep.subr.bf16.mxu0 0
  %8598 = vmatpush1.bf16.msra.mxu0 %v7290
  %8599 = vmatprep.subr.bf16.mxu0 0
  %8600 = vmatpush1.bf16.msra.mxu0 %v7293
  %8601 = vmatprep.subr.bf16.mxu0 0
  %8602 = vmatpush1.bf16.msra.mxu0 %v7296
  %8603 = vmatprep.subr.bf16.mxu0 0
  %8604 = vmatpush1.bf16.msra.mxu0 %v7299
  %8605 = vmatprep.subr.bf16.mxu0 0
  %8606 = vmatpush1.bf16.msra.mxu0 %v7302
  %8607 = vmatprep.subr.bf16.mxu0 0
  %8608 = vmatpush1.bf16.msra.mxu0 %v7305
  %8609 = vmatprep.subr.bf16.mxu0 0
  %8610 = vmatpush1.bf16.msra.mxu0 %v7308
  %8611 = vmatprep.subr.bf16.mxu0 0
  %8612 = vmatpush1.bf16.msra.mxu0 %v7311
  %8613 = vmatprep.subr.bf16.mxu0 0
  %8614 = vmatpush1.bf16.msra.mxu0 %v7314
  %8615 = vmatprep.subr.bf16.mxu0 0
  %8616 = vmatpush1.bf16.msra.mxu0 %v7317
  %8617 = vmatprep.subr.bf16.mxu0 0
  %8618 = vmatpush1.bf16.msra.mxu0 %v7320
  %8619 = vmatprep.subr.bf16.mxu0 0
  %8620 = vmatpush1.bf16.msra.mxu0 %v7323
  %8621 = vmatprep.subr.bf16.mxu0 0
  %8622 = vmatpush1.bf16.msra.mxu0 %v7326
  %8623 = vmatprep.subr.bf16.mxu0 0
  %8624 = vmatpush1.bf16.msra.mxu0 %v7329
  %8625 = vmatprep.subr.bf16.mxu0 0
  %8626 = vmatpush1.bf16.msra.mxu0 %v7332
  %8627 = vmatprep.mubr.bf16.mxu0 %v696
  %8628 = vmatmul.mubr.bf16.gmra.mrb[0].mxu0 %v682
  %v8629 = vpop.f32.mrb[0].mxu0
  %v8630 = vadd.f32 %v5781, %v8629
  %v8631 = vpop.f32.mrb[0].mxu0
  %v8632 = vpop.f32.mrb[0].mxu0
  %v8633 = vpop.f32.mrb[0].mxu0
  %8634 = vdwg.mxu0
  %8635 = vmatprep.subr.bf16.mxu0 0
  %8636 = vmatpush1.bf16.msra.mxu0 %v7335
  %8637 = vmatprep.subr.bf16.mxu0 0
  %8638 = vmatpush1.bf16.msra.mxu0 %v7338
  %8639 = vmatprep.subr.bf16.mxu0 0
  %8640 = vmatpush1.bf16.msra.mxu0 %v7341
  %8641 = vmatprep.subr.bf16.mxu0 0
  %8642 = vmatpush1.bf16.msra.mxu0 %v7344
  %8643 = vmatprep.subr.bf16.mxu0 0
  %8644 = vmatpush1.bf16.msra.mxu0 %v7347
  %8645 = vmatprep.subr.bf16.mxu0 0
  %8646 = vmatpush1.bf16.msra.mxu0 %v7350
  %8647 = vmatprep.subr.bf16.mxu0 0
  %8648 = vmatpush1.bf16.msra.mxu0 %v7353
  %8649 = vmatprep.subr.bf16.mxu0 0
  %8650 = vmatpush1.bf16.msra.mxu0 %v7356
  %8651 = vmatprep.subr.bf16.mxu0 0
  %8652 = vmatpush1.bf16.msra.mxu0 %v7359
  %8653 = vmatprep.subr.bf16.mxu0 0
  %8654 = vmatpush1.bf16.msra.mxu0 %v7362
  %8655 = vmatprep.subr.bf16.mxu0 0
  %8656 = vmatpush1.bf16.msra.mxu0 %v7365
  %8657 = vmatprep.subr.bf16.mxu0 0
  %8658 = vmatpush1.bf16.msra.mxu0 %v7368
  %8659 = vmatprep.subr.bf16.mxu0 0
  %8660 = vmatpush1.bf16.msra.mxu0 %v7371
  %8661 = vmatprep.subr.bf16.mxu0 0
  %8662 = vmatpush1.bf16.msra.mxu0 %v7374
  %8663 = vmatprep.subr.bf16.mxu0 0
  %8664 = vmatpush1.bf16.msra.mxu0 %v7377
  %8665 = vmatprep.subr.bf16.mxu0 0
  %8666 = vmatpush1.bf16.msra.mxu0 %v7380
  %8667 = vmatprep.mubr.bf16.mxu0 %v706
  %8668 = vmatmul.mubr.bf16.gmra.mrb[0].mxu0 %v704
  %v8669 = vpop.f32.mrb[0].mxu0
  %v8670 = vadd.f32 %v8630, %v8669
  %v8671 = vpop.f32.mrb[0].mxu0
  %v8672 = vpop.f32.mrb[0].mxu0
  %v8673 = vpop.f32.mrb[0].mxu0
  %8674 = vdwg.mxu0
  %8675 = vmatprep.subr.bf16.mxu0 0
  %8676 = vmatpush1.bf16.msra.mxu0 %v7383
  %8677 = vmatprep.subr.bf16.mxu0 0
  %8678 = vmatpush1.bf16.msra.mxu0 %v7386
  %8679 = vmatprep.subr.bf16.mxu0 0
  %8680 = vmatpush1.bf16.msra.mxu0 %v7389
  %8681 = vmatprep.subr.bf16.mxu0 0
  %8682 = vmatpush1.bf16.msra.mxu0 %v7392
  %8683 = vmatprep.subr.bf16.mxu0 0
  %8684 = vmatpush1.bf16.msra.mxu0 %v7395
  %8685 = vmatprep.subr.bf16.mxu0 0
  %8686 = vmatpush1.bf16.msra.mxu0 %v7398
  %8687 = vmatprep.subr.bf16.mxu0 0
  %8688 = vmatpush1.bf16.msra.mxu0 %v7401
  %8689 = vmatprep.subr.bf16.mxu0 0
  %8690 = vmatpush1.bf16.msra.mxu0 %v7404
  %8691 = vmatprep.subr.bf16.mxu0 0
  %8692 = vmatpush1.bf16.msra.mxu0 %v7407
  %8693 = vmatprep.subr.bf16.mxu0 0
  %8694 = vmatpush1.bf16.msra.mxu0 %v7410
  %8695 = vmatprep.subr.bf16.mxu0 0
  %8696 = vmatpush1.bf16.msra.mxu0 %v7413
  %8697 = vmatprep.subr.bf16.mxu0 0
  %8698 = vmatpush1.bf16.msra.mxu0 %v7416
  %8699 = vmatprep.subr.bf16.mxu0 0
  %8700 = vmatpush1.bf16.msra.mxu0 %v7419
  %8701 = vmatprep.subr.bf16.mxu0 0
  %8702 = vmatpush1.bf16.msra.mxu0 %v7422
  %8703 = vmatprep.subr.bf16.mxu0 0
  %8704 = vmatpush1.bf16.msra.mxu0 %v7425
  %8705 = vmatprep.subr.bf16.mxu0 0
  %8706 = vmatpush1.bf16.msra.mxu0 %v7428
  %8707 = vmatprep.mubr.bf16.mxu0 %v703
  %8708 = vmatmul.mubr.bf16.gmra.mrb[0].mxu0 %v689
  %v8709 = vpop.f32.mrb[0].mxu0
  %v8710 = vadd.f32 %v8670, %v8709
  %v8711 = vpop.f32.mrb[0].mxu0
  %v8712 = vpop.f32.mrb[0].mxu0
  %v8713 = vpop.f32.mrb[0].mxu0
  %8714 = vdwg.mxu0
  %8715 = vmatprep.subr.bf16.mxu0 0
  %8716 = vmatpush1.bf16.msra.mxu0 %v7431
  %8717 = vmatprep.subr.bf16.mxu0 0
  %8718 = vmatpush1.bf16.msra.mxu0 %v7434
  %8719 = vmatprep.subr.bf16.mxu0 0
  %8720 = vmatpush1.bf16.msra.mxu0 %v7437
  %8721 = vmatprep.subr.bf16.mxu0 0
  %8722 = vmatpush1.bf16.msra.mxu0 %v7440
  %8723 = vmatprep.subr.bf16.mxu0 0
  %8724 = vmatpush1.bf16.msra.mxu0 %v7443
  %8725 = vmatprep.subr.bf16.mxu0 0
  %8726 = vmatpush1.bf16.msra.mxu0 %v7446
  %8727 = vmatprep.subr.bf16.mxu0 0
  %8728 = vmatpush1.bf16.msra.mxu0 %v7449
  %8729 = vmatprep.subr.bf16.mxu0 0
  %8730 = vmatpush1.bf16.msra.mxu0 %v7452
  %8731 = vmatprep.subr.bf16.mxu0 0
  %8732 = vmatpush1.bf16.msra.mxu0 %v7455
  %8733 = vmatprep.subr.bf16.mxu0 0
  %8734 = vmatpush1.bf16.msra.mxu0 %v7458
  %8735 = vmatprep.subr.bf16.mxu0 0
  %8736 = vmatpush1.bf16.msra.mxu0 %v7461
  %8737 = vmatprep.subr.bf16.mxu0 0
  %8738 = vmatpush1.bf16.msra.mxu0 %v7464
  %8739 = vmatprep.subr.bf16.mxu0 0
  %8740 = vmatpush1.bf16.msra.mxu0 %v7467
  %8741 = vmatprep.subr.bf16.mxu0 0
  %8742 = vmatpush1.bf16.msra.mxu0 %v7470
  %8743 = vmatprep.subr.bf16.mxu0 0
  %8744 = vmatpush1.bf16.msra.mxu0 %v7473
  %8745 = vmatprep.subr.bf16.mxu0 0
  %8746 = vmatpush1.bf16.msra.mxu0 %v7476
  %8747 = vmatprep.mubr.bf16.mxu0 %v707
  %8748 = vmatmul.mubr.bf16.gmra.mrb[0].mxu0 %v705
  %v8749 = vpop.f32.mrb[0].mxu0
  %v8750 = vadd.f32 %v8710, %v8749
  %v8751 = vpop.f32.mrb[0].mxu0
  %v8752 = vpop.f32.mrb[0].mxu0
  %v8753 = vpop.f32.mrb[0].mxu0
  %8754 = vdwg.mxu0
  %8755 = vmatprep.subr.bf16.mxu0 0
  %8756 = vmatpush1.bf16.msra.mxu0 %v7479
  %8757 = vmatprep.subr.bf16.mxu0 0
  %8758 = vmatpush1.bf16.msra.mxu0 %v7482
  %8759 = vmatprep.subr.bf16.mxu0 0
  %8760 = vmatpush1.bf16.msra.mxu0 %v7485
  %8761 = vmatprep.subr.bf16.mxu0 0
  %8762 = vmatpush1.bf16.msra.mxu0 %v7488
  %8763 = vmatprep.subr.bf16.mxu0 0
  %8764 = vmatpush1.bf16.msra.mxu0 %v7491
  %8765 = vmatprep.subr.bf16.mxu0 0
  %8766 = vmatpush1.bf16.msra.mxu0 %v7494
  %8767 = vmatprep.subr.bf16.mxu0 0
  %8768 = vmatpush1.bf16.msra.mxu0 %v7497
  %8769 = vmatprep.subr.bf16.mxu0 0
  %8770 = vmatpush1.bf16.msra.mxu0 %v7500
  %8771 = vmatprep.subr.bf16.mxu0 0
  %8772 = vmatpush1.bf16.msra.mxu0 %v7503
  %8773 = vmatprep.subr.bf16.mxu0 0
  %8774 = vmatpush1.bf16.msra.mxu0 %v7506
  %8775 = vmatprep.subr.bf16.mxu0 0
  %8776 = vmatpush1.bf16.msra.mxu0 %v7509
  %8777 = vmatprep.subr.bf16.mxu0 0
  %8778 = vmatpush1.bf16.msra.mxu0 %v7512
  %8779 = vmatprep.subr.bf16.mxu0 0
  %8780 = vmatpush1.bf16.msra.mxu0 %v7515
  %8781 = vmatprep.subr.bf16.mxu0 0
  %8782 = vmatpush1.bf16.msra.mxu0 %v7518
  %8783 = vmatprep.subr.bf16.mxu0 0
  %8784 = vmatpush1.bf16.msra.mxu0 %v7521
  %8785 = vmatprep.subr.bf16.mxu0 0
  %8786 = vmatpush1.bf16.msra.mxu0 %v7524
  %8787 = vmatprep.mubr.bf16.mxu0 %v745
  %8788 = vmatmul.mubr.bf16.gmra.mrb[0].mxu0 %v731
  %v8789 = vpop.f32.mrb[0].mxu0
  %v8790 = vadd.f32 %v8750, %v8789
  %v8791 = vpop.f32.mrb[0].mxu0
  %v8792 = vpop.f32.mrb[0].mxu0
  %v8793 = vpop.f32.mrb[0].mxu0
  %8794 = vdwg.mxu0
  %8795 = vmatprep.subr.bf16.mxu0 0
  %8796 = vmatpush1.bf16.msra.mxu0 %v7527
  %8797 = vmatprep.subr.bf16.mxu0 0
  %8798 = vmatpush1.bf16.msra.mxu0 %v7530
  %8799 = vmatprep.subr.bf16.mxu0 0
  %8800 = vmatpush1.bf16.msra.mxu0 %v7533
  %8801 = vmatprep.subr.bf16.mxu0 0
  %8802 = vmatpush1.bf16.msra.mxu0 %v7536
  %8803 = vmatprep.subr.bf16.mxu0 0
  %8804 = vmatpush1.bf16.msra.mxu0 %v7539
  %8805 = vmatprep.subr.bf16.mxu0 0
  %8806 = vmatpush1.bf16.msra.mxu0 %v7542
  %8807 = vmatprep.subr.bf16.mxu0 0
  %8808 = vmatpush1.bf16.msra.mxu0 %v7545
  %8809 = vmatprep.subr.bf16.mxu0 0
  %8810 = vmatpush1.bf16.msra.mxu0 %v7548
  %8811 = vmatprep.subr.bf16.mxu0 0
  %8812 = vmatpush1.bf16.msra.mxu0 %v7551
  %8813 = vmatprep.subr.bf16.mxu0 0
  %8814 = vmatpush1.bf16.msra.mxu0 %v7554
  %8815 = vmatprep.subr.bf16.mxu0 0
  %8816 = vmatpush1.bf16.msra.mxu0 %v7557
  %8817 = vmatprep.subr.bf16.mxu0 0
  %8818 = vmatpush1.bf16.msra.mxu0 %v7560
  %8819 = vmatprep.subr.bf16.mxu0 0
  %8820 = vmatpush1.bf16.msra.mxu0 %v7563
  %8821 = vmatprep.subr.bf16.mxu0 0
  %8822 = vmatpush1.bf16.msra.mxu0 %v7566
  %8823 = vmatprep.subr.bf16.mxu0 0
  %8824 = vmatpush1.bf16.msra.mxu0 %v7569
  %8825 = vmatprep.subr.bf16.mxu0 0
  %8826 = vmatpush1.bf16.msra.mxu0 %v7572
  %8827 = vmatprep.mubr.bf16.mxu0 %v755
  %8828 = vmatmul.mubr.bf16.gmra.mrb[0].mxu0 %v753
  %v8829 = vpop.f32.mrb[0].mxu0
  %v8830 = vadd.f32 %v8790, %v8829
  %v8831 = vpop.f32.mrb[0].mxu0
  %v8832 = vpop.f32.mrb[0].mxu0
  %v8833 = vpop.f32.mrb[0].mxu0
  %8834 = vdwg.mxu0
  %8835 = vmatprep.subr.bf16.mxu0 0
  %8836 = vmatpush1.bf16.msra.mxu0 %v7575
  %8837 = vmatprep.subr.bf16.mxu0 0
  %8838 = vmatpush1.bf16.msra.mxu0 %v7578
  %8839 = vmatprep.subr.bf16.mxu0 0
  %8840 = vmatpush1.bf16.msra.mxu0 %v7581
  %8841 = vmatprep.subr.bf16.mxu0 0
  %8842 = vmatpush1.bf16.msra.mxu0 %v7584
  %8843 = vmatprep.subr.bf16.mxu0 0
  %8844 = vmatpush1.bf16.msra.mxu0 %v7587
  %8845 = vmatprep.subr.bf16.mxu0 0
  %8846 = vmatpush1.bf16.msra.mxu0 %v7590
  %8847 = vmatprep.subr.bf16.mxu0 0
  %8848 = vmatpush1.bf16.msra.mxu0 %v7593
  %8849 = vmatprep.subr.bf16.mxu0 0
  %8850 = vmatpush1.bf16.msra.mxu0 %v7596
  %8851 = vmatprep.subr.bf16.mxu0 0
  %8852 = vmatpush1.bf16.msra.mxu0 %v7599
  %8853 = vmatprep.subr.bf16.mxu0 0
  %8854 = vmatpush1.bf16.msra.mxu0 %v7602
  %8855 = vmatprep.subr.bf16.mxu0 0
  %8856 = vmatpush1.bf16.msra.mxu0 %v7605
  %8857 = vmatprep.subr.bf16.mxu0 0
  %8858 = vmatpush1.bf16.msra.mxu0 %v7608
  %8859 = vmatprep.subr.bf16.mxu0 0
  %8860 = vmatpush1.bf16.msra.mxu0 %v7611
  %8861 = vmatprep.subr.bf16.mxu0 0
  %8862 = vmatpush1.bf16.msra.mxu0 %v7614
  %8863 = vmatprep.subr.bf16.mxu0 0
  %8864 = vmatpush1.bf16.msra.mxu0 %v7617
  %8865 = vmatprep.subr.bf16.mxu0 0
  %8866 = vmatpush1.bf16.msra.mxu0 %v7620
  %8867 = vmatprep.mubr.bf16.mxu0 %v752
  %8868 = vmatmul.mubr.bf16.gmra.mrb[0].mxu0 %v738
  %v8869 = vpop.f32.mrb[0].mxu0
  %v8870 = vadd.f32 %v8830, %v8869
  %v8871 = vpop.f32.mrb[0].mxu0
  %v8872 = vpop.f32.mrb[0].mxu0
  %v8873 = vpop.f32.mrb[0].mxu0
  %8874 = vdwg.mxu0
  %8875 = vmatprep.subr.bf16.mxu0 0
  %8876 = vmatpush1.bf16.msra.mxu0 %v7623
  %8877 = vmatprep.subr.bf16.mxu0 0
  %8878 = vmatpush1.bf16.msra.mxu0 %v7626
  %8879 = vmatprep.subr.bf16.mxu0 0
  %8880 = vmatpush1.bf16.msra.mxu0 %v7629
  %8881 = vmatprep.subr.bf16.mxu0 0
  %8882 = vmatpush1.bf16.msra.mxu0 %v7632
  %8883 = vmatprep.subr.bf16.mxu0 0
  %8884 = vmatpush1.bf16.msra.mxu0 %v7635
  %8885 = vmatprep.subr.bf16.mxu0 0
  %8886 = vmatpush1.bf16.msra.mxu0 %v7638
  %8887 = vmatprep.subr.bf16.mxu0 0
  %8888 = vmatpush1.bf16.msra.mxu0 %v7641
  %8889 = vmatprep.subr.bf16.mxu0 0
  %8890 = vmatpush1.bf16.msra.mxu0 %v7644
  %8891 = vmatprep.subr.bf16.mxu0 0
  %8892 = vmatpush1.bf16.msra.mxu0 %v7647
  %8893 = vmatprep.subr.bf16.mxu0 0
  %8894 = vmatpush1.bf16.msra.mxu0 %v7650
  %8895 = vmatprep.subr.bf16.mxu0 0
  %8896 = vmatpush1.bf16.msra.mxu0 %v7653
  %8897 = vmatprep.subr.bf16.mxu0 0
  %8898 = vmatpush1.bf16.msra.mxu0 %v7656
  %8899 = vmatprep.subr.bf16.mxu0 0
  %8900 = vmatpush1.bf16.msra.mxu0 %v7659
  %8901 = vmatprep.subr.bf16.mxu0 0
  %8902 = vmatpush1.bf16.msra.mxu0 %v7662
  %8903 = vmatprep.subr.bf16.mxu0 0
  %8904 = vmatpush1.bf16.msra.mxu0 %v7665
  %8905 = vmatprep.subr.bf16.mxu0 0
  %8906 = vmatpush1.bf16.msra.mxu0 %v7668
  %8907 = vmatprep.mubr.bf16.mxu0 %v756
  %8908 = vmatmul.mubr.bf16.gmra.mrb[0].mxu0 %v754
  %v8909 = vpop.f32.mrb[0].mxu0
  %v8910 = vadd.f32 %v8870, %v8909
  %v8911 = vpop.f32.mrb[0].mxu0
  %v8912 = vpop.f32.mrb[0].mxu0
  %v8913 = vpop.f32.mrb[0].mxu0
  %8914 = vdwg.mxu0
  %8915 = vmatprep.subr.bf16.mxu0 0
  %8916 = vmatpush1.bf16.msra.mxu0 %v7671
  %8917 = vmatprep.subr.bf16.mxu0 0
  %8918 = vmatpush1.bf16.msra.mxu0 %v7674
  %8919 = vmatprep.subr.bf16.mxu0 0
  %8920 = vmatpush1.bf16.msra.mxu0 %v7677
  %8921 = vmatprep.subr.bf16.mxu0 0
  %8922 = vmatpush1.bf16.msra.mxu0 %v7680
  %8923 = vmatprep.subr.bf16.mxu0 0
  %8924 = vmatpush1.bf16.msra.mxu0 %v7683
  %8925 = vmatprep.subr.bf16.mxu0 0
  %8926 = vmatpush1.bf16.msra.mxu0 %v7686
  %8927 = vmatprep.subr.bf16.mxu0 0
  %8928 = vmatpush1.bf16.msra.mxu0 %v7689
  %8929 = vmatprep.subr.bf16.mxu0 0
  %8930 = vmatpush1.bf16.msra.mxu0 %v7692
  %8931 = vmatprep.subr.bf16.mxu0 0
  %8932 = vmatpush1.bf16.msra.mxu0 %v7695
  %8933 = vmatprep.subr.bf16.mxu0 0
  %8934 = vmatpush1.bf16.msra.mxu0 %v7698
  %8935 = vmatprep.subr.bf16.mxu0 0
  %8936 = vmatpush1.bf16.msra.mxu0 %v7701
  %8937 = vmatprep.subr.bf16.mxu0 0
  %8938 = vmatpush1.bf16.msra.mxu0 %v7704
  %8939 = vmatprep.subr.bf16.mxu0 0
  %8940 = vmatpush1.bf16.msra.mxu0 %v7707
  %8941 = vmatprep.subr.bf16.mxu0 0
  %8942 = vmatpush1.bf16.msra.mxu0 %v7710
  %8943 = vmatprep.subr.bf16.mxu0 0
  %8944 = vmatpush1.bf16.msra.mxu0 %v7713
  %8945 = vmatprep.subr.bf16.mxu0 0
  %8946 = vmatpush1.bf16.msra.mxu0 %v7716
  %8947 = vmatprep.mubr.bf16.mxu0 %v778
  %8948 = vmatmul.mubr.bf16.gmra.mrb[0].mxu0 %v771
  %v8949 = vpop.f32.mrb[0].mxu0
  %v8950 = vadd.f32 %v8910, %v8949
  %v8951 = vpop.f32.mrb[0].mxu0
  %v8952 = vpop.f32.mrb[0].mxu0
  %v8953 = vpop.f32.mrb[0].mxu0
  %8954 = vdwg.mxu0
  %8955 = vmatprep.subr.bf16.mxu0 0
  %8956 = vmatpush1.bf16.msra.mxu0 %v7719
  %8957 = vmatprep.subr.bf16.mxu0 0
  %8958 = vmatpush1.bf16.msra.mxu0 %v7722
  %8959 = vmatprep.subr.bf16.mxu0 0
  %8960 = vmatpush1.bf16.msra.mxu0 %v7725
  %8961 = vmatprep.subr.bf16.mxu0 0
  %8962 = vmatpush1.bf16.msra.mxu0 %v7728
  %8963 = vmatprep.subr.bf16.mxu0 0
  %8964 = vmatpush1.bf16.msra.mxu0 %v7731
  %8965 = vmatprep.subr.bf16.mxu0 0
  %8966 = vmatpush1.bf16.msra.mxu0 %v7734
  %8967 = vmatprep.subr.bf16.mxu0 0
  %8968 = vmatpush1.bf16.msra.mxu0 0
  %8969 = vmatprep.subr.bf16.mxu0 0
  %8970 = vmatpush1.bf16.msra.mxu0 0
  %8971 = vmatprep.subr.bf16.mxu0 0
  %8972 = vmatpush1.bf16.msra.mxu0 0
  %8973 = vmatprep.subr.bf16.mxu0 0
  %8974 = vmatpush1.bf16.msra.mxu0 0
  %8975 = vmatprep.subr.bf16.mxu0 0
  %8976 = vmatpush1.bf16.msra.mxu0 0
  %8977 = vmatprep.subr.bf16.mxu0 0
  %8978 = vmatpush1.bf16.msra.mxu0 0
  %8979 = vmatprep.subr.bf16.mxu0 0
  %8980 = vmatpush1.bf16.msra.mxu0 0
  %8981 = vmatprep.subr.bf16.mxu0 0
  %8982 = vmatpush1.bf16.msra.mxu0 0
  %8983 = vmatprep.subr.bf16.mxu0 0
  %8984 = vmatpush1.bf16.msra.mxu0 0
  %8985 = vmatprep.subr.bf16.mxu0 0
  %8986 = vmatpush1.bf16.msra.mxu0 0
  %8987 = vmatprep.mubr.bf16.mxu0 0
  %8988 = vmatmul.mubr.bf16.gmra.mrb[0].mxu0 %v3200
  %v8989 = vpop.f32.mrb[0].mxu0
  %v8990 = vadd.f32 %v8950, %v8989
  %v8991 = vpop.f32.mrb[0].mxu0
  %v8992 = vpop.f32.mrb[0].mxu0
  %v8993 = vpop.f32.mrb[0].mxu0
  %8994 = vdwg.mxu0
  %v8995 = vmax.f32 %v8589, 0.0
  %v8996 = vmax.f32 %v8591, 0.0
  %v8997 = vmax.f32 %v8990, 0.0
  %v8998 = vpack.c.bf16 %v8995, %v8995
  %v8999 = vpack.c.bf16 %v8996, %v8996
  %v9000 = vpack.c.bf16 %v8997, %v8997
  %v9001 = vld [vmem:[%s7] sm:$0xff]
  %v9002 = vld [vmem:[%s7 + $0x8] sm:$0xff]
  %v9003 = vld [vmem:[%s7 + $0x10] sm:$0xff]
  %v9004 = vld [vmem:[%s7 + $0x18] sm:$0xff]
  %v9005 = vld [vmem:[%s7 + $0x20] sm:$0xff]
  %v9006 = vld [vmem:[%s7 + $0x28] sm:$0xff]
  %v9007 = vld [vmem:[%s7 + $0x30] sm:$0xff]
  %v9008 = vld [vmem:[%s7 + $0x38] sm:$0xff]
  %v9009 = vld [vmem:[%s7 + $0x40] sm:$0xff]
  %v9010 = vld [vmem:[%s7 + $0x48] sm:$0xff]
  %v9011 = vld [vmem:[%s7 + $0x50] sm:$0xff]
  %v9012 = vld [vmem:[%s7 + $0x58] sm:$0xff]
  %v9013 = vld [vmem:[%s7 + $0x60] sm:$0xff]
  %v9014 = vld [vmem:[%s7 + $0x68] sm:$0xff]
  %v9015 = vld [vmem:[%s7 + $0x70] sm:$0xff]
  %v9016 = vld [vmem:[%s7 + $0x78] sm:$0xff]
  %v9017 = vld [vmem:[%s7 + $0x80] sm:$0xff]
  %v9018 = vld [vmem:[%s7 + $0x88] sm:$0xff]
  %v9019 = vld [vmem:[%s7 + $0x90] sm:$0xff]
  %v9020 = vld [vmem:[%s7 + $0x98] sm:$0xff]
  %v9021 = vld [vmem:[%s7 + $0xa0] sm:$0xff]
  %v9022 = vld [vmem:[%s7 + $0xa8] sm:$0xff]
  %v9023 = vld [vmem:[%s7 + $0xb0] sm:$0xff]
  %v9024 = vld [vmem:[%s7 + $0xb8] sm:$0xff]
  %v9025 = vld [vmem:[%s7 + $0xc0] sm:$0xff]
  %v9026 = vld [vmem:[%s7 + $0xc8] sm:$0xff]
  %v9027 = vld [vmem:[%s7 + $0xd0] sm:$0xff]
  %v9028 = vld [vmem:[%s7 + $0xd8] sm:$0xff]
  %v9029 = vld [vmem:[%s7 + $0xe0] sm:$0xff]
  %v9030 = vld [vmem:[%s7 + $0xe8] sm:$0xff]
  %v9031 = vld [vmem:[%s7 + $0xf0] sm:$0xff]
  %v9032 = vld [vmem:[%s7 + $0xf8] sm:$0xff]
  %v9033 = vld [vmem:[%s7 + $0x100] sm:$0xff]
  %v9034 = vld [vmem:[%s7 + $0x108] sm:$0xff]
  %v9035 = vld [vmem:[%s7 + $0x110] sm:$0xff]
  %v9036 = vld [vmem:[%s7 + $0x118] sm:$0xff]
  %v9037 = vld [vmem:[%s7 + $0x120] sm:$0xff]
  %v9038 = vld [vmem:[%s7 + $0x128] sm:$0xff]
  %v9039 = vld [vmem:[%s7 + $0x130] sm:$0xff]
  %v9040 = vld [vmem:[%s7 + $0x138] sm:$0xff]
  %v9041 = vld [vmem:[%s7 + $0x140] sm:$0xff]
  %v9042 = vld [vmem:[%s7 + $0x148] sm:$0xff]
  %v9043 = vld [vmem:[%s7 + $0x150] sm:$0xff]
  %v9044 = vld [vmem:[%s7 + $0x158] sm:$0xff]
  %v9045 = vld [vmem:[%s7 + $0x160] sm:$0xff]
  %v9046 = vld [vmem:[%s7 + $0x168] sm:$0xff]
  %v9047 = vld [vmem:[%s7 + $0x170] sm:$0xff]
  %v9048 = vld [vmem:[%s7 + $0x178] sm:$0xff]
  %v9097 = vunpack.c.l.b16 %v9001
  %v9098 = vunpack.c.h.b16 %v9001
  %v9099 = vunpack.c.l.b16 %v9002
  %v9100 = vunpack.c.h.b16 %v9002
  %v9101 = vunpack.c.l.b16 %v9003
  %v9102 = vunpack.c.h.b16 %v9003
  %v9103 = vunpack.c.l.b16 %v9004
  %v9104 = vunpack.c.h.b16 %v9004
  %v9105 = vunpack.c.l.b16 %v9005
  %v9106 = vunpack.c.h.b16 %v9005
  %v9107 = vunpack.c.l.b16 %v9006
  %v9108 = vunpack.c.h.b16 %v9006
  %v9109 = vunpack.c.l.b16 %v9007
  %v9110 = vunpack.c.h.b16 %v9007
  %v9111 = vunpack.c.l.b16 %v9008
  %v9112 = vunpack.c.h.b16 %v9008
  %v9113 = vunpack.c.l.b16 %v9009
  %v9114 = vunpack.c.h.b16 %v9009
  %v9115 = vunpack.c.l.b16 %v9010
  %v9116 = vunpack.c.h.b16 %v9010
  %v9117 = vunpack.c.l.b16 %v9011
  %v9118 = vunpack.c.h.b16 %v9011
  %v9119 = vunpack.c.l.b16 %v9012
  %v9120 = vunpack.c.h.b16 %v9012
  %v9121 = vunpack.c.l.b16 %v9013
  %v9122 = vunpack.c.h.b16 %v9013
  %v9123 = vunpack.c.l.b16 %v9014
  %v9124 = vunpack.c.h.b16 %v9014
  %v9125 = vunpack.c.l.b16 %v9015
  %v9126 = vunpack.c.h.b16 %v9015
  %v9127 = vunpack.c.l.b16 %v9016
  %v9128 = vunpack.c.h.b16 %v9016
  %v9129 = vunpack.c.l.b16 %v9017
  %v9130 = vunpack.c.h.b16 %v9017
  %v9131 = vunpack.c.l.b16 %v9018
  %v9132 = vunpack.c.h.b16 %v9018
  %v9133 = vunpack.c.l.b16 %v9019
  %v9134 = vunpack.c.h.b16 %v9019
  %v9135 = vunpack.c.l.b16 %v9020
  %v9136 = vunpack.c.h.b16 %v9020
  %v9137 = vunpack.c.l.b16 %v9021
  %v9138 = vunpack.c.h.b16 %v9021
  %v9139 = vunpack.c.l.b16 %v9022
  %v9140 = vunpack.c.h.b16 %v9022
  %v9141 = vunpack.c.l.b16 %v9023
  %v9142 = vunpack.c.h.b16 %v9023
  %v9143 = vunpack.c.l.b16 %v9024
  %v9144 = vunpack.c.h.b16 %v9024
  %v9145 = vunpack.c.l.b16 %v9025
  %v9146 = vunpack.c.h.b16 %v9025
  %v9147 = vunpack.c.l.b16 %v9026
  %v9148 = vunpack.c.h.b16 %v9026
  %v9149 = vunpack.c.l.b16 %v9027
  %v9150 = vunpack.c.h.b16 %v9027
  %v9151 = vunpack.c.l.b16 %v9028
  %v9152 = vunpack.c.h.b16 %v9028
  %v9153 = vunpack.c.l.b16 %v9029
  %v9154 = vunpack.c.h.b16 %v9029
  %v9155 = vunpack.c.l.b16 %v9030
  %v9156 = vunpack.c.h.b16 %v9030
  %v9157 = vunpack.c.l.b16 %v9031
  %v9158 = vunpack.c.h.b16 %v9031
  %v9159 = vunpack.c.l.b16 %v9032
  %v9160 = vunpack.c.h.b16 %v9032
  %v9161 = vunpack.c.l.b16 %v9033
  %v9162 = vunpack.c.h.b16 %v9033
  %v9163 = vunpack.c.l.b16 %v9034
  %v9164 = vunpack.c.h.b16 %v9034
  %v9165 = vunpack.c.l.b16 %v9035
  %v9166 = vunpack.c.h.b16 %v9035
  %v9167 = vunpack.c.l.b16 %v9036
  %v9168 = vunpack.c.h.b16 %v9036
  %v9169 = vunpack.c.l.b16 %v9037
  %v9170 = vunpack.c.h.b16 %v9037
  %v9171 = vunpack.c.l.b16 %v9038
  %v9172 = vunpack.c.h.b16 %v9038
  %v9173 = vunpack.c.l.b16 %v9039
  %v9174 = vunpack.c.h.b16 %v9039
  %v9175 = vunpack.c.l.b16 %v9040
  %v9176 = vunpack.c.h.b16 %v9040
  %v9177 = vunpack.c.l.b16 %v9041
  %v9178 = vunpack.c.h.b16 %v9041
  %v9179 = vunpack.c.l.b16 %v9042
  %v9180 = vunpack.c.h.b16 %v9042
  %v9181 = vunpack.c.l.b16 %v9043
  %v9182 = vunpack.c.h.b16 %v9043
  %v9183 = vunpack.c.l.b16 %v9044
  %v9184 = vunpack.c.h.b16 %v9044
  %v9185 = vunpack.c.l.b16 %v9045
  %v9186 = vunpack.c.h.b16 %v9045
  %v9187 = vunpack.c.l.b16 %v9046
  %v9188 = vunpack.c.h.b16 %v9046
  %v9189 = vunpack.c.l.b16 %v9047
  %v9190 = vunpack.c.h.b16 %v9047
  %v9191 = vunpack.c.l.b16 %v9048
  %v9192 = vunpack.c.h.b16 %v9048
  %v9193 = vpack.c.b16 %v9099, %v9097
  %v9194 = vpack.c.b16 %v9100, %v9098
  %v9195 = vpack.c.b16 %v9103, %v9101
  %v9196 = vpack.c.b16 %v9104, %v9102
  %v9197 = vpack.c.b16 %v9107, %v9105
  %v9198 = vpack.c.b16 %v9108, %v9106
  %v9199 = vpack.c.b16 %v9111, %v9109
  %v9200 = vpack.c.b16 %v9112, %v9110
  %v9201 = vpack.c.b16 %v9115, %v9113
  %v9202 = vpack.c.b16 %v9116, %v9114
  %v9203 = vpack.c.b16 %v9119, %v9117
  %v9204 = vpack.c.b16 %v9120, %v9118
  %v9205 = vpack.c.b16 %v9123, %v9121
  %v9206 = vpack.c.b16 %v9124, %v9122
  %v9207 = vpack.c.b16 %v9127, %v9125
  %v9208 = vpack.c.b16 %v9128, %v9126
  %v9209 = vpack.c.b16 %v9131, %v9129
  %v9210 = vpack.c.b16 %v9132, %v9130
  %v9211 = vpack.c.b16 %v9135, %v9133
  %v9212 = vpack.c.b16 %v9136, %v9134
  %v9213 = vpack.c.b16 %v9139, %v9137
  %v9214 = vpack.c.b16 %v9140, %v9138
  %v9215 = vpack.c.b16 %v9143, %v9141
  %v9216 = vpack.c.b16 %v9144, %v9142
  %v9217 = vpack.c.b16 %v9147, %v9145
  %v9218 = vpack.c.b16 %v9148, %v9146
  %v9219 = vpack.c.b16 %v9151, %v9149
  %v9220 = vpack.c.b16 %v9152, %v9150
  %v9221 = vpack.c.b16 %v9155, %v9153
  %v9222 = vpack.c.b16 %v9156, %v9154
  %v9223 = vpack.c.b16 %v9159, %v9157
  %v9224 = vpack.c.b16 %v9160, %v9158
  %v9225 = vpack.c.b16 %v9163, %v9161
  %v9226 = vpack.c.b16 %v9164, %v9162
  %v9227 = vpack.c.b16 %v9167, %v9165
  %v9228 = vpack.c.b16 %v9168, %v9166
  %v9229 = vpack.c.b16 %v9171, %v9169
  %v9230 = vpack.c.b16 %v9172, %v9170
  %v9231 = vpack.c.b16 %v9175, %v9173
  %v9232 = vpack.c.b16 %v9176, %v9174
  %v9233 = vpack.c.b16 %v9179, %v9177
  %v9234 = vpack.c.b16 %v9180, %v9178
  %v9235 = vpack.c.b16 %v9183, %v9181
  %v9236 = vpack.c.b16 %v9184, %v9182
  %v9237 = vpack.c.b16 %v9187, %v9185
  %v9238 = vpack.c.b16 %v9188, %v9186
  %v9239 = vpack.c.b16 %v9191, %v9189
  %v9240 = vpack.c.b16 %v9192, %v9190
  %9289 = vmatprep.subr.bf16.mxu0 %v9194
  %9290 = vmatpush1.bf16.msra.mxu0 %v9193
  %9291 = vmatprep.subr.bf16.mxu0 %v9196
  %9292 = vmatpush1.bf16.msra.mxu0 %v9195
  %9293 = vmatprep.subr.bf16.mxu0 %v9198
  %9294 = vmatpush1.bf16.msra.mxu0 %v9197
  %9295 = vmatprep.subr.bf16.mxu0 %v9200
  %9296 = vmatpush1.bf16.msra.mxu0 %v9199
  %9297 = vmatprep.subr.bf16.mxu0 %v9202
  %9298 = vmatpush1.bf16.msra.mxu0 %v9201
  %9299 = vmatprep.subr.bf16.mxu0 %v9204
  %9300 = vmatpush1.bf16.msra.mxu0 %v9203
  %9301 = vmatprep.subr.bf16.mxu0 %v9206
  %9302 = vmatpush1.bf16.msra.mxu0 %v9205
  %9303 = vmatprep.subr.bf16.mxu0 %v9208
  %9304 = vmatpush1.bf16.msra.mxu0 %v9207
  %9305 = vmatprep.subr.bf16.mxu0 %v9210
  %9306 = vmatpush1.bf16.msra.mxu0 %v9209
  %9307 = vmatprep.subr.bf16.mxu0 %v9212
  %9308 = vmatpush1.bf16.msra.mxu0 %v9211
  %9309 = vmatprep.subr.bf16.mxu0 %v9214
  %9310 = vmatpush1.bf16.msra.mxu0 %v9213
  %9311 = vmatprep.subr.bf16.mxu0 %v9216
  %9312 = vmatpush1.bf16.msra.mxu0 %v9215
  %9313 = vmatprep.subr.bf16.mxu0 %v9218
  %9314 = vmatpush1.bf16.msra.mxu0 %v9217
  %9315 = vmatprep.subr.bf16.mxu0 %v9220
  %9316 = vmatpush1.bf16.msra.mxu0 %v9219
  %9317 = vmatprep.subr.bf16.mxu0 %v9222
  %9318 = vmatpush1.bf16.msra.mxu0 %v9221
  %9319 = vmatprep.subr.bf16.mxu0 %v9224
  %9320 = vmatpush1.bf16.msra.mxu0 %v9223
  %9321 = vmatprep.mubr.bf16.mxu0 %v8999
  %9322 = vmatmul.mubr.bf16.gmra.mrb[0].mxu0 %v8998
  %v9323 = vpop.f32.mrb[0].mxu0
  %v9324 = vadd.f32 0.0, %v9323
  %v9325 = vpop.f32.mrb[0].mxu0
  %v9326 = vadd.f32 0.0, %v9325
  %v9327 = vpop.f32.mrb[0].mxu0
  %v9328 = vpop.f32.mrb[0].mxu0
  %9329 = vdwg.mxu0
  %9330 = vmatprep.subr.bf16.mxu0 %v9226
  %9331 = vmatpush1.bf16.msra.mxu0 %v9225
  %9332 = vmatprep.subr.bf16.mxu0 %v9228
  %9333 = vmatpush1.bf16.msra.mxu0 %v9227
  %9334 = vmatprep.subr.bf16.mxu0 %v9230
  %9335 = vmatpush1.bf16.msra.mxu0 %v9229
  %9336 = vmatprep.subr.bf16.mxu0 %v9232
  %9337 = vmatpush1.bf16.msra.mxu0 %v9231
  %9338 = vmatprep.subr.bf16.mxu0 %v9234
  %9339 = vmatpush1.bf16.msra.mxu0 %v9233
  %9340 = vmatprep.subr.bf16.mxu0 %v9236
  %9341 = vmatpush1.bf16.msra.mxu0 %v9235
  %9342 = vmatprep.subr.bf16.mxu0 %v9238
  %9343 = vmatpush1.bf16.msra.mxu0 %v9237
  %9344 = vmatprep.subr.bf16.mxu0 %v9240
  %9345 = vmatpush1.bf16.msra.mxu0 %v9239
  %9346 = vmatprep.subr.bf16.mxu0 0
  %9347 = vmatpush1.bf16.msra.mxu0 0
  %9348 = vmatprep.subr.bf16.mxu0 0
  %9349 = vmatpush1.bf16.msra.mxu0 0
  %9350 = vmatprep.subr.bf16.mxu0 0
  %9351 = vmatpush1.bf16.msra.mxu0 0
  %9352 = vmatprep.subr.bf16.mxu0 0
  %9353 = vmatpush1.bf16.msra.mxu0 0
  %9354 = vmatprep.subr.bf16.mxu0 0
  %9355 = vmatpush1.bf16.msra.mxu0 0
  %9356 = vmatprep.subr.bf16.mxu0 0
  %9357 = vmatpush1.bf16.msra.mxu0 0
  %9358 = vmatprep.subr.bf16.mxu0 0
  %9359 = vmatpush1.bf16.msra.mxu0 0
  %9360 = vmatprep.subr.bf16.mxu0 0
  %9361 = vmatpush1.bf16.msra.mxu0 0
  %9362 = vmatprep.mubr.bf16.mxu0 0
  %9363 = vmatmul.mubr.bf16.gmra.mrb[0].mxu0 %v9000
  %v9364 = vpop.f32.mrb[0].mxu0
  %v9365 = vadd.f32 %v9324, %v9364
  %v9366 = vpop.f32.mrb[0].mxu0
  %v9367 = vadd.f32 %v9326, %v9366
  %v9368 = vpop.f32.mrb[0].mxu0
  %v9369 = vpop.f32.mrb[0].mxu0
  %9370 = vdwg.mxu0
  %s9371 = scalar_lea.vmem %s7, 384
  %v9372 = vld [vmem:[%s9371] sm:$0xff]
  %v9373 = vld [vmem:[%s9371 + $0x8] sm:$0xff]
  %v9374 = vld [vmem:[%s9371 + $0x10] sm:$0xff]
  %v9375 = vld [vmem:[%s9371 + $0x18] sm:$0xff]
  %v9376 = vld [vmem:[%s9371 + $0x20] sm:$0xff]
  %v9377 = vld [vmem:[%s9371 + $0x28] sm:$0xff]
  %v9378 = vld [vmem:[%s9371 + $0x30] sm:$0xff]
  %v9379 = vld [vmem:[%s9371 + $0x38] sm:$0xff]
  %v9380 = vld [vmem:[%s9371 + $0x40] sm:$0xff]
  %v9381 = vld [vmem:[%s9371 + $0x48] sm:$0xff]
  %v9382 = vld [vmem:[%s9371 + $0x50] sm:$0xff]
  %v9383 = vld [vmem:[%s9371 + $0x58] sm:$0xff]
  %v9384 = vld [vmem:[%s9371 + $0x60] sm:$0xff]
  %v9385 = vld [vmem:[%s9371 + $0x68] sm:$0xff]
  %v9386 = vld [vmem:[%s9371 + $0x70] sm:$0xff]
  %v9387 = vld [vmem:[%s9371 + $0x78] sm:$0xff]
  %v9388 = vld [vmem:[%s9371 + $0x80] sm:$0xff]
  %v9389 = vld [vmem:[%s9371 + $0x88] sm:$0xff]
  %v9390 = vld [vmem:[%s9371 + $0x90] sm:$0xff]
  %v9391 = vld [vmem:[%s9371 + $0x98] sm:$0xff]
  %v9392 = vld [vmem:[%s9371 + $0xa0] sm:$0xff]
  %v9393 = vld [vmem:[%s9371 + $0xa8] sm:$0xff]
  %v9394 = vld [vmem:[%s9371 + $0xb0] sm:$0xff]
  %v9395 = vld [vmem:[%s9371 + $0xb8] sm:$0xff]
  %v9396 = vld [vmem:[%s9371 + $0xc0] sm:$0xff]
  %v9397 = vld [vmem:[%s9371 + $0xc8] sm:$0xff]
  %v9398 = vld [vmem:[%s9371 + $0xd0] sm:$0xff]
  %v9399 = vld [vmem:[%s9371 + $0xd8] sm:$0xff]
  %v9400 = vld [vmem:[%s9371 + $0xe0] sm:$0xff]
  %v9401 = vld [vmem:[%s9371 + $0xe8] sm:$0xff]
  %v9402 = vld [vmem:[%s9371 + $0xf0] sm:$0xff]
  %v9403 = vld [vmem:[%s9371 + $0xf8] sm:$0xff]
  %v9404 = vld [vmem:[%s9371 + $0x100] sm:$0xff]
  %v9405 = vld [vmem:[%s9371 + $0x108] sm:$0xff]
  %v9406 = vld [vmem:[%s9371 + $0x110] sm:$0xff]
  %v9407 = vld [vmem:[%s9371 + $0x118] sm:$0xff]
  %v9408 = vld [vmem:[%s9371 + $0x120] sm:$0xff]
  %v9409 = vld [vmem:[%s9371 + $0x128] sm:$0xff]
  %v9410 = vld [vmem:[%s9371 + $0x130] sm:$0xff]
  %v9411 = vld [vmem:[%s9371 + $0x138] sm:$0xff]
  %v9412 = vld [vmem:[%s9371 + $0x140] sm:$0xff]
  %v9413 = vld [vmem:[%s9371 + $0x148] sm:$0xff]
  %v9414 = vld [vmem:[%s9371 + $0x150] sm:$0xff]
  %v9415 = vld [vmem:[%s9371 + $0x158] sm:$0xff]
  %v9416 = vld [vmem:[%s9371 + $0x160] sm:$0xff]
  %v9417 = vld [vmem:[%s9371 + $0x168] sm:$0xff]
  %v9418 = vld [vmem:[%s9371 + $0x170] sm:$0xff]
  %v9419 = vld [vmem:[%s9371 + $0x178] sm:$0xff]
  %v9468 = vunpack.c.l.b16 %v9372
  %v9469 = vunpack.c.h.b16 %v9372
  %v9470 = vunpack.c.l.b16 %v9373
  %v9471 = vunpack.c.h.b16 %v9373
  %v9472 = vunpack.c.l.b16 %v9374
  %v9473 = vunpack.c.h.b16 %v9374
  %v9474 = vunpack.c.l.b16 %v9375
  %v9475 = vunpack.c.h.b16 %v9375
  %v9476 = vunpack.c.l.b16 %v9376
  %v9477 = vunpack.c.h.b16 %v9376
  %v9478 = vunpack.c.l.b16 %v9377
  %v9479 = vunpack.c.h.b16 %v9377
  %v9480 = vunpack.c.l.b16 %v9378
  %v9481 = vunpack.c.h.b16 %v9378
  %v9482 = vunpack.c.l.b16 %v9379
  %v9483 = vunpack.c.h.b16 %v9379
  %v9484 = vunpack.c.l.b16 %v9380
  %v9485 = vunpack.c.h.b16 %v9380
  %v9486 = vunpack.c.l.b16 %v9381
  %v9487 = vunpack.c.h.b16 %v9381
  %v9488 = vunpack.c.l.b16 %v9382
  %v9489 = vunpack.c.h.b16 %v9382
  %v9490 = vunpack.c.l.b16 %v9383
  %v9491 = vunpack.c.h.b16 %v9383
  %v9492 = vunpack.c.l.b16 %v9384
  %v9493 = vunpack.c.h.b16 %v9384
  %v9494 = vunpack.c.l.b16 %v9385
  %v9495 = vunpack.c.h.b16 %v9385
  %v9496 = vunpack.c.l.b16 %v9386
  %v9497 = vunpack.c.h.b16 %v9386
  %v9498 = vunpack.c.l.b16 %v9387
  %v9499 = vunpack.c.h.b16 %v9387
  %v9500 = vunpack.c.l.b16 %v9388
  %v9501 = vunpack.c.h.b16 %v9388
  %v9502 = vunpack.c.l.b16 %v9389
  %v9503 = vunpack.c.h.b16 %v9389
  %v9504 = vunpack.c.l.b16 %v9390
  %v9505 = vunpack.c.h.b16 %v9390
  %v9506 = vunpack.c.l.b16 %v9391
  %v9507 = vunpack.c.h.b16 %v9391
  %v9508 = vunpack.c.l.b16 %v9392
  %v9509 = vunpack.c.h.b16 %v9392
  %v9510 = vunpack.c.l.b16 %v9393
  %v9511 = vunpack.c.h.b16 %v9393
  %v9512 = vunpack.c.l.b16 %v9394
  %v9513 = vunpack.c.h.b16 %v9394
  %v9514 = vunpack.c.l.b16 %v9395
  %v9515 = vunpack.c.h.b16 %v9395
  %v9516 = vunpack.c.l.b16 %v9396
  %v9517 = vunpack.c.h.b16 %v9396
  %v9518 = vunpack.c.l.b16 %v9397
  %v9519 = vunpack.c.h.b16 %v9397
  %v9520 = vunpack.c.l.b16 %v9398
  %v9521 = vunpack.c.h.b16 %v9398
  %v9522 = vunpack.c.l.b16 %v9399
  %v9523 = vunpack.c.h.b16 %v9399
  %v9524 = vunpack.c.l.b16 %v9400
  %v9525 = vunpack.c.h.b16 %v9400
  %v9526 = vunpack.c.l.b16 %v9401
  %v9527 = vunpack.c.h.b16 %v9401
  %v9528 = vunpack.c.l.b16 %v9402
  %v9529 = vunpack.c.h.b16 %v9402
  %v9530 = vunpack.c.l.b16 %v9403
  %v9531 = vunpack.c.h.b16 %v9403
  %v9532 = vunpack.c.l.b16 %v9404
  %v9533 = vunpack.c.h.b16 %v9404
  %v9534 = vunpack.c.l.b16 %v9405
  %v9535 = vunpack.c.h.b16 %v9405
  %v9536 = vunpack.c.l.b16 %v9406
  %v9537 = vunpack.c.h.b16 %v9406
  %v9538 = vunpack.c.l.b16 %v9407
  %v9539 = vunpack.c.h.b16 %v9407
  %v9540 = vunpack.c.l.b16 %v9408
  %v9541 = vunpack.c.h.b16 %v9408
  %v9542 = vunpack.c.l.b16 %v9409
  %v9543 = vunpack.c.h.b16 %v9409
  %v9544 = vunpack.c.l.b16 %v9410
  %v9545 = vunpack.c.h.b16 %v9410
  %v9546 = vunpack.c.l.b16 %v9411
  %v9547 = vunpack.c.h.b16 %v9411
  %v9548 = vunpack.c.l.b16 %v9412
  %v9549 = vunpack.c.h.b16 %v9412
  %v9550 = vunpack.c.l.b16 %v9413
  %v9551 = vunpack.c.h.b16 %v9413
  %v9552 = vunpack.c.l.b16 %v9414
  %v9553 = vunpack.c.h.b16 %v9414
  %v9554 = vunpack.c.l.b16 %v9415
  %v9555 = vunpack.c.h.b16 %v9415
  %v9556 = vunpack.c.l.b16 %v9416
  %v9557 = vunpack.c.h.b16 %v9416
  %v9558 = vunpack.c.l.b16 %v9417
  %v9559 = vunpack.c.h.b16 %v9417
  %v9560 = vunpack.c.l.b16 %v9418
  %v9561 = vunpack.c.h.b16 %v9418
  %v9562 = vunpack.c.l.b16 %v9419
  %v9563 = vunpack.c.h.b16 %v9419
  %v9564 = vpack.c.b16 %v9470, %v9468
  %v9565 = vpack.c.b16 %v9471, %v9469
  %v9566 = vpack.c.b16 %v9474, %v9472
  %v9567 = vpack.c.b16 %v9475, %v9473
  %v9568 = vpack.c.b16 %v9478, %v9476
  %v9569 = vpack.c.b16 %v9479, %v9477
  %v9570 = vpack.c.b16 %v9482, %v9480
  %v9571 = vpack.c.b16 %v9483, %v9481
  %v9572 = vpack.c.b16 %v9486, %v9484
  %v9573 = vpack.c.b16 %v9487, %v9485
  %v9574 = vpack.c.b16 %v9490, %v9488
  %v9575 = vpack.c.b16 %v9491, %v9489
  %v9576 = vpack.c.b16 %v9494, %v9492
  %v9577 = vpack.c.b16 %v9495, %v9493
  %v9578 = vpack.c.b16 %v9498, %v9496
  %v9579 = vpack.c.b16 %v9499, %v9497
  %v9580 = vpack.c.b16 %v9502, %v9500
  %v9581 = vpack.c.b16 %v9503, %v9501
  %v9582 = vpack.c.b16 %v9506, %v9504
  %v9583 = vpack.c.b16 %v9507, %v9505
  %v9584 = vpack.c.b16 %v9510, %v9508
  %v9585 = vpack.c.b16 %v9511, %v9509
  %v9586 = vpack.c.b16 %v9514, %v9512
  %v9587 = vpack.c.b16 %v9515, %v9513
  %v9588 = vpack.c.b16 %v9518, %v9516
  %v9589 = vpack.c.b16 %v9519, %v9517
  %v9590 = vpack.c.b16 %v9522, %v9520
  %v9591 = vpack.c.b16 %v9523, %v9521
  %v9592 = vpack.c.b16 %v9526, %v9524
  %v9593 = vpack.c.b16 %v9527, %v9525
  %v9594 = vpack.c.b16 %v9530, %v9528
  %v9595 = vpack.c.b16 %v9531, %v9529
  %v9596 = vpack.c.b16 %v9534, %v9532
  %v9597 = vpack.c.b16 %v9535, %v9533
  %v9598 = vpack.c.b16 %v9538, %v9536
  %v9599 = vpack.c.b16 %v9539, %v9537
  %v9600 = vpack.c.b16 %v9542, %v9540
  %v9601 = vpack.c.b16 %v9543, %v9541
  %v9602 = vpack.c.b16 %v9546, %v9544
  %v9603 = vpack.c.b16 %v9547, %v9545
  %v9604 = vpack.c.b16 %v9550, %v9548
  %v9605 = vpack.c.b16 %v9551, %v9549
  %v9606 = vpack.c.b16 %v9554, %v9552
  %v9607 = vpack.c.b16 %v9555, %v9553
  %v9608 = vpack.c.b16 %v9558, %v9556
  %v9609 = vpack.c.b16 %v9559, %v9557
  %v9610 = vpack.c.b16 %v9562, %v9560
  %v9611 = vpack.c.b16 %v9563, %v9561
  %9660 = vmatprep.subr.bf16.mxu0 %v9565
  %9661 = vmatpush1.bf16.msra.mxu0 %v9564
  %9662 = vmatprep.subr.bf16.mxu0 %v9567
  %9663 = vmatpush1.bf16.msra.mxu0 %v9566
  %9664 = vmatprep.subr.bf16.mxu0 %v9569
  %9665 = vmatpush1.bf16.msra.mxu0 %v9568
  %9666 = vmatprep.subr.bf16.mxu0 %v9571
  %9667 = vmatpush1.bf16.msra.mxu0 %v9570
  %9668 = vmatprep.subr.bf16.mxu0 %v9573
  %9669 = vmatpush1.bf16.msra.mxu0 %v9572
  %9670 = vmatprep.subr.bf16.mxu0 %v9575
  %9671 = vmatpush1.bf16.msra.mxu0 %v9574
  %9672 = vmatprep.subr.bf16.mxu0 %v9577
  %9673 = vmatpush1.bf16.msra.mxu0 %v9576
  %9674 = vmatprep.subr.bf16.mxu0 %v9579
  %9675 = vmatpush1.bf16.msra.mxu0 %v9578
  %9676 = vmatprep.subr.bf16.mxu0 %v9581
  %9677 = vmatpush1.bf16.msra.mxu0 %v9580
  %9678 = vmatprep.subr.bf16.mxu0 %v9583
  %9679 = vmatpush1.bf16.msra.mxu0 %v9582
  %9680 = vmatprep.subr.bf16.mxu0 %v9585
  %9681 = vmatpush1.bf16.msra.mxu0 %v9584
  %9682 = vmatprep.subr.bf16.mxu0 %v9587
  %9683 = vmatpush1.bf16.msra.mxu0 %v9586
  %9684 = vmatprep.subr.bf16.mxu0 %v9589
  %9685 = vmatpush1.bf16.msra.mxu0 %v9588
  %9686 = vmatprep.subr.bf16.mxu0 %v9591
  %9687 = vmatpush1.bf16.msra.mxu0 %v9590
  %9688 = vmatprep.subr.bf16.mxu0 %v9593
  %9689 = vmatpush1.bf16.msra.mxu0 %v9592
  %9690 = vmatprep.subr.bf16.mxu0 %v9595
  %9691 = vmatpush1.bf16.msra.mxu0 %v9594
  %9692 = vmatprep.mubr.bf16.mxu0 %v8999
  %9693 = vmatmul.mubr.bf16.gmra.mrb[0].mxu0 %v8998
  %v9694 = vpop.f32.mrb[0].mxu0
  %v9695 = vadd.f32 0.0, %v9694
  %v9696 = vpop.f32.mrb[0].mxu0
  %v9697 = vadd.f32 0.0, %v9696
  %v9698 = vpop.f32.mrb[0].mxu0
  %v9699 = vpop.f32.mrb[0].mxu0
  %9700 = vdwg.mxu0
  %9701 = vmatprep.subr.bf16.mxu0 %v9597
  %9702 = vmatpush1.bf16.msra.mxu0 %v9596
  %9703 = vmatprep.subr.bf16.mxu0 %v9599
  %9704 = vmatpush1.bf16.msra.mxu0 %v9598
  %9705 = vmatprep.subr.bf16.mxu0 %v9601
  %9706 = vmatpush1.bf16.msra.mxu0 %v9600
  %9707 = vmatprep.subr.bf16.mxu0 %v9603
  %9708 = vmatpush1.bf16.msra.mxu0 %v9602
  %9709 = vmatprep.subr.bf16.mxu0 %v9605
  %9710 = vmatpush1.bf16.msra.mxu0 %v9604
  %9711 = vmatprep.subr.bf16.mxu0 %v9607
  %9712 = vmatpush1.bf16.msra.mxu0 %v9606
  %9713 = vmatprep.subr.bf16.mxu0 %v9609
  %9714 = vmatpush1.bf16.msra.mxu0 %v9608
  %9715 = vmatprep.subr.bf16.mxu0 %v9611
  %9716 = vmatpush1.bf16.msra.mxu0 %v9610
  %9717 = vmatprep.subr.bf16.mxu0 0
  %9718 = vmatpush1.bf16.msra.mxu0 0
  %9719 = vmatprep.subr.bf16.mxu0 0
  %9720 = vmatpush1.bf16.msra.mxu0 0
  %9721 = vmatprep.subr.bf16.mxu0 0
  %9722 = vmatpush1.bf16.msra.mxu0 0
  %9723 = vmatprep.subr.bf16.mxu0 0
  %9724 = vmatpush1.bf16.msra.mxu0 0
  %9725 = vmatprep.subr.bf16.mxu0 0
  %9726 = vmatpush1.bf16.msra.mxu0 0
  %9727 = vmatprep.subr.bf16.mxu0 0
  %9728 = vmatpush1.bf16.msra.mxu0 0
  %9729 = vmatprep.subr.bf16.mxu0 0
  %9730 = vmatpush1.bf16.msra.mxu0 0
  %9731 = vmatprep.subr.bf16.mxu0 0
  %9732 = vmatpush1.bf16.msra.mxu0 0
  %9733 = vmatprep.mubr.bf16.mxu0 0
  %9734 = vmatmul.mubr.bf16.gmra.mrb[0].mxu0 %v9000
  %v9735 = vpop.f32.mrb[0].mxu0
  %v9736 = vadd.f32 %v9695, %v9735
  %v9737 = vpop.f32.mrb[0].mxu0
  %v9738 = vadd.f32 %v9697, %v9737
  %v9739 = vpop.f32.mrb[0].mxu0
  %v9740 = vpop.f32.mrb[0].mxu0
  %9741 = vdwg.mxu0
  %v9742 = vmax.f32 %v9365, %v9736
  %v9743 = vmax.f32 %v9367, %v9738
  %s9744 = scalar_lea.vmem %s7, 768
  %v9745 = vld [vmem:[%s9744] sm:$0xff]
  %v9746 = vld [vmem:[%s9744 + $0x8] sm:$0xff]
  %v9747 = vld [vmem:[%s9744 + $0x10] sm:$0xff]
  %v9748 = vld [vmem:[%s9744 + $0x18] sm:$0xff]
  %v9749 = vld [vmem:[%s9744 + $0x20] sm:$0xff]
  %v9750 = vld [vmem:[%s9744 + $0x28] sm:$0xff]
  %v9751 = vld [vmem:[%s9744 + $0x30] sm:$0xff]
  %v9752 = vld [vmem:[%s9744 + $0x38] sm:$0xff]
  %v9753 = vld [vmem:[%s9744 + $0x40] sm:$0xff]
  %v9754 = vld [vmem:[%s9744 + $0x48] sm:$0xff]
  %v9755 = vld [vmem:[%s9744 + $0x50] sm:$0xff]
  %v9756 = vld [vmem:[%s9744 + $0x58] sm:$0xff]
  %v9757 = vld [vmem:[%s9744 + $0x60] sm:$0xff]
  %v9758 = vld [vmem:[%s9744 + $0x68] sm:$0xff]
  %v9759 = vld [vmem:[%s9744 + $0x70] sm:$0xff]
  %v9760 = vld [vmem:[%s9744 + $0x78] sm:$0xff]
  %v9761 = vld [vmem:[%s9744 + $0x80] sm:$0xff]
  %v9762 = vld [vmem:[%s9744 + $0x88] sm:$0xff]
  %v9763 = vld [vmem:[%s9744 + $0x90] sm:$0xff]
  %v9764 = vld [vmem:[%s9744 + $0x98] sm:$0xff]
  %v9765 = vld [vmem:[%s9744 + $0xa0] sm:$0xff]
  %v9766 = vld [vmem:[%s9744 + $0xa8] sm:$0xff]
  %v9767 = vld [vmem:[%s9744 + $0xb0] sm:$0xff]
  %v9768 = vld [vmem:[%s9744 + $0xb8] sm:$0xff]
  %v9769 = vld [vmem:[%s9744 + $0xc0] sm:$0xff]
  %v9770 = vld [vmem:[%s9744 + $0xc8] sm:$0xff]
  %v9771 = vld [vmem:[%s9744 + $0xd0] sm:$0xff]
  %v9772 = vld [vmem:[%s9744 + $0xd8] sm:$0xff]
  %v9773 = vld [vmem:[%s9744 + $0xe0] sm:$0xff]
  %v9774 = vld [vmem:[%s9744 + $0xe8] sm:$0xff]
  %v9775 = vld [vmem:[%s9744 + $0xf0] sm:$0xff]
  %v9776 = vld [vmem:[%s9744 + $0xf8] sm:$0xff]
  %v9777 = vld [vmem:[%s9744 + $0x100] sm:$0xff]
  %v9778 = vld [vmem:[%s9744 + $0x108] sm:$0xff]
  %v9779 = vld [vmem:[%s9744 + $0x110] sm:$0xff]
  %v9780 = vld [vmem:[%s9744 + $0x118] sm:$0xff]
  %v9781 = vld [vmem:[%s9744 + $0x120] sm:$0xff]
  %v9782 = vld [vmem:[%s9744 + $0x128] sm:$0xff]
  %v9783 = vld [vmem:[%s9744 + $0x130] sm:$0xff]
  %v9784 = vld [vmem:[%s9744 + $0x138] sm:$0xff]
  %v9785 = vld [vmem:[%s9744 + $0x140] sm:$0xff]
  %v9786 = vld [vmem:[%s9744 + $0x148] sm:$0xff]
  %v9787 = vld [vmem:[%s9744 + $0x150] sm:$0xff]
  %v9788 = vld [vmem:[%s9744 + $0x158] sm:$0xff]
  %v9789 = vld [vmem:[%s9744 + $0x160] sm:$0xff]
  %v9790 = vld [vmem:[%s9744 + $0x168] sm:$0xff]
  %v9791 = vld [vmem:[%s9744 + $0x170] sm:$0xff]
  %v9792 = vld [vmem:[%s9744 + $0x178] sm:$0xff]
  %v9841 = vunpack.c.l.b16 %v9745
  %v9842 = vunpack.c.h.b16 %v9745
  %v9843 = vunpack.c.l.b16 %v9746
  %v9844 = vunpack.c.h.b16 %v9746
  %v9845 = vunpack.c.l.b16 %v9747
  %v9846 = vunpack.c.h.b16 %v9747
  %v9847 = vunpack.c.l.b16 %v9748
  %v9848 = vunpack.c.h.b16 %v9748
  %v9849 = vunpack.c.l.b16 %v9749
  %v9850 = vunpack.c.h.b16 %v9749
  %v9851 = vunpack.c.l.b16 %v9750
  %v9852 = vunpack.c.h.b16 %v9750
  %v9853 = vunpack.c.l.b16 %v9751
  %v9854 = vunpack.c.h.b16 %v9751
  %v9855 = vunpack.c.l.b16 %v9752
  %v9856 = vunpack.c.h.b16 %v9752
  %v9857 = vunpack.c.l.b16 %v9753
  %v9858 = vunpack.c.h.b16 %v9753
  %v9859 = vunpack.c.l.b16 %v9754
  %v9860 = vunpack.c.h.b16 %v9754
  %v9861 = vunpack.c.l.b16 %v9755
  %v9862 = vunpack.c.h.b16 %v9755
  %v9863 = vunpack.c.l.b16 %v9756
  %v9864 = vunpack.c.h.b16 %v9756
  %v9865 = vunpack.c.l.b16 %v9757
  %v9866 = vunpack.c.h.b16 %v9757
  %v9867 = vunpack.c.l.b16 %v9758
  %v9868 = vunpack.c.h.b16 %v9758
  %v9869 = vunpack.c.l.b16 %v9759
  %v9870 = vunpack.c.h.b16 %v9759
  %v9871 = vunpack.c.l.b16 %v9760
  %v9872 = vunpack.c.h.b16 %v9760
  %v9873 = vunpack.c.l.b16 %v9761
  %v9874 = vunpack.c.h.b16 %v9761
  %v9875 = vunpack.c.l.b16 %v9762
  %v9876 = vunpack.c.h.b16 %v9762
  %v9877 = vunpack.c.l.b16 %v9763
  %v9878 = vunpack.c.h.b16 %v9763
  %v9879 = vunpack.c.l.b16 %v9764
  %v9880 = vunpack.c.h.b16 %v9764
  %v9881 = vunpack.c.l.b16 %v9765
  %v9882 = vunpack.c.h.b16 %v9765
  %v9883 = vunpack.c.l.b16 %v9766
  %v9884 = vunpack.c.h.b16 %v9766
  %v9885 = vunpack.c.l.b16 %v9767
  %v9886 = vunpack.c.h.b16 %v9767
  %v9887 = vunpack.c.l.b16 %v9768
  %v9888 = vunpack.c.h.b16 %v9768
  %v9889 = vunpack.c.l.b16 %v9769
  %v9890 = vunpack.c.h.b16 %v9769
  %v9891 = vunpack.c.l.b16 %v9770
  %v9892 = vunpack.c.h.b16 %v9770
  %v9893 = vunpack.c.l.b16 %v9771
  %v9894 = vunpack.c.h.b16 %v9771
  %v9895 = vunpack.c.l.b16 %v9772
  %v9896 = vunpack.c.h.b16 %v9772
  %v9897 = vunpack.c.l.b16 %v9773
  %v9898 = vunpack.c.h.b16 %v9773
  %v9899 = vunpack.c.l.b16 %v9774
  %v9900 = vunpack.c.h.b16 %v9774
  %v9901 = vunpack.c.l.b16 %v9775
  %v9902 = vunpack.c.h.b16 %v9775
  %v9903 = vunpack.c.l.b16 %v9776
  %v9904 = vunpack.c.h.b16 %v9776
  %v9905 = vunpack.c.l.b16 %v9777
  %v9906 = vunpack.c.h.b16 %v9777
  %v9907 = vunpack.c.l.b16 %v9778
  %v9908 = vunpack.c.h.b16 %v9778
  %v9909 = vunpack.c.l.b16 %v9779
  %v9910 = vunpack.c.h.b16 %v9779
  %v9911 = vunpack.c.l.b16 %v9780
  %v9912 = vunpack.c.h.b16 %v9780
  %v9913 = vunpack.c.l.b16 %v9781
  %v9914 = vunpack.c.h.b16 %v9781
  %v9915 = vunpack.c.l.b16 %v9782
  %v9916 = vunpack.c.h.b16 %v9782
  %v9917 = vunpack.c.l.b16 %v9783
  %v9918 = vunpack.c.h.b16 %v9783
  %v9919 = vunpack.c.l.b16 %v9784
  %v9920 = vunpack.c.h.b16 %v9784
  %v9921 = vunpack.c.l.b16 %v9785
  %v9922 = vunpack.c.h.b16 %v9785
  %v9923 = vunpack.c.l.b16 %v9786
  %v9924 = vunpack.c.h.b16 %v9786
  %v9925 = vunpack.c.l.b16 %v9787
  %v9926 = vunpack.c.h.b16 %v9787
  %v9927 = vunpack.c.l.b16 %v9788
  %v9928 = vunpack.c.h.b16 %v9788
  %v9929 = vunpack.c.l.b16 %v9789
  %v9930 = vunpack.c.h.b16 %v9789
  %v9931 = vunpack.c.l.b16 %v9790
  %v9932 = vunpack.c.h.b16 %v9790
  %v9933 = vunpack.c.l.b16 %v9791
  %v9934 = vunpack.c.h.b16 %v9791
  %v9935 = vunpack.c.l.b16 %v9792
  %v9936 = vunpack.c.h.b16 %v9792
  %v9937 = vpack.c.b16 %v9843, %v9841
  %v9938 = vpack.c.b16 %v9844, %v9842
  %v9939 = vpack.c.b16 %v9847, %v9845
  %v9940 = vpack.c.b16 %v9848, %v9846
  %v9941 = vpack.c.b16 %v9851, %v9849
  %v9942 = vpack.c.b16 %v9852, %v9850
  %v9943 = vpack.c.b16 %v9855, %v9853
  %v9944 = vpack.c.b16 %v9856, %v9854
  %v9945 = vpack.c.b16 %v9859, %v9857
  %v9946 = vpack.c.b16 %v9860, %v9858
  %v9947 = vpack.c.b16 %v9863, %v9861
  %v9948 = vpack.c.b16 %v9864, %v9862
  %v9949 = vpack.c.b16 %v9867, %v9865
  %v9950 = vpack.c.b16 %v9868, %v9866
  %v9951 = vpack.c.b16 %v9871, %v9869
  %v9952 = vpack.c.b16 %v9872, %v9870
  %v9953 = vpack.c.b16 %v9875, %v9873
  %v9954 = vpack.c.b16 %v9876, %v9874
  %v9955 = vpack.c.b16 %v9879, %v9877
  %v9956 = vpack.c.b16 %v9880, %v9878
  %v9957 = vpack.c.b16 %v9883, %v9881
  %v9958 = vpack.c.b16 %v9884, %v9882
  %v9959 = vpack.c.b16 %v9887, %v9885
  %v9960 = vpack.c.b16 %v9888, %v9886
  %v9961 = vpack.c.b16 %v9891, %v9889
  %v9962 = vpack.c.b16 %v9892, %v9890
  %v9963 = vpack.c.b16 %v9895, %v9893
  %v9964 = vpack.c.b16 %v9896, %v9894
  %v9965 = vpack.c.b16 %v9899, %v9897
  %v9966 = vpack.c.b16 %v9900, %v9898
  %v9967 = vpack.c.b16 %v9903, %v9901
  %v9968 = vpack.c.b16 %v9904, %v9902
  %v9969 = vpack.c.b16 %v9907, %v9905
  %v9970 = vpack.c.b16 %v9908, %v9906
  %v9971 = vpack.c.b16 %v9911, %v9909
  %v9972 = vpack.c.b16 %v9912, %v9910
  %v9973 = vpack.c.b16 %v9915, %v9913
  %v9974 = vpack.c.b16 %v9916, %v9914
  %v9975 = vpack.c.b16 %v9919, %v9917
  %v9976 = vpack.c.b16 %v9920, %v9918
  %v9977 = vpack.c.b16 %v9923, %v9921
  %v9978 = vpack.c.b16 %v9924, %v9922
  %v9979 = vpack.c.b16 %v9927, %v9925
  %v9980 = vpack.c.b16 %v9928, %v9926
  %v9981 = vpack.c.b16 %v9931, %v9929
  %v9982 = vpack.c.b16 %v9932, %v9930
  %v9983 = vpack.c.b16 %v9935, %v9933
  %v9984 = vpack.c.b16 %v9936, %v9934
  %10033 = vmatprep.subr.bf16.mxu0 %v9938
  %10034 = vmatpush1.bf16.msra.mxu0 %v9937
  %10035 = vmatprep.subr.bf16.mxu0 %v9940
  %10036 = vmatpush1.bf16.msra.mxu0 %v9939
  %10037 = vmatprep.subr.bf16.mxu0 %v9942
  %10038 = vmatpush1.bf16.msra.mxu0 %v9941
  %10039 = vmatprep.subr.bf16.mxu0 %v9944
  %10040 = vmatpush1.bf16.msra.mxu0 %v9943
  %10041 = vmatprep.subr.bf16.mxu0 %v9946
  %10042 = vmatpush1.bf16.msra.mxu0 %v9945
  %10043 = vmatprep.subr.bf16.mxu0 %v9948
  %10044 = vmatpush1.bf16.msra.mxu0 %v9947
  %10045 = vmatprep.subr.bf16.mxu0 %v9950
  %10046 = vmatpush1.bf16.msra.mxu0 %v9949
  %10047 = vmatprep.subr.bf16.mxu0 %v9952
  %10048 = vmatpush1.bf16.msra.mxu0 %v9951
  %10049 = vmatprep.subr.bf16.mxu0 %v9954
  %10050 = vmatpush1.bf16.msra.mxu0 %v9953
  %10051 = vmatprep.subr.bf16.mxu0 %v9956
  %10052 = vmatpush1.bf16.msra.mxu0 %v9955
  %10053 = vmatprep.subr.bf16.mxu0 %v9958
  %10054 = vmatpush1.bf16.msra.mxu0 %v9957
  %10055 = vmatprep.subr.bf16.mxu0 %v9960
  %10056 = vmatpush1.bf16.msra.mxu0 %v9959
  %10057 = vmatprep.subr.bf16.mxu0 %v9962
  %10058 = vmatpush1.bf16.msra.mxu0 %v9961
  %10059 = vmatprep.subr.bf16.mxu0 %v9964
  %10060 = vmatpush1.bf16.msra.mxu0 %v9963
  %10061 = vmatprep.subr.bf16.mxu0 %v9966
  %10062 = vmatpush1.bf16.msra.mxu0 %v9965
  %10063 = vmatprep.subr.bf16.mxu0 %v9968
  %10064 = vmatpush1.bf16.msra.mxu0 %v9967
  %10065 = vmatprep.mubr.bf16.mxu0 %v8999
  %10066 = vmatmul.mubr.bf16.gmra.mrb[0].mxu0 %v8998
  %v10067 = vpop.f32.mrb[0].mxu0
  %v10068 = vadd.f32 0.0, %v10067
  %v10069 = vpop.f32.mrb[0].mxu0
  %v10070 = vadd.f32 0.0, %v10069
  %v10071 = vpop.f32.mrb[0].mxu0
  %v10072 = vpop.f32.mrb[0].mxu0
  %10073 = vdwg.mxu0
  %10074 = vmatprep.subr.bf16.mxu0 %v9970
  %10075 = vmatpush1.bf16.msra.mxu0 %v9969
  %10076 = vmatprep.subr.bf16.mxu0 %v9972
  %10077 = vmatpush1.bf16.msra.mxu0 %v9971
  %10078 = vmatprep.subr.bf16.mxu0 %v9974
  %10079 = vmatpush1.bf16.msra.mxu0 %v9973
  %10080 = vmatprep.subr.bf16.mxu0 %v9976
  %10081 = vmatpush1.bf16.msra.mxu0 %v9975
  %10082 = vmatprep.subr.bf16.mxu0 %v9978
  %10083 = vmatpush1.bf16.msra.mxu0 %v9977
  %10084 = vmatprep.subr.bf16.mxu0 %v9980
  %10085 = vmatpush1.bf16.msra.mxu0 %v9979
  %10086 = vmatprep.subr.bf16.mxu0 %v9982
  %10087 = vmatpush1.bf16.msra.mxu0 %v9981
  %10088 = vmatprep.subr.bf16.mxu0 %v9984
  %10089 = vmatpush1.bf16.msra.mxu0 %v9983
  %10090 = vmatprep.subr.bf16.mxu0 0
  %10091 = vmatpush1.bf16.msra.mxu0 0
  %10092 = vmatprep.subr.bf16.mxu0 0
  %10093 = vmatpush1.bf16.msra.mxu0 0
  %10094 = vmatprep.subr.bf16.mxu0 0
  %10095 = vmatpush1.bf16.msra.mxu0 0
  %10096 = vmatprep.subr.bf16.mxu0 0
  %10097 = vmatpush1.bf16.msra.mxu0 0
  %10098 = vmatprep.subr.bf16.mxu0 0
  %10099 = vmatpush1.bf16.msra.mxu0 0
  %10100 = vmatprep.subr.bf16.mxu0 0
  %10101 = vmatpush1.bf16.msra.mxu0 0
  %10102 = vmatprep.subr.bf16.mxu0 0
  %10103 = vmatpush1.bf16.msra.mxu0 0
  %10104 = vmatprep.subr.bf16.mxu0 0
  %10105 = vmatpush1.bf16.msra.mxu0 0
  %10106 = vmatprep.mubr.bf16.mxu0 0
  %10107 = vmatmul.mubr.bf16.gmra.mrb[0].mxu0 %v9000
  %v10108 = vpop.f32.mrb[0].mxu0
  %v10109 = vadd.f32 %v10068, %v10108
  %v10110 = vpop.f32.mrb[0].mxu0
  %v10111 = vadd.f32 %v10070, %v10110
  %v10112 = vpop.f32.mrb[0].mxu0
  %v10113 = vpop.f32.mrb[0].mxu0
  %10114 = vdwg.mxu0
  %v10115 = vmax.f32 %v9742, %v10109
  %v10116 = vmax.f32 %v9743, %v10111
  %s10117 = scalar_lea.vmem %s7, 1152
  %v10118 = vld [vmem:[%s10117] sm:$0xff]
  %v10119 = vld [vmem:[%s10117 + $0x8] sm:$0xff]
  %v10120 = vld [vmem:[%s10117 + $0x10] sm:$0xff]
  %v10121 = vld [vmem:[%s10117 + $0x18] sm:$0xff]
  %v10122 = vld [vmem:[%s10117 + $0x20] sm:$0xff]
  %v10123 = vld [vmem:[%s10117 + $0x28] sm:$0xff]
  %v10124 = vld [vmem:[%s10117 + $0x30] sm:$0xff]
  %v10125 = vld [vmem:[%s10117 + $0x38] sm:$0xff]
  %v10126 = vld [vmem:[%s10117 + $0x40] sm:$0xff]
  %v10127 = vld [vmem:[%s10117 + $0x48] sm:$0xff]
  %v10128 = vld [vmem:[%s10117 + $0x50] sm:$0xff]
  %v10129 = vld [vmem:[%s10117 + $0x58] sm:$0xff]
  %v10130 = vld [vmem:[%s10117 + $0x60] sm:$0xff]
  %v10131 = vld [vmem:[%s10117 + $0x68] sm:$0xff]
  %v10132 = vld [vmem:[%s10117 + $0x70] sm:$0xff]
  %v10133 = vld [vmem:[%s10117 + $0x78] sm:$0xff]
  %v10134 = vld [vmem:[%s10117 + $0x80] sm:$0xff]
  %v10135 = vld [vmem:[%s10117 + $0x88] sm:$0xff]
  %v10136 = vld [vmem:[%s10117 + $0x90] sm:$0xff]
  %v10137 = vld [vmem:[%s10117 + $0x98] sm:$0xff]
  %v10138 = vld [vmem:[%s10117 + $0xa0] sm:$0xff]
  %v10139 = vld [vmem:[%s10117 + $0xa8] sm:$0xff]
  %v10140 = vld [vmem:[%s10117 + $0xb0] sm:$0xff]
  %v10141 = vld [vmem:[%s10117 + $0xb8] sm:$0xff]
  %v10142 = vld [vmem:[%s10117 + $0xc0] sm:$0xff]
  %v10143 = vld [vmem:[%s10117 + $0xc8] sm:$0xff]
  %v10144 = vld [vmem:[%s10117 + $0xd0] sm:$0xff]
  %v10145 = vld [vmem:[%s10117 + $0xd8] sm:$0xff]
  %v10146 = vld [vmem:[%s10117 + $0xe0] sm:$0xff]
  %v10147 = vld [vmem:[%s10117 + $0xe8] sm:$0xff]
  %v10148 = vld [vmem:[%s10117 + $0xf0] sm:$0xff]
  %v10149 = vld [vmem:[%s10117 + $0xf8] sm:$0xff]
  %v10150 = vld [vmem:[%s10117 + $0x100] sm:$0xff]
  %v10151 = vld [vmem:[%s10117 + $0x108] sm:$0xff]
  %v10152 = vld [vmem:[%s10117 + $0x110] sm:$0xff]
  %v10153 = vld [vmem:[%s10117 + $0x118] sm:$0xff]
  %v10154 = vld [vmem:[%s10117 + $0x120] sm:$0xff]
  %v10155 = vld [vmem:[%s10117 + $0x128] sm:$0xff]
  %v10156 = vld [vmem:[%s10117 + $0x130] sm:$0xff]
  %v10157 = vld [vmem:[%s10117 + $0x138] sm:$0xff]
  %v10158 = vld [vmem:[%s10117 + $0x140] sm:$0xff]
  %v10159 = vld [vmem:[%s10117 + $0x148] sm:$0xff]
  %v10160 = vld [vmem:[%s10117 + $0x150] sm:$0xff]
  %v10161 = vld [vmem:[%s10117 + $0x158] sm:$0xff]
  %v10162 = vld [vmem:[%s10117 + $0x160] sm:$0xff]
  %v10163 = vld [vmem:[%s10117 + $0x168] sm:$0xff]
  %v10164 = vld [vmem:[%s10117 + $0x170] sm:$0xff]
  %v10165 = vld [vmem:[%s10117 + $0x178] sm:$0xff]
  %v10214 = vunpack.c.l.b16 %v10118
  %v10215 = vunpack.c.h.b16 %v10118
  %v10216 = vunpack.c.l.b16 %v10119
  %v10217 = vunpack.c.h.b16 %v10119
  %v10218 = vunpack.c.l.b16 %v10120
  %v10219 = vunpack.c.h.b16 %v10120
  %v10220 = vunpack.c.l.b16 %v10121
  %v10221 = vunpack.c.h.b16 %v10121
  %v10222 = vunpack.c.l.b16 %v10122
  %v10223 = vunpack.c.h.b16 %v10122
  %v10224 = vunpack.c.l.b16 %v10123
  %v10225 = vunpack.c.h.b16 %v10123
  %v10226 = vunpack.c.l.b16 %v10124
  %v10227 = vunpack.c.h.b16 %v10124
  %v10228 = vunpack.c.l.b16 %v10125
  %v10229 = vunpack.c.h.b16 %v10125
  %v10230 = vunpack.c.l.b16 %v10126
  %v10231 = vunpack.c.h.b16 %v10126
  %v10232 = vunpack.c.l.b16 %v10127
  %v10233 = vunpack.c.h.b16 %v10127
  %v10234 = vunpack.c.l.b16 %v10128
  %v10235 = vunpack.c.h.b16 %v10128
  %v10236 = vunpack.c.l.b16 %v10129
  %v10237 = vunpack.c.h.b16 %v10129
  %v10238 = vunpack.c.l.b16 %v10130
  %v10239 = vunpack.c.h.b16 %v10130
  %v10240 = vunpack.c.l.b16 %v10131
  %v10241 = vunpack.c.h.b16 %v10131
  %v10242 = vunpack.c.l.b16 %v10132
  %v10243 = vunpack.c.h.b16 %v10132
  %v10244 = vunpack.c.l.b16 %v10133
  %v10245 = vunpack.c.h.b16 %v10133
  %v10246 = vunpack.c.l.b16 %v10134
  %v10247 = vunpack.c.h.b16 %v10134
  %v10248 = vunpack.c.l.b16 %v10135
  %v10249 = vunpack.c.h.b16 %v10135
  %v10250 = vunpack.c.l.b16 %v10136
  %v10251 = vunpack.c.h.b16 %v10136
  %v10252 = vunpack.c.l.b16 %v10137
  %v10253 = vunpack.c.h.b16 %v10137
  %v10254 = vunpack.c.l.b16 %v10138
  %v10255 = vunpack.c.h.b16 %v10138
  %v10256 = vunpack.c.l.b16 %v10139
  %v10257 = vunpack.c.h.b16 %v10139
  %v10258 = vunpack.c.l.b16 %v10140
  %v10259 = vunpack.c.h.b16 %v10140
  %v10260 = vunpack.c.l.b16 %v10141
  %v10261 = vunpack.c.h.b16 %v10141
  %v10262 = vunpack.c.l.b16 %v10142
  %v10263 = vunpack.c.h.b16 %v10142
  %v10264 = vunpack.c.l.b16 %v10143
  %v10265 = vunpack.c.h.b16 %v10143
  %v10266 = vunpack.c.l.b16 %v10144
  %v10267 = vunpack.c.h.b16 %v10144
  %v10268 = vunpack.c.l.b16 %v10145
  %v10269 = vunpack.c.h.b16 %v10145
  %v10270 = vunpack.c.l.b16 %v10146
  %v10271 = vunpack.c.h.b16 %v10146
  %v10272 = vunpack.c.l.b16 %v10147
  %v10273 = vunpack.c.h.b16 %v10147
  %v10274 = vunpack.c.l.b16 %v10148
  %v10275 = vunpack.c.h.b16 %v10148
  %v10276 = vunpack.c.l.b16 %v10149
  %v10277 = vunpack.c.h.b16 %v10149
  %v10278 = vunpack.c.l.b16 %v10150
  %v10279 = vunpack.c.h.b16 %v10150
  %v10280 = vunpack.c.l.b16 %v10151
  %v10281 = vunpack.c.h.b16 %v10151
  %v10282 = vunpack.c.l.b16 %v10152
  %v10283 = vunpack.c.h.b16 %v10152
  %v10284 = vunpack.c.l.b16 %v10153
  %v10285 = vunpack.c.h.b16 %v10153
  %v10286 = vunpack.c.l.b16 %v10154
  %v10287 = vunpack.c.h.b16 %v10154
  %v10288 = vunpack.c.l.b16 %v10155
  %v10289 = vunpack.c.h.b16 %v10155
  %v10290 = vunpack.c.l.b16 %v10156
  %v10291 = vunpack.c.h.b16 %v10156
  %v10292 = vunpack.c.l.b16 %v10157
  %v10293 = vunpack.c.h.b16 %v10157
  %v10294 = vunpack.c.l.b16 %v10158
  %v10295 = vunpack.c.h.b16 %v10158
  %v10296 = vunpack.c.l.b16 %v10159
  %v10297 = vunpack.c.h.b16 %v10159
  %v10298 = vunpack.c.l.b16 %v10160
  %v10299 = vunpack.c.h.b16 %v10160
  %v10300 = vunpack.c.l.b16 %v10161
  %v10301 = vunpack.c.h.b16 %v10161
  %v10302 = vunpack.c.l.b16 %v10162
  %v10303 = vunpack.c.h.b16 %v10162
  %v10304 = vunpack.c.l.b16 %v10163
  %v10305 = vunpack.c.h.b16 %v10163
  %v10306 = vunpack.c.l.b16 %v10164
  %v10307 = vunpack.c.h.b16 %v10164
  %v10308 = vunpack.c.l.b16 %v10165
  %v10309 = vunpack.c.h.b16 %v10165
  %v10310 = vpack.c.b16 %v10216, %v10214
  %v10311 = vpack.c.b16 %v10217, %v10215
  %v10312 = vpack.c.b16 %v10220, %v10218
  %v10313 = vpack.c.b16 %v10221, %v10219
  %v10314 = vpack.c.b16 %v10224, %v10222
  %v10315 = vpack.c.b16 %v10225, %v10223
  %v10316 = vpack.c.b16 %v10228, %v10226
  %v10317 = vpack.c.b16 %v10229, %v10227
  %v10318 = vpack.c.b16 %v10232, %v10230
  %v10319 = vpack.c.b16 %v10233, %v10231
  %v10320 = vpack.c.b16 %v10236, %v10234
  %v10321 = vpack.c.b16 %v10237, %v10235
  %v10322 = vpack.c.b16 %v10240, %v10238
  %v10323 = vpack.c.b16 %v10241, %v10239
  %v10324 = vpack.c.b16 %v10244, %v10242
  %v10325 = vpack.c.b16 %v10245, %v10243
  %v10326 = vpack.c.b16 %v10248, %v10246
  %v10327 = vpack.c.b16 %v10249, %v10247
  %v10328 = vpack.c.b16 %v10252, %v10250
  %v10329 = vpack.c.b16 %v10253, %v10251
  %v10330 = vpack.c.b16 %v10256, %v10254
  %v10331 = vpack.c.b16 %v10257, %v10255
  %v10332 = vpack.c.b16 %v10260, %v10258
  %v10333 = vpack.c.b16 %v10261, %v10259
  %v10334 = vpack.c.b16 %v10264, %v10262
  %v10335 = vpack.c.b16 %v10265, %v10263
  %v10336 = vpack.c.b16 %v10268, %v10266
  %v10337 = vpack.c.b16 %v10269, %v10267
  %v10338 = vpack.c.b16 %v10272, %v10270
  %v10339 = vpack.c.b16 %v10273, %v10271
  %v10340 = vpack.c.b16 %v10276, %v10274
  %v10341 = vpack.c.b16 %v10277, %v10275
  %v10342 = vpack.c.b16 %v10280, %v10278
  %v10343 = vpack.c.b16 %v10281, %v10279
  %v10344 = vpack.c.b16 %v10284, %v10282
  %v10345 = vpack.c.b16 %v10285, %v10283
  %v10346 = vpack.c.b16 %v10288, %v10286
  %v10347 = vpack.c.b16 %v10289, %v10287
  %v10348 = vpack.c.b16 %v10292, %v10290
  %v10349 = vpack.c.b16 %v10293, %v10291
  %v10350 = vpack.c.b16 %v10296, %v10294
  %v10351 = vpack.c.b16 %v10297, %v10295
  %v10352 = vpack.c.b16 %v10300, %v10298
  %v10353 = vpack.c.b16 %v10301, %v10299
  %v10354 = vpack.c.b16 %v10304, %v10302
  %v10355 = vpack.c.b16 %v10305, %v10303
  %v10356 = vpack.c.b16 %v10308, %v10306
  %v10357 = vpack.c.b16 %v10309, %v10307
  %10406 = vmatprep.subr.bf16.mxu0 %v10311
  %10407 = vmatpush1.bf16.msra.mxu0 %v10310
  %10408 = vmatprep.subr.bf16.mxu0 %v10313
  %10409 = vmatpush1.bf16.msra.mxu0 %v10312
  %10410 = vmatprep.subr.bf16.mxu0 %v10315
  %10411 = vmatpush1.bf16.msra.mxu0 %v10314
  %10412 = vmatprep.subr.bf16.mxu0 %v10317
  %10413 = vmatpush1.bf16.msra.mxu0 %v10316
  %10414 = vmatprep.subr.bf16.mxu0 %v10319
  %10415 = vmatpush1.bf16.msra.mxu0 %v10318
  %10416 = vmatprep.subr.bf16.mxu0 %v10321
  %10417 = vmatpush1.bf16.msra.mxu0 %v10320
  %10418 = vmatprep.subr.bf16.mxu0 %v10323
  %10419 = vmatpush1.bf16.msra.mxu0 %v10322
  %10420 = vmatprep.subr.bf16.mxu0 %v10325
  %10421 = vmatpush1.bf16.msra.mxu0 %v10324
  %10422 = vmatprep.subr.bf16.mxu0 %v10327
  %10423 = vmatpush1.bf16.msra.mxu0 %v10326
  %10424 = vmatprep.subr.bf16.mxu0 %v10329
  %10425 = vmatpush1.bf16.msra.mxu0 %v10328
  %10426 = vmatprep.subr.bf16.mxu0 %v10331
  %10427 = vmatpush1.bf16.msra.mxu0 %v10330
  %10428 = vmatprep.subr.bf16.mxu0 %v10333
  %10429 = vmatpush1.bf16.msra.mxu0 %v10332
  %10430 = vmatprep.subr.bf16.mxu0 %v10335
  %10431 = vmatpush1.bf16.msra.mxu0 %v10334
  %10432 = vmatprep.subr.bf16.mxu0 %v10337
  %10433 = vmatpush1.bf16.msra.mxu0 %v10336
  %10434 = vmatprep.subr.bf16.mxu0 %v10339
  %10435 = vmatpush1.bf16.msra.mxu0 %v10338
  %10436 = vmatprep.subr.bf16.mxu0 %v10341
  %10437 = vmatpush1.bf16.msra.mxu0 %v10340
  %10438 = vmatprep.mubr.bf16.mxu0 %v8999
  %10439 = vmatmul.mubr.bf16.gmra.mrb[0].mxu0 %v8998
  %v10440 = vpop.f32.mrb[0].mxu0
  %v10441 = vadd.f32 0.0, %v10440
  %v10442 = vpop.f32.mrb[0].mxu0
  %v10443 = vadd.f32 0.0, %v10442
  %v10444 = vpop.f32.mrb[0].mxu0
  %v10445 = vpop.f32.mrb[0].mxu0
  %10446 = vdwg.mxu0
  %10447 = vmatprep.subr.bf16.mxu0 %v10343
  %10448 = vmatpush1.bf16.msra.mxu0 %v10342
  %10449 = vmatprep.subr.bf16.mxu0 %v10345
  %10450 = vmatpush1.bf16.msra.mxu0 %v10344
  %10451 = vmatprep.subr.bf16.mxu0 %v10347
  %10452 = vmatpush1.bf16.msra.mxu0 %v10346
  %10453 = vmatprep.subr.bf16.mxu0 %v10349
  %10454 = vmatpush1.bf16.msra.mxu0 %v10348
  %10455 = vmatprep.subr.bf16.mxu0 %v10351
  %10456 = vmatpush1.bf16.msra.mxu0 %v10350
  %10457 = vmatprep.subr.bf16.mxu0 %v10353
  %10458 = vmatpush1.bf16.msra.mxu0 %v10352
  %10459 = vmatprep.subr.bf16.mxu0 %v10355
  %10460 = vmatpush1.bf16.msra.mxu0 %v10354
  %10461 = vmatprep.subr.bf16.mxu0 %v10357
  %10462 = vmatpush1.bf16.msra.mxu0 %v10356
  %10463 = vmatprep.subr.bf16.mxu0 0
  %10464 = vmatpush1.bf16.msra.mxu0 0
  %10465 = vmatprep.subr.bf16.mxu0 0
  %10466 = vmatpush1.bf16.msra.mxu0 0
  %10467 = vmatprep.subr.bf16.mxu0 0
  %10468 = vmatpush1.bf16.msra.mxu0 0
  %10469 = vmatprep.subr.bf16.mxu0 0
  %10470 = vmatpush1.bf16.msra.mxu0 0
  %10471 = vmatprep.subr.bf16.mxu0 0
  %10472 = vmatpush1.bf16.msra.mxu0 0
  %10473 = vmatprep.subr.bf16.mxu0 0
  %10474 = vmatpush1.bf16.msra.mxu0 0
  %10475 = vmatprep.subr.bf16.mxu0 0
  %10476 = vmatpush1.bf16.msra.mxu0 0
  %10477 = vmatprep.subr.bf16.mxu0 0
  %10478 = vmatpush1.bf16.msra.mxu0 0
  %10479 = vmatprep.mubr.bf16.mxu0 0
  %10480 = vmatmul.mubr.bf16.gmra.mrb[0].mxu0 %v9000
  %v10481 = vpop.f32.mrb[0].mxu0
  %v10482 = vadd.f32 %v10441, %v10481
  %v10483 = vpop.f32.mrb[0].mxu0
  %v10484 = vadd.f32 %v10443, %v10483
  %v10485 = vpop.f32.mrb[0].mxu0
  %v10486 = vpop.f32.mrb[0].mxu0
  %10487 = vdwg.mxu0
  %v10488 = vmax.f32 %v10115, %v10482
  %v10489 = vmax.f32 %v10116, %v10484
  %v10490 = vpack.c.bf16 %v10488, %v10488
  %v10491 = vpack.c.bf16 %v10489, %v10489
  %v10492 = vld [vmem:[%s8] sm:$0xf]
  %v10493 = vld [vmem:[%s8 + $0x4] sm:$0xf]
  %v10494 = vld [vmem:[%s8 + $0x8] sm:$0xf]
  %v10495 = vld [vmem:[%s8 + $0xc] sm:$0xf]
  %v10496 = vld [vmem:[%s8 + $0x10] sm:$0xf]
  %v10497 = vld [vmem:[%s8 + $0x14] sm:$0xf]
  %v10498 = vld [vmem:[%s8 + $0x18] sm:$0xf]
  %v10499 = vld [vmem:[%s8 + $0x1c] sm:$0xf]
  %v10500 = vld [vmem:[%s8 + $0x20] sm:$0xf]
  %v10501 = vld [vmem:[%s8 + $0x24] sm:$0xf]
  %v10502 = vld [vmem:[%s8 + $0x28] sm:$0xf]
  %v10503 = vld [vmem:[%s8 + $0x2c] sm:$0xf]
  %v10504 = vld [vmem:[%s8 + $0x30] sm:$0xf]
  %v10505 = vld [vmem:[%s8 + $0x34] sm:$0xf]
  %v10506 = vld [vmem:[%s8 + $0x38] sm:$0xf]
  %v10507 = vld [vmem:[%s8 + $0x3c] sm:$0xf]
  %v10508 = vld [vmem:[%s8 + $0x40] sm:$0xf]
  %v10509 = vld [vmem:[%s8 + $0x44] sm:$0xf]
  %v10510 = vld [vmem:[%s8 + $0x48] sm:$0xf]
  %v10511 = vld [vmem:[%s8 + $0x4c] sm:$0xf]
  %v10512 = vld [vmem:[%s8 + $0x50] sm:$0xf]
  %v10513 = vld [vmem:[%s8 + $0x54] sm:$0xf]
  %v10514 = vld [vmem:[%s8 + $0x58] sm:$0xf]
  %v10515 = vld [vmem:[%s8 + $0x5c] sm:$0xf]
  %v10516 = vld [vmem:[%s8 + $0x60] sm:$0xf]
  %v10517 = vld [vmem:[%s8 + $0x64] sm:$0xf]
  %v10518 = vld [vmem:[%s8 + $0x68] sm:$0xf]
  %v10519 = vld [vmem:[%s8 + $0x6c] sm:$0xf]
  %v10520 = vld [vmem:[%s8 + $0x70] sm:$0xf]
  %v10521 = vld [vmem:[%s8 + $0x74] sm:$0xf]
  %v10522 = vld [vmem:[%s8 + $0x78] sm:$0xf]
  %v10523 = vld [vmem:[%s8 + $0x7c] sm:$0xf]
  %v10556 = vunpack.c.l.b16 %v10492
  %v10557 = vunpack.c.l.b16 %v10493
  %v10558 = vunpack.c.l.b16 %v10494
  %v10559 = vunpack.c.l.b16 %v10495
  %v10560 = vunpack.c.l.b16 %v10496
  %v10561 = vunpack.c.l.b16 %v10497
  %v10562 = vunpack.c.l.b16 %v10498
  %v10563 = vunpack.c.l.b16 %v10499
  %v10564 = vunpack.c.l.b16 %v10500
  %v10565 = vunpack.c.l.b16 %v10501
  %v10566 = vunpack.c.l.b16 %v10502
  %v10567 = vunpack.c.l.b16 %v10503
  %v10568 = vunpack.c.l.b16 %v10504
  %v10569 = vunpack.c.l.b16 %v10505
  %v10570 = vunpack.c.l.b16 %v10506
  %v10571 = vunpack.c.l.b16 %v10507
  %v10572 = vunpack.c.l.b16 %v10508
  %v10573 = vunpack.c.l.b16 %v10509
  %v10574 = vunpack.c.l.b16 %v10510
  %v10575 = vunpack.c.l.b16 %v10511
  %v10576 = vunpack.c.l.b16 %v10512
  %v10577 = vunpack.c.l.b16 %v10513
  %v10578 = vunpack.c.l.b16 %v10514
  %v10579 = vunpack.c.l.b16 %v10515
  %v10580 = vunpack.c.l.b16 %v10516
  %v10581 = vunpack.c.l.b16 %v10517
  %v10582 = vunpack.c.l.b16 %v10518
  %v10583 = vunpack.c.l.b16 %v10519
  %v10584 = vunpack.c.l.b16 %v10520
  %v10585 = vunpack.c.l.b16 %v10521
  %v10586 = vunpack.c.l.b16 %v10522
  %v10587 = vunpack.c.l.b16 %v10523
  %v10588 = vpack.c.b16 %v10557, %v10556
  %v10589 = vpack.c.b16 %v10559, %v10558
  %v10590 = vpack.c.b16 %v10561, %v10560
  %v10591 = vpack.c.b16 %v10563, %v10562
  %v10592 = vpack.c.b16 %v10565, %v10564
  %v10593 = vpack.c.b16 %v10567, %v10566
  %v10594 = vpack.c.b16 %v10569, %v10568
  %v10595 = vpack.c.b16 %v10571, %v10570
  %v10596 = vpack.c.b16 %v10573, %v10572
  %v10597 = vpack.c.b16 %v10575, %v10574
  %v10598 = vpack.c.b16 %v10577, %v10576
  %v10599 = vpack.c.b16 %v10579, %v10578
  %v10600 = vpack.c.b16 %v10581, %v10580
  %v10601 = vpack.c.b16 %v10583, %v10582
  %v10602 = vpack.c.b16 %v10585, %v10584
  %v10603 = vpack.c.b16 %v10587, %v10586
  %10620 = vmatprep.subr.bf16.mxu0 0
  %10621 = vmatpush1.bf16.msra.mxu0 %v10588
  %10622 = vmatprep.subr.bf16.mxu0 0
  %10623 = vmatpush1.bf16.msra.mxu0 %v10589
  %10624 = vmatprep.subr.bf16.mxu0 0
  %10625 = vmatpush1.bf16.msra.mxu0 %v10590
  %10626 = vmatprep.subr.bf16.mxu0 0
  %10627 = vmatpush1.bf16.msra.mxu0 %v10591
  %10628 = vmatprep.subr.bf16.mxu0 0
  %10629 = vmatpush1.bf16.msra.mxu0 %v10592
  %10630 = vmatprep.subr.bf16.mxu0 0
  %10631 = vmatpush1.bf16.msra.mxu0 %v10593
  %10632 = vmatprep.subr.bf16.mxu0 0
  %10633 = vmatpush1.bf16.msra.mxu0 %v10594
  %10634 = vmatprep.subr.bf16.mxu0 0
  %10635 = vmatpush1.bf16.msra.mxu0 %v10595
  %10636 = vmatprep.subr.bf16.mxu0 0
  %10637 = vmatpush1.bf16.msra.mxu0 %v10596
  %10638 = vmatprep.subr.bf16.mxu0 0
  %10639 = vmatpush1.bf16.msra.mxu0 %v10597
  %10640 = vmatprep.subr.bf16.mxu0 0
  %10641 = vmatpush1.bf16.msra.mxu0 %v10598
  %10642 = vmatprep.subr.bf16.mxu0 0
  %10643 = vmatpush1.bf16.msra.mxu0 %v10599
  %10644 = vmatprep.subr.bf16.mxu0 0
  %10645 = vmatpush1.bf16.msra.mxu0 %v10600
  %10646 = vmatprep.subr.bf16.mxu0 0
  %10647 = vmatpush1.bf16.msra.mxu0 %v10601
  %10648 = vmatprep.subr.bf16.mxu0 0
  %10649 = vmatpush1.bf16.msra.mxu0 %v10602
  %10650 = vmatprep.subr.bf16.mxu0 0
  %10651 = vmatpush1.bf16.msra.mxu0 %v10603
  %10652 = vmatprep.mubr.bf16.mxu0 %v10491
  %10653 = vmatmul.mubr.bf16.gmra.mrb[0].mxu0 %v10490
  %v10654 = vpop.f32.mrb[0].mxu0
  %v10655 = vadd.f32 0.0, %v10654
  %v10656 = vpop.f32.mrb[0].mxu0
  %v10657 = vpop.f32.mrb[0].mxu0
  %v10658 = vpop.f32.mrb[0].mxu0
  %10659 = vdwg.mxu0
  %v10692 = vunpack.c.l.b16 %v5136
  %v10693 = vunpack.c.l.b16 %v5137
  %v10694 = vunpack.c.l.b16 %v5138
  %v10695 = vunpack.c.l.b16 %v5139
  %v10696 = vunpack.c.l.b16 %v5140
  %v10697 = vunpack.c.l.b16 %v5141
  %v10698 = vunpack.c.l.b16 %v5142
  %v10699 = vunpack.c.l.b16 %v5143
  %v10700 = vunpack.c.l.b16 %v5144
  %v10701 = vunpack.c.l.b16 %v5145
  %v10702 = vunpack.c.l.b16 %v5146
  %v10703 = vunpack.c.l.b16 %v5147
  %v10704 = vunpack.c.l.b16 %v5148
  %v10705 = vunpack.c.l.b16 %v5149
  %v10706 = vunpack.c.l.b16 %v5150
  %v10707 = vunpack.c.l.b16 %v5151
  %v10708 = vunpack.c.l.b16 %v5152
  %v10709 = vunpack.c.l.b16 %v5153
  %v10710 = vunpack.c.l.b16 %v5154
  %v10711 = vunpack.c.l.b16 %v5155
  %v10712 = vunpack.c.l.b16 %v5156
  %v10713 = vunpack.c.l.b16 %v5157
  %v10714 = vunpack.c.l.b16 %v5158
  %v10715 = vunpack.c.l.b16 %v5159
  %v10716 = vunpack.c.l.b16 %v5160
  %v10717 = vunpack.c.l.b16 %v5161
  %v10718 = vunpack.c.l.b16 %v5162
  %v10719 = vunpack.c.l.b16 %v5163
  %v10720 = vunpack.c.l.b16 %v5164
  %v10721 = vunpack.c.l.b16 %v5165
  %v10722 = vunpack.c.l.b16 %v5166
  %v10723 = vunpack.c.l.b16 %v5167
  %v10724 = vpack.c.b16 %v10693, %v10692
  %v10725 = vpack.c.b16 %v10695, %v10694
  %v10726 = vpack.c.b16 %v10697, %v10696
  %v10727 = vpack.c.b16 %v10699, %v10698
  %v10728 = vpack.c.b16 %v10701, %v10700
  %v10729 = vpack.c.b16 %v10703, %v10702
  %v10730 = vpack.c.b16 %v10705, %v10704
  %v10731 = vpack.c.b16 %v10707, %v10706
  %v10732 = vpack.c.b16 %v10709, %v10708
  %v10733 = vpack.c.b16 %v10711, %v10710
  %v10734 = vpack.c.b16 %v10713, %v10712
  %v10735 = vpack.c.b16 %v10715, %v10714
  %v10736 = vpack.c.b16 %v10717, %v10716
  %v10737 = vpack.c.b16 %v10719, %v10718
  %v10738 = vpack.c.b16 %v10721, %v10720
  %v10739 = vpack.c.b16 %v10723, %v10722
  %10756 = vmatprep.subr.bf16.mxu0 0
  %10757 = vmatpush1.bf16.msra.mxu0 %v10724
  %10758 = vmatprep.subr.bf16.mxu0 0
  %10759 = vmatpush1.bf16.msra.mxu0 %v10725
  %10760 = vmatprep.subr.bf16.mxu0 0
  %10761 = vmatpush1.bf16.msra.mxu0 %v10726
  %10762 = vmatprep.subr.bf16.mxu0 0
  %10763 = vmatpush1.bf16.msra.mxu0 %v10727
  %10764 = vmatprep.subr.bf16.mxu0 0
  %10765 = vmatpush1.bf16.msra.mxu0 %v10728
  %10766 = vmatprep.subr.bf16.mxu0 0
  %10767 = vmatpush1.bf16.msra.mxu0 %v10729
  %10768 = vmatprep.subr.bf16.mxu0 0
  %10769 = vmatpush1.bf16.msra.mxu0 %v10730
  %10770 = vmatprep.subr.bf16.mxu0 0
  %10771 = vmatpush1.bf16.msra.mxu0 %v10731
  %10772 = vmatprep.subr.bf16.mxu0 0
  %10773 = vmatpush1.bf16.msra.mxu0 %v10732
  %10774 = vmatprep.subr.bf16.mxu0 0
  %10775 = vmatpush1.bf16.msra.mxu0 %v10733
  %10776 = vmatprep.subr.bf16.mxu0 0
  %10777 = vmatpush1.bf16.msra.mxu0 %v10734
  %10778 = vmatprep.subr.bf16.mxu0 0
  %10779 = vmatpush1.bf16.msra.mxu0 %v10735
  %10780 = vmatprep.subr.bf16.mxu0 0
  %10781 = vmatpush1.bf16.msra.mxu0 %v10736
  %10782 = vmatprep.subr.bf16.mxu0 0
  %10783 = vmatpush1.bf16.msra.mxu0 %v10737
  %10784 = vmatprep.subr.bf16.mxu0 0
  %10785 = vmatpush1.bf16.msra.mxu0 %v10738
  %10786 = vmatprep.subr.bf16.mxu0 0
  %10787 = vmatpush1.bf16.msra.mxu0 %v10739
  %10788 = vmatprep.mubr.bf16.mxu0 %v5135
  %10789 = vmatmul.mubr.bf16.gmra.mrb[0].mxu0 %v5134
  %v10790 = vpop.f32.mrb[0].mxu0
  %v10791 = vadd.f32 %v10655, %v10790
  %v10792 = vpop.f32.mrb[0].mxu0
  %v10793 = vpop.f32.mrb[0].mxu0
  %v10794 = vpop.f32.mrb[0].mxu0
  %10795 = vdwg.mxu0
  %v10796 = vld [vmem:[%s9] sm:$0x1]
  %v10798 = vlaneseq
  %v10799 = vshrl.u32 %v10798, 7
  %v10800 = vsub.s32 0, %v10799
  %v10801 = vrot.slane %v10796, %v10800
  %v10803 = vadd.f32 %v10791, %v10801
  %v10804 = vxor.u32 %v10803, 2147483648
  %v10805 = vmul.f32 %v10804, 1.442695
  %v10806 = vpow.pop %v10805
  %v10807 = vadd.f32 %v10806, 1.0
  %v10808 = vrcp.pop %v10807
  %v10809 = vmul.f32 1.0, %v10808
  %v10810 = vpack.c.bf16 %v10809, %v10809
  %10811 = vst [vmem:[%s10] sm:$0x1] %v10810
  // Predicated region
  $region42: #{_forward.1} parent=0 // pred_check
    _
  $region43: #{_forward.1} parent=0 // pred_check_branch
    %10813 = sbr.rel (0) target = $region45
  $region44: #{_forward.1} parent=0 // pred_region
    _
  $region45: #{_forward.1} parent=0 // pred_fallthru
    _
  // Predicated region
  $region46: #{_forward.1} parent=0 // pred_check
    _
  $region47: #{_forward.1} parent=0 // pred_check_branch
    %10815 = sbr.rel (0) target = $region49
  $region48: #{_forward.1} parent=0 // pred_region
    _
  $region49: #{_forward.1} parent=0 // pred_fallthru
    _

</llo_original>
